<compile_context>
chip_gen: v6e
topology: v6e:2x2x1
jax: 0.10.0
libtpu: 0.0.40
codegen_flags: <defaults>
</compile_context>

<pallas_src>
import functools

import jax
import jax.numpy as jnp
from jax import lax
from jax.experimental import pallas as pl
from jax.experimental.pallas import tpu as pltpu

KSIZE = 7
PAD = (KSIZE - 1) // 2
KVOL = KSIZE * KSIZE * KSIZE
BN_EPS = 1e-5

_LANE = 128     # TPU lane width
_CHUNK = 1024   # flat-lane chunk for the streaming (pool / gate) stages
_CGROUP = 8     # channels per dense sublane group


def _round_up(x, m):
    return (x + m - 1) // m * m


def _spatial_gate_kernel(w_ref, shift_ref, x_ref, o_ref,
                         pad_ref, pool_ref, gate3_ref, gate_ref,
                         *, C, D, H, W, WL):
    """One batch sample per grid step.

    w_ref     : (2*K^3,) f32 SMEM -- conv weights, BN scale & 1/C pre-folded,
                flat (c, kd, kh, kw) order.
    shift_ref : (1,)     f32 SMEM -- folded BN shift.
    x_ref     : (1, C, D*H*W)     -- lane-dense input block.
    o_ref     : (1, C, D*H*W)     -- lane-dense output block.
    pad_ref   : (2, D+6, H+6, WL) f32 -- zero-haloed conv input, WL 128-aligned.
    pool_ref  : (2, D*H*W) f32    -- flat channel-max / channel-sum planes.
    gate3_ref : (D, H, WL) f32    -- sigmoid gate in depth-plane (conv) layout.
    gate_ref  : (1, D*H*W) f32    -- sigmoid gate in the flat streaming layout.
    """
    Dp, Hp = D + 2 * PAD, H + 2 * PAD
    HW = H * W
    DHW = D * HW

    # Static channel groups (<= 8 sublanes each) and static flat-lane chunks.
    groups = [(g * _CGROUP, min(_CGROUP, C - g * _CGROUP))
              for g in range(pl.cdiv(C, _CGROUP))]
    n_full, tail = divmod(DHW, _CHUNK)
    chunks = [(j * _CHUNK, _CHUNK) for j in range(n_full)]
    if tail:
        chunks.append((n_full * _CHUNK, tail))

    # ------------------------------------------------------------------
    # 0) zero ONLY the halo of the padded conv buffer; the interior box
    #    [PAD:PAD+D, PAD:PAD+H, PAD:PAD+W] is fully overwritten below.
    # ------------------------------------------------------------------
    for ch in range(2):
        pad_ref[ch, 0:PAD, :, :] = jnp.zeros((PAD, Hp, WL), jnp.float32)
        pad_ref[ch, PAD + D:Dp, :, :] = jnp.zeros((PAD, Hp, WL), jnp.float32)
        pad_ref[ch, PAD:PAD + D, 0:PAD, :] = jnp.zeros((D, PAD, WL), jnp.float32)
        pad_ref[ch, PAD:PAD + D, PAD + H:Hp, :] = jnp.zeros((D, PAD, WL), jnp.float32)
        pad_ref[ch, PAD:PAD + D, PAD:PAD + H, 0:PAD] = (
            jnp.zeros((D, H, PAD), jnp.float32))
        pad_ref[ch, PAD:PAD + D, PAD:PAD + H, PAD + W:WL] = (
            jnp.zeros((D, H, WL - PAD - W), jnp.float32))

    # ------------------------------------------------------------------
    # 1) ChannelPool: dense (<=8 channel, chunk-lane) tiles; carries are one
    #    chunk wide (register resident) and initialised from channel group 0.
    # ------------------------------------------------------------------
    for l0, L in chunks:
        cs0, cl0 = groups[0]
        blk = x_ref[0, pl.ds(cs0, cl0), pl.ds(l0, L)].astype(jnp.float32)
        cmax = jnp.max(blk, axis=0)
        csum = jnp.sum(blk, axis=0)
        for cs, cl in groups[1:]:
            blk = x_ref[0, pl.ds(cs, cl), pl.ds(l0, L)].astype(jnp.float32)
            cmax = jnp.maximum(cmax, jnp.max(blk, axis=0))
            csum = csum + jnp.sum(blk, axis=0)
        pool_ref[0, pl.ds(l0, L)] = cmax
        pool_ref[1, pl.ds(l0, L)] = csum   # 1/C is folded into the conv weights

    # ------------------------------------------------------------------
    # 2) scatter the pooled planes into the interior of the padded buffer
    #    (tiny traffic: 2 planes, amortised over C channels).
    # ------------------------------------------------------------------
    for d in range(D):
        for h in range(H):
            off = (d * H + h) * W
            for ch in range(2):
                pad_ref[ch, PAD + d, PAD + h, pl.ds(PAD, W)] = (
                    pool_ref[ch, pl.ds(off, W)])

    # ------------------------------------------------------------------
    # 3) 7x7x7 conv (+ folded BN shift) -> sigmoid gate, one output depth
    #    plane per iteration.  Per (kd, channel) the slab is loaded once; the
    #    7 kw taps are <=6-lane pltpu.roll rotations hoisted OUTSIDE the kh
    #    loop; each kh tap is a static sublane-offset slice of the rolled
    #    slab.  All roll reads stay below lane W+6 <= WL, so the circular
    #    wrap never contaminates the consumed interior lanes [0, W).
    # ------------------------------------------------------------------
    def conv_depth_plane(d, carry):
        acc = jnp.zeros((H, WL), jnp.float32)
        for ch in range(2):
            def kd_body(kd, acc, _ch=ch):
                slab = pad_ref[_ch, d + kd, :, :]            # (Hp, WL), one load
                for kw in range(KSIZE):
                    rolled = slab if kw == 0 else pltpu.roll(slab, WL - kw, axis=1)
                    for kh in range(KSIZE):
                        widx = _ch * KVOL + (kd * KSIZE + kh) * KSIZE + kw
                        acc = acc + w_ref[widx] * rolled[kh:kh + H, :]
                return acc
            acc = lax.fori_loop(0, KSIZE, kd_body, acc)
        sig = jax.nn.sigmoid(acc + shift_ref[0])             # folded BN shift
        gate3_ref[pl.ds(d, 1), :, :] = sig[None, :, :]
        return carry

    lax.fori_loop(0, D, conv_depth_plane, 0)

    # repack the gate into the flat streaming layout (static offsets only).
    for d in range(D):
        for h in range(H):
            gate_ref[0, pl.ds((d * H + h) * W, W)] = gate3_ref[d, h, 0:W]

    # ------------------------------------------------------------------
    # 4) gating: dense streaming multiply, channel groups statically unrolled.
    # ------------------------------------------------------------------
    for l0, L in chunks:
        g = gate_ref[0, pl.ds(l0, L)]                        # (L,) f32
        for cs, cl in groups:
            blk = x_ref[0, pl.ds(cs, cl), pl.ds(l0, L)].astype(jnp.float32)
            o_ref[0, pl.ds(cs, cl), pl.ds(l0, L)] = (blk * g).astype(o_ref.dtype)


def spatial_gate(x, conv_weight, bn_gamma, bn_beta, bn_mean, bn_var):
    """x: (N, C, D, H, W). conv_weight: (1, 2, K, K, K) f32 (PyTorch OIDHW)."""
    N, C, D, H, W = x.shape
    DHW = D * H * W
    WL = max(_LANE, _round_up(W + 2 * PAD, _LANE))
    Dp, Hp = D + 2 * PAD, H + 2 * PAD

    # Fold inference-mode BN scale and the channel-mean 1/C into the conv
    # weights; only a scalar shift remains for the kernel.
    bn_scale = (jnp.asarray(bn_gamma, jnp.float32).reshape(())
                / jnp.sqrt(jnp.asarray(bn_var, jnp.float32).reshape(()) + BN_EPS))
    bn_shift = (jnp.asarray(bn_beta, jnp.float32).reshape(())
                - jnp.asarray(bn_mean, jnp.float32).reshape(()) * bn_scale)
    w = conv_weight[0].astype(jnp.float32) * bn_scale                   # (2, K, K, K)
    w = w * jnp.array([1.0, 1.0 / C], jnp.float32).reshape(2, 1, 1, 1)  # mean folding
    w_flat = w.reshape(-1)                                              # (2*K^3,)
    shift = bn_shift.reshape(1)

    # Fully lane-dense streaming layout (free trailing-dim merge).
    x2 = x.reshape(N, C, DHW)

    kernel = functools.partial(_spatial_gate_kernel, C=C, D=D, H=H, W=W, WL=WL)

    # Per-generation VMEM budget (no hard 64 MiB clamp).
    try:
        cap = int(getattr(pltpu.get_tpu_info(), "vmem_capacity_bytes", 0)) or (128 << 20)
    except Exception:
        cap = 128 << 20
    elt = jnp.dtype(x.dtype).itemsize
    block_bytes = C * DHW * elt
    scratch_bytes = (2 * Dp * Hp * WL + 2 * DHW + D * H * WL + DHW) * 4
    vmem_needed = 4 * block_bytes + scratch_bytes + (4 << 20)
    vmem_limit = int(min(max(vmem_needed, 32 << 20), int(cap * 0.85)))

    grid_spec = pltpu.PrefetchScalarGridSpec(
        num_scalar_prefetch=0,
        grid=(N,),
        in_specs=[
            pl.BlockSpec(memory_space=pltpu.MemorySpace.SMEM),   # folded conv weights
            pl.BlockSpec(memory_space=pltpu.MemorySpace.SMEM),   # folded BN shift
            pl.BlockSpec((1, C, DHW), lambda n: (n, 0, 0)),      # x (one sample/step)
        ],
        out_specs=pl.BlockSpec((1, C, DHW), lambda n: (n, 0, 0)),
        scratch_shapes=[
            pltpu.VMEM((2, Dp, Hp, WL), jnp.float32),            # zero-haloed conv input
            pltpu.VMEM((2, DHW), jnp.float32),                   # flat pooled planes
            pltpu.VMEM((D, H, WL), jnp.float32),                 # gate, conv layout
            pltpu.VMEM((1, DHW), jnp.float32),                   # gate, flat layout
        ],
    )

    out2 = pl.pallas_call(
        kernel,
        out_shape=jax.ShapeDtypeStruct((N, C, DHW), x.dtype),
        grid_spec=grid_spec,
        compiler_params=pltpu.CompilerParams(
            dimension_semantics=("parallel",),   # samples independent
            vmem_limit_bytes=vmem_limit,
        ),
    )(w_flat, shift, x2)

    return out2.reshape(N, C, D, H, W)


def spatial_gate_reference(x, conv_weight, bn_gamma, bn_beta, bn_mean, bn_var):
    """Pure-JAX reference matching the PyTorch forward (inference-mode BN)."""
    cmax = jnp.max(x, axis=1, keepdims=True)
    cmean = jnp.mean(x, axis=1, keepdims=True)
    xc = jnp.concatenate([cmax, cmean], axis=1)            # (N, 2, D, H, W)
    y = lax.conv_general_dilated(
        xc, conv_weight, window_strides=(1, 1, 1),
        padding=[(PAD, PAD)] * 3,
        dimension_numbers=("NCDHW", "OIDHW", "NCDHW"),
        precision=lax.Precision.HIGHEST)
    y = (y - bn_mean) / jnp.sqrt(bn_var + BN_EPS) * bn_gamma + bn_beta
    return x * jax.nn.sigmoid(y)


if __name__ == "__main__":
    key = jax.random.PRNGKey(0)
    k_x, k_w = jax.random.split(key)

    # Small shapes; C=12 exercises both full and partial channel groups,
    # D*H*W=1280 exercises both a full 1024-lane chunk and a tail chunk.
    N, C, D, H, W = 2, 12, 8, 8, 20
    x = jax.random.normal(k_x, (N, C, D, H, W), dtype=jnp.float32)

    # Conv3d(2 -> 1, kernel_size=7, bias=False) weight, PyTorch OIDHW layout.
    conv_weight = 0.05 * jax.random.normal(
        k_w, (1, 2, KSIZE, KSIZE, KSIZE), dtype=jnp.float32)

    # Deterministic BatchNorm3d(1) parameters / running stats.
    bn_gamma = jnp.array(0.9, dtype=jnp.float32)
    bn_beta = jnp.array(0.1, dtype=jnp.float32)
    bn_mean = jnp.array(0.05, dtype=jnp.float32)
    bn_var = jnp.array(1.2, dtype=jnp.float32)

    out = jax.block_until_ready(
        spatial_gate(x, conv_weight, bn_gamma, bn_beta, bn_mean, bn_var))
    ref = jax.block_until_ready(
        spatial_gate_reference(x, conv_weight, bn_gamma, bn_beta, bn_mean, bn_var))

    assert out.shape == x.shape and out.dtype == x.dtype
    max_err = jnp.max(jnp.abs(out - ref))
    assert jnp.allclose(out, ref, atol=1e-4, rtol=1e-4), f"max abs err = {max_err}"

    print("KERNEL_OK")
</pallas_src>

<mosaic_0001>
module attributes {stable_mosaic.version = 11 : i64} {
  func.func @_spatial_gate_kernel(%arg0: i32, %arg1: memref<686xf32, #tpu.memory_space<smem>>, %arg2: memref<1xf32, #tpu.memory_space<smem>>, %arg3: memref<1x12x1280xf32, #tpu.memory_space<vmem>>, %arg4: memref<1x12x1280xf32, #tpu.memory_space<vmem>>, %arg5: memref<2x14x14x128xf32, #tpu.memory_space<vmem>>, %arg6: memref<2x1280xf32, #tpu.memory_space<vmem>>, %arg7: memref<8x8x128xf32, #tpu.memory_space<vmem>>, %arg8: memref<1x1280xf32, #tpu.memory_space<vmem>>) attributes {dimension_semantics = [#tpu.dimension_semantics<parallel>], iteration_bounds = array<i64: 2>, scalar_prefetch = 0 : i64, scratch_operands = 4 : i64, tpu.core_type = #tpu.core_type<tc>, window_params = [{transform_indices = @transform_0, window_bounds = array<i64: 686>}, {transform_indices = @transform_1, window_bounds = array<i64: 1>}, {transform_indices = @transform_2, window_bounds = array<i64: 1, 12, 1280>}, {transform_indices = @transform_3, window_bounds = array<i64: 1, 12, 1280>}]} {
    %cst = arith.constant 0.000000e+00 : f32
    %0 = vector.broadcast %cst : f32 to vector<3x14x128xf32>
    %c0 = arith.constant 0 : index
    %c0_0 = arith.constant 0 : index
    %c0_1 = arith.constant 0 : index
    %c0_2 = arith.constant 0 : index
    %1 = vector.load %arg5[%c0, %c0_0, %c0_1, %c0_2] : memref<2x14x14x128xf32, #tpu.memory_space<vmem>>, vector<1x3x14x128xf32>
    %2 = vector.shape_cast %1 : vector<1x3x14x128xf32> to vector<3x14x128xf32>
    %3 = vector.shape_cast %0 : vector<3x14x128xf32> to vector<1x3x14x128xf32>
    tpu.vector_store %arg5[%c0, %c0_0, %c0_1, %c0_2], %3 {strides = array<i32>} : memref<2x14x14x128xf32, #tpu.memory_space<vmem>>, vector<1x3x14x128xf32>,
    %cst_3 = arith.constant 0.000000e+00 : f32
    %4 = vector.broadcast %cst_3 : f32 to vector<3x14x128xf32>
    %c0_4 = arith.constant 0 : index
    %c11 = arith.constant 11 : index
    %c0_5 = arith.constant 0 : index
    %c0_6 = arith.constant 0 : index
    %5 = vector.load %arg5[%c0_4, %c11, %c0_5, %c0_6] : memref<2x14x14x128xf32, #tpu.memory_space<vmem>>, vector<1x3x14x128xf32>
    %6 = vector.shape_cast %5 : vector<1x3x14x128xf32> to vector<3x14x128xf32>
    %7 = vector.shape_cast %4 : vector<3x14x128xf32> to vector<1x3x14x128xf32>
    tpu.vector_store %arg5[%c0_4, %c11, %c0_5, %c0_6], %7 {strides = array<i32>} : memref<2x14x14x128xf32, #tpu.memory_space<vmem>>, vector<1x3x14x128xf32>,
    %cst_7 = arith.constant 0.000000e+00 : f32
    %8 = vector.broadcast %cst_7 : f32 to vector<8x3x128xf32>
    %c0_8 = arith.constant 0 : index
    %c3 = arith.constant 3 : index
    %c0_9 = arith.constant 0 : index
    %c0_10 = arith.constant 0 : index
    %9 = vector.load %arg5[%c0_8, %c3, %c0_9, %c0_10] : memref<2x14x14x128xf32, #tpu.memory_space<vmem>>, vector<1x8x3x128xf32>
    %10 = vector.shape_cast %9 : vector<1x8x3x128xf32> to vector<8x3x128xf32>
    %11 = vector.shape_cast %8 : vector<8x3x128xf32> to vector<1x8x3x128xf32>
    tpu.vector_store %arg5[%c0_8, %c3, %c0_9, %c0_10], %11 {strides = array<i32>} : memref<2x14x14x128xf32, #tpu.memory_space<vmem>>, vector<1x8x3x128xf32>,
    %cst_11 = arith.constant 0.000000e+00 : f32
    %12 = vector.broadcast %cst_11 : f32 to vector<8x3x128xf32>
    %c0_12 = arith.constant 0 : index
    %c3_13 = arith.constant 3 : index
    %c11_14 = arith.constant 11 : index
    %c0_15 = arith.constant 0 : index
    %13 = vector.load %arg5[%c0_12, %c3_13, %c11_14, %c0_15] : memref<2x14x14x128xf32, #tpu.memory_space<vmem>>, vector<1x8x3x128xf32>
    %14 = vector.shape_cast %13 : vector<1x8x3x128xf32> to vector<8x3x128xf32>
    %15 = vector.shape_cast %12 : vector<8x3x128xf32> to vector<1x8x3x128xf32>
    tpu.vector_store %arg5[%c0_12, %c3_13, %c11_14, %c0_15], %15 {strides = array<i32>} : memref<2x14x14x128xf32, #tpu.memory_space<vmem>>, vector<1x8x3x128xf32>,
    %cst_16 = arith.constant 0.000000e+00 : f32
    %16 = vector.broadcast %cst_16 : f32 to vector<8x8x3xf32>
    %c0_17 = arith.constant 0 : index
    %c3_18 = arith.constant 3 : index
    %c3_19 = arith.constant 3 : index
    %c0_20 = arith.constant 0 : index
    %17 = vector.load %arg5[%c0_17, %c3_18, %c3_19, %c0_20] : memref<2x14x14x128xf32, #tpu.memory_space<vmem>>, vector<1x8x8x3xf32>
    %18 = vector.shape_cast %17 : vector<1x8x8x3xf32> to vector<8x8x3xf32>
    %19 = vector.shape_cast %16 : vector<8x8x3xf32> to vector<1x8x8x3xf32>
    tpu.vector_store %arg5[%c0_17, %c3_18, %c3_19, %c0_20], %19 {strides = array<i32>} : memref<2x14x14x128xf32, #tpu.memory_space<vmem>>, vector<1x8x8x3xf32>,
    %cst_21 = arith.constant 0.000000e+00 : f32
    %20 = vector.broadcast %cst_21 : f32 to vector<8x8x105xf32>
    %c0_22 = arith.constant 0 : index
    %c3_23 = arith.constant 3 : index
    %c3_24 = arith.constant 3 : index
    %c23 = arith.constant 23 : index
    %21 = vector.load %arg5[%c0_22, %c3_23, %c3_24, %c23] : memref<2x14x14x128xf32, #tpu.memory_space<vmem>>, vector<1x8x8x105xf32>
    %22 = vector.shape_cast %21 : vector<1x8x8x105xf32> to vector<8x8x105xf32>
    %23 = vector.shape_cast %20 : vector<8x8x105xf32> to vector<1x8x8x105xf32>
    tpu.vector_store %arg5[%c0_22, %c3_23, %c3_24, %c23], %23 {strides = array<i32>} : memref<2x14x14x128xf32, #tpu.memory_space<vmem>>, vector<1x8x8x105xf32>,
    %cst_25 = arith.constant 0.000000e+00 : f32
    %24 = vector.broadcast %cst_25 : f32 to vector<3x14x128xf32>
    %c1 = arith.constant 1 : index
    %c0_26 = arith.constant 0 : index
    %c0_27 = arith.constant 0 : index
    %c0_28 = arith.constant 0 : index
    %25 = vector.load %arg5[%c1, %c0_26, %c0_27, %c0_28] : memref<2x14x14x128xf32, #tpu.memory_space<vmem>>, vector<1x3x14x128xf32>
    %26 = vector.shape_cast %25 : vector<1x3x14x128xf32> to vector<3x14x128xf32>
    %27 = vector.shape_cast %24 : vector<3x14x128xf32> to vector<1x3x14x128xf32>
    tpu.vector_store %arg5[%c1, %c0_26, %c0_27, %c0_28], %27 {strides = array<i32>} : memref<2x14x14x128xf32, #tpu.memory_space<vmem>>, vector<1x3x14x128xf32>,
    %cst_29 = arith.constant 0.000000e+00 : f32
    %28 = vector.broadcast %cst_29 : f32 to vector<3x14x128xf32>
    %c1_30 = arith.constant 1 : index
    %c11_31 = arith.constant 11 : index
    %c0_32 = arith.constant 0 : index
    %c0_33 = arith.constant 0 : index
    %29 = vector.load %arg5[%c1_30, %c11_31, %c0_32, %c0_33] : memref<2x14x14x128xf32, #tpu.memory_space<vmem>>, vector<1x3x14x128xf32>
    %30 = vector.shape_cast %29 : vector<1x3x14x128xf32> to vector<3x14x128xf32>
    %31 = vector.shape_cast %28 : vector<3x14x128xf32> to vector<1x3x14x128xf32>
    tpu.vector_store %arg5[%c1_30, %c11_31, %c0_32, %c0_33], %31 {strides = array<i32>} : memref<2x14x14x128xf32, #tpu.memory_space<vmem>>, vector<1x3x14x128xf32>,
    %cst_34 = arith.constant 0.000000e+00 : f32
    %32 = vector.broadcast %cst_34 : f32 to vector<8x3x128xf32>
    %c1_35 = arith.constant 1 : index
    %c3_36 = arith.constant 3 : index
    %c0_37 = arith.constant 0 : index
    %c0_38 = arith.constant 0 : index
    %33 = vector.load %arg5[%c1_35, %c3_36, %c0_37, %c0_38] : memref<2x14x14x128xf32, #tpu.memory_space<vmem>>, vector<1x8x3x128xf32>
    %34 = vector.shape_cast %33 : vector<1x8x3x128xf32> to vector<8x3x128xf32>
    %35 = vector.shape_cast %32 : vector<8x3x128xf32> to vector<1x8x3x128xf32>
    tpu.vector_store %arg5[%c1_35, %c3_36, %c0_37, %c0_38], %35 {strides = array<i32>} : memref<2x14x14x128xf32, #tpu.memory_space<vmem>>, vector<1x8x3x128xf32>,
    %cst_39 = arith.constant 0.000000e+00 : f32
    %36 = vector.broadcast %cst_39 : f32 to vector<8x3x128xf32>
    %c1_40 = arith.constant 1 : index
    %c3_41 = arith.constant 3 : index
    %c11_42 = arith.constant 11 : index
    %c0_43 = arith.constant 0 : index
    %37 = vector.load %arg5[%c1_40, %c3_41, %c11_42, %c0_43] : memref<2x14x14x128xf32, #tpu.memory_space<vmem>>, vector<1x8x3x128xf32>
    %38 = vector.shape_cast %37 : vector<1x8x3x128xf32> to vector<8x3x128xf32>
    %39 = vector.shape_cast %36 : vector<8x3x128xf32> to vector<1x8x3x128xf32>
    tpu.vector_store %arg5[%c1_40, %c3_41, %c11_42, %c0_43], %39 {strides = array<i32>} : memref<2x14x14x128xf32, #tpu.memory_space<vmem>>, vector<1x8x3x128xf32>,
    %cst_44 = arith.constant 0.000000e+00 : f32
    %40 = vector.broadcast %cst_44 : f32 to vector<8x8x3xf32>
    %c1_45 = arith.constant 1 : index
    %c3_46 = arith.constant 3 : index
    %c3_47 = arith.constant 3 : index
    %c0_48 = arith.constant 0 : index
    %41 = vector.load %arg5[%c1_45, %c3_46, %c3_47, %c0_48] : memref<2x14x14x128xf32, #tpu.memory_space<vmem>>, vector<1x8x8x3xf32>
    %42 = vector.shape_cast %41 : vector<1x8x8x3xf32> to vector<8x8x3xf32>
    %43 = vector.shape_cast %40 : vector<8x8x3xf32> to vector<1x8x8x3xf32>
    tpu.vector_store %arg5[%c1_45, %c3_46, %c3_47, %c0_48], %43 {strides = array<i32>} : memref<2x14x14x128xf32, #tpu.memory_space<vmem>>, vector<1x8x8x3xf32>,
    %cst_49 = arith.constant 0.000000e+00 : f32
    %44 = vector.broadcast %cst_49 : f32 to vector<8x8x105xf32>
    %c1_50 = arith.constant 1 : index
    %c3_51 = arith.constant 3 : index
    %c3_52 = arith.constant 3 : index
    %c23_53 = arith.constant 23 : index
    %45 = vector.load %arg5[%c1_50, %c3_51, %c3_52, %c23_53] : memref<2x14x14x128xf32, #tpu.memory_space<vmem>>, vector<1x8x8x105xf32>
    %46 = vector.shape_cast %45 : vector<1x8x8x105xf32> to vector<8x8x105xf32>
    %47 = vector.shape_cast %44 : vector<8x8x105xf32> to vector<1x8x8x105xf32>
    tpu.vector_store %arg5[%c1_50, %c3_51, %c3_52, %c23_53], %47 {strides = array<i32>} : memref<2x14x14x128xf32, #tpu.memory_space<vmem>>, vector<1x8x8x105xf32>,
    %c0_54 = arith.constant 0 : index
    %c0_55 = arith.constant 0 : index
    %c0_56 = arith.constant 0 : index
    %48 = vector.load %arg3[%c0_54, %c0_55, %c0_56] : memref<1x12x1280xf32, #tpu.memory_space<vmem>>, vector<1x8x1024xf32>
    %49 = vector.shape_cast %48 : vector<1x8x1024xf32> to vector<8x1024xf32>
    %cst_57 = arith.constant dense<0xFF800000> : vector<1024xf32>
    %50 = vector.multi_reduction <maximumf>, %49, %cst_57 [0] : vector<8x1024xf32> to vector<1024xf32>
    %cst_58 = arith.constant dense<0.000000e+00> : vector<1024xf32>
    %51 = vector.multi_reduction <add>, %49, %cst_58 [0] : vector<8x1024xf32> to vector<1024xf32>
    %c0_59 = arith.constant 0 : index
    %c8 = arith.constant 8 : index
    %c0_60 = arith.constant 0 : index
    %52 = vector.load %arg3[%c0_59, %c8, %c0_60] : memref<1x12x1280xf32, #tpu.memory_space<vmem>>, vector<1x4x1024xf32>
    %53 = vector.shape_cast %52 : vector<1x4x1024xf32> to vector<4x1024xf32>
    %cst_61 = arith.constant dense<0xFF800000> : vector<1024xf32>
    %54 = vector.multi_reduction <maximumf>, %53, %cst_61 [0] : vector<4x1024xf32> to vector<1024xf32>
    %55 = arith.maximumf %50, %54 : vector<1024xf32>
    %cst_62 = arith.constant dense<0.000000e+00> : vector<1024xf32>
    %56 = vector.multi_reduction <add>, %53, %cst_62 [0] : vector<4x1024xf32> to vector<1024xf32>
    %57 = arith.addf %51, %56 : vector<1024xf32>
    %c0_63 = arith.constant 0 : index
    %c0_64 = arith.constant 0 : index
    %58 = vector.load %arg6[%c0_63, %c0_64] : memref<2x1280xf32, #tpu.memory_space<vmem>>, vector<1x1024xf32>
    %59 = vector.shape_cast %58 : vector<1x1024xf32> to vector<1024xf32>
    %60 = vector.shape_cast %55 : vector<1024xf32> to vector<1x1024xf32>
    tpu.vector_store %arg6[%c0_63, %c0_64], %60 {strides = array<i32>} : memref<2x1280xf32, #tpu.memory_space<vmem>>, vector<1x1024xf32>,
    %c1_65 = arith.constant 1 : index
    %c0_66 = arith.constant 0 : index
    %61 = vector.load %arg6[%c1_65, %c0_66] : memref<2x1280xf32, #tpu.memory_space<vmem>>, vector<1x1024xf32>
    %62 = vector.shape_cast %61 : vector<1x1024xf32> to vector<1024xf32>
    %63 = vector.shape_cast %57 : vector<1024xf32> to vector<1x1024xf32>
    tpu.vector_store %arg6[%c1_65, %c0_66], %63 {strides = array<i32>} : memref<2x1280xf32, #tpu.memory_space<vmem>>, vector<1x1024xf32>,
    %c0_67 = arith.constant 0 : index
    %c0_68 = arith.constant 0 : index
    %c1024 = arith.constant 1024 : index
    %64 = vector.load %arg3[%c0_67, %c0_68, %c1024] : memref<1x12x1280xf32, #tpu.memory_space<vmem>>, vector<1x8x256xf32>
    %65 = vector.shape_cast %64 : vector<1x8x256xf32> to vector<8x256xf32>
    %cst_69 = arith.constant dense<0xFF800000> : vector<256xf32>
    %66 = vector.multi_reduction <maximumf>, %65, %cst_69 [0] : vector<8x256xf32> to vector<256xf32>
    %cst_70 = arith.constant dense<0.000000e+00> : vector<256xf32>
    %67 = vector.multi_reduction <add>, %65, %cst_70 [0] : vector<8x256xf32> to vector<256xf32>
    %c0_71 = arith.constant 0 : index
    %c8_72 = arith.constant 8 : index
    %c1024_73 = arith.constant 1024 : index
    %68 = vector.load %arg3[%c0_71, %c8_72, %c1024_73] : memref<1x12x1280xf32, #tpu.memory_space<vmem>>, vector<1x4x256xf32>
    %69 = vector.shape_cast %68 : vector<1x4x256xf32> to vector<4x256xf32>
    %cst_74 = arith.constant dense<0xFF800000> : vector<256xf32>
    %70 = vector.multi_reduction <maximumf>, %69, %cst_74 [0] : vector<4x256xf32> to vector<256xf32>
    %71 = arith.maximumf %66, %70 : vector<256xf32>
    %cst_75 = arith.constant dense<0.000000e+00> : vector<256xf32>
    %72 = vector.multi_reduction <add>, %69, %cst_75 [0] : vector<4x256xf32> to vector<256xf32>
    %73 = arith.addf %67, %72 : vector<256xf32>
    %c0_76 = arith.constant 0 : index
    %c1024_77 = arith.constant 1024 : index
    %74 = vector.load %arg6[%c0_76, %c1024_77] : memref<2x1280xf32, #tpu.memory_space<vmem>>, vector<1x256xf32>
    %75 = vector.shape_cast %74 : vector<1x256xf32> to vector<256xf32>
    %76 = vector.shape_cast %71 : vector<256xf32> to vector<1x256xf32>
    tpu.vector_store %arg6[%c0_76, %c1024_77], %76 {strides = array<i32>} : memref<2x1280xf32, #tpu.memory_space<vmem>>, vector<1x256xf32>,
    %c1_78 = arith.constant 1 : index
    %c1024_79 = arith.constant 1024 : index
    %77 = vector.load %arg6[%c1_78, %c1024_79] : memref<2x1280xf32, #tpu.memory_space<vmem>>, vector<1x256xf32>
    %78 = vector.shape_cast %77 : vector<1x256xf32> to vector<256xf32>
    %79 = vector.shape_cast %73 : vector<256xf32> to vector<1x256xf32>
    tpu.vector_store %arg6[%c1_78, %c1024_79], %79 {strides = array<i32>} : memref<2x1280xf32, #tpu.memory_space<vmem>>, vector<1x256xf32>,
    %c0_80 = arith.constant 0 : index
    %c0_81 = arith.constant 0 : index
    %80 = vector.load %arg6[%c0_80, %c0_81] : memref<2x1280xf32, #tpu.memory_space<vmem>>, vector<1x20xf32>
    %81 = vector.shape_cast %80 : vector<1x20xf32> to vector<20xf32>
    %c0_82 = arith.constant 0 : index
    %c3_83 = arith.constant 3 : index
    %c3_84 = arith.constant 3 : index
    %c3_85 = arith.constant 3 : index
    %82 = vector.load %arg5[%c0_82, %c3_83, %c3_84, %c3_85] : memref<2x14x14x128xf32, #tpu.memory_space<vmem>>, vector<1x1x1x20xf32>
    %83 = vector.shape_cast %82 : vector<1x1x1x20xf32> to vector<20xf32>
    %84 = vector.shape_cast %81 : vector<20xf32> to vector<1x1x1x20xf32>
    tpu.vector_store %arg5[%c0_82, %c3_83, %c3_84, %c3_85], %84 {strides = array<i32>} : memref<2x14x14x128xf32, #tpu.memory_space<vmem>>, vector<1x1x1x20xf32>,
    %c1_86 = arith.constant 1 : index
    %c0_87 = arith.constant 0 : index
    %85 = vector.load %arg6[%c1_86, %c0_87] : memref<2x1280xf32, #tpu.memory_space<vmem>>, vector<1x20xf32>
    %86 = vector.shape_cast %85 : vector<1x20xf32> to vector<20xf32>
    %c1_88 = arith.constant 1 : index
    %c3_89 = arith.constant 3 : index
    %c3_90 = arith.constant 3 : index
    %c3_91 = arith.constant 3 : index
    %87 = vector.load %arg5[%c1_88, %c3_89, %c3_90, %c3_91] : memref<2x14x14x128xf32, #tpu.memory_space<vmem>>, vector<1x1x1x20xf32>
    %88 = vector.shape_cast %87 : vector<1x1x1x20xf32> to vector<20xf32>
    %89 = vector.shape_cast %86 : vector<20xf32> to vector<1x1x1x20xf32>
    tpu.vector_store %arg5[%c1_88, %c3_89, %c3_90, %c3_91], %89 {strides = array<i32>} : memref<2x14x14x128xf32, #tpu.memory_space<vmem>>, vector<1x1x1x20xf32>,
    %c0_92 = arith.constant 0 : index
    %c20 = arith.constant 20 : index
    %90 = vector.load %arg6[%c0_92, %c20] : memref<2x1280xf32, #tpu.memory_space<vmem>>, vector<1x20xf32>
    %91 = vector.shape_cast %90 : vector<1x20xf32> to vector<20xf32>
    %c0_93 = arith.constant 0 : index
    %c3_94 = arith.constant 3 : index
    %c4 = arith.constant 4 : index
    %c3_95 = arith.constant 3 : index
    %92 = vector.load %arg5[%c0_93, %c3_94, %c4, %c3_95] : memref<2x14x14x128xf32, #tpu.memory_space<vmem>>, vector<1x1x1x20xf32>
    %93 = vector.shape_cast %92 : vector<1x1x1x20xf32> to vector<20xf32>
    %94 = vector.shape_cast %91 : vector<20xf32> to vector<1x1x1x20xf32>
    tpu.vector_store %arg5[%c0_93, %c3_94, %c4, %c3_95], %94 {strides = array<i32>} : memref<2x14x14x128xf32, #tpu.memory_space<vmem>>, vector<1x1x1x20xf32>,
    %c1_96 = arith.constant 1 : index
    %c20_97 = arith.constant 20 : index
    %95 = vector.load %arg6[%c1_96, %c20_97] : memref<2x1280xf32, #tpu.memory_space<vmem>>, vector<1x20xf32>
    %96 = vector.shape_cast %95 : vector<1x20xf32> to vector<20xf32>
    %c1_98 = arith.constant 1 : index
    %c3_99 = arith.constant 3 : index
    %c4_100 = arith.constant 4 : index
    %c3_101 = arith.constant 3 : index
    %97 = vector.load %arg5[%c1_98, %c3_99, %c4_100, %c3_101] : memref<2x14x14x128xf32, #tpu.memory_space<vmem>>, vector<1x1x1x20xf32>
    %98 = vector.shape_cast %97 : vector<1x1x1x20xf32> to vector<20xf32>
    %99 = vector.shape_cast %96 : vector<20xf32> to vector<1x1x1x20xf32>
    tpu.vector_store %arg5[%c1_98, %c3_99, %c4_100, %c3_101], %99 {strides = array<i32>} : memref<2x14x14x128xf32, #tpu.memory_space<vmem>>, vector<1x1x1x20xf32>,
    %c0_102 = arith.constant 0 : index
    %c40 = arith.constant 40 : index
    %100 = vector.load %arg6[%c0_102, %c40] : memref<2x1280xf32, #tpu.memory_space<vmem>>, vector<1x20xf32>
    %101 = vector.shape_cast %100 : vector<1x20xf32> to vector<20xf32>
    %c0_103 = arith.constant 0 : index
    %c3_104 = arith.constant 3 : index
    %c5 = arith.constant 5 : index
    %c3_105 = arith.constant 3 : index
    %102 = vector.load %arg5[%c0_103, %c3_104, %c5, %c3_105] : memref<2x14x14x128xf32, #tpu.memory_space<vmem>>, vector<1x1x1x20xf32>
    %103 = vector.shape_cast %102 : vector<1x1x1x20xf32> to vector<20xf32>
    %104 = vector.shape_cast %101 : vector<20xf32> to vector<1x1x1x20xf32>
    tpu.vector_store %arg5[%c0_103, %c3_104, %c5, %c3_105], %104 {strides = array<i32>} : memref<2x14x14x128xf32, #tpu.memory_space<vmem>>, vector<1x1x1x20xf32>,
    %c1_106 = arith.constant 1 : index
    %c40_107 = arith.constant 40 : index
    %105 = vector.load %arg6[%c1_106, %c40_107] : memref<2x1280xf32, #tpu.memory_space<vmem>>, vector<1x20xf32>
    %106 = vector.shape_cast %105 : vector<1x20xf32> to vector<20xf32>
    %c1_108 = arith.constant 1 : index
    %c3_109 = arith.constant 3 : index
    %c5_110 = arith.constant 5 : index
    %c3_111 = arith.constant 3 : index
    %107 = vector.load %arg5[%c1_108, %c3_109, %c5_110, %c3_111] : memref<2x14x14x128xf32, #tpu.memory_space<vmem>>, vector<1x1x1x20xf32>
    %108 = vector.shape_cast %107 : vector<1x1x1x20xf32> to vector<20xf32>
    %109 = vector.shape_cast %106 : vector<20xf32> to vector<1x1x1x20xf32>
    tpu.vector_store %arg5[%c1_108, %c3_109, %c5_110, %c3_111], %109 {strides = array<i32>} : memref<2x14x14x128xf32, #tpu.memory_space<vmem>>, vector<1x1x1x20xf32>,
    %c0_112 = arith.constant 0 : index
    %c60 = arith.constant 60 : index
    %110 = vector.load %arg6[%c0_112, %c60] : memref<2x1280xf32, #tpu.memory_space<vmem>>, vector<1x20xf32>
    %111 = vector.shape_cast %110 : vector<1x20xf32> to vector<20xf32>
    %c0_113 = arith.constant 0 : index
    %c3_114 = arith.constant 3 : index
    %c6 = arith.constant 6 : index
    %c3_115 = arith.constant 3 : index
    %112 = vector.load %arg5[%c0_113, %c3_114, %c6, %c3_115] : memref<2x14x14x128xf32, #tpu.memory_space<vmem>>, vector<1x1x1x20xf32>
    %113 = vector.shape_cast %112 : vector<1x1x1x20xf32> to vector<20xf32>
    %114 = vector.shape_cast %111 : vector<20xf32> to vector<1x1x1x20xf32>
    tpu.vector_store %arg5[%c0_113, %c3_114, %c6, %c3_115], %114 {strides = array<i32>} : memref<2x14x14x128xf32, #tpu.memory_space<vmem>>, vector<1x1x1x20xf32>,
    %c1_116 = arith.constant 1 : index
    %c60_117 = arith.constant 60 : index
    %115 = vector.load %arg6[%c1_116, %c60_117] : memref<2x1280xf32, #tpu.memory_space<vmem>>, vector<1x20xf32>
    %116 = vector.shape_cast %115 : vector<1x20xf32> to vector<20xf32>
    %c1_118 = arith.constant 1 : index
    %c3_119 = arith.constant 3 : index
    %c6_120 = arith.constant 6 : index
    %c3_121 = arith.constant 3 : index
    %117 = vector.load %arg5[%c1_118, %c3_119, %c6_120, %c3_121] : memref<2x14x14x128xf32, #tpu.memory_space<vmem>>, vector<1x1x1x20xf32>
    %118 = vector.shape_cast %117 : vector<1x1x1x20xf32> to vector<20xf32>
    %119 = vector.shape_cast %116 : vector<20xf32> to vector<1x1x1x20xf32>
    tpu.vector_store %arg5[%c1_118, %c3_119, %c6_120, %c3_121], %119 {strides = array<i32>} : memref<2x14x14x128xf32, #tpu.memory_space<vmem>>, vector<1x1x1x20xf32>,
    %c0_122 = arith.constant 0 : index
    %c80 = arith.constant 80 : index
    %120 = vector.load %arg6[%c0_122, %c80] : memref<2x1280xf32, #tpu.memory_space<vmem>>, vector<1x20xf32>
    %121 = vector.shape_cast %120 : vector<1x20xf32> to vector<20xf32>
    %c0_123 = arith.constant 0 : index
    %c3_124 = arith.constant 3 : index
    %c7 = arith.constant 7 : index
    %c3_125 = arith.constant 3 : index
    %122 = vector.load %arg5[%c0_123, %c3_124, %c7, %c3_125] : memref<2x14x14x128xf32, #tpu.memory_space<vmem>>, vector<1x1x1x20xf32>
    %123 = vector.shape_cast %122 : vector<1x1x1x20xf32> to vector<20xf32>
    %124 = vector.shape_cast %121 : vector<20xf32> to vector<1x1x1x20xf32>
    tpu.vector_store %arg5[%c0_123, %c3_124, %c7, %c3_125], %124 {strides = array<i32>} : memref<2x14x14x128xf32, #tpu.memory_space<vmem>>, vector<1x1x1x20xf32>,
    %c1_126 = arith.constant 1 : index
    %c80_127 = arith.constant 80 : index
    %125 = vector.load %arg6[%c1_126, %c80_127] : memref<2x1280xf32, #tpu.memory_space<vmem>>, vector<1x20xf32>
    %126 = vector.shape_cast %125 : vector<1x20xf32> to vector<20xf32>
    %c1_128 = arith.constant 1 : index
    %c3_129 = arith.constant 3 : index
    %c7_130 = arith.constant 7 : index
    %c3_131 = arith.constant 3 : index
    %127 = vector.load %arg5[%c1_128, %c3_129, %c7_130, %c3_131] : memref<2x14x14x128xf32, #tpu.memory_space<vmem>>, vector<1x1x1x20xf32>
    %128 = vector.shape_cast %127 : vector<1x1x1x20xf32> to vector<20xf32>
    %129 = vector.shape_cast %126 : vector<20xf32> to vector<1x1x1x20xf32>
    tpu.vector_store %arg5[%c1_128, %c3_129, %c7_130, %c3_131], %129 {strides = array<i32>} : memref<2x14x14x128xf32, #tpu.memory_space<vmem>>, vector<1x1x1x20xf32>,
    %c0_132 = arith.constant 0 : index
    %c100 = arith.constant 100 : index
    %130 = vector.load %arg6[%c0_132, %c100] : memref<2x1280xf32, #tpu.memory_space<vmem>>, vector<1x20xf32>
    %131 = vector.shape_cast %130 : vector<1x20xf32> to vector<20xf32>
    %c0_133 = arith.constant 0 : index
    %c3_134 = arith.constant 3 : index
    %c8_135 = arith.constant 8 : index
    %c3_136 = arith.constant 3 : index
    %132 = vector.load %arg5[%c0_133, %c3_134, %c8_135, %c3_136] : memref<2x14x14x128xf32, #tpu.memory_space<vmem>>, vector<1x1x1x20xf32>
    %133 = vector.shape_cast %132 : vector<1x1x1x20xf32> to vector<20xf32>
    %134 = vector.shape_cast %131 : vector<20xf32> to vector<1x1x1x20xf32>
    tpu.vector_store %arg5[%c0_133, %c3_134, %c8_135, %c3_136], %134 {strides = array<i32>} : memref<2x14x14x128xf32, #tpu.memory_space<vmem>>, vector<1x1x1x20xf32>,
    %c1_137 = arith.constant 1 : index
    %c100_138 = arith.constant 100 : index
    %135 = vector.load %arg6[%c1_137, %c100_138] : memref<2x1280xf32, #tpu.memory_space<vmem>>, vector<1x20xf32>
    %136 = vector.shape_cast %135 : vector<1x20xf32> to vector<20xf32>
    %c1_139 = arith.constant 1 : index
    %c3_140 = arith.constant 3 : index
    %c8_141 = arith.constant 8 : index
    %c3_142 = arith.constant 3 : index
    %137 = vector.load %arg5[%c1_139, %c3_140, %c8_141, %c3_142] : memref<2x14x14x128xf32, #tpu.memory_space<vmem>>, vector<1x1x1x20xf32>
    %138 = vector.shape_cast %137 : vector<1x1x1x20xf32> to vector<20xf32>
    %139 = vector.shape_cast %136 : vector<20xf32> to vector<1x1x1x20xf32>
    tpu.vector_store %arg5[%c1_139, %c3_140, %c8_141, %c3_142], %139 {strides = array<i32>} : memref<2x14x14x128xf32, #tpu.memory_space<vmem>>, vector<1x1x1x20xf32>,
    %c0_143 = arith.constant 0 : index
    %c120 = arith.constant 120 : index
    %140 = vector.load %arg6[%c0_143, %c120] : memref<2x1280xf32, #tpu.memory_space<vmem>>, vector<1x20xf32>
    %141 = vector.shape_cast %140 : vector<1x20xf32> to vector<20xf32>
    %c0_144 = arith.constant 0 : index
    %c3_145 = arith.constant 3 : index
    %c9 = arith.constant 9 : index
    %c3_146 = arith.constant 3 : index
    %142 = vector.load %arg5[%c0_144, %c3_145, %c9, %c3_146] : memref<2x14x14x128xf32, #tpu.memory_space<vmem>>, vector<1x1x1x20xf32>
    %143 = vector.shape_cast %142 : vector<1x1x1x20xf32> to vector<20xf32>
    %144 = vector.shape_cast %141 : vector<20xf32> to vector<1x1x1x20xf32>
    tpu.vector_store %arg5[%c0_144, %c3_145, %c9, %c3_146], %144 {strides = array<i32>} : memref<2x14x14x128xf32, #tpu.memory_space<vmem>>, vector<1x1x1x20xf32>,
    %c1_147 = arith.constant 1 : index
    %c120_148 = arith.constant 120 : index
    %145 = vector.load %arg6[%c1_147, %c120_148] : memref<2x1280xf32, #tpu.memory_space<vmem>>, vector<1x20xf32>
    %146 = vector.shape_cast %145 : vector<1x20xf32> to vector<20xf32>
    %c1_149 = arith.constant 1 : index
    %c3_150 = arith.constant 3 : index
    %c9_151 = arith.constant 9 : index
    %c3_152 = arith.constant 3 : index
    %147 = vector.load %arg5[%c1_149, %c3_150, %c9_151, %c3_152] : memref<2x14x14x128xf32, #tpu.memory_space<vmem>>, vector<1x1x1x20xf32>
    %148 = vector.shape_cast %147 : vector<1x1x1x20xf32> to vector<20xf32>
    %149 = vector.shape_cast %146 : vector<20xf32> to vector<1x1x1x20xf32>
    tpu.vector_store %arg5[%c1_149, %c3_150, %c9_151, %c3_152], %149 {strides = array<i32>} : memref<2x14x14x128xf32, #tpu.memory_space<vmem>>, vector<1x1x1x20xf32>,
    %c0_153 = arith.constant 0 : index
    %c140 = arith.constant 140 : index
    %150 = vector.load %arg6[%c0_153, %c140] : memref<2x1280xf32, #tpu.memory_space<vmem>>, vector<1x20xf32>
    %151 = vector.shape_cast %150 : vector<1x20xf32> to vector<20xf32>
    %c0_154 = arith.constant 0 : index
    %c3_155 = arith.constant 3 : index
    %c10 = arith.constant 10 : index
    %c3_156 = arith.constant 3 : index
    %152 = vector.load %arg5[%c0_154, %c3_155, %c10, %c3_156] : memref<2x14x14x128xf32, #tpu.memory_space<vmem>>, vector<1x1x1x20xf32>
    %153 = vector.shape_cast %152 : vector<1x1x1x20xf32> to vector<20xf32>
    %154 = vector.shape_cast %151 : vector<20xf32> to vector<1x1x1x20xf32>
    tpu.vector_store %arg5[%c0_154, %c3_155, %c10, %c3_156], %154 {strides = array<i32>} : memref<2x14x14x128xf32, #tpu.memory_space<vmem>>, vector<1x1x1x20xf32>,
    %c1_157 = arith.constant 1 : index
    %c140_158 = arith.constant 140 : index
    %155 = vector.load %arg6[%c1_157, %c140_158] : memref<2x1280xf32, #tpu.memory_space<vmem>>, vector<1x20xf32>
    %156 = vector.shape_cast %155 : vector<1x20xf32> to vector<20xf32>
    %c1_159 = arith.constant 1 : index
    %c3_160 = arith.constant 3 : index
    %c10_161 = arith.constant 10 : index
    %c3_162 = arith.constant 3 : index
    %157 = vector.load %arg5[%c1_159, %c3_160, %c10_161, %c3_162] : memref<2x14x14x128xf32, #tpu.memory_space<vmem>>, vector<1x1x1x20xf32>
    %158 = vector.shape_cast %157 : vector<1x1x1x20xf32> to vector<20xf32>
    %159 = vector.shape_cast %156 : vector<20xf32> to vector<1x1x1x20xf32>
    tpu.vector_store %arg5[%c1_159, %c3_160, %c10_161, %c3_162], %159 {strides = array<i32>} : memref<2x14x14x128xf32, #tpu.memory_space<vmem>>, vector<1x1x1x20xf32>,
    %c0_163 = arith.constant 0 : index
    %c160 = arith.constant 160 : index
    %160 = vector.load %arg6[%c0_163, %c160] : memref<2x1280xf32, #tpu.memory_space<vmem>>, vector<1x20xf32>
    %161 = vector.shape_cast %160 : vector<1x20xf32> to vector<20xf32>
    %c0_164 = arith.constant 0 : index
    %c4_165 = arith.constant 4 : index
    %c3_166 = arith.constant 3 : index
    %c3_167 = arith.constant 3 : index
    %162 = vector.load %arg5[%c0_164, %c4_165, %c3_166, %c3_167] : memref<2x14x14x128xf32, #tpu.memory_space<vmem>>, vector<1x1x1x20xf32>
    %163 = vector.shape_cast %162 : vector<1x1x1x20xf32> to vector<20xf32>
    %164 = vector.shape_cast %161 : vector<20xf32> to vector<1x1x1x20xf32>
    tpu.vector_store %arg5[%c0_164, %c4_165, %c3_166, %c3_167], %164 {strides = array<i32>} : memref<2x14x14x128xf32, #tpu.memory_space<vmem>>, vector<1x1x1x20xf32>,
    %c1_168 = arith.constant 1 : index
    %c160_169 = arith.constant 160 : index
    %165 = vector.load %arg6[%c1_168, %c160_169] : memref<2x1280xf32, #tpu.memory_space<vmem>>, vector<1x20xf32>
    %166 = vector.shape_cast %165 : vector<1x20xf32> to vector<20xf32>
    %c1_170 = arith.constant 1 : index
    %c4_171 = arith.constant 4 : index
    %c3_172 = arith.constant 3 : index
    %c3_173 = arith.constant 3 : index
    %167 = vector.load %arg5[%c1_170, %c4_171, %c3_172, %c3_173] : memref<2x14x14x128xf32, #tpu.memory_space<vmem>>, vector<1x1x1x20xf32>
    %168 = vector.shape_cast %167 : vector<1x1x1x20xf32> to vector<20xf32>
    %169 = vector.shape_cast %166 : vector<20xf32> to vector<1x1x1x20xf32>
    tpu.vector_store %arg5[%c1_170, %c4_171, %c3_172, %c3_173], %169 {strides = array<i32>} : memref<2x14x14x128xf32, #tpu.memory_space<vmem>>, vector<1x1x1x20xf32>,
    %c0_174 = arith.constant 0 : index
    %c180 = arith.constant 180 : index
    %170 = vector.load %arg6[%c0_174, %c180] : memref<2x1280xf32, #tpu.memory_space<vmem>>, vector<1x20xf32>
    %171 = vector.shape_cast %170 : vector<1x20xf32> to vector<20xf32>
    %c0_175 = arith.constant 0 : index
    %c4_176 = arith.constant 4 : index
    %c4_177 = arith.constant 4 : index
    %c3_178 = arith.constant 3 : index
    %172 = vector.load %arg5[%c0_175, %c4_176, %c4_177, %c3_178] : memref<2x14x14x128xf32, #tpu.memory_space<vmem>>, vector<1x1x1x20xf32>
    %173 = vector.shape_cast %172 : vector<1x1x1x20xf32> to vector<20xf32>
    %174 = vector.shape_cast %171 : vector<20xf32> to vector<1x1x1x20xf32>
    tpu.vector_store %arg5[%c0_175, %c4_176, %c4_177, %c3_178], %174 {strides = array<i32>} : memref<2x14x14x128xf32, #tpu.memory_space<vmem>>, vector<1x1x1x20xf32>,
    %c1_179 = arith.constant 1 : index
    %c180_180 = arith.constant 180 : index
    %175 = vector.load %arg6[%c1_179, %c180_180] : memref<2x1280xf32, #tpu.memory_space<vmem>>, vector<1x20xf32>
    %176 = vector.shape_cast %175 : vector<1x20xf32> to vector<20xf32>
    %c1_181 = arith.constant 1 : index
    %c4_182 = arith.constant 4 : index
    %c4_183 = arith.constant 4 : index
    %c3_184 = arith.constant 3 : index
    %177 = vector.load %arg5[%c1_181, %c4_182, %c4_183, %c3_184] : memref<2x14x14x128xf32, #tpu.memory_space<vmem>>, vector<1x1x1x20xf32>
    %178 = vector.shape_cast %177 : vector<1x1x1x20xf32> to vector<20xf32>
    %179 = vector.shape_cast %176 : vector<20xf32> to vector<1x1x1x20xf32>
    tpu.vector_store %arg5[%c1_181, %c4_182, %c4_183, %c3_184], %179 {strides = array<i32>} : memref<2x14x14x128xf32, #tpu.memory_space<vmem>>, vector<1x1x1x20xf32>,
    %c0_185 = arith.constant 0 : index
    %c200 = arith.constant 200 : index
    %180 = vector.load %arg6[%c0_185, %c200] : memref<2x1280xf32, #tpu.memory_space<vmem>>, vector<1x20xf32>
    %181 = vector.shape_cast %180 : vector<1x20xf32> to vector<20xf32>
    %c0_186 = arith.constant 0 : index
    %c4_187 = arith.constant 4 : index
    %c5_188 = arith.constant 5 : index
    %c3_189 = arith.constant 3 : index
    %182 = vector.load %arg5[%c0_186, %c4_187, %c5_188, %c3_189] : memref<2x14x14x128xf32, #tpu.memory_space<vmem>>, vector<1x1x1x20xf32>
    %183 = vector.shape_cast %182 : vector<1x1x1x20xf32> to vector<20xf32>
    %184 = vector.shape_cast %181 : vector<20xf32> to vector<1x1x1x20xf32>
    tpu.vector_store %arg5[%c0_186, %c4_187, %c5_188, %c3_189], %184 {strides = array<i32>} : memref<2x14x14x128xf32, #tpu.memory_space<vmem>>, vector<1x1x1x20xf32>,
    %c1_190 = arith.constant 1 : index
    %c200_191 = arith.constant 200 : index
    %185 = vector.load %arg6[%c1_190, %c200_191] : memref<2x1280xf32, #tpu.memory_space<vmem>>, vector<1x20xf32>
    %186 = vector.shape_cast %185 : vector<1x20xf32> to vector<20xf32>
    %c1_192 = arith.constant 1 : index
    %c4_193 = arith.constant 4 : index
    %c5_194 = arith.constant 5 : index
    %c3_195 = arith.constant 3 : index
    %187 = vector.load %arg5[%c1_192, %c4_193, %c5_194, %c3_195] : memref<2x14x14x128xf32, #tpu.memory_space<vmem>>, vector<1x1x1x20xf32>
    %188 = vector.shape_cast %187 : vector<1x1x1x20xf32> to vector<20xf32>
    %189 = vector.shape_cast %186 : vector<20xf32> to vector<1x1x1x20xf32>
    tpu.vector_store %arg5[%c1_192, %c4_193, %c5_194, %c3_195], %189 {strides = array<i32>} : memref<2x14x14x128xf32, #tpu.memory_space<vmem>>, vector<1x1x1x20xf32>,
    %c0_196 = arith.constant 0 : index
    %c220 = arith.constant 220 : index
    %190 = vector.load %arg6[%c0_196, %c220] : memref<2x1280xf32, #tpu.memory_space<vmem>>, vector<1x20xf32>
    %191 = vector.shape_cast %190 : vector<1x20xf32> to vector<20xf32>
    %c0_197 = arith.constant 0 : index
    %c4_198 = arith.constant 4 : index
    %c6_199 = arith.constant 6 : index
    %c3_200 = arith.constant 3 : index
    %192 = vector.load %arg5[%c0_197, %c4_198, %c6_199, %c3_200] : memref<2x14x14x128xf32, #tpu.memory_space<vmem>>, vector<1x1x1x20xf32>
    %193 = vector.shape_cast %192 : vector<1x1x1x20xf32> to vector<20xf32>
    %194 = vector.shape_cast %191 : vector<20xf32> to vector<1x1x1x20xf32>
    tpu.vector_store %arg5[%c0_197, %c4_198, %c6_199, %c3_200], %194 {strides = array<i32>} : memref<2x14x14x128xf32, #tpu.memory_space<vmem>>, vector<1x1x1x20xf32>,
    %c1_201 = arith.constant 1 : index
    %c220_202 = arith.constant 220 : index
    %195 = vector.load %arg6[%c1_201, %c220_202] : memref<2x1280xf32, #tpu.memory_space<vmem>>, vector<1x20xf32>
    %196 = vector.shape_cast %195 : vector<1x20xf32> to vector<20xf32>
    %c1_203 = arith.constant 1 : index
    %c4_204 = arith.constant 4 : index
    %c6_205 = arith.constant 6 : index
    %c3_206 = arith.constant 3 : index
    %197 = vector.load %arg5[%c1_203, %c4_204, %c6_205, %c3_206] : memref<2x14x14x128xf32, #tpu.memory_space<vmem>>, vector<1x1x1x20xf32>
    %198 = vector.shape_cast %197 : vector<1x1x1x20xf32> to vector<20xf32>
    %199 = vector.shape_cast %196 : vector<20xf32> to vector<1x1x1x20xf32>
    tpu.vector_store %arg5[%c1_203, %c4_204, %c6_205, %c3_206], %199 {strides = array<i32>} : memref<2x14x14x128xf32, #tpu.memory_space<vmem>>, vector<1x1x1x20xf32>,
    %c0_207 = arith.constant 0 : index
    %c240 = arith.constant 240 : index
    %200 = vector.load %arg6[%c0_207, %c240] : memref<2x1280xf32, #tpu.memory_space<vmem>>, vector<1x20xf32>
    %201 = vector.shape_cast %200 : vector<1x20xf32> to vector<20xf32>
    %c0_208 = arith.constant 0 : index
    %c4_209 = arith.constant 4 : index
    %c7_210 = arith.constant 7 : index
    %c3_211 = arith.constant 3 : index
    %202 = vector.load %arg5[%c0_208, %c4_209, %c7_210, %c3_211] : memref<2x14x14x128xf32, #tpu.memory_space<vmem>>, vector<1x1x1x20xf32>
    %203 = vector.shape_cast %202 : vector<1x1x1x20xf32> to vector<20xf32>
    %204 = vector.shape_cast %201 : vector<20xf32> to vector<1x1x1x20xf32>
    tpu.vector_store %arg5[%c0_208, %c4_209, %c7_210, %c3_211], %204 {strides = array<i32>} : memref<2x14x14x128xf32, #tpu.memory_space<vmem>>, vector<1x1x1x20xf32>,
    %c1_212 = arith.constant 1 : index
    %c240_213 = arith.constant 240 : index
    %205 = vector.load %arg6[%c1_212, %c240_213] : memref<2x1280xf32, #tpu.memory_space<vmem>>, vector<1x20xf32>
    %206 = vector.shape_cast %205 : vector<1x20xf32> to vector<20xf32>
    %c1_214 = arith.constant 1 : index
    %c4_215 = arith.constant 4 : index
    %c7_216 = arith.constant 7 : index
    %c3_217 = arith.constant 3 : index
    %207 = vector.load %arg5[%c1_214, %c4_215, %c7_216, %c3_217] : memref<2x14x14x128xf32, #tpu.memory_space<vmem>>, vector<1x1x1x20xf32>
    %208 = vector.shape_cast %207 : vector<1x1x1x20xf32> to vector<20xf32>
    %209 = vector.shape_cast %206 : vector<20xf32> to vector<1x1x1x20xf32>
    tpu.vector_store %arg5[%c1_214, %c4_215, %c7_216, %c3_217], %209 {strides = array<i32>} : memref<2x14x14x128xf32, #tpu.memory_space<vmem>>, vector<1x1x1x20xf32>,
    %c0_218 = arith.constant 0 : index
    %c260 = arith.constant 260 : index
    %210 = vector.load %arg6[%c0_218, %c260] : memref<2x1280xf32, #tpu.memory_space<vmem>>, vector<1x20xf32>
    %211 = vector.shape_cast %210 : vector<1x20xf32> to vector<20xf32>
    %c0_219 = arith.constant 0 : index
    %c4_220 = arith.constant 4 : index
    %c8_221 = arith.constant 8 : index
    %c3_222 = arith.constant 3 : index
    %212 = vector.load %arg5[%c0_219, %c4_220, %c8_221, %c3_222] : memref<2x14x14x128xf32, #tpu.memory_space<vmem>>, vector<1x1x1x20xf32>
    %213 = vector.shape_cast %212 : vector<1x1x1x20xf32> to vector<20xf32>
    %214 = vector.shape_cast %211 : vector<20xf32> to vector<1x1x1x20xf32>
    tpu.vector_store %arg5[%c0_219, %c4_220, %c8_221, %c3_222], %214 {strides = array<i32>} : memref<2x14x14x128xf32, #tpu.memory_space<vmem>>, vector<1x1x1x20xf32>,
    %c1_223 = arith.constant 1 : index
    %c260_224 = arith.constant 260 : index
    %215 = vector.load %arg6[%c1_223, %c260_224] : memref<2x1280xf32, #tpu.memory_space<vmem>>, vector<1x20xf32>
    %216 = vector.shape_cast %215 : vector<1x20xf32> to vector<20xf32>
    %c1_225 = arith.constant 1 : index
    %c4_226 = arith.constant 4 : index
    %c8_227 = arith.constant 8 : index
    %c3_228 = arith.constant 3 : index
    %217 = vector.load %arg5[%c1_225, %c4_226, %c8_227, %c3_228] : memref<2x14x14x128xf32, #tpu.memory_space<vmem>>, vector<1x1x1x20xf32>
    %218 = vector.shape_cast %217 : vector<1x1x1x20xf32> to vector<20xf32>
    %219 = vector.shape_cast %216 : vector<20xf32> to vector<1x1x1x20xf32>
    tpu.vector_store %arg5[%c1_225, %c4_226, %c8_227, %c3_228], %219 {strides = array<i32>} : memref<2x14x14x128xf32, #tpu.memory_space<vmem>>, vector<1x1x1x20xf32>,
    %c0_229 = arith.constant 0 : index
    %c280 = arith.constant 280 : index
    %220 = vector.load %arg6[%c0_229, %c280] : memref<2x1280xf32, #tpu.memory_space<vmem>>, vector<1x20xf32>
    %221 = vector.shape_cast %220 : vector<1x20xf32> to vector<20xf32>
    %c0_230 = arith.constant 0 : index
    %c4_231 = arith.constant 4 : index
    %c9_232 = arith.constant 9 : index
    %c3_233 = arith.constant 3 : index
    %222 = vector.load %arg5[%c0_230, %c4_231, %c9_232, %c3_233] : memref<2x14x14x128xf32, #tpu.memory_space<vmem>>, vector<1x1x1x20xf32>
    %223 = vector.shape_cast %222 : vector<1x1x1x20xf32> to vector<20xf32>
    %224 = vector.shape_cast %221 : vector<20xf32> to vector<1x1x1x20xf32>
    tpu.vector_store %arg5[%c0_230, %c4_231, %c9_232, %c3_233], %224 {strides = array<i32>} : memref<2x14x14x128xf32, #tpu.memory_space<vmem>>, vector<1x1x1x20xf32>,
    %c1_234 = arith.constant 1 : index
    %c280_235 = arith.constant 280 : index
    %225 = vector.load %arg6[%c1_234, %c280_235] : memref<2x1280xf32, #tpu.memory_space<vmem>>, vector<1x20xf32>
    %226 = vector.shape_cast %225 : vector<1x20xf32> to vector<20xf32>
    %c1_236 = arith.constant 1 : index
    %c4_237 = arith.constant 4 : index
    %c9_238 = arith.constant 9 : index
    %c3_239 = arith.constant 3 : index
    %227 = vector.load %arg5[%c1_236, %c4_237, %c9_238, %c3_239] : memref<2x14x14x128xf32, #tpu.memory_space<vmem>>, vector<1x1x1x20xf32>
    %228 = vector.shape_cast %227 : vector<1x1x1x20xf32> to vector<20xf32>
    %229 = vector.shape_cast %226 : vector<20xf32> to vector<1x1x1x20xf32>
    tpu.vector_store %arg5[%c1_236, %c4_237, %c9_238, %c3_239], %229 {strides = array<i32>} : memref<2x14x14x128xf32, #tpu.memory_space<vmem>>, vector<1x1x1x20xf32>,
    %c0_240 = arith.constant 0 : index
    %c300 = arith.constant 300 : index
    %230 = vector.load %arg6[%c0_240, %c300] : memref<2x1280xf32, #tpu.memory_space<vmem>>, vector<1x20xf32>
    %231 = vector.shape_cast %230 : vector<1x20xf32> to vector<20xf32>
    %c0_241 = arith.constant 0 : index
    %c4_242 = arith.constant 4 : index
    %c10_243 = arith.constant 10 : index
    %c3_244 = arith.constant 3 : index
    %232 = vector.load %arg5[%c0_241, %c4_242, %c10_243, %c3_244] : memref<2x14x14x128xf32, #tpu.memory_space<vmem>>, vector<1x1x1x20xf32>
    %233 = vector.shape_cast %232 : vector<1x1x1x20xf32> to vector<20xf32>
    %234 = vector.shape_cast %231 : vector<20xf32> to vector<1x1x1x20xf32>
    tpu.vector_store %arg5[%c0_241, %c4_242, %c10_243, %c3_244], %234 {strides = array<i32>} : memref<2x14x14x128xf32, #tpu.memory_space<vmem>>, vector<1x1x1x20xf32>,
    %c1_245 = arith.constant 1 : index
    %c300_246 = arith.constant 300 : index
    %235 = vector.load %arg6[%c1_245, %c300_246] : memref<2x1280xf32, #tpu.memory_space<vmem>>, vector<1x20xf32>
    %236 = vector.shape_cast %235 : vector<1x20xf32> to vector<20xf32>
    %c1_247 = arith.constant 1 : index
    %c4_248 = arith.constant 4 : index
    %c10_249 = arith.constant 10 : index
    %c3_250 = arith.constant 3 : index
    %237 = vector.load %arg5[%c1_247, %c4_248, %c10_249, %c3_250] : memref<2x14x14x128xf32, #tpu.memory_space<vmem>>, vector<1x1x1x20xf32>
    %238 = vector.shape_cast %237 : vector<1x1x1x20xf32> to vector<20xf32>
    %239 = vector.shape_cast %236 : vector<20xf32> to vector<1x1x1x20xf32>
    tpu.vector_store %arg5[%c1_247, %c4_248, %c10_249, %c3_250], %239 {strides = array<i32>} : memref<2x14x14x128xf32, #tpu.memory_space<vmem>>, vector<1x1x1x20xf32>,
    %c0_251 = arith.constant 0 : index
    %c320 = arith.constant 320 : index
    %240 = vector.load %arg6[%c0_251, %c320] : memref<2x1280xf32, #tpu.memory_space<vmem>>, vector<1x20xf32>
    %241 = vector.shape_cast %240 : vector<1x20xf32> to vector<20xf32>
    %c0_252 = arith.constant 0 : index
    %c5_253 = arith.constant 5 : index
    %c3_254 = arith.constant 3 : index
    %c3_255 = arith.constant 3 : index
    %242 = vector.load %arg5[%c0_252, %c5_253, %c3_254, %c3_255] : memref<2x14x14x128xf32, #tpu.memory_space<vmem>>, vector<1x1x1x20xf32>
    %243 = vector.shape_cast %242 : vector<1x1x1x20xf32> to vector<20xf32>
    %244 = vector.shape_cast %241 : vector<20xf32> to vector<1x1x1x20xf32>
    tpu.vector_store %arg5[%c0_252, %c5_253, %c3_254, %c3_255], %244 {strides = array<i32>} : memref<2x14x14x128xf32, #tpu.memory_space<vmem>>, vector<1x1x1x20xf32>,
    %c1_256 = arith.constant 1 : index
    %c320_257 = arith.constant 320 : index
    %245 = vector.load %arg6[%c1_256, %c320_257] : memref<2x1280xf32, #tpu.memory_space<vmem>>, vector<1x20xf32>
    %246 = vector.shape_cast %245 : vector<1x20xf32> to vector<20xf32>
    %c1_258 = arith.constant 1 : index
    %c5_259 = arith.constant 5 : index
    %c3_260 = arith.constant 3 : index
    %c3_261 = arith.constant 3 : index
    %247 = vector.load %arg5[%c1_258, %c5_259, %c3_260, %c3_261] : memref<2x14x14x128xf32, #tpu.memory_space<vmem>>, vector<1x1x1x20xf32>
    %248 = vector.shape_cast %247 : vector<1x1x1x20xf32> to vector<20xf32>
    %249 = vector.shape_cast %246 : vector<20xf32> to vector<1x1x1x20xf32>
    tpu.vector_store %arg5[%c1_258, %c5_259, %c3_260, %c3_261], %249 {strides = array<i32>} : memref<2x14x14x128xf32, #tpu.memory_space<vmem>>, vector<1x1x1x20xf32>,
    %c0_262 = arith.constant 0 : index
    %c340 = arith.constant 340 : index
    %250 = vector.load %arg6[%c0_262, %c340] : memref<2x1280xf32, #tpu.memory_space<vmem>>, vector<1x20xf32>
    %251 = vector.shape_cast %250 : vector<1x20xf32> to vector<20xf32>
    %c0_263 = arith.constant 0 : index
    %c5_264 = arith.constant 5 : index
    %c4_265 = arith.constant 4 : index
    %c3_266 = arith.constant 3 : index
    %252 = vector.load %arg5[%c0_263, %c5_264, %c4_265, %c3_266] : memref<2x14x14x128xf32, #tpu.memory_space<vmem>>, vector<1x1x1x20xf32>
    %253 = vector.shape_cast %252 : vector<1x1x1x20xf32> to vector<20xf32>
    %254 = vector.shape_cast %251 : vector<20xf32> to vector<1x1x1x20xf32>
    tpu.vector_store %arg5[%c0_263, %c5_264, %c4_265, %c3_266], %254 {strides = array<i32>} : memref<2x14x14x128xf32, #tpu.memory_space<vmem>>, vector<1x1x1x20xf32>,
    %c1_267 = arith.constant 1 : index
    %c340_268 = arith.constant 340 : index
    %255 = vector.load %arg6[%c1_267, %c340_268] : memref<2x1280xf32, #tpu.memory_space<vmem>>, vector<1x20xf32>
    %256 = vector.shape_cast %255 : vector<1x20xf32> to vector<20xf32>
    %c1_269 = arith.constant 1 : index
    %c5_270 = arith.constant 5 : index
    %c4_271 = arith.constant 4 : index
    %c3_272 = arith.constant 3 : index
    %257 = vector.load %arg5[%c1_269, %c5_270, %c4_271, %c3_272] : memref<2x14x14x128xf32, #tpu.memory_space<vmem>>, vector<1x1x1x20xf32>
    %258 = vector.shape_cast %257 : vector<1x1x1x20xf32> to vector<20xf32>
    %259 = vector.shape_cast %256 : vector<20xf32> to vector<1x1x1x20xf32>
    tpu.vector_store %arg5[%c1_269, %c5_270, %c4_271, %c3_272], %259 {strides = array<i32>} : memref<2x14x14x128xf32, #tpu.memory_space<vmem>>, vector<1x1x1x20xf32>,
    %c0_273 = arith.constant 0 : index
    %c360 = arith.constant 360 : index
    %260 = vector.load %arg6[%c0_273, %c360] : memref<2x1280xf32, #tpu.memory_space<vmem>>, vector<1x20xf32>
    %261 = vector.shape_cast %260 : vector<1x20xf32> to vector<20xf32>
    %c0_274 = arith.constant 0 : index
    %c5_275 = arith.constant 5 : index
    %c5_276 = arith.constant 5 : index
    %c3_277 = arith.constant 3 : index
    %262 = vector.load %arg5[%c0_274, %c5_275, %c5_276, %c3_277] : memref<2x14x14x128xf32, #tpu.memory_space<vmem>>, vector<1x1x1x20xf32>
    %263 = vector.shape_cast %262 : vector<1x1x1x20xf32> to vector<20xf32>
    %264 = vector.shape_cast %261 : vector<20xf32> to vector<1x1x1x20xf32>
    tpu.vector_store %arg5[%c0_274, %c5_275, %c5_276, %c3_277], %264 {strides = array<i32>} : memref<2x14x14x128xf32, #tpu.memory_space<vmem>>, vector<1x1x1x20xf32>,
    %c1_278 = arith.constant 1 : index
    %c360_279 = arith.constant 360 : index
    %265 = vector.load %arg6[%c1_278, %c360_279] : memref<2x1280xf32, #tpu.memory_space<vmem>>, vector<1x20xf32>
    %266 = vector.shape_cast %265 : vector<1x20xf32> to vector<20xf32>
    %c1_280 = arith.constant 1 : index
    %c5_281 = arith.constant 5 : index
    %c5_282 = arith.constant 5 : index
    %c3_283 = arith.constant 3 : index
    %267 = vector.load %arg5[%c1_280, %c5_281, %c5_282, %c3_283] : memref<2x14x14x128xf32, #tpu.memory_space<vmem>>, vector<1x1x1x20xf32>
    %268 = vector.shape_cast %267 : vector<1x1x1x20xf32> to vector<20xf32>
    %269 = vector.shape_cast %266 : vector<20xf32> to vector<1x1x1x20xf32>
    tpu.vector_store %arg5[%c1_280, %c5_281, %c5_282, %c3_283], %269 {strides = array<i32>} : memref<2x14x14x128xf32, #tpu.memory_space<vmem>>, vector<1x1x1x20xf32>,
    %c0_284 = arith.constant 0 : index
    %c380 = arith.constant 380 : index
    %270 = vector.load %arg6[%c0_284, %c380] : memref<2x1280xf32, #tpu.memory_space<vmem>>, vector<1x20xf32>
    %271 = vector.shape_cast %270 : vector<1x20xf32> to vector<20xf32>
    %c0_285 = arith.constant 0 : index
    %c5_286 = arith.constant 5 : index
    %c6_287 = arith.constant 6 : index
    %c3_288 = arith.constant 3 : index
    %272 = vector.load %arg5[%c0_285, %c5_286, %c6_287, %c3_288] : memref<2x14x14x128xf32, #tpu.memory_space<vmem>>, vector<1x1x1x20xf32>
    %273 = vector.shape_cast %272 : vector<1x1x1x20xf32> to vector<20xf32>
    %274 = vector.shape_cast %271 : vector<20xf32> to vector<1x1x1x20xf32>
    tpu.vector_store %arg5[%c0_285, %c5_286, %c6_287, %c3_288], %274 {strides = array<i32>} : memref<2x14x14x128xf32, #tpu.memory_space<vmem>>, vector<1x1x1x20xf32>,
    %c1_289 = arith.constant 1 : index
    %c380_290 = arith.constant 380 : index
    %275 = vector.load %arg6[%c1_289, %c380_290] : memref<2x1280xf32, #tpu.memory_space<vmem>>, vector<1x20xf32>
    %276 = vector.shape_cast %275 : vector<1x20xf32> to vector<20xf32>
    %c1_291 = arith.constant 1 : index
    %c5_292 = arith.constant 5 : index
    %c6_293 = arith.constant 6 : index
    %c3_294 = arith.constant 3 : index
    %277 = vector.load %arg5[%c1_291, %c5_292, %c6_293, %c3_294] : memref<2x14x14x128xf32, #tpu.memory_space<vmem>>, vector<1x1x1x20xf32>
    %278 = vector.shape_cast %277 : vector<1x1x1x20xf32> to vector<20xf32>
    %279 = vector.shape_cast %276 : vector<20xf32> to vector<1x1x1x20xf32>
    tpu.vector_store %arg5[%c1_291, %c5_292, %c6_293, %c3_294], %279 {strides = array<i32>} : memref<2x14x14x128xf32, #tpu.memory_space<vmem>>, vector<1x1x1x20xf32>,
    %c0_295 = arith.constant 0 : index
    %c400 = arith.constant 400 : index
    %280 = vector.load %arg6[%c0_295, %c400] : memref<2x1280xf32, #tpu.memory_space<vmem>>, vector<1x20xf32>
    %281 = vector.shape_cast %280 : vector<1x20xf32> to vector<20xf32>
    %c0_296 = arith.constant 0 : index
    %c5_297 = arith.constant 5 : index
    %c7_298 = arith.constant 7 : index
    %c3_299 = arith.constant 3 : index
    %282 = vector.load %arg5[%c0_296, %c5_297, %c7_298, %c3_299] : memref<2x14x14x128xf32, #tpu.memory_space<vmem>>, vector<1x1x1x20xf32>
    %283 = vector.shape_cast %282 : vector<1x1x1x20xf32> to vector<20xf32>
    %284 = vector.shape_cast %281 : vector<20xf32> to vector<1x1x1x20xf32>
    tpu.vector_store %arg5[%c0_296, %c5_297, %c7_298, %c3_299], %284 {strides = array<i32>} : memref<2x14x14x128xf32, #tpu.memory_space<vmem>>, vector<1x1x1x20xf32>,
    %c1_300 = arith.constant 1 : index
    %c400_301 = arith.constant 400 : index
    %285 = vector.load %arg6[%c1_300, %c400_301] : memref<2x1280xf32, #tpu.memory_space<vmem>>, vector<1x20xf32>
    %286 = vector.shape_cast %285 : vector<1x20xf32> to vector<20xf32>
    %c1_302 = arith.constant 1 : index
    %c5_303 = arith.constant 5 : index
    %c7_304 = arith.constant 7 : index
    %c3_305 = arith.constant 3 : index
    %287 = vector.load %arg5[%c1_302, %c5_303, %c7_304, %c3_305] : memref<2x14x14x128xf32, #tpu.memory_space<vmem>>, vector<1x1x1x20xf32>
    %288 = vector.shape_cast %287 : vector<1x1x1x20xf32> to vector<20xf32>
    %289 = vector.shape_cast %286 : vector<20xf32> to vector<1x1x1x20xf32>
    tpu.vector_store %arg5[%c1_302, %c5_303, %c7_304, %c3_305], %289 {strides = array<i32>} : memref<2x14x14x128xf32, #tpu.memory_space<vmem>>, vector<1x1x1x20xf32>,
    %c0_306 = arith.constant 0 : index
    %c420 = arith.constant 420 : index
    %290 = vector.load %arg6[%c0_306, %c420] : memref<2x1280xf32, #tpu.memory_space<vmem>>, vector<1x20xf32>
    %291 = vector.shape_cast %290 : vector<1x20xf32> to vector<20xf32>
    %c0_307 = arith.constant 0 : index
    %c5_308 = arith.constant 5 : index
    %c8_309 = arith.constant 8 : index
    %c3_310 = arith.constant 3 : index
    %292 = vector.load %arg5[%c0_307, %c5_308, %c8_309, %c3_310] : memref<2x14x14x128xf32, #tpu.memory_space<vmem>>, vector<1x1x1x20xf32>
    %293 = vector.shape_cast %292 : vector<1x1x1x20xf32> to vector<20xf32>
    %294 = vector.shape_cast %291 : vector<20xf32> to vector<1x1x1x20xf32>
    tpu.vector_store %arg5[%c0_307, %c5_308, %c8_309, %c3_310], %294 {strides = array<i32>} : memref<2x14x14x128xf32, #tpu.memory_space<vmem>>, vector<1x1x1x20xf32>,
    %c1_311 = arith.constant 1 : index
    %c420_312 = arith.constant 420 : index
    %295 = vector.load %arg6[%c1_311, %c420_312] : memref<2x1280xf32, #tpu.memory_space<vmem>>, vector<1x20xf32>
    %296 = vector.shape_cast %295 : vector<1x20xf32> to vector<20xf32>
    %c1_313 = arith.constant 1 : index
    %c5_314 = arith.constant 5 : index
    %c8_315 = arith.constant 8 : index
    %c3_316 = arith.constant 3 : index
    %297 = vector.load %arg5[%c1_313, %c5_314, %c8_315, %c3_316] : memref<2x14x14x128xf32, #tpu.memory_space<vmem>>, vector<1x1x1x20xf32>
    %298 = vector.shape_cast %297 : vector<1x1x1x20xf32> to vector<20xf32>
    %299 = vector.shape_cast %296 : vector<20xf32> to vector<1x1x1x20xf32>
    tpu.vector_store %arg5[%c1_313, %c5_314, %c8_315, %c3_316], %299 {strides = array<i32>} : memref<2x14x14x128xf32, #tpu.memory_space<vmem>>, vector<1x1x1x20xf32>,
    %c0_317 = arith.constant 0 : index
    %c440 = arith.constant 440 : index
    %300 = vector.load %arg6[%c0_317, %c440] : memref<2x1280xf32, #tpu.memory_space<vmem>>, vector<1x20xf32>
    %301 = vector.shape_cast %300 : vector<1x20xf32> to vector<20xf32>
    %c0_318 = arith.constant 0 : index
    %c5_319 = arith.constant 5 : index
    %c9_320 = arith.constant 9 : index
    %c3_321 = arith.constant 3 : index
    %302 = vector.load %arg5[%c0_318, %c5_319, %c9_320, %c3_321] : memref<2x14x14x128xf32, #tpu.memory_space<vmem>>, vector<1x1x1x20xf32>
    %303 = vector.shape_cast %302 : vector<1x1x1x20xf32> to vector<20xf32>
    %304 = vector.shape_cast %301 : vector<20xf32> to vector<1x1x1x20xf32>
    tpu.vector_store %arg5[%c0_318, %c5_319, %c9_320, %c3_321], %304 {strides = array<i32>} : memref<2x14x14x128xf32, #tpu.memory_space<vmem>>, vector<1x1x1x20xf32>,
    %c1_322 = arith.constant 1 : index
    %c440_323 = arith.constant 440 : index
    %305 = vector.load %arg6[%c1_322, %c440_323] : memref<2x1280xf32, #tpu.memory_space<vmem>>, vector<1x20xf32>
    %306 = vector.shape_cast %305 : vector<1x20xf32> to vector<20xf32>
    %c1_324 = arith.constant 1 : index
    %c5_325 = arith.constant 5 : index
    %c9_326 = arith.constant 9 : index
    %c3_327 = arith.constant 3 : index
    %307 = vector.load %arg5[%c1_324, %c5_325, %c9_326, %c3_327] : memref<2x14x14x128xf32, #tpu.memory_space<vmem>>, vector<1x1x1x20xf32>
    %308 = vector.shape_cast %307 : vector<1x1x1x20xf32> to vector<20xf32>
    %309 = vector.shape_cast %306 : vector<20xf32> to vector<1x1x1x20xf32>
    tpu.vector_store %arg5[%c1_324, %c5_325, %c9_326, %c3_327], %309 {strides = array<i32>} : memref<2x14x14x128xf32, #tpu.memory_space<vmem>>, vector<1x1x1x20xf32>,
    %c0_328 = arith.constant 0 : index
    %c460 = arith.constant 460 : index
    %310 = vector.load %arg6[%c0_328, %c460] : memref<2x1280xf32, #tpu.memory_space<vmem>>, vector<1x20xf32>
    %311 = vector.shape_cast %310 : vector<1x20xf32> to vector<20xf32>
    %c0_329 = arith.constant 0 : index
    %c5_330 = arith.constant 5 : index
    %c10_331 = arith.constant 10 : index
    %c3_332 = arith.constant 3 : index
    %312 = vector.load %arg5[%c0_329, %c5_330, %c10_331, %c3_332] : memref<2x14x14x128xf32, #tpu.memory_space<vmem>>, vector<1x1x1x20xf32>
    %313 = vector.shape_cast %312 : vector<1x1x1x20xf32> to vector<20xf32>
    %314 = vector.shape_cast %311 : vector<20xf32> to vector<1x1x1x20xf32>
    tpu.vector_store %arg5[%c0_329, %c5_330, %c10_331, %c3_332], %314 {strides = array<i32>} : memref<2x14x14x128xf32, #tpu.memory_space<vmem>>, vector<1x1x1x20xf32>,
    %c1_333 = arith.constant 1 : index
    %c460_334 = arith.constant 460 : index
    %315 = vector.load %arg6[%c1_333, %c460_334] : memref<2x1280xf32, #tpu.memory_space<vmem>>, vector<1x20xf32>
    %316 = vector.shape_cast %315 : vector<1x20xf32> to vector<20xf32>
    %c1_335 = arith.constant 1 : index
    %c5_336 = arith.constant 5 : index
    %c10_337 = arith.constant 10 : index
    %c3_338 = arith.constant 3 : index
    %317 = vector.load %arg5[%c1_335, %c5_336, %c10_337, %c3_338] : memref<2x14x14x128xf32, #tpu.memory_space<vmem>>, vector<1x1x1x20xf32>
    %318 = vector.shape_cast %317 : vector<1x1x1x20xf32> to vector<20xf32>
    %319 = vector.shape_cast %316 : vector<20xf32> to vector<1x1x1x20xf32>
    tpu.vector_store %arg5[%c1_335, %c5_336, %c10_337, %c3_338], %319 {strides = array<i32>} : memref<2x14x14x128xf32, #tpu.memory_space<vmem>>, vector<1x1x1x20xf32>,
    %c0_339 = arith.constant 0 : index
    %c480 = arith.constant 480 : index
    %320 = vector.load %arg6[%c0_339, %c480] : memref<2x1280xf32, #tpu.memory_space<vmem>>, vector<1x20xf32>
    %321 = vector.shape_cast %320 : vector<1x20xf32> to vector<20xf32>
    %c0_340 = arith.constant 0 : index
    %c6_341 = arith.constant 6 : index
    %c3_342 = arith.constant 3 : index
    %c3_343 = arith.constant 3 : index
    %322 = vector.load %arg5[%c0_340, %c6_341, %c3_342, %c3_343] : memref<2x14x14x128xf32, #tpu.memory_space<vmem>>, vector<1x1x1x20xf32>
    %323 = vector.shape_cast %322 : vector<1x1x1x20xf32> to vector<20xf32>
    %324 = vector.shape_cast %321 : vector<20xf32> to vector<1x1x1x20xf32>
    tpu.vector_store %arg5[%c0_340, %c6_341, %c3_342, %c3_343], %324 {strides = array<i32>} : memref<2x14x14x128xf32, #tpu.memory_space<vmem>>, vector<1x1x1x20xf32>,
    %c1_344 = arith.constant 1 : index
    %c480_345 = arith.constant 480 : index
    %325 = vector.load %arg6[%c1_344, %c480_345] : memref<2x1280xf32, #tpu.memory_space<vmem>>, vector<1x20xf32>
    %326 = vector.shape_cast %325 : vector<1x20xf32> to vector<20xf32>
    %c1_346 = arith.constant 1 : index
    %c6_347 = arith.constant 6 : index
    %c3_348 = arith.constant 3 : index
    %c3_349 = arith.constant 3 : index
    %327 = vector.load %arg5[%c1_346, %c6_347, %c3_348, %c3_349] : memref<2x14x14x128xf32, #tpu.memory_space<vmem>>, vector<1x1x1x20xf32>
    %328 = vector.shape_cast %327 : vector<1x1x1x20xf32> to vector<20xf32>
    %329 = vector.shape_cast %326 : vector<20xf32> to vector<1x1x1x20xf32>
    tpu.vector_store %arg5[%c1_346, %c6_347, %c3_348, %c3_349], %329 {strides = array<i32>} : memref<2x14x14x128xf32, #tpu.memory_space<vmem>>, vector<1x1x1x20xf32>,
    %c0_350 = arith.constant 0 : index
    %c500 = arith.constant 500 : index
    %330 = vector.load %arg6[%c0_350, %c500] : memref<2x1280xf32, #tpu.memory_space<vmem>>, vector<1x20xf32>
    %331 = vector.shape_cast %330 : vector<1x20xf32> to vector<20xf32>
    %c0_351 = arith.constant 0 : index
    %c6_352 = arith.constant 6 : index
    %c4_353 = arith.constant 4 : index
    %c3_354 = arith.constant 3 : index
    %332 = vector.load %arg5[%c0_351, %c6_352, %c4_353, %c3_354] : memref<2x14x14x128xf32, #tpu.memory_space<vmem>>, vector<1x1x1x20xf32>
    %333 = vector.shape_cast %332 : vector<1x1x1x20xf32> to vector<20xf32>
    %334 = vector.shape_cast %331 : vector<20xf32> to vector<1x1x1x20xf32>
    tpu.vector_store %arg5[%c0_351, %c6_352, %c4_353, %c3_354], %334 {strides = array<i32>} : memref<2x14x14x128xf32, #tpu.memory_space<vmem>>, vector<1x1x1x20xf32>,
    %c1_355 = arith.constant 1 : index
    %c500_356 = arith.constant 500 : index
    %335 = vector.load %arg6[%c1_355, %c500_356] : memref<2x1280xf32, #tpu.memory_space<vmem>>, vector<1x20xf32>
    %336 = vector.shape_cast %335 : vector<1x20xf32> to vector<20xf32>
    %c1_357 = arith.constant 1 : index
    %c6_358 = arith.constant 6 : index
    %c4_359 = arith.constant 4 : index
    %c3_360 = arith.constant 3 : index
    %337 = vector.load %arg5[%c1_357, %c6_358, %c4_359, %c3_360] : memref<2x14x14x128xf32, #tpu.memory_space<vmem>>, vector<1x1x1x20xf32>
    %338 = vector.shape_cast %337 : vector<1x1x1x20xf32> to vector<20xf32>
    %339 = vector.shape_cast %336 : vector<20xf32> to vector<1x1x1x20xf32>
    tpu.vector_store %arg5[%c1_357, %c6_358, %c4_359, %c3_360], %339 {strides = array<i32>} : memref<2x14x14x128xf32, #tpu.memory_space<vmem>>, vector<1x1x1x20xf32>,
    %c0_361 = arith.constant 0 : index
    %c520 = arith.constant 520 : index
    %340 = vector.load %arg6[%c0_361, %c520] : memref<2x1280xf32, #tpu.memory_space<vmem>>, vector<1x20xf32>
    %341 = vector.shape_cast %340 : vector<1x20xf32> to vector<20xf32>
    %c0_362 = arith.constant 0 : index
    %c6_363 = arith.constant 6 : index
    %c5_364 = arith.constant 5 : index
    %c3_365 = arith.constant 3 : index
    %342 = vector.load %arg5[%c0_362, %c6_363, %c5_364, %c3_365] : memref<2x14x14x128xf32, #tpu.memory_space<vmem>>, vector<1x1x1x20xf32>
    %343 = vector.shape_cast %342 : vector<1x1x1x20xf32> to vector<20xf32>
    %344 = vector.shape_cast %341 : vector<20xf32> to vector<1x1x1x20xf32>
    tpu.vector_store %arg5[%c0_362, %c6_363, %c5_364, %c3_365], %344 {strides = array<i32>} : memref<2x14x14x128xf32, #tpu.memory_space<vmem>>, vector<1x1x1x20xf32>,
    %c1_366 = arith.constant 1 : index
    %c520_367 = arith.constant 520 : index
    %345 = vector.load %arg6[%c1_366, %c520_367] : memref<2x1280xf32, #tpu.memory_space<vmem>>, vector<1x20xf32>
    %346 = vector.shape_cast %345 : vector<1x20xf32> to vector<20xf32>
    %c1_368 = arith.constant 1 : index
    %c6_369 = arith.constant 6 : index
    %c5_370 = arith.constant 5 : index
    %c3_371 = arith.constant 3 : index
    %347 = vector.load %arg5[%c1_368, %c6_369, %c5_370, %c3_371] : memref<2x14x14x128xf32, #tpu.memory_space<vmem>>, vector<1x1x1x20xf32>
    %348 = vector.shape_cast %347 : vector<1x1x1x20xf32> to vector<20xf32>
    %349 = vector.shape_cast %346 : vector<20xf32> to vector<1x1x1x20xf32>
    tpu.vector_store %arg5[%c1_368, %c6_369, %c5_370, %c3_371], %349 {strides = array<i32>} : memref<2x14x14x128xf32, #tpu.memory_space<vmem>>, vector<1x1x1x20xf32>,
    %c0_372 = arith.constant 0 : index
    %c540 = arith.constant 540 : index
    %350 = vector.load %arg6[%c0_372, %c540] : memref<2x1280xf32, #tpu.memory_space<vmem>>, vector<1x20xf32>
    %351 = vector.shape_cast %350 : vector<1x20xf32> to vector<20xf32>
    %c0_373 = arith.constant 0 : index
    %c6_374 = arith.constant 6 : index
    %c6_375 = arith.constant 6 : index
    %c3_376 = arith.constant 3 : index
    %352 = vector.load %arg5[%c0_373, %c6_374, %c6_375, %c3_376] : memref<2x14x14x128xf32, #tpu.memory_space<vmem>>, vector<1x1x1x20xf32>
    %353 = vector.shape_cast %352 : vector<1x1x1x20xf32> to vector<20xf32>
    %354 = vector.shape_cast %351 : vector<20xf32> to vector<1x1x1x20xf32>
    tpu.vector_store %arg5[%c0_373, %c6_374, %c6_375, %c3_376], %354 {strides = array<i32>} : memref<2x14x14x128xf32, #tpu.memory_space<vmem>>, vector<1x1x1x20xf32>,
    %c1_377 = arith.constant 1 : index
    %c540_378 = arith.constant 540 : index
    %355 = vector.load %arg6[%c1_377, %c540_378] : memref<2x1280xf32, #tpu.memory_space<vmem>>, vector<1x20xf32>
    %356 = vector.shape_cast %355 : vector<1x20xf32> to vector<20xf32>
    %c1_379 = arith.constant 1 : index
    %c6_380 = arith.constant 6 : index
    %c6_381 = arith.constant 6 : index
    %c3_382 = arith.constant 3 : index
    %357 = vector.load %arg5[%c1_379, %c6_380, %c6_381, %c3_382] : memref<2x14x14x128xf32, #tpu.memory_space<vmem>>, vector<1x1x1x20xf32>
    %358 = vector.shape_cast %357 : vector<1x1x1x20xf32> to vector<20xf32>
    %359 = vector.shape_cast %356 : vector<20xf32> to vector<1x1x1x20xf32>
    tpu.vector_store %arg5[%c1_379, %c6_380, %c6_381, %c3_382], %359 {strides = array<i32>} : memref<2x14x14x128xf32, #tpu.memory_space<vmem>>, vector<1x1x1x20xf32>,
    %c0_383 = arith.constant 0 : index
    %c560 = arith.constant 560 : index
    %360 = vector.load %arg6[%c0_383, %c560] : memref<2x1280xf32, #tpu.memory_space<vmem>>, vector<1x20xf32>
    %361 = vector.shape_cast %360 : vector<1x20xf32> to vector<20xf32>
    %c0_384 = arith.constant 0 : index
    %c6_385 = arith.constant 6 : index
    %c7_386 = arith.constant 7 : index
    %c3_387 = arith.constant 3 : index
    %362 = vector.load %arg5[%c0_384, %c6_385, %c7_386, %c3_387] : memref<2x14x14x128xf32, #tpu.memory_space<vmem>>, vector<1x1x1x20xf32>
    %363 = vector.shape_cast %362 : vector<1x1x1x20xf32> to vector<20xf32>
    %364 = vector.shape_cast %361 : vector<20xf32> to vector<1x1x1x20xf32>
    tpu.vector_store %arg5[%c0_384, %c6_385, %c7_386, %c3_387], %364 {strides = array<i32>} : memref<2x14x14x128xf32, #tpu.memory_space<vmem>>, vector<1x1x1x20xf32>,
    %c1_388 = arith.constant 1 : index
    %c560_389 = arith.constant 560 : index
    %365 = vector.load %arg6[%c1_388, %c560_389] : memref<2x1280xf32, #tpu.memory_space<vmem>>, vector<1x20xf32>
    %366 = vector.shape_cast %365 : vector<1x20xf32> to vector<20xf32>
    %c1_390 = arith.constant 1 : index
    %c6_391 = arith.constant 6 : index
    %c7_392 = arith.constant 7 : index
    %c3_393 = arith.constant 3 : index
    %367 = vector.load %arg5[%c1_390, %c6_391, %c7_392, %c3_393] : memref<2x14x14x128xf32, #tpu.memory_space<vmem>>, vector<1x1x1x20xf32>
    %368 = vector.shape_cast %367 : vector<1x1x1x20xf32> to vector<20xf32>
    %369 = vector.shape_cast %366 : vector<20xf32> to vector<1x1x1x20xf32>
    tpu.vector_store %arg5[%c1_390, %c6_391, %c7_392, %c3_393], %369 {strides = array<i32>} : memref<2x14x14x128xf32, #tpu.memory_space<vmem>>, vector<1x1x1x20xf32>,
    %c0_394 = arith.constant 0 : index
    %c580 = arith.constant 580 : index
    %370 = vector.load %arg6[%c0_394, %c580] : memref<2x1280xf32, #tpu.memory_space<vmem>>, vector<1x20xf32>
    %371 = vector.shape_cast %370 : vector<1x20xf32> to vector<20xf32>
    %c0_395 = arith.constant 0 : index
    %c6_396 = arith.constant 6 : index
    %c8_397 = arith.constant 8 : index
    %c3_398 = arith.constant 3 : index
    %372 = vector.load %arg5[%c0_395, %c6_396, %c8_397, %c3_398] : memref<2x14x14x128xf32, #tpu.memory_space<vmem>>, vector<1x1x1x20xf32>
    %373 = vector.shape_cast %372 : vector<1x1x1x20xf32> to vector<20xf32>
    %374 = vector.shape_cast %371 : vector<20xf32> to vector<1x1x1x20xf32>
    tpu.vector_store %arg5[%c0_395, %c6_396, %c8_397, %c3_398], %374 {strides = array<i32>} : memref<2x14x14x128xf32, #tpu.memory_space<vmem>>, vector<1x1x1x20xf32>,
    %c1_399 = arith.constant 1 : index
    %c580_400 = arith.constant 580 : index
    %375 = vector.load %arg6[%c1_399, %c580_400] : memref<2x1280xf32, #tpu.memory_space<vmem>>, vector<1x20xf32>
    %376 = vector.shape_cast %375 : vector<1x20xf32> to vector<20xf32>
    %c1_401 = arith.constant 1 : index
    %c6_402 = arith.constant 6 : index
    %c8_403 = arith.constant 8 : index
    %c3_404 = arith.constant 3 : index
    %377 = vector.load %arg5[%c1_401, %c6_402, %c8_403, %c3_404] : memref<2x14x14x128xf32, #tpu.memory_space<vmem>>, vector<1x1x1x20xf32>
    %378 = vector.shape_cast %377 : vector<1x1x1x20xf32> to vector<20xf32>
    %379 = vector.shape_cast %376 : vector<20xf32> to vector<1x1x1x20xf32>
    tpu.vector_store %arg5[%c1_401, %c6_402, %c8_403, %c3_404], %379 {strides = array<i32>} : memref<2x14x14x128xf32, #tpu.memory_space<vmem>>, vector<1x1x1x20xf32>,
    %c0_405 = arith.constant 0 : index
    %c600 = arith.constant 600 : index
    %380 = vector.load %arg6[%c0_405, %c600] : memref<2x1280xf32, #tpu.memory_space<vmem>>, vector<1x20xf32>
    %381 = vector.shape_cast %380 : vector<1x20xf32> to vector<20xf32>
    %c0_406 = arith.constant 0 : index
    %c6_407 = arith.constant 6 : index
    %c9_408 = arith.constant 9 : index
    %c3_409 = arith.constant 3 : index
    %382 = vector.load %arg5[%c0_406, %c6_407, %c9_408, %c3_409] : memref<2x14x14x128xf32, #tpu.memory_space<vmem>>, vector<1x1x1x20xf32>
    %383 = vector.shape_cast %382 : vector<1x1x1x20xf32> to vector<20xf32>
    %384 = vector.shape_cast %381 : vector<20xf32> to vector<1x1x1x20xf32>
    tpu.vector_store %arg5[%c0_406, %c6_407, %c9_408, %c3_409], %384 {strides = array<i32>} : memref<2x14x14x128xf32, #tpu.memory_space<vmem>>, vector<1x1x1x20xf32>,
    %c1_410 = arith.constant 1 : index
    %c600_411 = arith.constant 600 : index
    %385 = vector.load %arg6[%c1_410, %c600_411] : memref<2x1280xf32, #tpu.memory_space<vmem>>, vector<1x20xf32>
    %386 = vector.shape_cast %385 : vector<1x20xf32> to vector<20xf32>
    %c1_412 = arith.constant 1 : index
    %c6_413 = arith.constant 6 : index
    %c9_414 = arith.constant 9 : index
    %c3_415 = arith.constant 3 : index
    %387 = vector.load %arg5[%c1_412, %c6_413, %c9_414, %c3_415] : memref<2x14x14x128xf32, #tpu.memory_space<vmem>>, vector<1x1x1x20xf32>
    %388 = vector.shape_cast %387 : vector<1x1x1x20xf32> to vector<20xf32>
    %389 = vector.shape_cast %386 : vector<20xf32> to vector<1x1x1x20xf32>
    tpu.vector_store %arg5[%c1_412, %c6_413, %c9_414, %c3_415], %389 {strides = array<i32>} : memref<2x14x14x128xf32, #tpu.memory_space<vmem>>, vector<1x1x1x20xf32>,
    %c0_416 = arith.constant 0 : index
    %c620 = arith.constant 620 : index
    %390 = vector.load %arg6[%c0_416, %c620] : memref<2x1280xf32, #tpu.memory_space<vmem>>, vector<1x20xf32>
    %391 = vector.shape_cast %390 : vector<1x20xf32> to vector<20xf32>
    %c0_417 = arith.constant 0 : index
    %c6_418 = arith.constant 6 : index
    %c10_419 = arith.constant 10 : index
    %c3_420 = arith.constant 3 : index
    %392 = vector.load %arg5[%c0_417, %c6_418, %c10_419, %c3_420] : memref<2x14x14x128xf32, #tpu.memory_space<vmem>>, vector<1x1x1x20xf32>
    %393 = vector.shape_cast %392 : vector<1x1x1x20xf32> to vector<20xf32>
    %394 = vector.shape_cast %391 : vector<20xf32> to vector<1x1x1x20xf32>
    tpu.vector_store %arg5[%c0_417, %c6_418, %c10_419, %c3_420], %394 {strides = array<i32>} : memref<2x14x14x128xf32, #tpu.memory_space<vmem>>, vector<1x1x1x20xf32>,
    %c1_421 = arith.constant 1 : index
    %c620_422 = arith.constant 620 : index
    %395 = vector.load %arg6[%c1_421, %c620_422] : memref<2x1280xf32, #tpu.memory_space<vmem>>, vector<1x20xf32>
    %396 = vector.shape_cast %395 : vector<1x20xf32> to vector<20xf32>
    %c1_423 = arith.constant 1 : index
    %c6_424 = arith.constant 6 : index
    %c10_425 = arith.constant 10 : index
    %c3_426 = arith.constant 3 : index
    %397 = vector.load %arg5[%c1_423, %c6_424, %c10_425, %c3_426] : memref<2x14x14x128xf32, #tpu.memory_space<vmem>>, vector<1x1x1x20xf32>
    %398 = vector.shape_cast %397 : vector<1x1x1x20xf32> to vector<20xf32>
    %399 = vector.shape_cast %396 : vector<20xf32> to vector<1x1x1x20xf32>
    tpu.vector_store %arg5[%c1_423, %c6_424, %c10_425, %c3_426], %399 {strides = array<i32>} : memref<2x14x14x128xf32, #tpu.memory_space<vmem>>, vector<1x1x1x20xf32>,
    %c0_427 = arith.constant 0 : index
    %c640 = arith.constant 640 : index
    %400 = vector.load %arg6[%c0_427, %c640] : memref<2x1280xf32, #tpu.memory_space<vmem>>, vector<1x20xf32>
    %401 = vector.shape_cast %400 : vector<1x20xf32> to vector<20xf32>
    %c0_428 = arith.constant 0 : index
    %c7_429 = arith.constant 7 : index
    %c3_430 = arith.constant 3 : index
    %c3_431 = arith.constant 3 : index
    %402 = vector.load %arg5[%c0_428, %c7_429, %c3_430, %c3_431] : memref<2x14x14x128xf32, #tpu.memory_space<vmem>>, vector<1x1x1x20xf32>
    %403 = vector.shape_cast %402 : vector<1x1x1x20xf32> to vector<20xf32>
    %404 = vector.shape_cast %401 : vector<20xf32> to vector<1x1x1x20xf32>
    tpu.vector_store %arg5[%c0_428, %c7_429, %c3_430, %c3_431], %404 {strides = array<i32>} : memref<2x14x14x128xf32, #tpu.memory_space<vmem>>, vector<1x1x1x20xf32>,
    %c1_432 = arith.constant 1 : index
    %c640_433 = arith.constant 640 : index
    %405 = vector.load %arg6[%c1_432, %c640_433] : memref<2x1280xf32, #tpu.memory_space<vmem>>, vector<1x20xf32>
    %406 = vector.shape_cast %405 : vector<1x20xf32> to vector<20xf32>
    %c1_434 = arith.constant 1 : index
    %c7_435 = arith.constant 7 : index
    %c3_436 = arith.constant 3 : index
    %c3_437 = arith.constant 3 : index
    %407 = vector.load %arg5[%c1_434, %c7_435, %c3_436, %c3_437] : memref<2x14x14x128xf32, #tpu.memory_space<vmem>>, vector<1x1x1x20xf32>
    %408 = vector.shape_cast %407 : vector<1x1x1x20xf32> to vector<20xf32>
    %409 = vector.shape_cast %406 : vector<20xf32> to vector<1x1x1x20xf32>
    tpu.vector_store %arg5[%c1_434, %c7_435, %c3_436, %c3_437], %409 {strides = array<i32>} : memref<2x14x14x128xf32, #tpu.memory_space<vmem>>, vector<1x1x1x20xf32>,
    %c0_438 = arith.constant 0 : index
    %c660 = arith.constant 660 : index
    %410 = vector.load %arg6[%c0_438, %c660] : memref<2x1280xf32, #tpu.memory_space<vmem>>, vector<1x20xf32>
    %411 = vector.shape_cast %410 : vector<1x20xf32> to vector<20xf32>
    %c0_439 = arith.constant 0 : index
    %c7_440 = arith.constant 7 : index
    %c4_441 = arith.constant 4 : index
    %c3_442 = arith.constant 3 : index
    %412 = vector.load %arg5[%c0_439, %c7_440, %c4_441, %c3_442] : memref<2x14x14x128xf32, #tpu.memory_space<vmem>>, vector<1x1x1x20xf32>
    %413 = vector.shape_cast %412 : vector<1x1x1x20xf32> to vector<20xf32>
    %414 = vector.shape_cast %411 : vector<20xf32> to vector<1x1x1x20xf32>
    tpu.vector_store %arg5[%c0_439, %c7_440, %c4_441, %c3_442], %414 {strides = array<i32>} : memref<2x14x14x128xf32, #tpu.memory_space<vmem>>, vector<1x1x1x20xf32>,
    %c1_443 = arith.constant 1 : index
    %c660_444 = arith.constant 660 : index
    %415 = vector.load %arg6[%c1_443, %c660_444] : memref<2x1280xf32, #tpu.memory_space<vmem>>, vector<1x20xf32>
    %416 = vector.shape_cast %415 : vector<1x20xf32> to vector<20xf32>
    %c1_445 = arith.constant 1 : index
    %c7_446 = arith.constant 7 : index
    %c4_447 = arith.constant 4 : index
    %c3_448 = arith.constant 3 : index
    %417 = vector.load %arg5[%c1_445, %c7_446, %c4_447, %c3_448] : memref<2x14x14x128xf32, #tpu.memory_space<vmem>>, vector<1x1x1x20xf32>
    %418 = vector.shape_cast %417 : vector<1x1x1x20xf32> to vector<20xf32>
    %419 = vector.shape_cast %416 : vector<20xf32> to vector<1x1x1x20xf32>
    tpu.vector_store %arg5[%c1_445, %c7_446, %c4_447, %c3_448], %419 {strides = array<i32>} : memref<2x14x14x128xf32, #tpu.memory_space<vmem>>, vector<1x1x1x20xf32>,
    %c0_449 = arith.constant 0 : index
    %c680 = arith.constant 680 : index
    %420 = vector.load %arg6[%c0_449, %c680] : memref<2x1280xf32, #tpu.memory_space<vmem>>, vector<1x20xf32>
    %421 = vector.shape_cast %420 : vector<1x20xf32> to vector<20xf32>
    %c0_450 = arith.constant 0 : index
    %c7_451 = arith.constant 7 : index
    %c5_452 = arith.constant 5 : index
    %c3_453 = arith.constant 3 : index
    %422 = vector.load %arg5[%c0_450, %c7_451, %c5_452, %c3_453] : memref<2x14x14x128xf32, #tpu.memory_space<vmem>>, vector<1x1x1x20xf32>
    %423 = vector.shape_cast %422 : vector<1x1x1x20xf32> to vector<20xf32>
    %424 = vector.shape_cast %421 : vector<20xf32> to vector<1x1x1x20xf32>
    tpu.vector_store %arg5[%c0_450, %c7_451, %c5_452, %c3_453], %424 {strides = array<i32>} : memref<2x14x14x128xf32, #tpu.memory_space<vmem>>, vector<1x1x1x20xf32>,
    %c1_454 = arith.constant 1 : index
    %c680_455 = arith.constant 680 : index
    %425 = vector.load %arg6[%c1_454, %c680_455] : memref<2x1280xf32, #tpu.memory_space<vmem>>, vector<1x20xf32>
    %426 = vector.shape_cast %425 : vector<1x20xf32> to vector<20xf32>
    %c1_456 = arith.constant 1 : index
    %c7_457 = arith.constant 7 : index
    %c5_458 = arith.constant 5 : index
    %c3_459 = arith.constant 3 : index
    %427 = vector.load %arg5[%c1_456, %c7_457, %c5_458, %c3_459] : memref<2x14x14x128xf32, #tpu.memory_space<vmem>>, vector<1x1x1x20xf32>
    %428 = vector.shape_cast %427 : vector<1x1x1x20xf32> to vector<20xf32>
    %429 = vector.shape_cast %426 : vector<20xf32> to vector<1x1x1x20xf32>
    tpu.vector_store %arg5[%c1_456, %c7_457, %c5_458, %c3_459], %429 {strides = array<i32>} : memref<2x14x14x128xf32, #tpu.memory_space<vmem>>, vector<1x1x1x20xf32>,
    %c0_460 = arith.constant 0 : index
    %c700 = arith.constant 700 : index
    %430 = vector.load %arg6[%c0_460, %c700] : memref<2x1280xf32, #tpu.memory_space<vmem>>, vector<1x20xf32>
    %431 = vector.shape_cast %430 : vector<1x20xf32> to vector<20xf32>
    %c0_461 = arith.constant 0 : index
    %c7_462 = arith.constant 7 : index
    %c6_463 = arith.constant 6 : index
    %c3_464 = arith.constant 3 : index
    %432 = vector.load %arg5[%c0_461, %c7_462, %c6_463, %c3_464] : memref<2x14x14x128xf32, #tpu.memory_space<vmem>>, vector<1x1x1x20xf32>
    %433 = vector.shape_cast %432 : vector<1x1x1x20xf32> to vector<20xf32>
    %434 = vector.shape_cast %431 : vector<20xf32> to vector<1x1x1x20xf32>
    tpu.vector_store %arg5[%c0_461, %c7_462, %c6_463, %c3_464], %434 {strides = array<i32>} : memref<2x14x14x128xf32, #tpu.memory_space<vmem>>, vector<1x1x1x20xf32>,
    %c1_465 = arith.constant 1 : index
    %c700_466 = arith.constant 700 : index
    %435 = vector.load %arg6[%c1_465, %c700_466] : memref<2x1280xf32, #tpu.memory_space<vmem>>, vector<1x20xf32>
    %436 = vector.shape_cast %435 : vector<1x20xf32> to vector<20xf32>
    %c1_467 = arith.constant 1 : index
    %c7_468 = arith.constant 7 : index
    %c6_469 = arith.constant 6 : index
    %c3_470 = arith.constant 3 : index
    %437 = vector.load %arg5[%c1_467, %c7_468, %c6_469, %c3_470] : memref<2x14x14x128xf32, #tpu.memory_space<vmem>>, vector<1x1x1x20xf32>
    %438 = vector.shape_cast %437 : vector<1x1x1x20xf32> to vector<20xf32>
    %439 = vector.shape_cast %436 : vector<20xf32> to vector<1x1x1x20xf32>
    tpu.vector_store %arg5[%c1_467, %c7_468, %c6_469, %c3_470], %439 {strides = array<i32>} : memref<2x14x14x128xf32, #tpu.memory_space<vmem>>, vector<1x1x1x20xf32>,
    %c0_471 = arith.constant 0 : index
    %c720 = arith.constant 720 : index
    %440 = vector.load %arg6[%c0_471, %c720] : memref<2x1280xf32, #tpu.memory_space<vmem>>, vector<1x20xf32>
    %441 = vector.shape_cast %440 : vector<1x20xf32> to vector<20xf32>
    %c0_472 = arith.constant 0 : index
    %c7_473 = arith.constant 7 : index
    %c7_474 = arith.constant 7 : index
    %c3_475 = arith.constant 3 : index
    %442 = vector.load %arg5[%c0_472, %c7_473, %c7_474, %c3_475] : memref<2x14x14x128xf32, #tpu.memory_space<vmem>>, vector<1x1x1x20xf32>
    %443 = vector.shape_cast %442 : vector<1x1x1x20xf32> to vector<20xf32>
    %444 = vector.shape_cast %441 : vector<20xf32> to vector<1x1x1x20xf32>
    tpu.vector_store %arg5[%c0_472, %c7_473, %c7_474, %c3_475], %444 {strides = array<i32>} : memref<2x14x14x128xf32, #tpu.memory_space<vmem>>, vector<1x1x1x20xf32>,
    %c1_476 = arith.constant 1 : index
    %c720_477 = arith.constant 720 : index
    %445 = vector.load %arg6[%c1_476, %c720_477] : memref<2x1280xf32, #tpu.memory_space<vmem>>, vector<1x20xf32>
    %446 = vector.shape_cast %445 : vector<1x20xf32> to vector<20xf32>
    %c1_478 = arith.constant 1 : index
    %c7_479 = arith.constant 7 : index
    %c7_480 = arith.constant 7 : index
    %c3_481 = arith.constant 3 : index
    %447 = vector.load %arg5[%c1_478, %c7_479, %c7_480, %c3_481] : memref<2x14x14x128xf32, #tpu.memory_space<vmem>>, vector<1x1x1x20xf32>
    %448 = vector.shape_cast %447 : vector<1x1x1x20xf32> to vector<20xf32>
    %449 = vector.shape_cast %446 : vector<20xf32> to vector<1x1x1x20xf32>
    tpu.vector_store %arg5[%c1_478, %c7_479, %c7_480, %c3_481], %449 {strides = array<i32>} : memref<2x14x14x128xf32, #tpu.memory_space<vmem>>, vector<1x1x1x20xf32>,
    %c0_482 = arith.constant 0 : index
    %c740 = arith.constant 740 : index
    %450 = vector.load %arg6[%c0_482, %c740] : memref<2x1280xf32, #tpu.memory_space<vmem>>, vector<1x20xf32>
    %451 = vector.shape_cast %450 : vector<1x20xf32> to vector<20xf32>
    %c0_483 = arith.constant 0 : index
    %c7_484 = arith.constant 7 : index
    %c8_485 = arith.constant 8 : index
    %c3_486 = arith.constant 3 : index
    %452 = vector.load %arg5[%c0_483, %c7_484, %c8_485, %c3_486] : memref<2x14x14x128xf32, #tpu.memory_space<vmem>>, vector<1x1x1x20xf32>
    %453 = vector.shape_cast %452 : vector<1x1x1x20xf32> to vector<20xf32>
    %454 = vector.shape_cast %451 : vector<20xf32> to vector<1x1x1x20xf32>
    tpu.vector_store %arg5[%c0_483, %c7_484, %c8_485, %c3_486], %454 {strides = array<i32>} : memref<2x14x14x128xf32, #tpu.memory_space<vmem>>, vector<1x1x1x20xf32>,
    %c1_487 = arith.constant 1 : index
    %c740_488 = arith.constant 740 : index
    %455 = vector.load %arg6[%c1_487, %c740_488] : memref<2x1280xf32, #tpu.memory_space<vmem>>, vector<1x20xf32>
    %456 = vector.shape_cast %455 : vector<1x20xf32> to vector<20xf32>
    %c1_489 = arith.constant 1 : index
    %c7_490 = arith.constant 7 : index
    %c8_491 = arith.constant 8 : index
    %c3_492 = arith.constant 3 : index
    %457 = vector.load %arg5[%c1_489, %c7_490, %c8_491, %c3_492] : memref<2x14x14x128xf32, #tpu.memory_space<vmem>>, vector<1x1x1x20xf32>
    %458 = vector.shape_cast %457 : vector<1x1x1x20xf32> to vector<20xf32>
    %459 = vector.shape_cast %456 : vector<20xf32> to vector<1x1x1x20xf32>
    tpu.vector_store %arg5[%c1_489, %c7_490, %c8_491, %c3_492], %459 {strides = array<i32>} : memref<2x14x14x128xf32, #tpu.memory_space<vmem>>, vector<1x1x1x20xf32>,
    %c0_493 = arith.constant 0 : index
    %c760 = arith.constant 760 : index
    %460 = vector.load %arg6[%c0_493, %c760] : memref<2x1280xf32, #tpu.memory_space<vmem>>, vector<1x20xf32>
    %461 = vector.shape_cast %460 : vector<1x20xf32> to vector<20xf32>
    %c0_494 = arith.constant 0 : index
    %c7_495 = arith.constant 7 : index
    %c9_496 = arith.constant 9 : index
    %c3_497 = arith.constant 3 : index
    %462 = vector.load %arg5[%c0_494, %c7_495, %c9_496, %c3_497] : memref<2x14x14x128xf32, #tpu.memory_space<vmem>>, vector<1x1x1x20xf32>
    %463 = vector.shape_cast %462 : vector<1x1x1x20xf32> to vector<20xf32>
    %464 = vector.shape_cast %461 : vector<20xf32> to vector<1x1x1x20xf32>
    tpu.vector_store %arg5[%c0_494, %c7_495, %c9_496, %c3_497], %464 {strides = array<i32>} : memref<2x14x14x128xf32, #tpu.memory_space<vmem>>, vector<1x1x1x20xf32>,
    %c1_498 = arith.constant 1 : index
    %c760_499 = arith.constant 760 : index
    %465 = vector.load %arg6[%c1_498, %c760_499] : memref<2x1280xf32, #tpu.memory_space<vmem>>, vector<1x20xf32>
    %466 = vector.shape_cast %465 : vector<1x20xf32> to vector<20xf32>
    %c1_500 = arith.constant 1 : index
    %c7_501 = arith.constant 7 : index
    %c9_502 = arith.constant 9 : index
    %c3_503 = arith.constant 3 : index
    %467 = vector.load %arg5[%c1_500, %c7_501, %c9_502, %c3_503] : memref<2x14x14x128xf32, #tpu.memory_space<vmem>>, vector<1x1x1x20xf32>
    %468 = vector.shape_cast %467 : vector<1x1x1x20xf32> to vector<20xf32>
    %469 = vector.shape_cast %466 : vector<20xf32> to vector<1x1x1x20xf32>
    tpu.vector_store %arg5[%c1_500, %c7_501, %c9_502, %c3_503], %469 {strides = array<i32>} : memref<2x14x14x128xf32, #tpu.memory_space<vmem>>, vector<1x1x1x20xf32>,
    %c0_504 = arith.constant 0 : index
    %c780 = arith.constant 780 : index
    %470 = vector.load %arg6[%c0_504, %c780] : memref<2x1280xf32, #tpu.memory_space<vmem>>, vector<1x20xf32>
    %471 = vector.shape_cast %470 : vector<1x20xf32> to vector<20xf32>
    %c0_505 = arith.constant 0 : index
    %c7_506 = arith.constant 7 : index
    %c10_507 = arith.constant 10 : index
    %c3_508 = arith.constant 3 : index
    %472 = vector.load %arg5[%c0_505, %c7_506, %c10_507, %c3_508] : memref<2x14x14x128xf32, #tpu.memory_space<vmem>>, vector<1x1x1x20xf32>
    %473 = vector.shape_cast %472 : vector<1x1x1x20xf32> to vector<20xf32>
    %474 = vector.shape_cast %471 : vector<20xf32> to vector<1x1x1x20xf32>
    tpu.vector_store %arg5[%c0_505, %c7_506, %c10_507, %c3_508], %474 {strides = array<i32>} : memref<2x14x14x128xf32, #tpu.memory_space<vmem>>, vector<1x1x1x20xf32>,
    %c1_509 = arith.constant 1 : index
    %c780_510 = arith.constant 780 : index
    %475 = vector.load %arg6[%c1_509, %c780_510] : memref<2x1280xf32, #tpu.memory_space<vmem>>, vector<1x20xf32>
    %476 = vector.shape_cast %475 : vector<1x20xf32> to vector<20xf32>
    %c1_511 = arith.constant 1 : index
    %c7_512 = arith.constant 7 : index
    %c10_513 = arith.constant 10 : index
    %c3_514 = arith.constant 3 : index
    %477 = vector.load %arg5[%c1_511, %c7_512, %c10_513, %c3_514] : memref<2x14x14x128xf32, #tpu.memory_space<vmem>>, vector<1x1x1x20xf32>
    %478 = vector.shape_cast %477 : vector<1x1x1x20xf32> to vector<20xf32>
    %479 = vector.shape_cast %476 : vector<20xf32> to vector<1x1x1x20xf32>
    tpu.vector_store %arg5[%c1_511, %c7_512, %c10_513, %c3_514], %479 {strides = array<i32>} : memref<2x14x14x128xf32, #tpu.memory_space<vmem>>, vector<1x1x1x20xf32>,
    %c0_515 = arith.constant 0 : index
    %c800 = arith.constant 800 : index
    %480 = vector.load %arg6[%c0_515, %c800] : memref<2x1280xf32, #tpu.memory_space<vmem>>, vector<1x20xf32>
    %481 = vector.shape_cast %480 : vector<1x20xf32> to vector<20xf32>
    %c0_516 = arith.constant 0 : index
    %c8_517 = arith.constant 8 : index
    %c3_518 = arith.constant 3 : index
    %c3_519 = arith.constant 3 : index
    %482 = vector.load %arg5[%c0_516, %c8_517, %c3_518, %c3_519] : memref<2x14x14x128xf32, #tpu.memory_space<vmem>>, vector<1x1x1x20xf32>
    %483 = vector.shape_cast %482 : vector<1x1x1x20xf32> to vector<20xf32>
    %484 = vector.shape_cast %481 : vector<20xf32> to vector<1x1x1x20xf32>
    tpu.vector_store %arg5[%c0_516, %c8_517, %c3_518, %c3_519], %484 {strides = array<i32>} : memref<2x14x14x128xf32, #tpu.memory_space<vmem>>, vector<1x1x1x20xf32>,
    %c1_520 = arith.constant 1 : index
    %c800_521 = arith.constant 800 : index
    %485 = vector.load %arg6[%c1_520, %c800_521] : memref<2x1280xf32, #tpu.memory_space<vmem>>, vector<1x20xf32>
    %486 = vector.shape_cast %485 : vector<1x20xf32> to vector<20xf32>
    %c1_522 = arith.constant 1 : index
    %c8_523 = arith.constant 8 : index
    %c3_524 = arith.constant 3 : index
    %c3_525 = arith.constant 3 : index
    %487 = vector.load %arg5[%c1_522, %c8_523, %c3_524, %c3_525] : memref<2x14x14x128xf32, #tpu.memory_space<vmem>>, vector<1x1x1x20xf32>
    %488 = vector.shape_cast %487 : vector<1x1x1x20xf32> to vector<20xf32>
    %489 = vector.shape_cast %486 : vector<20xf32> to vector<1x1x1x20xf32>
    tpu.vector_store %arg5[%c1_522, %c8_523, %c3_524, %c3_525], %489 {strides = array<i32>} : memref<2x14x14x128xf32, #tpu.memory_space<vmem>>, vector<1x1x1x20xf32>,
    %c0_526 = arith.constant 0 : index
    %c820 = arith.constant 820 : index
    %490 = vector.load %arg6[%c0_526, %c820] : memref<2x1280xf32, #tpu.memory_space<vmem>>, vector<1x20xf32>
    %491 = vector.shape_cast %490 : vector<1x20xf32> to vector<20xf32>
    %c0_527 = arith.constant 0 : index
    %c8_528 = arith.constant 8 : index
    %c4_529 = arith.constant 4 : index
    %c3_530 = arith.constant 3 : index
    %492 = vector.load %arg5[%c0_527, %c8_528, %c4_529, %c3_530] : memref<2x14x14x128xf32, #tpu.memory_space<vmem>>, vector<1x1x1x20xf32>
    %493 = vector.shape_cast %492 : vector<1x1x1x20xf32> to vector<20xf32>
    %494 = vector.shape_cast %491 : vector<20xf32> to vector<1x1x1x20xf32>
    tpu.vector_store %arg5[%c0_527, %c8_528, %c4_529, %c3_530], %494 {strides = array<i32>} : memref<2x14x14x128xf32, #tpu.memory_space<vmem>>, vector<1x1x1x20xf32>,
    %c1_531 = arith.constant 1 : index
    %c820_532 = arith.constant 820 : index
    %495 = vector.load %arg6[%c1_531, %c820_532] : memref<2x1280xf32, #tpu.memory_space<vmem>>, vector<1x20xf32>
    %496 = vector.shape_cast %495 : vector<1x20xf32> to vector<20xf32>
    %c1_533 = arith.constant 1 : index
    %c8_534 = arith.constant 8 : index
    %c4_535 = arith.constant 4 : index
    %c3_536 = arith.constant 3 : index
    %497 = vector.load %arg5[%c1_533, %c8_534, %c4_535, %c3_536] : memref<2x14x14x128xf32, #tpu.memory_space<vmem>>, vector<1x1x1x20xf32>
    %498 = vector.shape_cast %497 : vector<1x1x1x20xf32> to vector<20xf32>
    %499 = vector.shape_cast %496 : vector<20xf32> to vector<1x1x1x20xf32>
    tpu.vector_store %arg5[%c1_533, %c8_534, %c4_535, %c3_536], %499 {strides = array<i32>} : memref<2x14x14x128xf32, #tpu.memory_space<vmem>>, vector<1x1x1x20xf32>,
    %c0_537 = arith.constant 0 : index
    %c840 = arith.constant 840 : index
    %500 = vector.load %arg6[%c0_537, %c840] : memref<2x1280xf32, #tpu.memory_space<vmem>>, vector<1x20xf32>
    %501 = vector.shape_cast %500 : vector<1x20xf32> to vector<20xf32>
    %c0_538 = arith.constant 0 : index
    %c8_539 = arith.constant 8 : index
    %c5_540 = arith.constant 5 : index
    %c3_541 = arith.constant 3 : index
    %502 = vector.load %arg5[%c0_538, %c8_539, %c5_540, %c3_541] : memref<2x14x14x128xf32, #tpu.memory_space<vmem>>, vector<1x1x1x20xf32>
    %503 = vector.shape_cast %502 : vector<1x1x1x20xf32> to vector<20xf32>
    %504 = vector.shape_cast %501 : vector<20xf32> to vector<1x1x1x20xf32>
    tpu.vector_store %arg5[%c0_538, %c8_539, %c5_540, %c3_541], %504 {strides = array<i32>} : memref<2x14x14x128xf32, #tpu.memory_space<vmem>>, vector<1x1x1x20xf32>,
    %c1_542 = arith.constant 1 : index
    %c840_543 = arith.constant 840 : index
    %505 = vector.load %arg6[%c1_542, %c840_543] : memref<2x1280xf32, #tpu.memory_space<vmem>>, vector<1x20xf32>
    %506 = vector.shape_cast %505 : vector<1x20xf32> to vector<20xf32>
    %c1_544 = arith.constant 1 : index
    %c8_545 = arith.constant 8 : index
    %c5_546 = arith.constant 5 : index
    %c3_547 = arith.constant 3 : index
    %507 = vector.load %arg5[%c1_544, %c8_545, %c5_546, %c3_547] : memref<2x14x14x128xf32, #tpu.memory_space<vmem>>, vector<1x1x1x20xf32>
    %508 = vector.shape_cast %507 : vector<1x1x1x20xf32> to vector<20xf32>
    %509 = vector.shape_cast %506 : vector<20xf32> to vector<1x1x1x20xf32>
    tpu.vector_store %arg5[%c1_544, %c8_545, %c5_546, %c3_547], %509 {strides = array<i32>} : memref<2x14x14x128xf32, #tpu.memory_space<vmem>>, vector<1x1x1x20xf32>,
    %c0_548 = arith.constant 0 : index
    %c860 = arith.constant 860 : index
    %510 = vector.load %arg6[%c0_548, %c860] : memref<2x1280xf32, #tpu.memory_space<vmem>>, vector<1x20xf32>
    %511 = vector.shape_cast %510 : vector<1x20xf32> to vector<20xf32>
    %c0_549 = arith.constant 0 : index
    %c8_550 = arith.constant 8 : index
    %c6_551 = arith.constant 6 : index
    %c3_552 = arith.constant 3 : index
    %512 = vector.load %arg5[%c0_549, %c8_550, %c6_551, %c3_552] : memref<2x14x14x128xf32, #tpu.memory_space<vmem>>, vector<1x1x1x20xf32>
    %513 = vector.shape_cast %512 : vector<1x1x1x20xf32> to vector<20xf32>
    %514 = vector.shape_cast %511 : vector<20xf32> to vector<1x1x1x20xf32>
    tpu.vector_store %arg5[%c0_549, %c8_550, %c6_551, %c3_552], %514 {strides = array<i32>} : memref<2x14x14x128xf32, #tpu.memory_space<vmem>>, vector<1x1x1x20xf32>,
    %c1_553 = arith.constant 1 : index
    %c860_554 = arith.constant 860 : index
    %515 = vector.load %arg6[%c1_553, %c860_554] : memref<2x1280xf32, #tpu.memory_space<vmem>>, vector<1x20xf32>
    %516 = vector.shape_cast %515 : vector<1x20xf32> to vector<20xf32>
    %c1_555 = arith.constant 1 : index
    %c8_556 = arith.constant 8 : index
    %c6_557 = arith.constant 6 : index
    %c3_558 = arith.constant 3 : index
    %517 = vector.load %arg5[%c1_555, %c8_556, %c6_557, %c3_558] : memref<2x14x14x128xf32, #tpu.memory_space<vmem>>, vector<1x1x1x20xf32>
    %518 = vector.shape_cast %517 : vector<1x1x1x20xf32> to vector<20xf32>
    %519 = vector.shape_cast %516 : vector<20xf32> to vector<1x1x1x20xf32>
    tpu.vector_store %arg5[%c1_555, %c8_556, %c6_557, %c3_558], %519 {strides = array<i32>} : memref<2x14x14x128xf32, #tpu.memory_space<vmem>>, vector<1x1x1x20xf32>,
    %c0_559 = arith.constant 0 : index
    %c880 = arith.constant 880 : index
    %520 = vector.load %arg6[%c0_559, %c880] : memref<2x1280xf32, #tpu.memory_space<vmem>>, vector<1x20xf32>
    %521 = vector.shape_cast %520 : vector<1x20xf32> to vector<20xf32>
    %c0_560 = arith.constant 0 : index
    %c8_561 = arith.constant 8 : index
    %c7_562 = arith.constant 7 : index
    %c3_563 = arith.constant 3 : index
    %522 = vector.load %arg5[%c0_560, %c8_561, %c7_562, %c3_563] : memref<2x14x14x128xf32, #tpu.memory_space<vmem>>, vector<1x1x1x20xf32>
    %523 = vector.shape_cast %522 : vector<1x1x1x20xf32> to vector<20xf32>
    %524 = vector.shape_cast %521 : vector<20xf32> to vector<1x1x1x20xf32>
    tpu.vector_store %arg5[%c0_560, %c8_561, %c7_562, %c3_563], %524 {strides = array<i32>} : memref<2x14x14x128xf32, #tpu.memory_space<vmem>>, vector<1x1x1x20xf32>,
    %c1_564 = arith.constant 1 : index
    %c880_565 = arith.constant 880 : index
    %525 = vector.load %arg6[%c1_564, %c880_565] : memref<2x1280xf32, #tpu.memory_space<vmem>>, vector<1x20xf32>
    %526 = vector.shape_cast %525 : vector<1x20xf32> to vector<20xf32>
    %c1_566 = arith.constant 1 : index
    %c8_567 = arith.constant 8 : index
    %c7_568 = arith.constant 7 : index
    %c3_569 = arith.constant 3 : index
    %527 = vector.load %arg5[%c1_566, %c8_567, %c7_568, %c3_569] : memref<2x14x14x128xf32, #tpu.memory_space<vmem>>, vector<1x1x1x20xf32>
    %528 = vector.shape_cast %527 : vector<1x1x1x20xf32> to vector<20xf32>
    %529 = vector.shape_cast %526 : vector<20xf32> to vector<1x1x1x20xf32>
    tpu.vector_store %arg5[%c1_566, %c8_567, %c7_568, %c3_569], %529 {strides = array<i32>} : memref<2x14x14x128xf32, #tpu.memory_space<vmem>>, vector<1x1x1x20xf32>,
    %c0_570 = arith.constant 0 : index
    %c900 = arith.constant 900 : index
    %530 = vector.load %arg6[%c0_570, %c900] : memref<2x1280xf32, #tpu.memory_space<vmem>>, vector<1x20xf32>
    %531 = vector.shape_cast %530 : vector<1x20xf32> to vector<20xf32>
    %c0_571 = arith.constant 0 : index
    %c8_572 = arith.constant 8 : index
    %c8_573 = arith.constant 8 : index
    %c3_574 = arith.constant 3 : index
    %532 = vector.load %arg5[%c0_571, %c8_572, %c8_573, %c3_574] : memref<2x14x14x128xf32, #tpu.memory_space<vmem>>, vector<1x1x1x20xf32>
    %533 = vector.shape_cast %532 : vector<1x1x1x20xf32> to vector<20xf32>
    %534 = vector.shape_cast %531 : vector<20xf32> to vector<1x1x1x20xf32>
    tpu.vector_store %arg5[%c0_571, %c8_572, %c8_573, %c3_574], %534 {strides = array<i32>} : memref<2x14x14x128xf32, #tpu.memory_space<vmem>>, vector<1x1x1x20xf32>,
    %c1_575 = arith.constant 1 : index
    %c900_576 = arith.constant 900 : index
    %535 = vector.load %arg6[%c1_575, %c900_576] : memref<2x1280xf32, #tpu.memory_space<vmem>>, vector<1x20xf32>
    %536 = vector.shape_cast %535 : vector<1x20xf32> to vector<20xf32>
    %c1_577 = arith.constant 1 : index
    %c8_578 = arith.constant 8 : index
    %c8_579 = arith.constant 8 : index
    %c3_580 = arith.constant 3 : index
    %537 = vector.load %arg5[%c1_577, %c8_578, %c8_579, %c3_580] : memref<2x14x14x128xf32, #tpu.memory_space<vmem>>, vector<1x1x1x20xf32>
    %538 = vector.shape_cast %537 : vector<1x1x1x20xf32> to vector<20xf32>
    %539 = vector.shape_cast %536 : vector<20xf32> to vector<1x1x1x20xf32>
    tpu.vector_store %arg5[%c1_577, %c8_578, %c8_579, %c3_580], %539 {strides = array<i32>} : memref<2x14x14x128xf32, #tpu.memory_space<vmem>>, vector<1x1x1x20xf32>,
    %c0_581 = arith.constant 0 : index
    %c920 = arith.constant 920 : index
    %540 = vector.load %arg6[%c0_581, %c920] : memref<2x1280xf32, #tpu.memory_space<vmem>>, vector<1x20xf32>
    %541 = vector.shape_cast %540 : vector<1x20xf32> to vector<20xf32>
    %c0_582 = arith.constant 0 : index
    %c8_583 = arith.constant 8 : index
    %c9_584 = arith.constant 9 : index
    %c3_585 = arith.constant 3 : index
    %542 = vector.load %arg5[%c0_582, %c8_583, %c9_584, %c3_585] : memref<2x14x14x128xf32, #tpu.memory_space<vmem>>, vector<1x1x1x20xf32>
    %543 = vector.shape_cast %542 : vector<1x1x1x20xf32> to vector<20xf32>
    %544 = vector.shape_cast %541 : vector<20xf32> to vector<1x1x1x20xf32>
    tpu.vector_store %arg5[%c0_582, %c8_583, %c9_584, %c3_585], %544 {strides = array<i32>} : memref<2x14x14x128xf32, #tpu.memory_space<vmem>>, vector<1x1x1x20xf32>,
    %c1_586 = arith.constant 1 : index
    %c920_587 = arith.constant 920 : index
    %545 = vector.load %arg6[%c1_586, %c920_587] : memref<2x1280xf32, #tpu.memory_space<vmem>>, vector<1x20xf32>
    %546 = vector.shape_cast %545 : vector<1x20xf32> to vector<20xf32>
    %c1_588 = arith.constant 1 : index
    %c8_589 = arith.constant 8 : index
    %c9_590 = arith.constant 9 : index
    %c3_591 = arith.constant 3 : index
    %547 = vector.load %arg5[%c1_588, %c8_589, %c9_590, %c3_591] : memref<2x14x14x128xf32, #tpu.memory_space<vmem>>, vector<1x1x1x20xf32>
    %548 = vector.shape_cast %547 : vector<1x1x1x20xf32> to vector<20xf32>
    %549 = vector.shape_cast %546 : vector<20xf32> to vector<1x1x1x20xf32>
    tpu.vector_store %arg5[%c1_588, %c8_589, %c9_590, %c3_591], %549 {strides = array<i32>} : memref<2x14x14x128xf32, #tpu.memory_space<vmem>>, vector<1x1x1x20xf32>,
    %c0_592 = arith.constant 0 : index
    %c940 = arith.constant 940 : index
    %550 = vector.load %arg6[%c0_592, %c940] : memref<2x1280xf32, #tpu.memory_space<vmem>>, vector<1x20xf32>
    %551 = vector.shape_cast %550 : vector<1x20xf32> to vector<20xf32>
    %c0_593 = arith.constant 0 : index
    %c8_594 = arith.constant 8 : index
    %c10_595 = arith.constant 10 : index
    %c3_596 = arith.constant 3 : index
    %552 = vector.load %arg5[%c0_593, %c8_594, %c10_595, %c3_596] : memref<2x14x14x128xf32, #tpu.memory_space<vmem>>, vector<1x1x1x20xf32>
    %553 = vector.shape_cast %552 : vector<1x1x1x20xf32> to vector<20xf32>
    %554 = vector.shape_cast %551 : vector<20xf32> to vector<1x1x1x20xf32>
    tpu.vector_store %arg5[%c0_593, %c8_594, %c10_595, %c3_596], %554 {strides = array<i32>} : memref<2x14x14x128xf32, #tpu.memory_space<vmem>>, vector<1x1x1x20xf32>,
    %c1_597 = arith.constant 1 : index
    %c940_598 = arith.constant 940 : index
    %555 = vector.load %arg6[%c1_597, %c940_598] : memref<2x1280xf32, #tpu.memory_space<vmem>>, vector<1x20xf32>
    %556 = vector.shape_cast %555 : vector<1x20xf32> to vector<20xf32>
    %c1_599 = arith.constant 1 : index
    %c8_600 = arith.constant 8 : index
    %c10_601 = arith.constant 10 : index
    %c3_602 = arith.constant 3 : index
    %557 = vector.load %arg5[%c1_599, %c8_600, %c10_601, %c3_602] : memref<2x14x14x128xf32, #tpu.memory_space<vmem>>, vector<1x1x1x20xf32>
    %558 = vector.shape_cast %557 : vector<1x1x1x20xf32> to vector<20xf32>
    %559 = vector.shape_cast %556 : vector<20xf32> to vector<1x1x1x20xf32>
    tpu.vector_store %arg5[%c1_599, %c8_600, %c10_601, %c3_602], %559 {strides = array<i32>} : memref<2x14x14x128xf32, #tpu.memory_space<vmem>>, vector<1x1x1x20xf32>,
    %c0_603 = arith.constant 0 : index
    %c960 = arith.constant 960 : index
    %560 = vector.load %arg6[%c0_603, %c960] : memref<2x1280xf32, #tpu.memory_space<vmem>>, vector<1x20xf32>
    %561 = vector.shape_cast %560 : vector<1x20xf32> to vector<20xf32>
    %c0_604 = arith.constant 0 : index
    %c9_605 = arith.constant 9 : index
    %c3_606 = arith.constant 3 : index
    %c3_607 = arith.constant 3 : index
    %562 = vector.load %arg5[%c0_604, %c9_605, %c3_606, %c3_607] : memref<2x14x14x128xf32, #tpu.memory_space<vmem>>, vector<1x1x1x20xf32>
    %563 = vector.shape_cast %562 : vector<1x1x1x20xf32> to vector<20xf32>
    %564 = vector.shape_cast %561 : vector<20xf32> to vector<1x1x1x20xf32>
    tpu.vector_store %arg5[%c0_604, %c9_605, %c3_606, %c3_607], %564 {strides = array<i32>} : memref<2x14x14x128xf32, #tpu.memory_space<vmem>>, vector<1x1x1x20xf32>,
    %c1_608 = arith.constant 1 : index
    %c960_609 = arith.constant 960 : index
    %565 = vector.load %arg6[%c1_608, %c960_609] : memref<2x1280xf32, #tpu.memory_space<vmem>>, vector<1x20xf32>
    %566 = vector.shape_cast %565 : vector<1x20xf32> to vector<20xf32>
    %c1_610 = arith.constant 1 : index
    %c9_611 = arith.constant 9 : index
    %c3_612 = arith.constant 3 : index
    %c3_613 = arith.constant 3 : index
    %567 = vector.load %arg5[%c1_610, %c9_611, %c3_612, %c3_613] : memref<2x14x14x128xf32, #tpu.memory_space<vmem>>, vector<1x1x1x20xf32>
    %568 = vector.shape_cast %567 : vector<1x1x1x20xf32> to vector<20xf32>
    %569 = vector.shape_cast %566 : vector<20xf32> to vector<1x1x1x20xf32>
    tpu.vector_store %arg5[%c1_610, %c9_611, %c3_612, %c3_613], %569 {strides = array<i32>} : memref<2x14x14x128xf32, #tpu.memory_space<vmem>>, vector<1x1x1x20xf32>,
    %c0_614 = arith.constant 0 : index
    %c980 = arith.constant 980 : index
    %570 = vector.load %arg6[%c0_614, %c980] : memref<2x1280xf32, #tpu.memory_space<vmem>>, vector<1x20xf32>
    %571 = vector.shape_cast %570 : vector<1x20xf32> to vector<20xf32>
    %c0_615 = arith.constant 0 : index
    %c9_616 = arith.constant 9 : index
    %c4_617 = arith.constant 4 : index
    %c3_618 = arith.constant 3 : index
    %572 = vector.load %arg5[%c0_615, %c9_616, %c4_617, %c3_618] : memref<2x14x14x128xf32, #tpu.memory_space<vmem>>, vector<1x1x1x20xf32>
    %573 = vector.shape_cast %572 : vector<1x1x1x20xf32> to vector<20xf32>
    %574 = vector.shape_cast %571 : vector<20xf32> to vector<1x1x1x20xf32>
    tpu.vector_store %arg5[%c0_615, %c9_616, %c4_617, %c3_618], %574 {strides = array<i32>} : memref<2x14x14x128xf32, #tpu.memory_space<vmem>>, vector<1x1x1x20xf32>,
    %c1_619 = arith.constant 1 : index
    %c980_620 = arith.constant 980 : index
    %575 = vector.load %arg6[%c1_619, %c980_620] : memref<2x1280xf32, #tpu.memory_space<vmem>>, vector<1x20xf32>
    %576 = vector.shape_cast %575 : vector<1x20xf32> to vector<20xf32>
    %c1_621 = arith.constant 1 : index
    %c9_622 = arith.constant 9 : index
    %c4_623 = arith.constant 4 : index
    %c3_624 = arith.constant 3 : index
    %577 = vector.load %arg5[%c1_621, %c9_622, %c4_623, %c3_624] : memref<2x14x14x128xf32, #tpu.memory_space<vmem>>, vector<1x1x1x20xf32>
    %578 = vector.shape_cast %577 : vector<1x1x1x20xf32> to vector<20xf32>
    %579 = vector.shape_cast %576 : vector<20xf32> to vector<1x1x1x20xf32>
    tpu.vector_store %arg5[%c1_621, %c9_622, %c4_623, %c3_624], %579 {strides = array<i32>} : memref<2x14x14x128xf32, #tpu.memory_space<vmem>>, vector<1x1x1x20xf32>,
    %c0_625 = arith.constant 0 : index
    %c1000 = arith.constant 1000 : index
    %580 = vector.load %arg6[%c0_625, %c1000] : memref<2x1280xf32, #tpu.memory_space<vmem>>, vector<1x20xf32>
    %581 = vector.shape_cast %580 : vector<1x20xf32> to vector<20xf32>
    %c0_626 = arith.constant 0 : index
    %c9_627 = arith.constant 9 : index
    %c5_628 = arith.constant 5 : index
    %c3_629 = arith.constant 3 : index
    %582 = vector.load %arg5[%c0_626, %c9_627, %c5_628, %c3_629] : memref<2x14x14x128xf32, #tpu.memory_space<vmem>>, vector<1x1x1x20xf32>
    %583 = vector.shape_cast %582 : vector<1x1x1x20xf32> to vector<20xf32>
    %584 = vector.shape_cast %581 : vector<20xf32> to vector<1x1x1x20xf32>
    tpu.vector_store %arg5[%c0_626, %c9_627, %c5_628, %c3_629], %584 {strides = array<i32>} : memref<2x14x14x128xf32, #tpu.memory_space<vmem>>, vector<1x1x1x20xf32>,
    %c1_630 = arith.constant 1 : index
    %c1000_631 = arith.constant 1000 : index
    %585 = vector.load %arg6[%c1_630, %c1000_631] : memref<2x1280xf32, #tpu.memory_space<vmem>>, vector<1x20xf32>
    %586 = vector.shape_cast %585 : vector<1x20xf32> to vector<20xf32>
    %c1_632 = arith.constant 1 : index
    %c9_633 = arith.constant 9 : index
    %c5_634 = arith.constant 5 : index
    %c3_635 = arith.constant 3 : index
    %587 = vector.load %arg5[%c1_632, %c9_633, %c5_634, %c3_635] : memref<2x14x14x128xf32, #tpu.memory_space<vmem>>, vector<1x1x1x20xf32>
    %588 = vector.shape_cast %587 : vector<1x1x1x20xf32> to vector<20xf32>
    %589 = vector.shape_cast %586 : vector<20xf32> to vector<1x1x1x20xf32>
    tpu.vector_store %arg5[%c1_632, %c9_633, %c5_634, %c3_635], %589 {strides = array<i32>} : memref<2x14x14x128xf32, #tpu.memory_space<vmem>>, vector<1x1x1x20xf32>,
    %c0_636 = arith.constant 0 : index
    %c1020 = arith.constant 1020 : index
    %590 = vector.load %arg6[%c0_636, %c1020] : memref<2x1280xf32, #tpu.memory_space<vmem>>, vector<1x20xf32>
    %591 = vector.shape_cast %590 : vector<1x20xf32> to vector<20xf32>
    %c0_637 = arith.constant 0 : index
    %c9_638 = arith.constant 9 : index
    %c6_639 = arith.constant 6 : index
    %c3_640 = arith.constant 3 : index
    %592 = vector.load %arg5[%c0_637, %c9_638, %c6_639, %c3_640] : memref<2x14x14x128xf32, #tpu.memory_space<vmem>>, vector<1x1x1x20xf32>
    %593 = vector.shape_cast %592 : vector<1x1x1x20xf32> to vector<20xf32>
    %594 = vector.shape_cast %591 : vector<20xf32> to vector<1x1x1x20xf32>
    tpu.vector_store %arg5[%c0_637, %c9_638, %c6_639, %c3_640], %594 {strides = array<i32>} : memref<2x14x14x128xf32, #tpu.memory_space<vmem>>, vector<1x1x1x20xf32>,
    %c1_641 = arith.constant 1 : index
    %c1020_642 = arith.constant 1020 : index
    %595 = vector.load %arg6[%c1_641, %c1020_642] : memref<2x1280xf32, #tpu.memory_space<vmem>>, vector<1x20xf32>
    %596 = vector.shape_cast %595 : vector<1x20xf32> to vector<20xf32>
    %c1_643 = arith.constant 1 : index
    %c9_644 = arith.constant 9 : index
    %c6_645 = arith.constant 6 : index
    %c3_646 = arith.constant 3 : index
    %597 = vector.load %arg5[%c1_643, %c9_644, %c6_645, %c3_646] : memref<2x14x14x128xf32, #tpu.memory_space<vmem>>, vector<1x1x1x20xf32>
    %598 = vector.shape_cast %597 : vector<1x1x1x20xf32> to vector<20xf32>
    %599 = vector.shape_cast %596 : vector<20xf32> to vector<1x1x1x20xf32>
    tpu.vector_store %arg5[%c1_643, %c9_644, %c6_645, %c3_646], %599 {strides = array<i32>} : memref<2x14x14x128xf32, #tpu.memory_space<vmem>>, vector<1x1x1x20xf32>,
    %c0_647 = arith.constant 0 : index
    %c1040 = arith.constant 1040 : index
    %600 = vector.load %arg6[%c0_647, %c1040] : memref<2x1280xf32, #tpu.memory_space<vmem>>, vector<1x20xf32>
    %601 = vector.shape_cast %600 : vector<1x20xf32> to vector<20xf32>
    %c0_648 = arith.constant 0 : index
    %c9_649 = arith.constant 9 : index
    %c7_650 = arith.constant 7 : index
    %c3_651 = arith.constant 3 : index
    %602 = vector.load %arg5[%c0_648, %c9_649, %c7_650, %c3_651] : memref<2x14x14x128xf32, #tpu.memory_space<vmem>>, vector<1x1x1x20xf32>
    %603 = vector.shape_cast %602 : vector<1x1x1x20xf32> to vector<20xf32>
    %604 = vector.shape_cast %601 : vector<20xf32> to vector<1x1x1x20xf32>
    tpu.vector_store %arg5[%c0_648, %c9_649, %c7_650, %c3_651], %604 {strides = array<i32>} : memref<2x14x14x128xf32, #tpu.memory_space<vmem>>, vector<1x1x1x20xf32>,
    %c1_652 = arith.constant 1 : index
    %c1040_653 = arith.constant 1040 : index
    %605 = vector.load %arg6[%c1_652, %c1040_653] : memref<2x1280xf32, #tpu.memory_space<vmem>>, vector<1x20xf32>
    %606 = vector.shape_cast %605 : vector<1x20xf32> to vector<20xf32>
    %c1_654 = arith.constant 1 : index
    %c9_655 = arith.constant 9 : index
    %c7_656 = arith.constant 7 : index
    %c3_657 = arith.constant 3 : index
    %607 = vector.load %arg5[%c1_654, %c9_655, %c7_656, %c3_657] : memref<2x14x14x128xf32, #tpu.memory_space<vmem>>, vector<1x1x1x20xf32>
    %608 = vector.shape_cast %607 : vector<1x1x1x20xf32> to vector<20xf32>
    %609 = vector.shape_cast %606 : vector<20xf32> to vector<1x1x1x20xf32>
    tpu.vector_store %arg5[%c1_654, %c9_655, %c7_656, %c3_657], %609 {strides = array<i32>} : memref<2x14x14x128xf32, #tpu.memory_space<vmem>>, vector<1x1x1x20xf32>,
    %c0_658 = arith.constant 0 : index
    %c1060 = arith.constant 1060 : index
    %610 = vector.load %arg6[%c0_658, %c1060] : memref<2x1280xf32, #tpu.memory_space<vmem>>, vector<1x20xf32>
    %611 = vector.shape_cast %610 : vector<1x20xf32> to vector<20xf32>
    %c0_659 = arith.constant 0 : index
    %c9_660 = arith.constant 9 : index
    %c8_661 = arith.constant 8 : index
    %c3_662 = arith.constant 3 : index
    %612 = vector.load %arg5[%c0_659, %c9_660, %c8_661, %c3_662] : memref<2x14x14x128xf32, #tpu.memory_space<vmem>>, vector<1x1x1x20xf32>
    %613 = vector.shape_cast %612 : vector<1x1x1x20xf32> to vector<20xf32>
    %614 = vector.shape_cast %611 : vector<20xf32> to vector<1x1x1x20xf32>
    tpu.vector_store %arg5[%c0_659, %c9_660, %c8_661, %c3_662], %614 {strides = array<i32>} : memref<2x14x14x128xf32, #tpu.memory_space<vmem>>, vector<1x1x1x20xf32>,
    %c1_663 = arith.constant 1 : index
    %c1060_664 = arith.constant 1060 : index
    %615 = vector.load %arg6[%c1_663, %c1060_664] : memref<2x1280xf32, #tpu.memory_space<vmem>>, vector<1x20xf32>
    %616 = vector.shape_cast %615 : vector<1x20xf32> to vector<20xf32>
    %c1_665 = arith.constant 1 : index
    %c9_666 = arith.constant 9 : index
    %c8_667 = arith.constant 8 : index
    %c3_668 = arith.constant 3 : index
    %617 = vector.load %arg5[%c1_665, %c9_666, %c8_667, %c3_668] : memref<2x14x14x128xf32, #tpu.memory_space<vmem>>, vector<1x1x1x20xf32>
    %618 = vector.shape_cast %617 : vector<1x1x1x20xf32> to vector<20xf32>
    %619 = vector.shape_cast %616 : vector<20xf32> to vector<1x1x1x20xf32>
    tpu.vector_store %arg5[%c1_665, %c9_666, %c8_667, %c3_668], %619 {strides = array<i32>} : memref<2x14x14x128xf32, #tpu.memory_space<vmem>>, vector<1x1x1x20xf32>,
    %c0_669 = arith.constant 0 : index
    %c1080 = arith.constant 1080 : index
    %620 = vector.load %arg6[%c0_669, %c1080] : memref<2x1280xf32, #tpu.memory_space<vmem>>, vector<1x20xf32>
    %621 = vector.shape_cast %620 : vector<1x20xf32> to vector<20xf32>
    %c0_670 = arith.constant 0 : index
    %c9_671 = arith.constant 9 : index
    %c9_672 = arith.constant 9 : index
    %c3_673 = arith.constant 3 : index
    %622 = vector.load %arg5[%c0_670, %c9_671, %c9_672, %c3_673] : memref<2x14x14x128xf32, #tpu.memory_space<vmem>>, vector<1x1x1x20xf32>
    %623 = vector.shape_cast %622 : vector<1x1x1x20xf32> to vector<20xf32>
    %624 = vector.shape_cast %621 : vector<20xf32> to vector<1x1x1x20xf32>
    tpu.vector_store %arg5[%c0_670, %c9_671, %c9_672, %c3_673], %624 {strides = array<i32>} : memref<2x14x14x128xf32, #tpu.memory_space<vmem>>, vector<1x1x1x20xf32>,
    %c1_674 = arith.constant 1 : index
    %c1080_675 = arith.constant 1080 : index
    %625 = vector.load %arg6[%c1_674, %c1080_675] : memref<2x1280xf32, #tpu.memory_space<vmem>>, vector<1x20xf32>
    %626 = vector.shape_cast %625 : vector<1x20xf32> to vector<20xf32>
    %c1_676 = arith.constant 1 : index
    %c9_677 = arith.constant 9 : index
    %c9_678 = arith.constant 9 : index
    %c3_679 = arith.constant 3 : index
    %627 = vector.load %arg5[%c1_676, %c9_677, %c9_678, %c3_679] : memref<2x14x14x128xf32, #tpu.memory_space<vmem>>, vector<1x1x1x20xf32>
    %628 = vector.shape_cast %627 : vector<1x1x1x20xf32> to vector<20xf32>
    %629 = vector.shape_cast %626 : vector<20xf32> to vector<1x1x1x20xf32>
    tpu.vector_store %arg5[%c1_676, %c9_677, %c9_678, %c3_679], %629 {strides = array<i32>} : memref<2x14x14x128xf32, #tpu.memory_space<vmem>>, vector<1x1x1x20xf32>,
    %c0_680 = arith.constant 0 : index
    %c1100 = arith.constant 1100 : index
    %630 = vector.load %arg6[%c0_680, %c1100] : memref<2x1280xf32, #tpu.memory_space<vmem>>, vector<1x20xf32>
    %631 = vector.shape_cast %630 : vector<1x20xf32> to vector<20xf32>
    %c0_681 = arith.constant 0 : index
    %c9_682 = arith.constant 9 : index
    %c10_683 = arith.constant 10 : index
    %c3_684 = arith.constant 3 : index
    %632 = vector.load %arg5[%c0_681, %c9_682, %c10_683, %c3_684] : memref<2x14x14x128xf32, #tpu.memory_space<vmem>>, vector<1x1x1x20xf32>
    %633 = vector.shape_cast %632 : vector<1x1x1x20xf32> to vector<20xf32>
    %634 = vector.shape_cast %631 : vector<20xf32> to vector<1x1x1x20xf32>
    tpu.vector_store %arg5[%c0_681, %c9_682, %c10_683, %c3_684], %634 {strides = array<i32>} : memref<2x14x14x128xf32, #tpu.memory_space<vmem>>, vector<1x1x1x20xf32>,
    %c1_685 = arith.constant 1 : index
    %c1100_686 = arith.constant 1100 : index
    %635 = vector.load %arg6[%c1_685, %c1100_686] : memref<2x1280xf32, #tpu.memory_space<vmem>>, vector<1x20xf32>
    %636 = vector.shape_cast %635 : vector<1x20xf32> to vector<20xf32>
    %c1_687 = arith.constant 1 : index
    %c9_688 = arith.constant 9 : index
    %c10_689 = arith.constant 10 : index
    %c3_690 = arith.constant 3 : index
    %637 = vector.load %arg5[%c1_687, %c9_688, %c10_689, %c3_690] : memref<2x14x14x128xf32, #tpu.memory_space<vmem>>, vector<1x1x1x20xf32>
    %638 = vector.shape_cast %637 : vector<1x1x1x20xf32> to vector<20xf32>
    %639 = vector.shape_cast %636 : vector<20xf32> to vector<1x1x1x20xf32>
    tpu.vector_store %arg5[%c1_687, %c9_688, %c10_689, %c3_690], %639 {strides = array<i32>} : memref<2x14x14x128xf32, #tpu.memory_space<vmem>>, vector<1x1x1x20xf32>,
    %c0_691 = arith.constant 0 : index
    %c1120 = arith.constant 1120 : index
    %640 = vector.load %arg6[%c0_691, %c1120] : memref<2x1280xf32, #tpu.memory_space<vmem>>, vector<1x20xf32>
    %641 = vector.shape_cast %640 : vector<1x20xf32> to vector<20xf32>
    %c0_692 = arith.constant 0 : index
    %c10_693 = arith.constant 10 : index
    %c3_694 = arith.constant 3 : index
    %c3_695 = arith.constant 3 : index
    %642 = vector.load %arg5[%c0_692, %c10_693, %c3_694, %c3_695] : memref<2x14x14x128xf32, #tpu.memory_space<vmem>>, vector<1x1x1x20xf32>
    %643 = vector.shape_cast %642 : vector<1x1x1x20xf32> to vector<20xf32>
    %644 = vector.shape_cast %641 : vector<20xf32> to vector<1x1x1x20xf32>
    tpu.vector_store %arg5[%c0_692, %c10_693, %c3_694, %c3_695], %644 {strides = array<i32>} : memref<2x14x14x128xf32, #tpu.memory_space<vmem>>, vector<1x1x1x20xf32>,
    %c1_696 = arith.constant 1 : index
    %c1120_697 = arith.constant 1120 : index
    %645 = vector.load %arg6[%c1_696, %c1120_697] : memref<2x1280xf32, #tpu.memory_space<vmem>>, vector<1x20xf32>
    %646 = vector.shape_cast %645 : vector<1x20xf32> to vector<20xf32>
    %c1_698 = arith.constant 1 : index
    %c10_699 = arith.constant 10 : index
    %c3_700 = arith.constant 3 : index
    %c3_701 = arith.constant 3 : index
    %647 = vector.load %arg5[%c1_698, %c10_699, %c3_700, %c3_701] : memref<2x14x14x128xf32, #tpu.memory_space<vmem>>, vector<1x1x1x20xf32>
    %648 = vector.shape_cast %647 : vector<1x1x1x20xf32> to vector<20xf32>
    %649 = vector.shape_cast %646 : vector<20xf32> to vector<1x1x1x20xf32>
    tpu.vector_store %arg5[%c1_698, %c10_699, %c3_700, %c3_701], %649 {strides = array<i32>} : memref<2x14x14x128xf32, #tpu.memory_space<vmem>>, vector<1x1x1x20xf32>,
    %c0_702 = arith.constant 0 : index
    %c1140 = arith.constant 1140 : index
    %650 = vector.load %arg6[%c0_702, %c1140] : memref<2x1280xf32, #tpu.memory_space<vmem>>, vector<1x20xf32>
    %651 = vector.shape_cast %650 : vector<1x20xf32> to vector<20xf32>
    %c0_703 = arith.constant 0 : index
    %c10_704 = arith.constant 10 : index
    %c4_705 = arith.constant 4 : index
    %c3_706 = arith.constant 3 : index
    %652 = vector.load %arg5[%c0_703, %c10_704, %c4_705, %c3_706] : memref<2x14x14x128xf32, #tpu.memory_space<vmem>>, vector<1x1x1x20xf32>
    %653 = vector.shape_cast %652 : vector<1x1x1x20xf32> to vector<20xf32>
    %654 = vector.shape_cast %651 : vector<20xf32> to vector<1x1x1x20xf32>
    tpu.vector_store %arg5[%c0_703, %c10_704, %c4_705, %c3_706], %654 {strides = array<i32>} : memref<2x14x14x128xf32, #tpu.memory_space<vmem>>, vector<1x1x1x20xf32>,
    %c1_707 = arith.constant 1 : index
    %c1140_708 = arith.constant 1140 : index
    %655 = vector.load %arg6[%c1_707, %c1140_708] : memref<2x1280xf32, #tpu.memory_space<vmem>>, vector<1x20xf32>
    %656 = vector.shape_cast %655 : vector<1x20xf32> to vector<20xf32>
    %c1_709 = arith.constant 1 : index
    %c10_710 = arith.constant 10 : index
    %c4_711 = arith.constant 4 : index
    %c3_712 = arith.constant 3 : index
    %657 = vector.load %arg5[%c1_709, %c10_710, %c4_711, %c3_712] : memref<2x14x14x128xf32, #tpu.memory_space<vmem>>, vector<1x1x1x20xf32>
    %658 = vector.shape_cast %657 : vector<1x1x1x20xf32> to vector<20xf32>
    %659 = vector.shape_cast %656 : vector<20xf32> to vector<1x1x1x20xf32>
    tpu.vector_store %arg5[%c1_709, %c10_710, %c4_711, %c3_712], %659 {strides = array<i32>} : memref<2x14x14x128xf32, #tpu.memory_space<vmem>>, vector<1x1x1x20xf32>,
    %c0_713 = arith.constant 0 : index
    %c1160 = arith.constant 1160 : index
    %660 = vector.load %arg6[%c0_713, %c1160] : memref<2x1280xf32, #tpu.memory_space<vmem>>, vector<1x20xf32>
    %661 = vector.shape_cast %660 : vector<1x20xf32> to vector<20xf32>
    %c0_714 = arith.constant 0 : index
    %c10_715 = arith.constant 10 : index
    %c5_716 = arith.constant 5 : index
    %c3_717 = arith.constant 3 : index
    %662 = vector.load %arg5[%c0_714, %c10_715, %c5_716, %c3_717] : memref<2x14x14x128xf32, #tpu.memory_space<vmem>>, vector<1x1x1x20xf32>
    %663 = vector.shape_cast %662 : vector<1x1x1x20xf32> to vector<20xf32>
    %664 = vector.shape_cast %661 : vector<20xf32> to vector<1x1x1x20xf32>
    tpu.vector_store %arg5[%c0_714, %c10_715, %c5_716, %c3_717], %664 {strides = array<i32>} : memref<2x14x14x128xf32, #tpu.memory_space<vmem>>, vector<1x1x1x20xf32>,
    %c1_718 = arith.constant 1 : index
    %c1160_719 = arith.constant 1160 : index
    %665 = vector.load %arg6[%c1_718, %c1160_719] : memref<2x1280xf32, #tpu.memory_space<vmem>>, vector<1x20xf32>
    %666 = vector.shape_cast %665 : vector<1x20xf32> to vector<20xf32>
    %c1_720 = arith.constant 1 : index
    %c10_721 = arith.constant 10 : index
    %c5_722 = arith.constant 5 : index
    %c3_723 = arith.constant 3 : index
    %667 = vector.load %arg5[%c1_720, %c10_721, %c5_722, %c3_723] : memref<2x14x14x128xf32, #tpu.memory_space<vmem>>, vector<1x1x1x20xf32>
    %668 = vector.shape_cast %667 : vector<1x1x1x20xf32> to vector<20xf32>
    %669 = vector.shape_cast %666 : vector<20xf32> to vector<1x1x1x20xf32>
    tpu.vector_store %arg5[%c1_720, %c10_721, %c5_722, %c3_723], %669 {strides = array<i32>} : memref<2x14x14x128xf32, #tpu.memory_space<vmem>>, vector<1x1x1x20xf32>,
    %c0_724 = arith.constant 0 : index
    %c1180 = arith.constant 1180 : index
    %670 = vector.load %arg6[%c0_724, %c1180] : memref<2x1280xf32, #tpu.memory_space<vmem>>, vector<1x20xf32>
    %671 = vector.shape_cast %670 : vector<1x20xf32> to vector<20xf32>
    %c0_725 = arith.constant 0 : index
    %c10_726 = arith.constant 10 : index
    %c6_727 = arith.constant 6 : index
    %c3_728 = arith.constant 3 : index
    %672 = vector.load %arg5[%c0_725, %c10_726, %c6_727, %c3_728] : memref<2x14x14x128xf32, #tpu.memory_space<vmem>>, vector<1x1x1x20xf32>
    %673 = vector.shape_cast %672 : vector<1x1x1x20xf32> to vector<20xf32>
    %674 = vector.shape_cast %671 : vector<20xf32> to vector<1x1x1x20xf32>
    tpu.vector_store %arg5[%c0_725, %c10_726, %c6_727, %c3_728], %674 {strides = array<i32>} : memref<2x14x14x128xf32, #tpu.memory_space<vmem>>, vector<1x1x1x20xf32>,
    %c1_729 = arith.constant 1 : index
    %c1180_730 = arith.constant 1180 : index
    %675 = vector.load %arg6[%c1_729, %c1180_730] : memref<2x1280xf32, #tpu.memory_space<vmem>>, vector<1x20xf32>
    %676 = vector.shape_cast %675 : vector<1x20xf32> to vector<20xf32>
    %c1_731 = arith.constant 1 : index
    %c10_732 = arith.constant 10 : index
    %c6_733 = arith.constant 6 : index
    %c3_734 = arith.constant 3 : index
    %677 = vector.load %arg5[%c1_731, %c10_732, %c6_733, %c3_734] : memref<2x14x14x128xf32, #tpu.memory_space<vmem>>, vector<1x1x1x20xf32>
    %678 = vector.shape_cast %677 : vector<1x1x1x20xf32> to vector<20xf32>
    %679 = vector.shape_cast %676 : vector<20xf32> to vector<1x1x1x20xf32>
    tpu.vector_store %arg5[%c1_731, %c10_732, %c6_733, %c3_734], %679 {strides = array<i32>} : memref<2x14x14x128xf32, #tpu.memory_space<vmem>>, vector<1x1x1x20xf32>,
    %c0_735 = arith.constant 0 : index
    %c1200 = arith.constant 1200 : index
    %680 = vector.load %arg6[%c0_735, %c1200] : memref<2x1280xf32, #tpu.memory_space<vmem>>, vector<1x20xf32>
    %681 = vector.shape_cast %680 : vector<1x20xf32> to vector<20xf32>
    %c0_736 = arith.constant 0 : index
    %c10_737 = arith.constant 10 : index
    %c7_738 = arith.constant 7 : index
    %c3_739 = arith.constant 3 : index
    %682 = vector.load %arg5[%c0_736, %c10_737, %c7_738, %c3_739] : memref<2x14x14x128xf32, #tpu.memory_space<vmem>>, vector<1x1x1x20xf32>
    %683 = vector.shape_cast %682 : vector<1x1x1x20xf32> to vector<20xf32>
    %684 = vector.shape_cast %681 : vector<20xf32> to vector<1x1x1x20xf32>
    tpu.vector_store %arg5[%c0_736, %c10_737, %c7_738, %c3_739], %684 {strides = array<i32>} : memref<2x14x14x128xf32, #tpu.memory_space<vmem>>, vector<1x1x1x20xf32>,
    %c1_740 = arith.constant 1 : index
    %c1200_741 = arith.constant 1200 : index
    %685 = vector.load %arg6[%c1_740, %c1200_741] : memref<2x1280xf32, #tpu.memory_space<vmem>>, vector<1x20xf32>
    %686 = vector.shape_cast %685 : vector<1x20xf32> to vector<20xf32>
    %c1_742 = arith.constant 1 : index
    %c10_743 = arith.constant 10 : index
    %c7_744 = arith.constant 7 : index
    %c3_745 = arith.constant 3 : index
    %687 = vector.load %arg5[%c1_742, %c10_743, %c7_744, %c3_745] : memref<2x14x14x128xf32, #tpu.memory_space<vmem>>, vector<1x1x1x20xf32>
    %688 = vector.shape_cast %687 : vector<1x1x1x20xf32> to vector<20xf32>
    %689 = vector.shape_cast %686 : vector<20xf32> to vector<1x1x1x20xf32>
    tpu.vector_store %arg5[%c1_742, %c10_743, %c7_744, %c3_745], %689 {strides = array<i32>} : memref<2x14x14x128xf32, #tpu.memory_space<vmem>>, vector<1x1x1x20xf32>,
    %c0_746 = arith.constant 0 : index
    %c1220 = arith.constant 1220 : index
    %690 = vector.load %arg6[%c0_746, %c1220] : memref<2x1280xf32, #tpu.memory_space<vmem>>, vector<1x20xf32>
    %691 = vector.shape_cast %690 : vector<1x20xf32> to vector<20xf32>
    %c0_747 = arith.constant 0 : index
    %c10_748 = arith.constant 10 : index
    %c8_749 = arith.constant 8 : index
    %c3_750 = arith.constant 3 : index
    %692 = vector.load %arg5[%c0_747, %c10_748, %c8_749, %c3_750] : memref<2x14x14x128xf32, #tpu.memory_space<vmem>>, vector<1x1x1x20xf32>
    %693 = vector.shape_cast %692 : vector<1x1x1x20xf32> to vector<20xf32>
    %694 = vector.shape_cast %691 : vector<20xf32> to vector<1x1x1x20xf32>
    tpu.vector_store %arg5[%c0_747, %c10_748, %c8_749, %c3_750], %694 {strides = array<i32>} : memref<2x14x14x128xf32, #tpu.memory_space<vmem>>, vector<1x1x1x20xf32>,
    %c1_751 = arith.constant 1 : index
    %c1220_752 = arith.constant 1220 : index
    %695 = vector.load %arg6[%c1_751, %c1220_752] : memref<2x1280xf32, #tpu.memory_space<vmem>>, vector<1x20xf32>
    %696 = vector.shape_cast %695 : vector<1x20xf32> to vector<20xf32>
    %c1_753 = arith.constant 1 : index
    %c10_754 = arith.constant 10 : index
    %c8_755 = arith.constant 8 : index
    %c3_756 = arith.constant 3 : index
    %697 = vector.load %arg5[%c1_753, %c10_754, %c8_755, %c3_756] : memref<2x14x14x128xf32, #tpu.memory_space<vmem>>, vector<1x1x1x20xf32>
    %698 = vector.shape_cast %697 : vector<1x1x1x20xf32> to vector<20xf32>
    %699 = vector.shape_cast %696 : vector<20xf32> to vector<1x1x1x20xf32>
    tpu.vector_store %arg5[%c1_753, %c10_754, %c8_755, %c3_756], %699 {strides = array<i32>} : memref<2x14x14x128xf32, #tpu.memory_space<vmem>>, vector<1x1x1x20xf32>,
    %c0_757 = arith.constant 0 : index
    %c1240 = arith.constant 1240 : index
    %700 = vector.load %arg6[%c0_757, %c1240] : memref<2x1280xf32, #tpu.memory_space<vmem>>, vector<1x20xf32>
    %701 = vector.shape_cast %700 : vector<1x20xf32> to vector<20xf32>
    %c0_758 = arith.constant 0 : index
    %c10_759 = arith.constant 10 : index
    %c9_760 = arith.constant 9 : index
    %c3_761 = arith.constant 3 : index
    %702 = vector.load %arg5[%c0_758, %c10_759, %c9_760, %c3_761] : memref<2x14x14x128xf32, #tpu.memory_space<vmem>>, vector<1x1x1x20xf32>
    %703 = vector.shape_cast %702 : vector<1x1x1x20xf32> to vector<20xf32>
    %704 = vector.shape_cast %701 : vector<20xf32> to vector<1x1x1x20xf32>
    tpu.vector_store %arg5[%c0_758, %c10_759, %c9_760, %c3_761], %704 {strides = array<i32>} : memref<2x14x14x128xf32, #tpu.memory_space<vmem>>, vector<1x1x1x20xf32>,
    %c1_762 = arith.constant 1 : index
    %c1240_763 = arith.constant 1240 : index
    %705 = vector.load %arg6[%c1_762, %c1240_763] : memref<2x1280xf32, #tpu.memory_space<vmem>>, vector<1x20xf32>
    %706 = vector.shape_cast %705 : vector<1x20xf32> to vector<20xf32>
    %c1_764 = arith.constant 1 : index
    %c10_765 = arith.constant 10 : index
    %c9_766 = arith.constant 9 : index
    %c3_767 = arith.constant 3 : index
    %707 = vector.load %arg5[%c1_764, %c10_765, %c9_766, %c3_767] : memref<2x14x14x128xf32, #tpu.memory_space<vmem>>, vector<1x1x1x20xf32>
    %708 = vector.shape_cast %707 : vector<1x1x1x20xf32> to vector<20xf32>
    %709 = vector.shape_cast %706 : vector<20xf32> to vector<1x1x1x20xf32>
    tpu.vector_store %arg5[%c1_764, %c10_765, %c9_766, %c3_767], %709 {strides = array<i32>} : memref<2x14x14x128xf32, #tpu.memory_space<vmem>>, vector<1x1x1x20xf32>,
    %c0_768 = arith.constant 0 : index
    %c1260 = arith.constant 1260 : index
    %710 = vector.load %arg6[%c0_768, %c1260] : memref<2x1280xf32, #tpu.memory_space<vmem>>, vector<1x20xf32>
    %711 = vector.shape_cast %710 : vector<1x20xf32> to vector<20xf32>
    %c0_769 = arith.constant 0 : index
    %c10_770 = arith.constant 10 : index
    %c10_771 = arith.constant 10 : index
    %c3_772 = arith.constant 3 : index
    %712 = vector.load %arg5[%c0_769, %c10_770, %c10_771, %c3_772] : memref<2x14x14x128xf32, #tpu.memory_space<vmem>>, vector<1x1x1x20xf32>
    %713 = vector.shape_cast %712 : vector<1x1x1x20xf32> to vector<20xf32>
    %714 = vector.shape_cast %711 : vector<20xf32> to vector<1x1x1x20xf32>
    tpu.vector_store %arg5[%c0_769, %c10_770, %c10_771, %c3_772], %714 {strides = array<i32>} : memref<2x14x14x128xf32, #tpu.memory_space<vmem>>, vector<1x1x1x20xf32>,
    %c1_773 = arith.constant 1 : index
    %c1260_774 = arith.constant 1260 : index
    %715 = vector.load %arg6[%c1_773, %c1260_774] : memref<2x1280xf32, #tpu.memory_space<vmem>>, vector<1x20xf32>
    %716 = vector.shape_cast %715 : vector<1x20xf32> to vector<20xf32>
    %c1_775 = arith.constant 1 : index
    %c10_776 = arith.constant 10 : index
    %c10_777 = arith.constant 10 : index
    %c3_778 = arith.constant 3 : index
    %717 = vector.load %arg5[%c1_775, %c10_776, %c10_777, %c3_778] : memref<2x14x14x128xf32, #tpu.memory_space<vmem>>, vector<1x1x1x20xf32>
    %718 = vector.shape_cast %717 : vector<1x1x1x20xf32> to vector<20xf32>
    %719 = vector.shape_cast %716 : vector<20xf32> to vector<1x1x1x20xf32>
    tpu.vector_store %arg5[%c1_775, %c10_776, %c10_777, %c3_778], %719 {strides = array<i32>} : memref<2x14x14x128xf32, #tpu.memory_space<vmem>>, vector<1x1x1x20xf32>,
    %c0_i32 = arith.constant 0 : i32
    %c8_i32 = arith.constant 8 : i32
    %720 = arith.addi %c0_i32, %c8_i32 : i32
    %c1_i32 = arith.constant 1 : i32
    scf.for %arg9 = %c0_i32 to %720 step %c1_i32  : i32 {
      %cst_1127 = arith.constant 0.000000e+00 : f32
      %1077 = vector.broadcast %cst_1127 : f32 to vector<8x128xf32>
      %c0_i32_1128 = arith.constant 0 : i32
      %c7_i32 = arith.constant 7 : i32
      %1078 = arith.addi %c0_i32_1128, %c7_i32 : i32
      %c1_i32_1129 = arith.constant 1 : i32
      %1079 = scf.for %arg10 = %c0_i32_1128 to %1078 step %c1_i32_1129 iter_args(%arg11 = %1077) -> (vector<8x128xf32>)  : i32 {
        %1093 = arith.addi %arg9, %arg10 : i32
        %c0_1139 = arith.constant 0 : index
        %1094 = arith.index_cast %1093 : i32 to index
        %c0_1140 = arith.constant 0 : index
        %c0_1141 = arith.constant 0 : index
        %1095 = vector.load %arg5[%c0_1139, %1094, %c0_1140, %c0_1141] : memref<2x14x14x128xf32, #tpu.memory_space<vmem>>, vector<1x1x14x128xf32>
        %1096 = vector.shape_cast %1095 : vector<1x1x14x128xf32> to vector<14x128xf32>
        %c7_i32_1142 = arith.constant 7 : i32
        %1097 = arith.muli %arg10, %c7_i32_1142 : i32
        %c0_i32_1143 = arith.constant 0 : i32
        %1098 = arith.addi %1097, %c0_i32_1143 : i32
        %c7_i32_1144 = arith.constant 7 : i32
        %1099 = arith.muli %1098, %c7_i32_1144 : i32
        %c0_i32_1145 = arith.constant 0 : i32
        %1100 = arith.addi %c0_i32_1145, %1099 : i32
        %c0_i32_1146 = arith.constant 0 : i32
        %1101 = arith.addi %1100, %c0_i32_1146 : i32
        %1102 = arith.index_cast %1101 : i32 to index
        %1103 = memref.load %arg1[%1102] : memref<686xf32, #tpu.memory_space<smem>>
        %1104 = vector.extract_strided_slice %1096 {offsets = [0, 0], sizes = [8, 128], strides = [1, 1]} : vector<14x128xf32> to vector<8x128xf32>
        %1105 = vector.broadcast %1103 : f32 to vector<8x128xf32>
        %1106 = arith.mulf %1105, %1104 : vector<8x128xf32>
        %1107 = arith.addf %arg11, %1106 : vector<8x128xf32>
        %c7_i32_1147 = arith.constant 7 : i32
        %1108 = arith.muli %arg10, %c7_i32_1147 : i32
        %c1_i32_1148 = arith.constant 1 : i32
        %1109 = arith.addi %1108, %c1_i32_1148 : i32
        %c7_i32_1149 = arith.constant 7 : i32
        %1110 = arith.muli %1109, %c7_i32_1149 : i32
        %c0_i32_1150 = arith.constant 0 : i32
        %1111 = arith.addi %c0_i32_1150, %1110 : i32
        %c0_i32_1151 = arith.constant 0 : i32
        %1112 = arith.addi %1111, %c0_i32_1151 : i32
        %1113 = arith.index_cast %1112 : i32 to index
        %1114 = memref.load %arg1[%1113] : memref<686xf32, #tpu.memory_space<smem>>
        %1115 = vector.extract_strided_slice %1096 {offsets = [1, 0], sizes = [8, 128], strides = [1, 1]} : vector<14x128xf32> to vector<8x128xf32>
        %1116 = vector.broadcast %1114 : f32 to vector<8x128xf32>
        %1117 = arith.mulf %1116, %1115 : vector<8x128xf32>
        %1118 = arith.addf %1107, %1117 : vector<8x128xf32>
        %c7_i32_1152 = arith.constant 7 : i32
        %1119 = arith.muli %arg10, %c7_i32_1152 : i32
        %c2_i32 = arith.constant 2 : i32
        %1120 = arith.addi %1119, %c2_i32 : i32
        %c7_i32_1153 = arith.constant 7 : i32
        %1121 = arith.muli %1120, %c7_i32_1153 : i32
        %c0_i32_1154 = arith.constant 0 : i32
        %1122 = arith.addi %c0_i32_1154, %1121 : i32
        %c0_i32_1155 = arith.constant 0 : i32
        %1123 = arith.addi %1122, %c0_i32_1155 : i32
        %1124 = arith.index_cast %1123 : i32 to index
        %1125 = memref.load %arg1[%1124] : memref<686xf32, #tpu.memory_space<smem>>
        %1126 = vector.extract_strided_slice %1096 {offsets = [2, 0], sizes = [8, 128], strides = [1, 1]} : vector<14x128xf32> to vector<8x128xf32>
        %1127 = vector.broadcast %1125 : f32 to vector<8x128xf32>
        %1128 = arith.mulf %1127, %1126 : vector<8x128xf32>
        %1129 = arith.addf %1118, %1128 : vector<8x128xf32>
        %c7_i32_1156 = arith.constant 7 : i32
        %1130 = arith.muli %arg10, %c7_i32_1156 : i32
        %c3_i32 = arith.constant 3 : i32
        %1131 = arith.addi %1130, %c3_i32 : i32
        %c7_i32_1157 = arith.constant 7 : i32
        %1132 = arith.muli %1131, %c7_i32_1157 : i32
        %c0_i32_1158 = arith.constant 0 : i32
        %1133 = arith.addi %c0_i32_1158, %1132 : i32
        %c0_i32_1159 = arith.constant 0 : i32
        %1134 = arith.addi %1133, %c0_i32_1159 : i32
        %1135 = arith.index_cast %1134 : i32 to index
        %1136 = memref.load %arg1[%1135] : memref<686xf32, #tpu.memory_space<smem>>
        %1137 = vector.extract_strided_slice %1096 {offsets = [3, 0], sizes = [8, 128], strides = [1, 1]} : vector<14x128xf32> to vector<8x128xf32>
        %1138 = vector.broadcast %1136 : f32 to vector<8x128xf32>
        %1139 = arith.mulf %1138, %1137 : vector<8x128xf32>
        %1140 = arith.addf %1129, %1139 : vector<8x128xf32>
        %c7_i32_1160 = arith.constant 7 : i32
        %1141 = arith.muli %arg10, %c7_i32_1160 : i32
        %c4_i32 = arith.constant 4 : i32
        %1142 = arith.addi %1141, %c4_i32 : i32
        %c7_i32_1161 = arith.constant 7 : i32
        %1143 = arith.muli %1142, %c7_i32_1161 : i32
        %c0_i32_1162 = arith.constant 0 : i32
        %1144 = arith.addi %c0_i32_1162, %1143 : i32
        %c0_i32_1163 = arith.constant 0 : i32
        %1145 = arith.addi %1144, %c0_i32_1163 : i32
        %1146 = arith.index_cast %1145 : i32 to index
        %1147 = memref.load %arg1[%1146] : memref<686xf32, #tpu.memory_space<smem>>
        %1148 = vector.extract_strided_slice %1096 {offsets = [4, 0], sizes = [8, 128], strides = [1, 1]} : vector<14x128xf32> to vector<8x128xf32>
        %1149 = vector.broadcast %1147 : f32 to vector<8x128xf32>
        %1150 = arith.mulf %1149, %1148 : vector<8x128xf32>
        %1151 = arith.addf %1140, %1150 : vector<8x128xf32>
        %c7_i32_1164 = arith.constant 7 : i32
        %1152 = arith.muli %arg10, %c7_i32_1164 : i32
        %c5_i32 = arith.constant 5 : i32
        %1153 = arith.addi %1152, %c5_i32 : i32
        %c7_i32_1165 = arith.constant 7 : i32
        %1154 = arith.muli %1153, %c7_i32_1165 : i32
        %c0_i32_1166 = arith.constant 0 : i32
        %1155 = arith.addi %c0_i32_1166, %1154 : i32
        %c0_i32_1167 = arith.constant 0 : i32
        %1156 = arith.addi %1155, %c0_i32_1167 : i32
        %1157 = arith.index_cast %1156 : i32 to index
        %1158 = memref.load %arg1[%1157] : memref<686xf32, #tpu.memory_space<smem>>
        %1159 = vector.extract_strided_slice %1096 {offsets = [5, 0], sizes = [8, 128], strides = [1, 1]} : vector<14x128xf32> to vector<8x128xf32>
        %1160 = vector.broadcast %1158 : f32 to vector<8x128xf32>
        %1161 = arith.mulf %1160, %1159 : vector<8x128xf32>
        %1162 = arith.addf %1151, %1161 : vector<8x128xf32>
        %c7_i32_1168 = arith.constant 7 : i32
        %1163 = arith.muli %arg10, %c7_i32_1168 : i32
        %c6_i32 = arith.constant 6 : i32
        %1164 = arith.addi %1163, %c6_i32 : i32
        %c7_i32_1169 = arith.constant 7 : i32
        %1165 = arith.muli %1164, %c7_i32_1169 : i32
        %c0_i32_1170 = arith.constant 0 : i32
        %1166 = arith.addi %c0_i32_1170, %1165 : i32
        %c0_i32_1171 = arith.constant 0 : i32
        %1167 = arith.addi %1166, %c0_i32_1171 : i32
        %1168 = arith.index_cast %1167 : i32 to index
        %1169 = memref.load %arg1[%1168] : memref<686xf32, #tpu.memory_space<smem>>
        %1170 = vector.extract_strided_slice %1096 {offsets = [6, 0], sizes = [8, 128], strides = [1, 1]} : vector<14x128xf32> to vector<8x128xf32>
        %1171 = vector.broadcast %1169 : f32 to vector<8x128xf32>
        %1172 = arith.mulf %1171, %1170 : vector<8x128xf32>
        %1173 = arith.addf %1162, %1172 : vector<8x128xf32>
        %c127_i32 = arith.constant 127 : i32
        %1174 = tpu.dynamic_rotate %1096 by %c127_i32 dim 1 : vector<14x128xf32>, i32 -> vector<14x128xf32>
        %c7_i32_1172 = arith.constant 7 : i32
        %1175 = arith.muli %arg10, %c7_i32_1172 : i32
        %c0_i32_1173 = arith.constant 0 : i32
        %1176 = arith.addi %1175, %c0_i32_1173 : i32
        %c7_i32_1174 = arith.constant 7 : i32
        %1177 = arith.muli %1176, %c7_i32_1174 : i32
        %c0_i32_1175 = arith.constant 0 : i32
        %1178 = arith.addi %c0_i32_1175, %1177 : i32
        %c1_i32_1176 = arith.constant 1 : i32
        %1179 = arith.addi %1178, %c1_i32_1176 : i32
        %1180 = arith.index_cast %1179 : i32 to index
        %1181 = memref.load %arg1[%1180] : memref<686xf32, #tpu.memory_space<smem>>
        %1182 = vector.extract_strided_slice %1174 {offsets = [0, 0], sizes = [8, 128], strides = [1, 1]} : vector<14x128xf32> to vector<8x128xf32>
        %1183 = vector.broadcast %1181 : f32 to vector<8x128xf32>
        %1184 = arith.mulf %1183, %1182 : vector<8x128xf32>
        %1185 = arith.addf %1173, %1184 : vector<8x128xf32>
        %c7_i32_1177 = arith.constant 7 : i32
        %1186 = arith.muli %arg10, %c7_i32_1177 : i32
        %c1_i32_1178 = arith.constant 1 : i32
        %1187 = arith.addi %1186, %c1_i32_1178 : i32
        %c7_i32_1179 = arith.constant 7 : i32
        %1188 = arith.muli %1187, %c7_i32_1179 : i32
        %c0_i32_1180 = arith.constant 0 : i32
        %1189 = arith.addi %c0_i32_1180, %1188 : i32
        %c1_i32_1181 = arith.constant 1 : i32
        %1190 = arith.addi %1189, %c1_i32_1181 : i32
        %1191 = arith.index_cast %1190 : i32 to index
        %1192 = memref.load %arg1[%1191] : memref<686xf32, #tpu.memory_space<smem>>
        %1193 = vector.extract_strided_slice %1174 {offsets = [1, 0], sizes = [8, 128], strides = [1, 1]} : vector<14x128xf32> to vector<8x128xf32>
        %1194 = vector.broadcast %1192 : f32 to vector<8x128xf32>
        %1195 = arith.mulf %1194, %1193 : vector<8x128xf32>
        %1196 = arith.addf %1185, %1195 : vector<8x128xf32>
        %c7_i32_1182 = arith.constant 7 : i32
        %1197 = arith.muli %arg10, %c7_i32_1182 : i32
        %c2_i32_1183 = arith.constant 2 : i32
        %1198 = arith.addi %1197, %c2_i32_1183 : i32
        %c7_i32_1184 = arith.constant 7 : i32
        %1199 = arith.muli %1198, %c7_i32_1184 : i32
        %c0_i32_1185 = arith.constant 0 : i32
        %1200 = arith.addi %c0_i32_1185, %1199 : i32
        %c1_i32_1186 = arith.constant 1 : i32
        %1201 = arith.addi %1200, %c1_i32_1186 : i32
        %1202 = arith.index_cast %1201 : i32 to index
        %1203 = memref.load %arg1[%1202] : memref<686xf32, #tpu.memory_space<smem>>
        %1204 = vector.extract_strided_slice %1174 {offsets = [2, 0], sizes = [8, 128], strides = [1, 1]} : vector<14x128xf32> to vector<8x128xf32>
        %1205 = vector.broadcast %1203 : f32 to vector<8x128xf32>
        %1206 = arith.mulf %1205, %1204 : vector<8x128xf32>
        %1207 = arith.addf %1196, %1206 : vector<8x128xf32>
        %c7_i32_1187 = arith.constant 7 : i32
        %1208 = arith.muli %arg10, %c7_i32_1187 : i32
        %c3_i32_1188 = arith.constant 3 : i32
        %1209 = arith.addi %1208, %c3_i32_1188 : i32
        %c7_i32_1189 = arith.constant 7 : i32
        %1210 = arith.muli %1209, %c7_i32_1189 : i32
        %c0_i32_1190 = arith.constant 0 : i32
        %1211 = arith.addi %c0_i32_1190, %1210 : i32
        %c1_i32_1191 = arith.constant 1 : i32
        %1212 = arith.addi %1211, %c1_i32_1191 : i32
        %1213 = arith.index_cast %1212 : i32 to index
        %1214 = memref.load %arg1[%1213] : memref<686xf32, #tpu.memory_space<smem>>
        %1215 = vector.extract_strided_slice %1174 {offsets = [3, 0], sizes = [8, 128], strides = [1, 1]} : vector<14x128xf32> to vector<8x128xf32>
        %1216 = vector.broadcast %1214 : f32 to vector<8x128xf32>
        %1217 = arith.mulf %1216, %1215 : vector<8x128xf32>
        %1218 = arith.addf %1207, %1217 : vector<8x128xf32>
        %c7_i32_1192 = arith.constant 7 : i32
        %1219 = arith.muli %arg10, %c7_i32_1192 : i32
        %c4_i32_1193 = arith.constant 4 : i32
        %1220 = arith.addi %1219, %c4_i32_1193 : i32
        %c7_i32_1194 = arith.constant 7 : i32
        %1221 = arith.muli %1220, %c7_i32_1194 : i32
        %c0_i32_1195 = arith.constant 0 : i32
        %1222 = arith.addi %c0_i32_1195, %1221 : i32
        %c1_i32_1196 = arith.constant 1 : i32
        %1223 = arith.addi %1222, %c1_i32_1196 : i32
        %1224 = arith.index_cast %1223 : i32 to index
        %1225 = memref.load %arg1[%1224] : memref<686xf32, #tpu.memory_space<smem>>
        %1226 = vector.extract_strided_slice %1174 {offsets = [4, 0], sizes = [8, 128], strides = [1, 1]} : vector<14x128xf32> to vector<8x128xf32>
        %1227 = vector.broadcast %1225 : f32 to vector<8x128xf32>
        %1228 = arith.mulf %1227, %1226 : vector<8x128xf32>
        %1229 = arith.addf %1218, %1228 : vector<8x128xf32>
        %c7_i32_1197 = arith.constant 7 : i32
        %1230 = arith.muli %arg10, %c7_i32_1197 : i32
        %c5_i32_1198 = arith.constant 5 : i32
        %1231 = arith.addi %1230, %c5_i32_1198 : i32
        %c7_i32_1199 = arith.constant 7 : i32
        %1232 = arith.muli %1231, %c7_i32_1199 : i32
        %c0_i32_1200 = arith.constant 0 : i32
        %1233 = arith.addi %c0_i32_1200, %1232 : i32
        %c1_i32_1201 = arith.constant 1 : i32
        %1234 = arith.addi %1233, %c1_i32_1201 : i32
        %1235 = arith.index_cast %1234 : i32 to index
        %1236 = memref.load %arg1[%1235] : memref<686xf32, #tpu.memory_space<smem>>
        %1237 = vector.extract_strided_slice %1174 {offsets = [5, 0], sizes = [8, 128], strides = [1, 1]} : vector<14x128xf32> to vector<8x128xf32>
        %1238 = vector.broadcast %1236 : f32 to vector<8x128xf32>
        %1239 = arith.mulf %1238, %1237 : vector<8x128xf32>
        %1240 = arith.addf %1229, %1239 : vector<8x128xf32>
        %c7_i32_1202 = arith.constant 7 : i32
        %1241 = arith.muli %arg10, %c7_i32_1202 : i32
        %c6_i32_1203 = arith.constant 6 : i32
        %1242 = arith.addi %1241, %c6_i32_1203 : i32
        %c7_i32_1204 = arith.constant 7 : i32
        %1243 = arith.muli %1242, %c7_i32_1204 : i32
        %c0_i32_1205 = arith.constant 0 : i32
        %1244 = arith.addi %c0_i32_1205, %1243 : i32
        %c1_i32_1206 = arith.constant 1 : i32
        %1245 = arith.addi %1244, %c1_i32_1206 : i32
        %1246 = arith.index_cast %1245 : i32 to index
        %1247 = memref.load %arg1[%1246] : memref<686xf32, #tpu.memory_space<smem>>
        %1248 = vector.extract_strided_slice %1174 {offsets = [6, 0], sizes = [8, 128], strides = [1, 1]} : vector<14x128xf32> to vector<8x128xf32>
        %1249 = vector.broadcast %1247 : f32 to vector<8x128xf32>
        %1250 = arith.mulf %1249, %1248 : vector<8x128xf32>
        %1251 = arith.addf %1240, %1250 : vector<8x128xf32>
        %c126_i32 = arith.constant 126 : i32
        %1252 = tpu.dynamic_rotate %1096 by %c126_i32 dim 1 : vector<14x128xf32>, i32 -> vector<14x128xf32>
        %c7_i32_1207 = arith.constant 7 : i32
        %1253 = arith.muli %arg10, %c7_i32_1207 : i32
        %c0_i32_1208 = arith.constant 0 : i32
        %1254 = arith.addi %1253, %c0_i32_1208 : i32
        %c7_i32_1209 = arith.constant 7 : i32
        %1255 = arith.muli %1254, %c7_i32_1209 : i32
        %c0_i32_1210 = arith.constant 0 : i32
        %1256 = arith.addi %c0_i32_1210, %1255 : i32
        %c2_i32_1211 = arith.constant 2 : i32
        %1257 = arith.addi %1256, %c2_i32_1211 : i32
        %1258 = arith.index_cast %1257 : i32 to index
        %1259 = memref.load %arg1[%1258] : memref<686xf32, #tpu.memory_space<smem>>
        %1260 = vector.extract_strided_slice %1252 {offsets = [0, 0], sizes = [8, 128], strides = [1, 1]} : vector<14x128xf32> to vector<8x128xf32>
        %1261 = vector.broadcast %1259 : f32 to vector<8x128xf32>
        %1262 = arith.mulf %1261, %1260 : vector<8x128xf32>
        %1263 = arith.addf %1251, %1262 : vector<8x128xf32>
        %c7_i32_1212 = arith.constant 7 : i32
        %1264 = arith.muli %arg10, %c7_i32_1212 : i32
        %c1_i32_1213 = arith.constant 1 : i32
        %1265 = arith.addi %1264, %c1_i32_1213 : i32
        %c7_i32_1214 = arith.constant 7 : i32
        %1266 = arith.muli %1265, %c7_i32_1214 : i32
        %c0_i32_1215 = arith.constant 0 : i32
        %1267 = arith.addi %c0_i32_1215, %1266 : i32
        %c2_i32_1216 = arith.constant 2 : i32
        %1268 = arith.addi %1267, %c2_i32_1216 : i32
        %1269 = arith.index_cast %1268 : i32 to index
        %1270 = memref.load %arg1[%1269] : memref<686xf32, #tpu.memory_space<smem>>
        %1271 = vector.extract_strided_slice %1252 {offsets = [1, 0], sizes = [8, 128], strides = [1, 1]} : vector<14x128xf32> to vector<8x128xf32>
        %1272 = vector.broadcast %1270 : f32 to vector<8x128xf32>
        %1273 = arith.mulf %1272, %1271 : vector<8x128xf32>
        %1274 = arith.addf %1263, %1273 : vector<8x128xf32>
        %c7_i32_1217 = arith.constant 7 : i32
        %1275 = arith.muli %arg10, %c7_i32_1217 : i32
        %c2_i32_1218 = arith.constant 2 : i32
        %1276 = arith.addi %1275, %c2_i32_1218 : i32
        %c7_i32_1219 = arith.constant 7 : i32
        %1277 = arith.muli %1276, %c7_i32_1219 : i32
        %c0_i32_1220 = arith.constant 0 : i32
        %1278 = arith.addi %c0_i32_1220, %1277 : i32
        %c2_i32_1221 = arith.constant 2 : i32
        %1279 = arith.addi %1278, %c2_i32_1221 : i32
        %1280 = arith.index_cast %1279 : i32 to index
        %1281 = memref.load %arg1[%1280] : memref<686xf32, #tpu.memory_space<smem>>
        %1282 = vector.extract_strided_slice %1252 {offsets = [2, 0], sizes = [8, 128], strides = [1, 1]} : vector<14x128xf32> to vector<8x128xf32>
        %1283 = vector.broadcast %1281 : f32 to vector<8x128xf32>
        %1284 = arith.mulf %1283, %1282 : vector<8x128xf32>
        %1285 = arith.addf %1274, %1284 : vector<8x128xf32>
        %c7_i32_1222 = arith.constant 7 : i32
        %1286 = arith.muli %arg10, %c7_i32_1222 : i32
        %c3_i32_1223 = arith.constant 3 : i32
        %1287 = arith.addi %1286, %c3_i32_1223 : i32
        %c7_i32_1224 = arith.constant 7 : i32
        %1288 = arith.muli %1287, %c7_i32_1224 : i32
        %c0_i32_1225 = arith.constant 0 : i32
        %1289 = arith.addi %c0_i32_1225, %1288 : i32
        %c2_i32_1226 = arith.constant 2 : i32
        %1290 = arith.addi %1289, %c2_i32_1226 : i32
        %1291 = arith.index_cast %1290 : i32 to index
        %1292 = memref.load %arg1[%1291] : memref<686xf32, #tpu.memory_space<smem>>
        %1293 = vector.extract_strided_slice %1252 {offsets = [3, 0], sizes = [8, 128], strides = [1, 1]} : vector<14x128xf32> to vector<8x128xf32>
        %1294 = vector.broadcast %1292 : f32 to vector<8x128xf32>
        %1295 = arith.mulf %1294, %1293 : vector<8x128xf32>
        %1296 = arith.addf %1285, %1295 : vector<8x128xf32>
        %c7_i32_1227 = arith.constant 7 : i32
        %1297 = arith.muli %arg10, %c7_i32_1227 : i32
        %c4_i32_1228 = arith.constant 4 : i32
        %1298 = arith.addi %1297, %c4_i32_1228 : i32
        %c7_i32_1229 = arith.constant 7 : i32
        %1299 = arith.muli %1298, %c7_i32_1229 : i32
        %c0_i32_1230 = arith.constant 0 : i32
        %1300 = arith.addi %c0_i32_1230, %1299 : i32
        %c2_i32_1231 = arith.constant 2 : i32
        %1301 = arith.addi %1300, %c2_i32_1231 : i32
        %1302 = arith.index_cast %1301 : i32 to index
        %1303 = memref.load %arg1[%1302] : memref<686xf32, #tpu.memory_space<smem>>
        %1304 = vector.extract_strided_slice %1252 {offsets = [4, 0], sizes = [8, 128], strides = [1, 1]} : vector<14x128xf32> to vector<8x128xf32>
        %1305 = vector.broadcast %1303 : f32 to vector<8x128xf32>
        %1306 = arith.mulf %1305, %1304 : vector<8x128xf32>
        %1307 = arith.addf %1296, %1306 : vector<8x128xf32>
        %c7_i32_1232 = arith.constant 7 : i32
        %1308 = arith.muli %arg10, %c7_i32_1232 : i32
        %c5_i32_1233 = arith.constant 5 : i32
        %1309 = arith.addi %1308, %c5_i32_1233 : i32
        %c7_i32_1234 = arith.constant 7 : i32
        %1310 = arith.muli %1309, %c7_i32_1234 : i32
        %c0_i32_1235 = arith.constant 0 : i32
        %1311 = arith.addi %c0_i32_1235, %1310 : i32
        %c2_i32_1236 = arith.constant 2 : i32
        %1312 = arith.addi %1311, %c2_i32_1236 : i32
        %1313 = arith.index_cast %1312 : i32 to index
        %1314 = memref.load %arg1[%1313] : memref<686xf32, #tpu.memory_space<smem>>
        %1315 = vector.extract_strided_slice %1252 {offsets = [5, 0], sizes = [8, 128], strides = [1, 1]} : vector<14x128xf32> to vector<8x128xf32>
        %1316 = vector.broadcast %1314 : f32 to vector<8x128xf32>
        %1317 = arith.mulf %1316, %1315 : vector<8x128xf32>
        %1318 = arith.addf %1307, %1317 : vector<8x128xf32>
        %c7_i32_1237 = arith.constant 7 : i32
        %1319 = arith.muli %arg10, %c7_i32_1237 : i32
        %c6_i32_1238 = arith.constant 6 : i32
        %1320 = arith.addi %1319, %c6_i32_1238 : i32
        %c7_i32_1239 = arith.constant 7 : i32
        %1321 = arith.muli %1320, %c7_i32_1239 : i32
        %c0_i32_1240 = arith.constant 0 : i32
        %1322 = arith.addi %c0_i32_1240, %1321 : i32
        %c2_i32_1241 = arith.constant 2 : i32
        %1323 = arith.addi %1322, %c2_i32_1241 : i32
        %1324 = arith.index_cast %1323 : i32 to index
        %1325 = memref.load %arg1[%1324] : memref<686xf32, #tpu.memory_space<smem>>
        %1326 = vector.extract_strided_slice %1252 {offsets = [6, 0], sizes = [8, 128], strides = [1, 1]} : vector<14x128xf32> to vector<8x128xf32>
        %1327 = vector.broadcast %1325 : f32 to vector<8x128xf32>
        %1328 = arith.mulf %1327, %1326 : vector<8x128xf32>
        %1329 = arith.addf %1318, %1328 : vector<8x128xf32>
        %c125_i32 = arith.constant 125 : i32
        %1330 = tpu.dynamic_rotate %1096 by %c125_i32 dim 1 : vector<14x128xf32>, i32 -> vector<14x128xf32>
        %c7_i32_1242 = arith.constant 7 : i32
        %1331 = arith.muli %arg10, %c7_i32_1242 : i32
        %c0_i32_1243 = arith.constant 0 : i32
        %1332 = arith.addi %1331, %c0_i32_1243 : i32
        %c7_i32_1244 = arith.constant 7 : i32
        %1333 = arith.muli %1332, %c7_i32_1244 : i32
        %c0_i32_1245 = arith.constant 0 : i32
        %1334 = arith.addi %c0_i32_1245, %1333 : i32
        %c3_i32_1246 = arith.constant 3 : i32
        %1335 = arith.addi %1334, %c3_i32_1246 : i32
        %1336 = arith.index_cast %1335 : i32 to index
        %1337 = memref.load %arg1[%1336] : memref<686xf32, #tpu.memory_space<smem>>
        %1338 = vector.extract_strided_slice %1330 {offsets = [0, 0], sizes = [8, 128], strides = [1, 1]} : vector<14x128xf32> to vector<8x128xf32>
        %1339 = vector.broadcast %1337 : f32 to vector<8x128xf32>
        %1340 = arith.mulf %1339, %1338 : vector<8x128xf32>
        %1341 = arith.addf %1329, %1340 : vector<8x128xf32>
        %c7_i32_1247 = arith.constant 7 : i32
        %1342 = arith.muli %arg10, %c7_i32_1247 : i32
        %c1_i32_1248 = arith.constant 1 : i32
        %1343 = arith.addi %1342, %c1_i32_1248 : i32
        %c7_i32_1249 = arith.constant 7 : i32
        %1344 = arith.muli %1343, %c7_i32_1249 : i32
        %c0_i32_1250 = arith.constant 0 : i32
        %1345 = arith.addi %c0_i32_1250, %1344 : i32
        %c3_i32_1251 = arith.constant 3 : i32
        %1346 = arith.addi %1345, %c3_i32_1251 : i32
        %1347 = arith.index_cast %1346 : i32 to index
        %1348 = memref.load %arg1[%1347] : memref<686xf32, #tpu.memory_space<smem>>
        %1349 = vector.extract_strided_slice %1330 {offsets = [1, 0], sizes = [8, 128], strides = [1, 1]} : vector<14x128xf32> to vector<8x128xf32>
        %1350 = vector.broadcast %1348 : f32 to vector<8x128xf32>
        %1351 = arith.mulf %1350, %1349 : vector<8x128xf32>
        %1352 = arith.addf %1341, %1351 : vector<8x128xf32>
        %c7_i32_1252 = arith.constant 7 : i32
        %1353 = arith.muli %arg10, %c7_i32_1252 : i32
        %c2_i32_1253 = arith.constant 2 : i32
        %1354 = arith.addi %1353, %c2_i32_1253 : i32
        %c7_i32_1254 = arith.constant 7 : i32
        %1355 = arith.muli %1354, %c7_i32_1254 : i32
        %c0_i32_1255 = arith.constant 0 : i32
        %1356 = arith.addi %c0_i32_1255, %1355 : i32
        %c3_i32_1256 = arith.constant 3 : i32
        %1357 = arith.addi %1356, %c3_i32_1256 : i32
        %1358 = arith.index_cast %1357 : i32 to index
        %1359 = memref.load %arg1[%1358] : memref<686xf32, #tpu.memory_space<smem>>
        %1360 = vector.extract_strided_slice %1330 {offsets = [2, 0], sizes = [8, 128], strides = [1, 1]} : vector<14x128xf32> to vector<8x128xf32>
        %1361 = vector.broadcast %1359 : f32 to vector<8x128xf32>
        %1362 = arith.mulf %1361, %1360 : vector<8x128xf32>
        %1363 = arith.addf %1352, %1362 : vector<8x128xf32>
        %c7_i32_1257 = arith.constant 7 : i32
        %1364 = arith.muli %arg10, %c7_i32_1257 : i32
        %c3_i32_1258 = arith.constant 3 : i32
        %1365 = arith.addi %1364, %c3_i32_1258 : i32
        %c7_i32_1259 = arith.constant 7 : i32
        %1366 = arith.muli %1365, %c7_i32_1259 : i32
        %c0_i32_1260 = arith.constant 0 : i32
        %1367 = arith.addi %c0_i32_1260, %1366 : i32
        %c3_i32_1261 = arith.constant 3 : i32
        %1368 = arith.addi %1367, %c3_i32_1261 : i32
        %1369 = arith.index_cast %1368 : i32 to index
        %1370 = memref.load %arg1[%1369] : memref<686xf32, #tpu.memory_space<smem>>
        %1371 = vector.extract_strided_slice %1330 {offsets = [3, 0], sizes = [8, 128], strides = [1, 1]} : vector<14x128xf32> to vector<8x128xf32>
        %1372 = vector.broadcast %1370 : f32 to vector<8x128xf32>
        %1373 = arith.mulf %1372, %1371 : vector<8x128xf32>
        %1374 = arith.addf %1363, %1373 : vector<8x128xf32>
        %c7_i32_1262 = arith.constant 7 : i32
        %1375 = arith.muli %arg10, %c7_i32_1262 : i32
        %c4_i32_1263 = arith.constant 4 : i32
        %1376 = arith.addi %1375, %c4_i32_1263 : i32
        %c7_i32_1264 = arith.constant 7 : i32
        %1377 = arith.muli %1376, %c7_i32_1264 : i32
        %c0_i32_1265 = arith.constant 0 : i32
        %1378 = arith.addi %c0_i32_1265, %1377 : i32
        %c3_i32_1266 = arith.constant 3 : i32
        %1379 = arith.addi %1378, %c3_i32_1266 : i32
        %1380 = arith.index_cast %1379 : i32 to index
        %1381 = memref.load %arg1[%1380] : memref<686xf32, #tpu.memory_space<smem>>
        %1382 = vector.extract_strided_slice %1330 {offsets = [4, 0], sizes = [8, 128], strides = [1, 1]} : vector<14x128xf32> to vector<8x128xf32>
        %1383 = vector.broadcast %1381 : f32 to vector<8x128xf32>
        %1384 = arith.mulf %1383, %1382 : vector<8x128xf32>
        %1385 = arith.addf %1374, %1384 : vector<8x128xf32>
        %c7_i32_1267 = arith.constant 7 : i32
        %1386 = arith.muli %arg10, %c7_i32_1267 : i32
        %c5_i32_1268 = arith.constant 5 : i32
        %1387 = arith.addi %1386, %c5_i32_1268 : i32
        %c7_i32_1269 = arith.constant 7 : i32
        %1388 = arith.muli %1387, %c7_i32_1269 : i32
        %c0_i32_1270 = arith.constant 0 : i32
        %1389 = arith.addi %c0_i32_1270, %1388 : i32
        %c3_i32_1271 = arith.constant 3 : i32
        %1390 = arith.addi %1389, %c3_i32_1271 : i32
        %1391 = arith.index_cast %1390 : i32 to index
        %1392 = memref.load %arg1[%1391] : memref<686xf32, #tpu.memory_space<smem>>
        %1393 = vector.extract_strided_slice %1330 {offsets = [5, 0], sizes = [8, 128], strides = [1, 1]} : vector<14x128xf32> to vector<8x128xf32>
        %1394 = vector.broadcast %1392 : f32 to vector<8x128xf32>
        %1395 = arith.mulf %1394, %1393 : vector<8x128xf32>
        %1396 = arith.addf %1385, %1395 : vector<8x128xf32>
        %c7_i32_1272 = arith.constant 7 : i32
        %1397 = arith.muli %arg10, %c7_i32_1272 : i32
        %c6_i32_1273 = arith.constant 6 : i32
        %1398 = arith.addi %1397, %c6_i32_1273 : i32
        %c7_i32_1274 = arith.constant 7 : i32
        %1399 = arith.muli %1398, %c7_i32_1274 : i32
        %c0_i32_1275 = arith.constant 0 : i32
        %1400 = arith.addi %c0_i32_1275, %1399 : i32
        %c3_i32_1276 = arith.constant 3 : i32
        %1401 = arith.addi %1400, %c3_i32_1276 : i32
        %1402 = arith.index_cast %1401 : i32 to index
        %1403 = memref.load %arg1[%1402] : memref<686xf32, #tpu.memory_space<smem>>
        %1404 = vector.extract_strided_slice %1330 {offsets = [6, 0], sizes = [8, 128], strides = [1, 1]} : vector<14x128xf32> to vector<8x128xf32>
        %1405 = vector.broadcast %1403 : f32 to vector<8x128xf32>
        %1406 = arith.mulf %1405, %1404 : vector<8x128xf32>
        %1407 = arith.addf %1396, %1406 : vector<8x128xf32>
        %c124_i32 = arith.constant 124 : i32
        %1408 = tpu.dynamic_rotate %1096 by %c124_i32 dim 1 : vector<14x128xf32>, i32 -> vector<14x128xf32>
        %c7_i32_1277 = arith.constant 7 : i32
        %1409 = arith.muli %arg10, %c7_i32_1277 : i32
        %c0_i32_1278 = arith.constant 0 : i32
        %1410 = arith.addi %1409, %c0_i32_1278 : i32
        %c7_i32_1279 = arith.constant 7 : i32
        %1411 = arith.muli %1410, %c7_i32_1279 : i32
        %c0_i32_1280 = arith.constant 0 : i32
        %1412 = arith.addi %c0_i32_1280, %1411 : i32
        %c4_i32_1281 = arith.constant 4 : i32
        %1413 = arith.addi %1412, %c4_i32_1281 : i32
        %1414 = arith.index_cast %1413 : i32 to index
        %1415 = memref.load %arg1[%1414] : memref<686xf32, #tpu.memory_space<smem>>
        %1416 = vector.extract_strided_slice %1408 {offsets = [0, 0], sizes = [8, 128], strides = [1, 1]} : vector<14x128xf32> to vector<8x128xf32>
        %1417 = vector.broadcast %1415 : f32 to vector<8x128xf32>
        %1418 = arith.mulf %1417, %1416 : vector<8x128xf32>
        %1419 = arith.addf %1407, %1418 : vector<8x128xf32>
        %c7_i32_1282 = arith.constant 7 : i32
        %1420 = arith.muli %arg10, %c7_i32_1282 : i32
        %c1_i32_1283 = arith.constant 1 : i32
        %1421 = arith.addi %1420, %c1_i32_1283 : i32
        %c7_i32_1284 = arith.constant 7 : i32
        %1422 = arith.muli %1421, %c7_i32_1284 : i32
        %c0_i32_1285 = arith.constant 0 : i32
        %1423 = arith.addi %c0_i32_1285, %1422 : i32
        %c4_i32_1286 = arith.constant 4 : i32
        %1424 = arith.addi %1423, %c4_i32_1286 : i32
        %1425 = arith.index_cast %1424 : i32 to index
        %1426 = memref.load %arg1[%1425] : memref<686xf32, #tpu.memory_space<smem>>
        %1427 = vector.extract_strided_slice %1408 {offsets = [1, 0], sizes = [8, 128], strides = [1, 1]} : vector<14x128xf32> to vector<8x128xf32>
        %1428 = vector.broadcast %1426 : f32 to vector<8x128xf32>
        %1429 = arith.mulf %1428, %1427 : vector<8x128xf32>
        %1430 = arith.addf %1419, %1429 : vector<8x128xf32>
        %c7_i32_1287 = arith.constant 7 : i32
        %1431 = arith.muli %arg10, %c7_i32_1287 : i32
        %c2_i32_1288 = arith.constant 2 : i32
        %1432 = arith.addi %1431, %c2_i32_1288 : i32
        %c7_i32_1289 = arith.constant 7 : i32
        %1433 = arith.muli %1432, %c7_i32_1289 : i32
        %c0_i32_1290 = arith.constant 0 : i32
        %1434 = arith.addi %c0_i32_1290, %1433 : i32
        %c4_i32_1291 = arith.constant 4 : i32
        %1435 = arith.addi %1434, %c4_i32_1291 : i32
        %1436 = arith.index_cast %1435 : i32 to index
        %1437 = memref.load %arg1[%1436] : memref<686xf32, #tpu.memory_space<smem>>
        %1438 = vector.extract_strided_slice %1408 {offsets = [2, 0], sizes = [8, 128], strides = [1, 1]} : vector<14x128xf32> to vector<8x128xf32>
        %1439 = vector.broadcast %1437 : f32 to vector<8x128xf32>
        %1440 = arith.mulf %1439, %1438 : vector<8x128xf32>
        %1441 = arith.addf %1430, %1440 : vector<8x128xf32>
        %c7_i32_1292 = arith.constant 7 : i32
        %1442 = arith.muli %arg10, %c7_i32_1292 : i32
        %c3_i32_1293 = arith.constant 3 : i32
        %1443 = arith.addi %1442, %c3_i32_1293 : i32
        %c7_i32_1294 = arith.constant 7 : i32
        %1444 = arith.muli %1443, %c7_i32_1294 : i32
        %c0_i32_1295 = arith.constant 0 : i32
        %1445 = arith.addi %c0_i32_1295, %1444 : i32
        %c4_i32_1296 = arith.constant 4 : i32
        %1446 = arith.addi %1445, %c4_i32_1296 : i32
        %1447 = arith.index_cast %1446 : i32 to index
        %1448 = memref.load %arg1[%1447] : memref<686xf32, #tpu.memory_space<smem>>
        %1449 = vector.extract_strided_slice %1408 {offsets = [3, 0], sizes = [8, 128], strides = [1, 1]} : vector<14x128xf32> to vector<8x128xf32>
        %1450 = vector.broadcast %1448 : f32 to vector<8x128xf32>
        %1451 = arith.mulf %1450, %1449 : vector<8x128xf32>
        %1452 = arith.addf %1441, %1451 : vector<8x128xf32>
        %c7_i32_1297 = arith.constant 7 : i32
        %1453 = arith.muli %arg10, %c7_i32_1297 : i32
        %c4_i32_1298 = arith.constant 4 : i32
        %1454 = arith.addi %1453, %c4_i32_1298 : i32
        %c7_i32_1299 = arith.constant 7 : i32
        %1455 = arith.muli %1454, %c7_i32_1299 : i32
        %c0_i32_1300 = arith.constant 0 : i32
        %1456 = arith.addi %c0_i32_1300, %1455 : i32
        %c4_i32_1301 = arith.constant 4 : i32
        %1457 = arith.addi %1456, %c4_i32_1301 : i32
        %1458 = arith.index_cast %1457 : i32 to index
        %1459 = memref.load %arg1[%1458] : memref<686xf32, #tpu.memory_space<smem>>
        %1460 = vector.extract_strided_slice %1408 {offsets = [4, 0], sizes = [8, 128], strides = [1, 1]} : vector<14x128xf32> to vector<8x128xf32>
        %1461 = vector.broadcast %1459 : f32 to vector<8x128xf32>
        %1462 = arith.mulf %1461, %1460 : vector<8x128xf32>
        %1463 = arith.addf %1452, %1462 : vector<8x128xf32>
        %c7_i32_1302 = arith.constant 7 : i32
        %1464 = arith.muli %arg10, %c7_i32_1302 : i32
        %c5_i32_1303 = arith.constant 5 : i32
        %1465 = arith.addi %1464, %c5_i32_1303 : i32
        %c7_i32_1304 = arith.constant 7 : i32
        %1466 = arith.muli %1465, %c7_i32_1304 : i32
        %c0_i32_1305 = arith.constant 0 : i32
        %1467 = arith.addi %c0_i32_1305, %1466 : i32
        %c4_i32_1306 = arith.constant 4 : i32
        %1468 = arith.addi %1467, %c4_i32_1306 : i32
        %1469 = arith.index_cast %1468 : i32 to index
        %1470 = memref.load %arg1[%1469] : memref<686xf32, #tpu.memory_space<smem>>
        %1471 = vector.extract_strided_slice %1408 {offsets = [5, 0], sizes = [8, 128], strides = [1, 1]} : vector<14x128xf32> to vector<8x128xf32>
        %1472 = vector.broadcast %1470 : f32 to vector<8x128xf32>
        %1473 = arith.mulf %1472, %1471 : vector<8x128xf32>
        %1474 = arith.addf %1463, %1473 : vector<8x128xf32>
        %c7_i32_1307 = arith.constant 7 : i32
        %1475 = arith.muli %arg10, %c7_i32_1307 : i32
        %c6_i32_1308 = arith.constant 6 : i32
        %1476 = arith.addi %1475, %c6_i32_1308 : i32
        %c7_i32_1309 = arith.constant 7 : i32
        %1477 = arith.muli %1476, %c7_i32_1309 : i32
        %c0_i32_1310 = arith.constant 0 : i32
        %1478 = arith.addi %c0_i32_1310, %1477 : i32
        %c4_i32_1311 = arith.constant 4 : i32
        %1479 = arith.addi %1478, %c4_i32_1311 : i32
        %1480 = arith.index_cast %1479 : i32 to index
        %1481 = memref.load %arg1[%1480] : memref<686xf32, #tpu.memory_space<smem>>
        %1482 = vector.extract_strided_slice %1408 {offsets = [6, 0], sizes = [8, 128], strides = [1, 1]} : vector<14x128xf32> to vector<8x128xf32>
        %1483 = vector.broadcast %1481 : f32 to vector<8x128xf32>
        %1484 = arith.mulf %1483, %1482 : vector<8x128xf32>
        %1485 = arith.addf %1474, %1484 : vector<8x128xf32>
        %c123_i32 = arith.constant 123 : i32
        %1486 = tpu.dynamic_rotate %1096 by %c123_i32 dim 1 : vector<14x128xf32>, i32 -> vector<14x128xf32>
        %c7_i32_1312 = arith.constant 7 : i32
        %1487 = arith.muli %arg10, %c7_i32_1312 : i32
        %c0_i32_1313 = arith.constant 0 : i32
        %1488 = arith.addi %1487, %c0_i32_1313 : i32
        %c7_i32_1314 = arith.constant 7 : i32
        %1489 = arith.muli %1488, %c7_i32_1314 : i32
        %c0_i32_1315 = arith.constant 0 : i32
        %1490 = arith.addi %c0_i32_1315, %1489 : i32
        %c5_i32_1316 = arith.constant 5 : i32
        %1491 = arith.addi %1490, %c5_i32_1316 : i32
        %1492 = arith.index_cast %1491 : i32 to index
        %1493 = memref.load %arg1[%1492] : memref<686xf32, #tpu.memory_space<smem>>
        %1494 = vector.extract_strided_slice %1486 {offsets = [0, 0], sizes = [8, 128], strides = [1, 1]} : vector<14x128xf32> to vector<8x128xf32>
        %1495 = vector.broadcast %1493 : f32 to vector<8x128xf32>
        %1496 = arith.mulf %1495, %1494 : vector<8x128xf32>
        %1497 = arith.addf %1485, %1496 : vector<8x128xf32>
        %c7_i32_1317 = arith.constant 7 : i32
        %1498 = arith.muli %arg10, %c7_i32_1317 : i32
        %c1_i32_1318 = arith.constant 1 : i32
        %1499 = arith.addi %1498, %c1_i32_1318 : i32
        %c7_i32_1319 = arith.constant 7 : i32
        %1500 = arith.muli %1499, %c7_i32_1319 : i32
        %c0_i32_1320 = arith.constant 0 : i32
        %1501 = arith.addi %c0_i32_1320, %1500 : i32
        %c5_i32_1321 = arith.constant 5 : i32
        %1502 = arith.addi %1501, %c5_i32_1321 : i32
        %1503 = arith.index_cast %1502 : i32 to index
        %1504 = memref.load %arg1[%1503] : memref<686xf32, #tpu.memory_space<smem>>
        %1505 = vector.extract_strided_slice %1486 {offsets = [1, 0], sizes = [8, 128], strides = [1, 1]} : vector<14x128xf32> to vector<8x128xf32>
        %1506 = vector.broadcast %1504 : f32 to vector<8x128xf32>
        %1507 = arith.mulf %1506, %1505 : vector<8x128xf32>
        %1508 = arith.addf %1497, %1507 : vector<8x128xf32>
        %c7_i32_1322 = arith.constant 7 : i32
        %1509 = arith.muli %arg10, %c7_i32_1322 : i32
        %c2_i32_1323 = arith.constant 2 : i32
        %1510 = arith.addi %1509, %c2_i32_1323 : i32
        %c7_i32_1324 = arith.constant 7 : i32
        %1511 = arith.muli %1510, %c7_i32_1324 : i32
        %c0_i32_1325 = arith.constant 0 : i32
        %1512 = arith.addi %c0_i32_1325, %1511 : i32
        %c5_i32_1326 = arith.constant 5 : i32
        %1513 = arith.addi %1512, %c5_i32_1326 : i32
        %1514 = arith.index_cast %1513 : i32 to index
        %1515 = memref.load %arg1[%1514] : memref<686xf32, #tpu.memory_space<smem>>
        %1516 = vector.extract_strided_slice %1486 {offsets = [2, 0], sizes = [8, 128], strides = [1, 1]} : vector<14x128xf32> to vector<8x128xf32>
        %1517 = vector.broadcast %1515 : f32 to vector<8x128xf32>
        %1518 = arith.mulf %1517, %1516 : vector<8x128xf32>
        %1519 = arith.addf %1508, %1518 : vector<8x128xf32>
        %c7_i32_1327 = arith.constant 7 : i32
        %1520 = arith.muli %arg10, %c7_i32_1327 : i32
        %c3_i32_1328 = arith.constant 3 : i32
        %1521 = arith.addi %1520, %c3_i32_1328 : i32
        %c7_i32_1329 = arith.constant 7 : i32
        %1522 = arith.muli %1521, %c7_i32_1329 : i32
        %c0_i32_1330 = arith.constant 0 : i32
        %1523 = arith.addi %c0_i32_1330, %1522 : i32
        %c5_i32_1331 = arith.constant 5 : i32
        %1524 = arith.addi %1523, %c5_i32_1331 : i32
        %1525 = arith.index_cast %1524 : i32 to index
        %1526 = memref.load %arg1[%1525] : memref<686xf32, #tpu.memory_space<smem>>
        %1527 = vector.extract_strided_slice %1486 {offsets = [3, 0], sizes = [8, 128], strides = [1, 1]} : vector<14x128xf32> to vector<8x128xf32>
        %1528 = vector.broadcast %1526 : f32 to vector<8x128xf32>
        %1529 = arith.mulf %1528, %1527 : vector<8x128xf32>
        %1530 = arith.addf %1519, %1529 : vector<8x128xf32>
        %c7_i32_1332 = arith.constant 7 : i32
        %1531 = arith.muli %arg10, %c7_i32_1332 : i32
        %c4_i32_1333 = arith.constant 4 : i32
        %1532 = arith.addi %1531, %c4_i32_1333 : i32
        %c7_i32_1334 = arith.constant 7 : i32
        %1533 = arith.muli %1532, %c7_i32_1334 : i32
        %c0_i32_1335 = arith.constant 0 : i32
        %1534 = arith.addi %c0_i32_1335, %1533 : i32
        %c5_i32_1336 = arith.constant 5 : i32
        %1535 = arith.addi %1534, %c5_i32_1336 : i32
        %1536 = arith.index_cast %1535 : i32 to index
        %1537 = memref.load %arg1[%1536] : memref<686xf32, #tpu.memory_space<smem>>
        %1538 = vector.extract_strided_slice %1486 {offsets = [4, 0], sizes = [8, 128], strides = [1, 1]} : vector<14x128xf32> to vector<8x128xf32>
        %1539 = vector.broadcast %1537 : f32 to vector<8x128xf32>
        %1540 = arith.mulf %1539, %1538 : vector<8x128xf32>
        %1541 = arith.addf %1530, %1540 : vector<8x128xf32>
        %c7_i32_1337 = arith.constant 7 : i32
        %1542 = arith.muli %arg10, %c7_i32_1337 : i32
        %c5_i32_1338 = arith.constant 5 : i32
        %1543 = arith.addi %1542, %c5_i32_1338 : i32
        %c7_i32_1339 = arith.constant 7 : i32
        %1544 = arith.muli %1543, %c7_i32_1339 : i32
        %c0_i32_1340 = arith.constant 0 : i32
        %1545 = arith.addi %c0_i32_1340, %1544 : i32
        %c5_i32_1341 = arith.constant 5 : i32
        %1546 = arith.addi %1545, %c5_i32_1341 : i32
        %1547 = arith.index_cast %1546 : i32 to index
        %1548 = memref.load %arg1[%1547] : memref<686xf32, #tpu.memory_space<smem>>
        %1549 = vector.extract_strided_slice %1486 {offsets = [5, 0], sizes = [8, 128], strides = [1, 1]} : vector<14x128xf32> to vector<8x128xf32>
        %1550 = vector.broadcast %1548 : f32 to vector<8x128xf32>
        %1551 = arith.mulf %1550, %1549 : vector<8x128xf32>
        %1552 = arith.addf %1541, %1551 : vector<8x128xf32>
        %c7_i32_1342 = arith.constant 7 : i32
        %1553 = arith.muli %arg10, %c7_i32_1342 : i32
        %c6_i32_1343 = arith.constant 6 : i32
        %1554 = arith.addi %1553, %c6_i32_1343 : i32
        %c7_i32_1344 = arith.constant 7 : i32
        %1555 = arith.muli %1554, %c7_i32_1344 : i32
        %c0_i32_1345 = arith.constant 0 : i32
        %1556 = arith.addi %c0_i32_1345, %1555 : i32
        %c5_i32_1346 = arith.constant 5 : i32
        %1557 = arith.addi %1556, %c5_i32_1346 : i32
        %1558 = arith.index_cast %1557 : i32 to index
        %1559 = memref.load %arg1[%1558] : memref<686xf32, #tpu.memory_space<smem>>
        %1560 = vector.extract_strided_slice %1486 {offsets = [6, 0], sizes = [8, 128], strides = [1, 1]} : vector<14x128xf32> to vector<8x128xf32>
        %1561 = vector.broadcast %1559 : f32 to vector<8x128xf32>
        %1562 = arith.mulf %1561, %1560 : vector<8x128xf32>
        %1563 = arith.addf %1552, %1562 : vector<8x128xf32>
        %c122_i32 = arith.constant 122 : i32
        %1564 = tpu.dynamic_rotate %1096 by %c122_i32 dim 1 : vector<14x128xf32>, i32 -> vector<14x128xf32>
        %c7_i32_1347 = arith.constant 7 : i32
        %1565 = arith.muli %arg10, %c7_i32_1347 : i32
        %c0_i32_1348 = arith.constant 0 : i32
        %1566 = arith.addi %1565, %c0_i32_1348 : i32
        %c7_i32_1349 = arith.constant 7 : i32
        %1567 = arith.muli %1566, %c7_i32_1349 : i32
        %c0_i32_1350 = arith.constant 0 : i32
        %1568 = arith.addi %c0_i32_1350, %1567 : i32
        %c6_i32_1351 = arith.constant 6 : i32
        %1569 = arith.addi %1568, %c6_i32_1351 : i32
        %1570 = arith.index_cast %1569 : i32 to index
        %1571 = memref.load %arg1[%1570] : memref<686xf32, #tpu.memory_space<smem>>
        %1572 = vector.extract_strided_slice %1564 {offsets = [0, 0], sizes = [8, 128], strides = [1, 1]} : vector<14x128xf32> to vector<8x128xf32>
        %1573 = vector.broadcast %1571 : f32 to vector<8x128xf32>
        %1574 = arith.mulf %1573, %1572 : vector<8x128xf32>
        %1575 = arith.addf %1563, %1574 : vector<8x128xf32>
        %c7_i32_1352 = arith.constant 7 : i32
        %1576 = arith.muli %arg10, %c7_i32_1352 : i32
        %c1_i32_1353 = arith.constant 1 : i32
        %1577 = arith.addi %1576, %c1_i32_1353 : i32
        %c7_i32_1354 = arith.constant 7 : i32
        %1578 = arith.muli %1577, %c7_i32_1354 : i32
        %c0_i32_1355 = arith.constant 0 : i32
        %1579 = arith.addi %c0_i32_1355, %1578 : i32
        %c6_i32_1356 = arith.constant 6 : i32
        %1580 = arith.addi %1579, %c6_i32_1356 : i32
        %1581 = arith.index_cast %1580 : i32 to index
        %1582 = memref.load %arg1[%1581] : memref<686xf32, #tpu.memory_space<smem>>
        %1583 = vector.extract_strided_slice %1564 {offsets = [1, 0], sizes = [8, 128], strides = [1, 1]} : vector<14x128xf32> to vector<8x128xf32>
        %1584 = vector.broadcast %1582 : f32 to vector<8x128xf32>
        %1585 = arith.mulf %1584, %1583 : vector<8x128xf32>
        %1586 = arith.addf %1575, %1585 : vector<8x128xf32>
        %c7_i32_1357 = arith.constant 7 : i32
        %1587 = arith.muli %arg10, %c7_i32_1357 : i32
        %c2_i32_1358 = arith.constant 2 : i32
        %1588 = arith.addi %1587, %c2_i32_1358 : i32
        %c7_i32_1359 = arith.constant 7 : i32
        %1589 = arith.muli %1588, %c7_i32_1359 : i32
        %c0_i32_1360 = arith.constant 0 : i32
        %1590 = arith.addi %c0_i32_1360, %1589 : i32
        %c6_i32_1361 = arith.constant 6 : i32
        %1591 = arith.addi %1590, %c6_i32_1361 : i32
        %1592 = arith.index_cast %1591 : i32 to index
        %1593 = memref.load %arg1[%1592] : memref<686xf32, #tpu.memory_space<smem>>
        %1594 = vector.extract_strided_slice %1564 {offsets = [2, 0], sizes = [8, 128], strides = [1, 1]} : vector<14x128xf32> to vector<8x128xf32>
        %1595 = vector.broadcast %1593 : f32 to vector<8x128xf32>
        %1596 = arith.mulf %1595, %1594 : vector<8x128xf32>
        %1597 = arith.addf %1586, %1596 : vector<8x128xf32>
        %c7_i32_1362 = arith.constant 7 : i32
        %1598 = arith.muli %arg10, %c7_i32_1362 : i32
        %c3_i32_1363 = arith.constant 3 : i32
        %1599 = arith.addi %1598, %c3_i32_1363 : i32
        %c7_i32_1364 = arith.constant 7 : i32
        %1600 = arith.muli %1599, %c7_i32_1364 : i32
        %c0_i32_1365 = arith.constant 0 : i32
        %1601 = arith.addi %c0_i32_1365, %1600 : i32
        %c6_i32_1366 = arith.constant 6 : i32
        %1602 = arith.addi %1601, %c6_i32_1366 : i32
        %1603 = arith.index_cast %1602 : i32 to index
        %1604 = memref.load %arg1[%1603] : memref<686xf32, #tpu.memory_space<smem>>
        %1605 = vector.extract_strided_slice %1564 {offsets = [3, 0], sizes = [8, 128], strides = [1, 1]} : vector<14x128xf32> to vector<8x128xf32>
        %1606 = vector.broadcast %1604 : f32 to vector<8x128xf32>
        %1607 = arith.mulf %1606, %1605 : vector<8x128xf32>
        %1608 = arith.addf %1597, %1607 : vector<8x128xf32>
        %c7_i32_1367 = arith.constant 7 : i32
        %1609 = arith.muli %arg10, %c7_i32_1367 : i32
        %c4_i32_1368 = arith.constant 4 : i32
        %1610 = arith.addi %1609, %c4_i32_1368 : i32
        %c7_i32_1369 = arith.constant 7 : i32
        %1611 = arith.muli %1610, %c7_i32_1369 : i32
        %c0_i32_1370 = arith.constant 0 : i32
        %1612 = arith.addi %c0_i32_1370, %1611 : i32
        %c6_i32_1371 = arith.constant 6 : i32
        %1613 = arith.addi %1612, %c6_i32_1371 : i32
        %1614 = arith.index_cast %1613 : i32 to index
        %1615 = memref.load %arg1[%1614] : memref<686xf32, #tpu.memory_space<smem>>
        %1616 = vector.extract_strided_slice %1564 {offsets = [4, 0], sizes = [8, 128], strides = [1, 1]} : vector<14x128xf32> to vector<8x128xf32>
        %1617 = vector.broadcast %1615 : f32 to vector<8x128xf32>
        %1618 = arith.mulf %1617, %1616 : vector<8x128xf32>
        %1619 = arith.addf %1608, %1618 : vector<8x128xf32>
        %c7_i32_1372 = arith.constant 7 : i32
        %1620 = arith.muli %arg10, %c7_i32_1372 : i32
        %c5_i32_1373 = arith.constant 5 : i32
        %1621 = arith.addi %1620, %c5_i32_1373 : i32
        %c7_i32_1374 = arith.constant 7 : i32
        %1622 = arith.muli %1621, %c7_i32_1374 : i32
        %c0_i32_1375 = arith.constant 0 : i32
        %1623 = arith.addi %c0_i32_1375, %1622 : i32
        %c6_i32_1376 = arith.constant 6 : i32
        %1624 = arith.addi %1623, %c6_i32_1376 : i32
        %1625 = arith.index_cast %1624 : i32 to index
        %1626 = memref.load %arg1[%1625] : memref<686xf32, #tpu.memory_space<smem>>
        %1627 = vector.extract_strided_slice %1564 {offsets = [5, 0], sizes = [8, 128], strides = [1, 1]} : vector<14x128xf32> to vector<8x128xf32>
        %1628 = vector.broadcast %1626 : f32 to vector<8x128xf32>
        %1629 = arith.mulf %1628, %1627 : vector<8x128xf32>
        %1630 = arith.addf %1619, %1629 : vector<8x128xf32>
        %c7_i32_1377 = arith.constant 7 : i32
        %1631 = arith.muli %arg10, %c7_i32_1377 : i32
        %c6_i32_1378 = arith.constant 6 : i32
        %1632 = arith.addi %1631, %c6_i32_1378 : i32
        %c7_i32_1379 = arith.constant 7 : i32
        %1633 = arith.muli %1632, %c7_i32_1379 : i32
        %c0_i32_1380 = arith.constant 0 : i32
        %1634 = arith.addi %c0_i32_1380, %1633 : i32
        %c6_i32_1381 = arith.constant 6 : i32
        %1635 = arith.addi %1634, %c6_i32_1381 : i32
        %1636 = arith.index_cast %1635 : i32 to index
        %1637 = memref.load %arg1[%1636] : memref<686xf32, #tpu.memory_space<smem>>
        %1638 = vector.extract_strided_slice %1564 {offsets = [6, 0], sizes = [8, 128], strides = [1, 1]} : vector<14x128xf32> to vector<8x128xf32>
        %1639 = vector.broadcast %1637 : f32 to vector<8x128xf32>
        %1640 = arith.mulf %1639, %1638 : vector<8x128xf32>
        %1641 = arith.addf %1630, %1640 : vector<8x128xf32>
        scf.yield %1641 : vector<8x128xf32>
      }
      %c7_i32_1130 = arith.constant 7 : i32
      %c0_i32_1131 = arith.constant 0 : i32
      %c7_i32_1132 = arith.constant 7 : i32
      %1080 = arith.addi %c0_i32_1131, %c7_i32_1132 : i32
      %c1_i32_1133 = arith.constant 1 : i32
      %1081 = scf.for %arg10 = %c0_i32_1131 to %1080 step %c1_i32_1133 iter_args(%arg11 = %1079) -> (vector<8x128xf32>)  : i32 {
        %1093 = arith.addi %arg9, %arg10 : i32
        %c1_1139 = arith.constant 1 : index
        %1094 = arith.index_cast %1093 : i32 to index
        %c0_1140 = arith.constant 0 : index
        %c0_1141 = arith.constant 0 : index
        %1095 = vector.load %arg5[%c1_1139, %1094, %c0_1140, %c0_1141] : memref<2x14x14x128xf32, #tpu.memory_space<vmem>>, vector<1x1x14x128xf32>
        %1096 = vector.shape_cast %1095 : vector<1x1x14x128xf32> to vector<14x128xf32>
        %c7_i32_1142 = arith.constant 7 : i32
        %1097 = arith.muli %arg10, %c7_i32_1142 : i32
        %c0_i32_1143 = arith.constant 0 : i32
        %1098 = arith.addi %1097, %c0_i32_1143 : i32
        %c7_i32_1144 = arith.constant 7 : i32
        %1099 = arith.muli %1098, %c7_i32_1144 : i32
        %c343_i32 = arith.constant 343 : i32
        %1100 = arith.addi %c343_i32, %1099 : i32
        %c0_i32_1145 = arith.constant 0 : i32
        %1101 = arith.addi %1100, %c0_i32_1145 : i32
        %1102 = arith.index_cast %1101 : i32 to index
        %1103 = memref.load %arg1[%1102] : memref<686xf32, #tpu.memory_space<smem>>
        %1104 = vector.extract_strided_slice %1096 {offsets = [0, 0], sizes = [8, 128], strides = [1, 1]} : vector<14x128xf32> to vector<8x128xf32>
        %1105 = vector.broadcast %1103 : f32 to vector<8x128xf32>
        %1106 = arith.mulf %1105, %1104 : vector<8x128xf32>
        %1107 = arith.addf %arg11, %1106 : vector<8x128xf32>
        %c7_i32_1146 = arith.constant 7 : i32
        %1108 = arith.muli %arg10, %c7_i32_1146 : i32
        %c1_i32_1147 = arith.constant 1 : i32
        %1109 = arith.addi %1108, %c1_i32_1147 : i32
        %c7_i32_1148 = arith.constant 7 : i32
        %1110 = arith.muli %1109, %c7_i32_1148 : i32
        %c343_i32_1149 = arith.constant 343 : i32
        %1111 = arith.addi %c343_i32_1149, %1110 : i32
        %c0_i32_1150 = arith.constant 0 : i32
        %1112 = arith.addi %1111, %c0_i32_1150 : i32
        %1113 = arith.index_cast %1112 : i32 to index
        %1114 = memref.load %arg1[%1113] : memref<686xf32, #tpu.memory_space<smem>>
        %1115 = vector.extract_strided_slice %1096 {offsets = [1, 0], sizes = [8, 128], strides = [1, 1]} : vector<14x128xf32> to vector<8x128xf32>
        %1116 = vector.broadcast %1114 : f32 to vector<8x128xf32>
        %1117 = arith.mulf %1116, %1115 : vector<8x128xf32>
        %1118 = arith.addf %1107, %1117 : vector<8x128xf32>
        %c7_i32_1151 = arith.constant 7 : i32
        %1119 = arith.muli %arg10, %c7_i32_1151 : i32
        %c2_i32 = arith.constant 2 : i32
        %1120 = arith.addi %1119, %c2_i32 : i32
        %c7_i32_1152 = arith.constant 7 : i32
        %1121 = arith.muli %1120, %c7_i32_1152 : i32
        %c343_i32_1153 = arith.constant 343 : i32
        %1122 = arith.addi %c343_i32_1153, %1121 : i32
        %c0_i32_1154 = arith.constant 0 : i32
        %1123 = arith.addi %1122, %c0_i32_1154 : i32
        %1124 = arith.index_cast %1123 : i32 to index
        %1125 = memref.load %arg1[%1124] : memref<686xf32, #tpu.memory_space<smem>>
        %1126 = vector.extract_strided_slice %1096 {offsets = [2, 0], sizes = [8, 128], strides = [1, 1]} : vector<14x128xf32> to vector<8x128xf32>
        %1127 = vector.broadcast %1125 : f32 to vector<8x128xf32>
        %1128 = arith.mulf %1127, %1126 : vector<8x128xf32>
        %1129 = arith.addf %1118, %1128 : vector<8x128xf32>
        %c7_i32_1155 = arith.constant 7 : i32
        %1130 = arith.muli %arg10, %c7_i32_1155 : i32
        %c3_i32 = arith.constant 3 : i32
        %1131 = arith.addi %1130, %c3_i32 : i32
        %c7_i32_1156 = arith.constant 7 : i32
        %1132 = arith.muli %1131, %c7_i32_1156 : i32
        %c343_i32_1157 = arith.constant 343 : i32
        %1133 = arith.addi %c343_i32_1157, %1132 : i32
        %c0_i32_1158 = arith.constant 0 : i32
        %1134 = arith.addi %1133, %c0_i32_1158 : i32
        %1135 = arith.index_cast %1134 : i32 to index
        %1136 = memref.load %arg1[%1135] : memref<686xf32, #tpu.memory_space<smem>>
        %1137 = vector.extract_strided_slice %1096 {offsets = [3, 0], sizes = [8, 128], strides = [1, 1]} : vector<14x128xf32> to vector<8x128xf32>
        %1138 = vector.broadcast %1136 : f32 to vector<8x128xf32>
        %1139 = arith.mulf %1138, %1137 : vector<8x128xf32>
        %1140 = arith.addf %1129, %1139 : vector<8x128xf32>
        %c7_i32_1159 = arith.constant 7 : i32
        %1141 = arith.muli %arg10, %c7_i32_1159 : i32
        %c4_i32 = arith.constant 4 : i32
        %1142 = arith.addi %1141, %c4_i32 : i32
        %c7_i32_1160 = arith.constant 7 : i32
        %1143 = arith.muli %1142, %c7_i32_1160 : i32
        %c343_i32_1161 = arith.constant 343 : i32
        %1144 = arith.addi %c343_i32_1161, %1143 : i32
        %c0_i32_1162 = arith.constant 0 : i32
        %1145 = arith.addi %1144, %c0_i32_1162 : i32
        %1146 = arith.index_cast %1145 : i32 to index
        %1147 = memref.load %arg1[%1146] : memref<686xf32, #tpu.memory_space<smem>>
        %1148 = vector.extract_strided_slice %1096 {offsets = [4, 0], sizes = [8, 128], strides = [1, 1]} : vector<14x128xf32> to vector<8x128xf32>
        %1149 = vector.broadcast %1147 : f32 to vector<8x128xf32>
        %1150 = arith.mulf %1149, %1148 : vector<8x128xf32>
        %1151 = arith.addf %1140, %1150 : vector<8x128xf32>
        %c7_i32_1163 = arith.constant 7 : i32
        %1152 = arith.muli %arg10, %c7_i32_1163 : i32
        %c5_i32 = arith.constant 5 : i32
        %1153 = arith.addi %1152, %c5_i32 : i32
        %c7_i32_1164 = arith.constant 7 : i32
        %1154 = arith.muli %1153, %c7_i32_1164 : i32
        %c343_i32_1165 = arith.constant 343 : i32
        %1155 = arith.addi %c343_i32_1165, %1154 : i32
        %c0_i32_1166 = arith.constant 0 : i32
        %1156 = arith.addi %1155, %c0_i32_1166 : i32
        %1157 = arith.index_cast %1156 : i32 to index
        %1158 = memref.load %arg1[%1157] : memref<686xf32, #tpu.memory_space<smem>>
        %1159 = vector.extract_strided_slice %1096 {offsets = [5, 0], sizes = [8, 128], strides = [1, 1]} : vector<14x128xf32> to vector<8x128xf32>
        %1160 = vector.broadcast %1158 : f32 to vector<8x128xf32>
        %1161 = arith.mulf %1160, %1159 : vector<8x128xf32>
        %1162 = arith.addf %1151, %1161 : vector<8x128xf32>
        %c7_i32_1167 = arith.constant 7 : i32
        %1163 = arith.muli %arg10, %c7_i32_1167 : i32
        %c6_i32 = arith.constant 6 : i32
        %1164 = arith.addi %1163, %c6_i32 : i32
        %c7_i32_1168 = arith.constant 7 : i32
        %1165 = arith.muli %1164, %c7_i32_1168 : i32
        %c343_i32_1169 = arith.constant 343 : i32
        %1166 = arith.addi %c343_i32_1169, %1165 : i32
        %c0_i32_1170 = arith.constant 0 : i32
        %1167 = arith.addi %1166, %c0_i32_1170 : i32
        %1168 = arith.index_cast %1167 : i32 to index
        %1169 = memref.load %arg1[%1168] : memref<686xf32, #tpu.memory_space<smem>>
        %1170 = vector.extract_strided_slice %1096 {offsets = [6, 0], sizes = [8, 128], strides = [1, 1]} : vector<14x128xf32> to vector<8x128xf32>
        %1171 = vector.broadcast %1169 : f32 to vector<8x128xf32>
        %1172 = arith.mulf %1171, %1170 : vector<8x128xf32>
        %1173 = arith.addf %1162, %1172 : vector<8x128xf32>
        %c127_i32 = arith.constant 127 : i32
        %1174 = tpu.dynamic_rotate %1096 by %c127_i32 dim 1 : vector<14x128xf32>, i32 -> vector<14x128xf32>
        %c7_i32_1171 = arith.constant 7 : i32
        %1175 = arith.muli %arg10, %c7_i32_1171 : i32
        %c0_i32_1172 = arith.constant 0 : i32
        %1176 = arith.addi %1175, %c0_i32_1172 : i32
        %c7_i32_1173 = arith.constant 7 : i32
        %1177 = arith.muli %1176, %c7_i32_1173 : i32
        %c343_i32_1174 = arith.constant 343 : i32
        %1178 = arith.addi %c343_i32_1174, %1177 : i32
        %c1_i32_1175 = arith.constant 1 : i32
        %1179 = arith.addi %1178, %c1_i32_1175 : i32
        %1180 = arith.index_cast %1179 : i32 to index
        %1181 = memref.load %arg1[%1180] : memref<686xf32, #tpu.memory_space<smem>>
        %1182 = vector.extract_strided_slice %1174 {offsets = [0, 0], sizes = [8, 128], strides = [1, 1]} : vector<14x128xf32> to vector<8x128xf32>
        %1183 = vector.broadcast %1181 : f32 to vector<8x128xf32>
        %1184 = arith.mulf %1183, %1182 : vector<8x128xf32>
        %1185 = arith.addf %1173, %1184 : vector<8x128xf32>
        %c7_i32_1176 = arith.constant 7 : i32
        %1186 = arith.muli %arg10, %c7_i32_1176 : i32
        %c1_i32_1177 = arith.constant 1 : i32
        %1187 = arith.addi %1186, %c1_i32_1177 : i32
        %c7_i32_1178 = arith.constant 7 : i32
        %1188 = arith.muli %1187, %c7_i32_1178 : i32
        %c343_i32_1179 = arith.constant 343 : i32
        %1189 = arith.addi %c343_i32_1179, %1188 : i32
        %c1_i32_1180 = arith.constant 1 : i32
        %1190 = arith.addi %1189, %c1_i32_1180 : i32
        %1191 = arith.index_cast %1190 : i32 to index
        %1192 = memref.load %arg1[%1191] : memref<686xf32, #tpu.memory_space<smem>>
        %1193 = vector.extract_strided_slice %1174 {offsets = [1, 0], sizes = [8, 128], strides = [1, 1]} : vector<14x128xf32> to vector<8x128xf32>
        %1194 = vector.broadcast %1192 : f32 to vector<8x128xf32>
        %1195 = arith.mulf %1194, %1193 : vector<8x128xf32>
        %1196 = arith.addf %1185, %1195 : vector<8x128xf32>
        %c7_i32_1181 = arith.constant 7 : i32
        %1197 = arith.muli %arg10, %c7_i32_1181 : i32
        %c2_i32_1182 = arith.constant 2 : i32
        %1198 = arith.addi %1197, %c2_i32_1182 : i32
        %c7_i32_1183 = arith.constant 7 : i32
        %1199 = arith.muli %1198, %c7_i32_1183 : i32
        %c343_i32_1184 = arith.constant 343 : i32
        %1200 = arith.addi %c343_i32_1184, %1199 : i32
        %c1_i32_1185 = arith.constant 1 : i32
        %1201 = arith.addi %1200, %c1_i32_1185 : i32
        %1202 = arith.index_cast %1201 : i32 to index
        %1203 = memref.load %arg1[%1202] : memref<686xf32, #tpu.memory_space<smem>>
        %1204 = vector.extract_strided_slice %1174 {offsets = [2, 0], sizes = [8, 128], strides = [1, 1]} : vector<14x128xf32> to vector<8x128xf32>
        %1205 = vector.broadcast %1203 : f32 to vector<8x128xf32>
        %1206 = arith.mulf %1205, %1204 : vector<8x128xf32>
        %1207 = arith.addf %1196, %1206 : vector<8x128xf32>
        %c7_i32_1186 = arith.constant 7 : i32
        %1208 = arith.muli %arg10, %c7_i32_1186 : i32
        %c3_i32_1187 = arith.constant 3 : i32
        %1209 = arith.addi %1208, %c3_i32_1187 : i32
        %c7_i32_1188 = arith.constant 7 : i32
        %1210 = arith.muli %1209, %c7_i32_1188 : i32
        %c343_i32_1189 = arith.constant 343 : i32
        %1211 = arith.addi %c343_i32_1189, %1210 : i32
        %c1_i32_1190 = arith.constant 1 : i32
        %1212 = arith.addi %1211, %c1_i32_1190 : i32
        %1213 = arith.index_cast %1212 : i32 to index
        %1214 = memref.load %arg1[%1213] : memref<686xf32, #tpu.memory_space<smem>>
        %1215 = vector.extract_strided_slice %1174 {offsets = [3, 0], sizes = [8, 128], strides = [1, 1]} : vector<14x128xf32> to vector<8x128xf32>
        %1216 = vector.broadcast %1214 : f32 to vector<8x128xf32>
        %1217 = arith.mulf %1216, %1215 : vector<8x128xf32>
        %1218 = arith.addf %1207, %1217 : vector<8x128xf32>
        %c7_i32_1191 = arith.constant 7 : i32
        %1219 = arith.muli %arg10, %c7_i32_1191 : i32
        %c4_i32_1192 = arith.constant 4 : i32
        %1220 = arith.addi %1219, %c4_i32_1192 : i32
        %c7_i32_1193 = arith.constant 7 : i32
        %1221 = arith.muli %1220, %c7_i32_1193 : i32
        %c343_i32_1194 = arith.constant 343 : i32
        %1222 = arith.addi %c343_i32_1194, %1221 : i32
        %c1_i32_1195 = arith.constant 1 : i32
        %1223 = arith.addi %1222, %c1_i32_1195 : i32
        %1224 = arith.index_cast %1223 : i32 to index
        %1225 = memref.load %arg1[%1224] : memref<686xf32, #tpu.memory_space<smem>>
        %1226 = vector.extract_strided_slice %1174 {offsets = [4, 0], sizes = [8, 128], strides = [1, 1]} : vector<14x128xf32> to vector<8x128xf32>
        %1227 = vector.broadcast %1225 : f32 to vector<8x128xf32>
        %1228 = arith.mulf %1227, %1226 : vector<8x128xf32>
        %1229 = arith.addf %1218, %1228 : vector<8x128xf32>
        %c7_i32_1196 = arith.constant 7 : i32
        %1230 = arith.muli %arg10, %c7_i32_1196 : i32
        %c5_i32_1197 = arith.constant 5 : i32
        %1231 = arith.addi %1230, %c5_i32_1197 : i32
        %c7_i32_1198 = arith.constant 7 : i32
        %1232 = arith.muli %1231, %c7_i32_1198 : i32
        %c343_i32_1199 = arith.constant 343 : i32
        %1233 = arith.addi %c343_i32_1199, %1232 : i32
        %c1_i32_1200 = arith.constant 1 : i32
        %1234 = arith.addi %1233, %c1_i32_1200 : i32
        %1235 = arith.index_cast %1234 : i32 to index
        %1236 = memref.load %arg1[%1235] : memref<686xf32, #tpu.memory_space<smem>>
        %1237 = vector.extract_strided_slice %1174 {offsets = [5, 0], sizes = [8, 128], strides = [1, 1]} : vector<14x128xf32> to vector<8x128xf32>
        %1238 = vector.broadcast %1236 : f32 to vector<8x128xf32>
        %1239 = arith.mulf %1238, %1237 : vector<8x128xf32>
        %1240 = arith.addf %1229, %1239 : vector<8x128xf32>
        %c7_i32_1201 = arith.constant 7 : i32
        %1241 = arith.muli %arg10, %c7_i32_1201 : i32
        %c6_i32_1202 = arith.constant 6 : i32
        %1242 = arith.addi %1241, %c6_i32_1202 : i32
        %c7_i32_1203 = arith.constant 7 : i32
        %1243 = arith.muli %1242, %c7_i32_1203 : i32
        %c343_i32_1204 = arith.constant 343 : i32
        %1244 = arith.addi %c343_i32_1204, %1243 : i32
        %c1_i32_1205 = arith.constant 1 : i32
        %1245 = arith.addi %1244, %c1_i32_1205 : i32
        %1246 = arith.index_cast %1245 : i32 to index
        %1247 = memref.load %arg1[%1246] : memref<686xf32, #tpu.memory_space<smem>>
        %1248 = vector.extract_strided_slice %1174 {offsets = [6, 0], sizes = [8, 128], strides = [1, 1]} : vector<14x128xf32> to vector<8x128xf32>
        %1249 = vector.broadcast %1247 : f32 to vector<8x128xf32>
        %1250 = arith.mulf %1249, %1248 : vector<8x128xf32>
        %1251 = arith.addf %1240, %1250 : vector<8x128xf32>
        %c126_i32 = arith.constant 126 : i32
        %1252 = tpu.dynamic_rotate %1096 by %c126_i32 dim 1 : vector<14x128xf32>, i32 -> vector<14x128xf32>
        %c7_i32_1206 = arith.constant 7 : i32
        %1253 = arith.muli %arg10, %c7_i32_1206 : i32
        %c0_i32_1207 = arith.constant 0 : i32
        %1254 = arith.addi %1253, %c0_i32_1207 : i32
        %c7_i32_1208 = arith.constant 7 : i32
        %1255 = arith.muli %1254, %c7_i32_1208 : i32
        %c343_i32_1209 = arith.constant 343 : i32
        %1256 = arith.addi %c343_i32_1209, %1255 : i32
        %c2_i32_1210 = arith.constant 2 : i32
        %1257 = arith.addi %1256, %c2_i32_1210 : i32
        %1258 = arith.index_cast %1257 : i32 to index
        %1259 = memref.load %arg1[%1258] : memref<686xf32, #tpu.memory_space<smem>>
        %1260 = vector.extract_strided_slice %1252 {offsets = [0, 0], sizes = [8, 128], strides = [1, 1]} : vector<14x128xf32> to vector<8x128xf32>
        %1261 = vector.broadcast %1259 : f32 to vector<8x128xf32>
        %1262 = arith.mulf %1261, %1260 : vector<8x128xf32>
        %1263 = arith.addf %1251, %1262 : vector<8x128xf32>
        %c7_i32_1211 = arith.constant 7 : i32
        %1264 = arith.muli %arg10, %c7_i32_1211 : i32
        %c1_i32_1212 = arith.constant 1 : i32
        %1265 = arith.addi %1264, %c1_i32_1212 : i32
        %c7_i32_1213 = arith.constant 7 : i32
        %1266 = arith.muli %1265, %c7_i32_1213 : i32
        %c343_i32_1214 = arith.constant 343 : i32
        %1267 = arith.addi %c343_i32_1214, %1266 : i32
        %c2_i32_1215 = arith.constant 2 : i32
        %1268 = arith.addi %1267, %c2_i32_1215 : i32
        %1269 = arith.index_cast %1268 : i32 to index
        %1270 = memref.load %arg1[%1269] : memref<686xf32, #tpu.memory_space<smem>>
        %1271 = vector.extract_strided_slice %1252 {offsets = [1, 0], sizes = [8, 128], strides = [1, 1]} : vector<14x128xf32> to vector<8x128xf32>
        %1272 = vector.broadcast %1270 : f32 to vector<8x128xf32>
        %1273 = arith.mulf %1272, %1271 : vector<8x128xf32>
        %1274 = arith.addf %1263, %1273 : vector<8x128xf32>
        %c7_i32_1216 = arith.constant 7 : i32
        %1275 = arith.muli %arg10, %c7_i32_1216 : i32
        %c2_i32_1217 = arith.constant 2 : i32
        %1276 = arith.addi %1275, %c2_i32_1217 : i32
        %c7_i32_1218 = arith.constant 7 : i32
        %1277 = arith.muli %1276, %c7_i32_1218 : i32
        %c343_i32_1219 = arith.constant 343 : i32
        %1278 = arith.addi %c343_i32_1219, %1277 : i32
        %c2_i32_1220 = arith.constant 2 : i32
        %1279 = arith.addi %1278, %c2_i32_1220 : i32
        %1280 = arith.index_cast %1279 : i32 to index
        %1281 = memref.load %arg1[%1280] : memref<686xf32, #tpu.memory_space<smem>>
        %1282 = vector.extract_strided_slice %1252 {offsets = [2, 0], sizes = [8, 128], strides = [1, 1]} : vector<14x128xf32> to vector<8x128xf32>
        %1283 = vector.broadcast %1281 : f32 to vector<8x128xf32>
        %1284 = arith.mulf %1283, %1282 : vector<8x128xf32>
        %1285 = arith.addf %1274, %1284 : vector<8x128xf32>
        %c7_i32_1221 = arith.constant 7 : i32
        %1286 = arith.muli %arg10, %c7_i32_1221 : i32
        %c3_i32_1222 = arith.constant 3 : i32
        %1287 = arith.addi %1286, %c3_i32_1222 : i32
        %c7_i32_1223 = arith.constant 7 : i32
        %1288 = arith.muli %1287, %c7_i32_1223 : i32
        %c343_i32_1224 = arith.constant 343 : i32
        %1289 = arith.addi %c343_i32_1224, %1288 : i32
        %c2_i32_1225 = arith.constant 2 : i32
        %1290 = arith.addi %1289, %c2_i32_1225 : i32
        %1291 = arith.index_cast %1290 : i32 to index
        %1292 = memref.load %arg1[%1291] : memref<686xf32, #tpu.memory_space<smem>>
        %1293 = vector.extract_strided_slice %1252 {offsets = [3, 0], sizes = [8, 128], strides = [1, 1]} : vector<14x128xf32> to vector<8x128xf32>
        %1294 = vector.broadcast %1292 : f32 to vector<8x128xf32>
        %1295 = arith.mulf %1294, %1293 : vector<8x128xf32>
        %1296 = arith.addf %1285, %1295 : vector<8x128xf32>
        %c7_i32_1226 = arith.constant 7 : i32
        %1297 = arith.muli %arg10, %c7_i32_1226 : i32
        %c4_i32_1227 = arith.constant 4 : i32
        %1298 = arith.addi %1297, %c4_i32_1227 : i32
        %c7_i32_1228 = arith.constant 7 : i32
        %1299 = arith.muli %1298, %c7_i32_1228 : i32
        %c343_i32_1229 = arith.constant 343 : i32
        %1300 = arith.addi %c343_i32_1229, %1299 : i32
        %c2_i32_1230 = arith.constant 2 : i32
        %1301 = arith.addi %1300, %c2_i32_1230 : i32
        %1302 = arith.index_cast %1301 : i32 to index
        %1303 = memref.load %arg1[%1302] : memref<686xf32, #tpu.memory_space<smem>>
        %1304 = vector.extract_strided_slice %1252 {offsets = [4, 0], sizes = [8, 128], strides = [1, 1]} : vector<14x128xf32> to vector<8x128xf32>
        %1305 = vector.broadcast %1303 : f32 to vector<8x128xf32>
        %1306 = arith.mulf %1305, %1304 : vector<8x128xf32>
        %1307 = arith.addf %1296, %1306 : vector<8x128xf32>
        %c7_i32_1231 = arith.constant 7 : i32
        %1308 = arith.muli %arg10, %c7_i32_1231 : i32
        %c5_i32_1232 = arith.constant 5 : i32
        %1309 = arith.addi %1308, %c5_i32_1232 : i32
        %c7_i32_1233 = arith.constant 7 : i32
        %1310 = arith.muli %1309, %c7_i32_1233 : i32
        %c343_i32_1234 = arith.constant 343 : i32
        %1311 = arith.addi %c343_i32_1234, %1310 : i32
        %c2_i32_1235 = arith.constant 2 : i32
        %1312 = arith.addi %1311, %c2_i32_1235 : i32
        %1313 = arith.index_cast %1312 : i32 to index
        %1314 = memref.load %arg1[%1313] : memref<686xf32, #tpu.memory_space<smem>>
        %1315 = vector.extract_strided_slice %1252 {offsets = [5, 0], sizes = [8, 128], strides = [1, 1]} : vector<14x128xf32> to vector<8x128xf32>
        %1316 = vector.broadcast %1314 : f32 to vector<8x128xf32>
        %1317 = arith.mulf %1316, %1315 : vector<8x128xf32>
        %1318 = arith.addf %1307, %1317 : vector<8x128xf32>
        %c7_i32_1236 = arith.constant 7 : i32
        %1319 = arith.muli %arg10, %c7_i32_1236 : i32
        %c6_i32_1237 = arith.constant 6 : i32
        %1320 = arith.addi %1319, %c6_i32_1237 : i32
        %c7_i32_1238 = arith.constant 7 : i32
        %1321 = arith.muli %1320, %c7_i32_1238 : i32
        %c343_i32_1239 = arith.constant 343 : i32
        %1322 = arith.addi %c343_i32_1239, %1321 : i32
        %c2_i32_1240 = arith.constant 2 : i32
        %1323 = arith.addi %1322, %c2_i32_1240 : i32
        %1324 = arith.index_cast %1323 : i32 to index
        %1325 = memref.load %arg1[%1324] : memref<686xf32, #tpu.memory_space<smem>>
        %1326 = vector.extract_strided_slice %1252 {offsets = [6, 0], sizes = [8, 128], strides = [1, 1]} : vector<14x128xf32> to vector<8x128xf32>
        %1327 = vector.broadcast %1325 : f32 to vector<8x128xf32>
        %1328 = arith.mulf %1327, %1326 : vector<8x128xf32>
        %1329 = arith.addf %1318, %1328 : vector<8x128xf32>
        %c125_i32 = arith.constant 125 : i32
        %1330 = tpu.dynamic_rotate %1096 by %c125_i32 dim 1 : vector<14x128xf32>, i32 -> vector<14x128xf32>
        %c7_i32_1241 = arith.constant 7 : i32
        %1331 = arith.muli %arg10, %c7_i32_1241 : i32
        %c0_i32_1242 = arith.constant 0 : i32
        %1332 = arith.addi %1331, %c0_i32_1242 : i32
        %c7_i32_1243 = arith.constant 7 : i32
        %1333 = arith.muli %1332, %c7_i32_1243 : i32
        %c343_i32_1244 = arith.constant 343 : i32
        %1334 = arith.addi %c343_i32_1244, %1333 : i32
        %c3_i32_1245 = arith.constant 3 : i32
        %1335 = arith.addi %1334, %c3_i32_1245 : i32
        %1336 = arith.index_cast %1335 : i32 to index
        %1337 = memref.load %arg1[%1336] : memref<686xf32, #tpu.memory_space<smem>>
        %1338 = vector.extract_strided_slice %1330 {offsets = [0, 0], sizes = [8, 128], strides = [1, 1]} : vector<14x128xf32> to vector<8x128xf32>
        %1339 = vector.broadcast %1337 : f32 to vector<8x128xf32>
        %1340 = arith.mulf %1339, %1338 : vector<8x128xf32>
        %1341 = arith.addf %1329, %1340 : vector<8x128xf32>
        %c7_i32_1246 = arith.constant 7 : i32
        %1342 = arith.muli %arg10, %c7_i32_1246 : i32
        %c1_i32_1247 = arith.constant 1 : i32
        %1343 = arith.addi %1342, %c1_i32_1247 : i32
        %c7_i32_1248 = arith.constant 7 : i32
        %1344 = arith.muli %1343, %c7_i32_1248 : i32
        %c343_i32_1249 = arith.constant 343 : i32
        %1345 = arith.addi %c343_i32_1249, %1344 : i32
        %c3_i32_1250 = arith.constant 3 : i32
        %1346 = arith.addi %1345, %c3_i32_1250 : i32
        %1347 = arith.index_cast %1346 : i32 to index
        %1348 = memref.load %arg1[%1347] : memref<686xf32, #tpu.memory_space<smem>>
        %1349 = vector.extract_strided_slice %1330 {offsets = [1, 0], sizes = [8, 128], strides = [1, 1]} : vector<14x128xf32> to vector<8x128xf32>
        %1350 = vector.broadcast %1348 : f32 to vector<8x128xf32>
        %1351 = arith.mulf %1350, %1349 : vector<8x128xf32>
        %1352 = arith.addf %1341, %1351 : vector<8x128xf32>
        %c7_i32_1251 = arith.constant 7 : i32
        %1353 = arith.muli %arg10, %c7_i32_1251 : i32
        %c2_i32_1252 = arith.constant 2 : i32
        %1354 = arith.addi %1353, %c2_i32_1252 : i32
        %c7_i32_1253 = arith.constant 7 : i32
        %1355 = arith.muli %1354, %c7_i32_1253 : i32
        %c343_i32_1254 = arith.constant 343 : i32
        %1356 = arith.addi %c343_i32_1254, %1355 : i32
        %c3_i32_1255 = arith.constant 3 : i32
        %1357 = arith.addi %1356, %c3_i32_1255 : i32
        %1358 = arith.index_cast %1357 : i32 to index
        %1359 = memref.load %arg1[%1358] : memref<686xf32, #tpu.memory_space<smem>>
        %1360 = vector.extract_strided_slice %1330 {offsets = [2, 0], sizes = [8, 128], strides = [1, 1]} : vector<14x128xf32> to vector<8x128xf32>
        %1361 = vector.broadcast %1359 : f32 to vector<8x128xf32>
        %1362 = arith.mulf %1361, %1360 : vector<8x128xf32>
        %1363 = arith.addf %1352, %1362 : vector<8x128xf32>
        %c7_i32_1256 = arith.constant 7 : i32
        %1364 = arith.muli %arg10, %c7_i32_1256 : i32
        %c3_i32_1257 = arith.constant 3 : i32
        %1365 = arith.addi %1364, %c3_i32_1257 : i32
        %c7_i32_1258 = arith.constant 7 : i32
        %1366 = arith.muli %1365, %c7_i32_1258 : i32
        %c343_i32_1259 = arith.constant 343 : i32
        %1367 = arith.addi %c343_i32_1259, %1366 : i32
        %c3_i32_1260 = arith.constant 3 : i32
        %1368 = arith.addi %1367, %c3_i32_1260 : i32
        %1369 = arith.index_cast %1368 : i32 to index
        %1370 = memref.load %arg1[%1369] : memref<686xf32, #tpu.memory_space<smem>>
        %1371 = vector.extract_strided_slice %1330 {offsets = [3, 0], sizes = [8, 128], strides = [1, 1]} : vector<14x128xf32> to vector<8x128xf32>
        %1372 = vector.broadcast %1370 : f32 to vector<8x128xf32>
        %1373 = arith.mulf %1372, %1371 : vector<8x128xf32>
        %1374 = arith.addf %1363, %1373 : vector<8x128xf32>
        %c7_i32_1261 = arith.constant 7 : i32
        %1375 = arith.muli %arg10, %c7_i32_1261 : i32
        %c4_i32_1262 = arith.constant 4 : i32
        %1376 = arith.addi %1375, %c4_i32_1262 : i32
        %c7_i32_1263 = arith.constant 7 : i32
        %1377 = arith.muli %1376, %c7_i32_1263 : i32
        %c343_i32_1264 = arith.constant 343 : i32
        %1378 = arith.addi %c343_i32_1264, %1377 : i32
        %c3_i32_1265 = arith.constant 3 : i32
        %1379 = arith.addi %1378, %c3_i32_1265 : i32
        %1380 = arith.index_cast %1379 : i32 to index
        %1381 = memref.load %arg1[%1380] : memref<686xf32, #tpu.memory_space<smem>>
        %1382 = vector.extract_strided_slice %1330 {offsets = [4, 0], sizes = [8, 128], strides = [1, 1]} : vector<14x128xf32> to vector<8x128xf32>
        %1383 = vector.broadcast %1381 : f32 to vector<8x128xf32>
        %1384 = arith.mulf %1383, %1382 : vector<8x128xf32>
        %1385 = arith.addf %1374, %1384 : vector<8x128xf32>
        %c7_i32_1266 = arith.constant 7 : i32
        %1386 = arith.muli %arg10, %c7_i32_1266 : i32
        %c5_i32_1267 = arith.constant 5 : i32
        %1387 = arith.addi %1386, %c5_i32_1267 : i32
        %c7_i32_1268 = arith.constant 7 : i32
        %1388 = arith.muli %1387, %c7_i32_1268 : i32
        %c343_i32_1269 = arith.constant 343 : i32
        %1389 = arith.addi %c343_i32_1269, %1388 : i32
        %c3_i32_1270 = arith.constant 3 : i32
        %1390 = arith.addi %1389, %c3_i32_1270 : i32
        %1391 = arith.index_cast %1390 : i32 to index
        %1392 = memref.load %arg1[%1391] : memref<686xf32, #tpu.memory_space<smem>>
        %1393 = vector.extract_strided_slice %1330 {offsets = [5, 0], sizes = [8, 128], strides = [1, 1]} : vector<14x128xf32> to vector<8x128xf32>
        %1394 = vector.broadcast %1392 : f32 to vector<8x128xf32>
        %1395 = arith.mulf %1394, %1393 : vector<8x128xf32>
        %1396 = arith.addf %1385, %1395 : vector<8x128xf32>
        %c7_i32_1271 = arith.constant 7 : i32
        %1397 = arith.muli %arg10, %c7_i32_1271 : i32
        %c6_i32_1272 = arith.constant 6 : i32
        %1398 = arith.addi %1397, %c6_i32_1272 : i32
        %c7_i32_1273 = arith.constant 7 : i32
        %1399 = arith.muli %1398, %c7_i32_1273 : i32
        %c343_i32_1274 = arith.constant 343 : i32
        %1400 = arith.addi %c343_i32_1274, %1399 : i32
        %c3_i32_1275 = arith.constant 3 : i32
        %1401 = arith.addi %1400, %c3_i32_1275 : i32
        %1402 = arith.index_cast %1401 : i32 to index
        %1403 = memref.load %arg1[%1402] : memref<686xf32, #tpu.memory_space<smem>>
        %1404 = vector.extract_strided_slice %1330 {offsets = [6, 0], sizes = [8, 128], strides = [1, 1]} : vector<14x128xf32> to vector<8x128xf32>
        %1405 = vector.broadcast %1403 : f32 to vector<8x128xf32>
        %1406 = arith.mulf %1405, %1404 : vector<8x128xf32>
        %1407 = arith.addf %1396, %1406 : vector<8x128xf32>
        %c124_i32 = arith.constant 124 : i32
        %1408 = tpu.dynamic_rotate %1096 by %c124_i32 dim 1 : vector<14x128xf32>, i32 -> vector<14x128xf32>
        %c7_i32_1276 = arith.constant 7 : i32
        %1409 = arith.muli %arg10, %c7_i32_1276 : i32
        %c0_i32_1277 = arith.constant 0 : i32
        %1410 = arith.addi %1409, %c0_i32_1277 : i32
        %c7_i32_1278 = arith.constant 7 : i32
        %1411 = arith.muli %1410, %c7_i32_1278 : i32
        %c343_i32_1279 = arith.constant 343 : i32
        %1412 = arith.addi %c343_i32_1279, %1411 : i32
        %c4_i32_1280 = arith.constant 4 : i32
        %1413 = arith.addi %1412, %c4_i32_1280 : i32
        %1414 = arith.index_cast %1413 : i32 to index
        %1415 = memref.load %arg1[%1414] : memref<686xf32, #tpu.memory_space<smem>>
        %1416 = vector.extract_strided_slice %1408 {offsets = [0, 0], sizes = [8, 128], strides = [1, 1]} : vector<14x128xf32> to vector<8x128xf32>
        %1417 = vector.broadcast %1415 : f32 to vector<8x128xf32>
        %1418 = arith.mulf %1417, %1416 : vector<8x128xf32>
        %1419 = arith.addf %1407, %1418 : vector<8x128xf32>
        %c7_i32_1281 = arith.constant 7 : i32
        %1420 = arith.muli %arg10, %c7_i32_1281 : i32
        %c1_i32_1282 = arith.constant 1 : i32
        %1421 = arith.addi %1420, %c1_i32_1282 : i32
        %c7_i32_1283 = arith.constant 7 : i32
        %1422 = arith.muli %1421, %c7_i32_1283 : i32
        %c343_i32_1284 = arith.constant 343 : i32
        %1423 = arith.addi %c343_i32_1284, %1422 : i32
        %c4_i32_1285 = arith.constant 4 : i32
        %1424 = arith.addi %1423, %c4_i32_1285 : i32
        %1425 = arith.index_cast %1424 : i32 to index
        %1426 = memref.load %arg1[%1425] : memref<686xf32, #tpu.memory_space<smem>>
        %1427 = vector.extract_strided_slice %1408 {offsets = [1, 0], sizes = [8, 128], strides = [1, 1]} : vector<14x128xf32> to vector<8x128xf32>
        %1428 = vector.broadcast %1426 : f32 to vector<8x128xf32>
        %1429 = arith.mulf %1428, %1427 : vector<8x128xf32>
        %1430 = arith.addf %1419, %1429 : vector<8x128xf32>
        %c7_i32_1286 = arith.constant 7 : i32
        %1431 = arith.muli %arg10, %c7_i32_1286 : i32
        %c2_i32_1287 = arith.constant 2 : i32
        %1432 = arith.addi %1431, %c2_i32_1287 : i32
        %c7_i32_1288 = arith.constant 7 : i32
        %1433 = arith.muli %1432, %c7_i32_1288 : i32
        %c343_i32_1289 = arith.constant 343 : i32
        %1434 = arith.addi %c343_i32_1289, %1433 : i32
        %c4_i32_1290 = arith.constant 4 : i32
        %1435 = arith.addi %1434, %c4_i32_1290 : i32
        %1436 = arith.index_cast %1435 : i32 to index
        %1437 = memref.load %arg1[%1436] : memref<686xf32, #tpu.memory_space<smem>>
        %1438 = vector.extract_strided_slice %1408 {offsets = [2, 0], sizes = [8, 128], strides = [1, 1]} : vector<14x128xf32> to vector<8x128xf32>
        %1439 = vector.broadcast %1437 : f32 to vector<8x128xf32>
        %1440 = arith.mulf %1439, %1438 : vector<8x128xf32>
        %1441 = arith.addf %1430, %1440 : vector<8x128xf32>
        %c7_i32_1291 = arith.constant 7 : i32
        %1442 = arith.muli %arg10, %c7_i32_1291 : i32
        %c3_i32_1292 = arith.constant 3 : i32
        %1443 = arith.addi %1442, %c3_i32_1292 : i32
        %c7_i32_1293 = arith.constant 7 : i32
        %1444 = arith.muli %1443, %c7_i32_1293 : i32
        %c343_i32_1294 = arith.constant 343 : i32
        %1445 = arith.addi %c343_i32_1294, %1444 : i32
        %c4_i32_1295 = arith.constant 4 : i32
        %1446 = arith.addi %1445, %c4_i32_1295 : i32
        %1447 = arith.index_cast %1446 : i32 to index
        %1448 = memref.load %arg1[%1447] : memref<686xf32, #tpu.memory_space<smem>>
        %1449 = vector.extract_strided_slice %1408 {offsets = [3, 0], sizes = [8, 128], strides = [1, 1]} : vector<14x128xf32> to vector<8x128xf32>
        %1450 = vector.broadcast %1448 : f32 to vector<8x128xf32>
        %1451 = arith.mulf %1450, %1449 : vector<8x128xf32>
        %1452 = arith.addf %1441, %1451 : vector<8x128xf32>
        %c7_i32_1296 = arith.constant 7 : i32
        %1453 = arith.muli %arg10, %c7_i32_1296 : i32
        %c4_i32_1297 = arith.constant 4 : i32
        %1454 = arith.addi %1453, %c4_i32_1297 : i32
        %c7_i32_1298 = arith.constant 7 : i32
        %1455 = arith.muli %1454, %c7_i32_1298 : i32
        %c343_i32_1299 = arith.constant 343 : i32
        %1456 = arith.addi %c343_i32_1299, %1455 : i32
        %c4_i32_1300 = arith.constant 4 : i32
        %1457 = arith.addi %1456, %c4_i32_1300 : i32
        %1458 = arith.index_cast %1457 : i32 to index
        %1459 = memref.load %arg1[%1458] : memref<686xf32, #tpu.memory_space<smem>>
        %1460 = vector.extract_strided_slice %1408 {offsets = [4, 0], sizes = [8, 128], strides = [1, 1]} : vector<14x128xf32> to vector<8x128xf32>
        %1461 = vector.broadcast %1459 : f32 to vector<8x128xf32>
        %1462 = arith.mulf %1461, %1460 : vector<8x128xf32>
        %1463 = arith.addf %1452, %1462 : vector<8x128xf32>
        %c7_i32_1301 = arith.constant 7 : i32
        %1464 = arith.muli %arg10, %c7_i32_1301 : i32
        %c5_i32_1302 = arith.constant 5 : i32
        %1465 = arith.addi %1464, %c5_i32_1302 : i32
        %c7_i32_1303 = arith.constant 7 : i32
        %1466 = arith.muli %1465, %c7_i32_1303 : i32
        %c343_i32_1304 = arith.constant 343 : i32
        %1467 = arith.addi %c343_i32_1304, %1466 : i32
        %c4_i32_1305 = arith.constant 4 : i32
        %1468 = arith.addi %1467, %c4_i32_1305 : i32
        %1469 = arith.index_cast %1468 : i32 to index
        %1470 = memref.load %arg1[%1469] : memref<686xf32, #tpu.memory_space<smem>>
        %1471 = vector.extract_strided_slice %1408 {offsets = [5, 0], sizes = [8, 128], strides = [1, 1]} : vector<14x128xf32> to vector<8x128xf32>
        %1472 = vector.broadcast %1470 : f32 to vector<8x128xf32>
        %1473 = arith.mulf %1472, %1471 : vector<8x128xf32>
        %1474 = arith.addf %1463, %1473 : vector<8x128xf32>
        %c7_i32_1306 = arith.constant 7 : i32
        %1475 = arith.muli %arg10, %c7_i32_1306 : i32
        %c6_i32_1307 = arith.constant 6 : i32
        %1476 = arith.addi %1475, %c6_i32_1307 : i32
        %c7_i32_1308 = arith.constant 7 : i32
        %1477 = arith.muli %1476, %c7_i32_1308 : i32
        %c343_i32_1309 = arith.constant 343 : i32
        %1478 = arith.addi %c343_i32_1309, %1477 : i32
        %c4_i32_1310 = arith.constant 4 : i32
        %1479 = arith.addi %1478, %c4_i32_1310 : i32
        %1480 = arith.index_cast %1479 : i32 to index
        %1481 = memref.load %arg1[%1480] : memref<686xf32, #tpu.memory_space<smem>>
        %1482 = vector.extract_strided_slice %1408 {offsets = [6, 0], sizes = [8, 128], strides = [1, 1]} : vector<14x128xf32> to vector<8x128xf32>
        %1483 = vector.broadcast %1481 : f32 to vector<8x128xf32>
        %1484 = arith.mulf %1483, %1482 : vector<8x128xf32>
        %1485 = arith.addf %1474, %1484 : vector<8x128xf32>
        %c123_i32 = arith.constant 123 : i32
        %1486 = tpu.dynamic_rotate %1096 by %c123_i32 dim 1 : vector<14x128xf32>, i32 -> vector<14x128xf32>
        %c7_i32_1311 = arith.constant 7 : i32
        %1487 = arith.muli %arg10, %c7_i32_1311 : i32
        %c0_i32_1312 = arith.constant 0 : i32
        %1488 = arith.addi %1487, %c0_i32_1312 : i32
        %c7_i32_1313 = arith.constant 7 : i32
        %1489 = arith.muli %1488, %c7_i32_1313 : i32
        %c343_i32_1314 = arith.constant 343 : i32
        %1490 = arith.addi %c343_i32_1314, %1489 : i32
        %c5_i32_1315 = arith.constant 5 : i32
        %1491 = arith.addi %1490, %c5_i32_1315 : i32
        %1492 = arith.index_cast %1491 : i32 to index
        %1493 = memref.load %arg1[%1492] : memref<686xf32, #tpu.memory_space<smem>>
        %1494 = vector.extract_strided_slice %1486 {offsets = [0, 0], sizes = [8, 128], strides = [1, 1]} : vector<14x128xf32> to vector<8x128xf32>
        %1495 = vector.broadcast %1493 : f32 to vector<8x128xf32>
        %1496 = arith.mulf %1495, %1494 : vector<8x128xf32>
        %1497 = arith.addf %1485, %1496 : vector<8x128xf32>
        %c7_i32_1316 = arith.constant 7 : i32
        %1498 = arith.muli %arg10, %c7_i32_1316 : i32
        %c1_i32_1317 = arith.constant 1 : i32
        %1499 = arith.addi %1498, %c1_i32_1317 : i32
        %c7_i32_1318 = arith.constant 7 : i32
        %1500 = arith.muli %1499, %c7_i32_1318 : i32
        %c343_i32_1319 = arith.constant 343 : i32
        %1501 = arith.addi %c343_i32_1319, %1500 : i32
        %c5_i32_1320 = arith.constant 5 : i32
        %1502 = arith.addi %1501, %c5_i32_1320 : i32
        %1503 = arith.index_cast %1502 : i32 to index
        %1504 = memref.load %arg1[%1503] : memref<686xf32, #tpu.memory_space<smem>>
        %1505 = vector.extract_strided_slice %1486 {offsets = [1, 0], sizes = [8, 128], strides = [1, 1]} : vector<14x128xf32> to vector<8x128xf32>
        %1506 = vector.broadcast %1504 : f32 to vector<8x128xf32>
        %1507 = arith.mulf %1506, %1505 : vector<8x128xf32>
        %1508 = arith.addf %1497, %1507 : vector<8x128xf32>
        %c7_i32_1321 = arith.constant 7 : i32
        %1509 = arith.muli %arg10, %c7_i32_1321 : i32
        %c2_i32_1322 = arith.constant 2 : i32
        %1510 = arith.addi %1509, %c2_i32_1322 : i32
        %c7_i32_1323 = arith.constant 7 : i32
        %1511 = arith.muli %1510, %c7_i32_1323 : i32
        %c343_i32_1324 = arith.constant 343 : i32
        %1512 = arith.addi %c343_i32_1324, %1511 : i32
        %c5_i32_1325 = arith.constant 5 : i32
        %1513 = arith.addi %1512, %c5_i32_1325 : i32
        %1514 = arith.index_cast %1513 : i32 to index
        %1515 = memref.load %arg1[%1514] : memref<686xf32, #tpu.memory_space<smem>>
        %1516 = vector.extract_strided_slice %1486 {offsets = [2, 0], sizes = [8, 128], strides = [1, 1]} : vector<14x128xf32> to vector<8x128xf32>
        %1517 = vector.broadcast %1515 : f32 to vector<8x128xf32>
        %1518 = arith.mulf %1517, %1516 : vector<8x128xf32>
        %1519 = arith.addf %1508, %1518 : vector<8x128xf32>
        %c7_i32_1326 = arith.constant 7 : i32
        %1520 = arith.muli %arg10, %c7_i32_1326 : i32
        %c3_i32_1327 = arith.constant 3 : i32
        %1521 = arith.addi %1520, %c3_i32_1327 : i32
        %c7_i32_1328 = arith.constant 7 : i32
        %1522 = arith.muli %1521, %c7_i32_1328 : i32
        %c343_i32_1329 = arith.constant 343 : i32
        %1523 = arith.addi %c343_i32_1329, %1522 : i32
        %c5_i32_1330 = arith.constant 5 : i32
        %1524 = arith.addi %1523, %c5_i32_1330 : i32
        %1525 = arith.index_cast %1524 : i32 to index
        %1526 = memref.load %arg1[%1525] : memref<686xf32, #tpu.memory_space<smem>>
        %1527 = vector.extract_strided_slice %1486 {offsets = [3, 0], sizes = [8, 128], strides = [1, 1]} : vector<14x128xf32> to vector<8x128xf32>
        %1528 = vector.broadcast %1526 : f32 to vector<8x128xf32>
        %1529 = arith.mulf %1528, %1527 : vector<8x128xf32>
        %1530 = arith.addf %1519, %1529 : vector<8x128xf32>
        %c7_i32_1331 = arith.constant 7 : i32
        %1531 = arith.muli %arg10, %c7_i32_1331 : i32
        %c4_i32_1332 = arith.constant 4 : i32
        %1532 = arith.addi %1531, %c4_i32_1332 : i32
        %c7_i32_1333 = arith.constant 7 : i32
        %1533 = arith.muli %1532, %c7_i32_1333 : i32
        %c343_i32_1334 = arith.constant 343 : i32
        %1534 = arith.addi %c343_i32_1334, %1533 : i32
        %c5_i32_1335 = arith.constant 5 : i32
        %1535 = arith.addi %1534, %c5_i32_1335 : i32
        %1536 = arith.index_cast %1535 : i32 to index
        %1537 = memref.load %arg1[%1536] : memref<686xf32, #tpu.memory_space<smem>>
        %1538 = vector.extract_strided_slice %1486 {offsets = [4, 0], sizes = [8, 128], strides = [1, 1]} : vector<14x128xf32> to vector<8x128xf32>
        %1539 = vector.broadcast %1537 : f32 to vector<8x128xf32>
        %1540 = arith.mulf %1539, %1538 : vector<8x128xf32>
        %1541 = arith.addf %1530, %1540 : vector<8x128xf32>
        %c7_i32_1336 = arith.constant 7 : i32
        %1542 = arith.muli %arg10, %c7_i32_1336 : i32
        %c5_i32_1337 = arith.constant 5 : i32
        %1543 = arith.addi %1542, %c5_i32_1337 : i32
        %c7_i32_1338 = arith.constant 7 : i32
        %1544 = arith.muli %1543, %c7_i32_1338 : i32
        %c343_i32_1339 = arith.constant 343 : i32
        %1545 = arith.addi %c343_i32_1339, %1544 : i32
        %c5_i32_1340 = arith.constant 5 : i32
        %1546 = arith.addi %1545, %c5_i32_1340 : i32
        %1547 = arith.index_cast %1546 : i32 to index
        %1548 = memref.load %arg1[%1547] : memref<686xf32, #tpu.memory_space<smem>>
        %1549 = vector.extract_strided_slice %1486 {offsets = [5, 0], sizes = [8, 128], strides = [1, 1]} : vector<14x128xf32> to vector<8x128xf32>
        %1550 = vector.broadcast %1548 : f32 to vector<8x128xf32>
        %1551 = arith.mulf %1550, %1549 : vector<8x128xf32>
        %1552 = arith.addf %1541, %1551 : vector<8x128xf32>
        %c7_i32_1341 = arith.constant 7 : i32
        %1553 = arith.muli %arg10, %c7_i32_1341 : i32
        %c6_i32_1342 = arith.constant 6 : i32
        %1554 = arith.addi %1553, %c6_i32_1342 : i32
        %c7_i32_1343 = arith.constant 7 : i32
        %1555 = arith.muli %1554, %c7_i32_1343 : i32
        %c343_i32_1344 = arith.constant 343 : i32
        %1556 = arith.addi %c343_i32_1344, %1555 : i32
        %c5_i32_1345 = arith.constant 5 : i32
        %1557 = arith.addi %1556, %c5_i32_1345 : i32
        %1558 = arith.index_cast %1557 : i32 to index
        %1559 = memref.load %arg1[%1558] : memref<686xf32, #tpu.memory_space<smem>>
        %1560 = vector.extract_strided_slice %1486 {offsets = [6, 0], sizes = [8, 128], strides = [1, 1]} : vector<14x128xf32> to vector<8x128xf32>
        %1561 = vector.broadcast %1559 : f32 to vector<8x128xf32>
        %1562 = arith.mulf %1561, %1560 : vector<8x128xf32>
        %1563 = arith.addf %1552, %1562 : vector<8x128xf32>
        %c122_i32 = arith.constant 122 : i32
        %1564 = tpu.dynamic_rotate %1096 by %c122_i32 dim 1 : vector<14x128xf32>, i32 -> vector<14x128xf32>
        %c7_i32_1346 = arith.constant 7 : i32
        %1565 = arith.muli %arg10, %c7_i32_1346 : i32
        %c0_i32_1347 = arith.constant 0 : i32
        %1566 = arith.addi %1565, %c0_i32_1347 : i32
        %c7_i32_1348 = arith.constant 7 : i32
        %1567 = arith.muli %1566, %c7_i32_1348 : i32
        %c343_i32_1349 = arith.constant 343 : i32
        %1568 = arith.addi %c343_i32_1349, %1567 : i32
        %c6_i32_1350 = arith.constant 6 : i32
        %1569 = arith.addi %1568, %c6_i32_1350 : i32
        %1570 = arith.index_cast %1569 : i32 to index
        %1571 = memref.load %arg1[%1570] : memref<686xf32, #tpu.memory_space<smem>>
        %1572 = vector.extract_strided_slice %1564 {offsets = [0, 0], sizes = [8, 128], strides = [1, 1]} : vector<14x128xf32> to vector<8x128xf32>
        %1573 = vector.broadcast %1571 : f32 to vector<8x128xf32>
        %1574 = arith.mulf %1573, %1572 : vector<8x128xf32>
        %1575 = arith.addf %1563, %1574 : vector<8x128xf32>
        %c7_i32_1351 = arith.constant 7 : i32
        %1576 = arith.muli %arg10, %c7_i32_1351 : i32
        %c1_i32_1352 = arith.constant 1 : i32
        %1577 = arith.addi %1576, %c1_i32_1352 : i32
        %c7_i32_1353 = arith.constant 7 : i32
        %1578 = arith.muli %1577, %c7_i32_1353 : i32
        %c343_i32_1354 = arith.constant 343 : i32
        %1579 = arith.addi %c343_i32_1354, %1578 : i32
        %c6_i32_1355 = arith.constant 6 : i32
        %1580 = arith.addi %1579, %c6_i32_1355 : i32
        %1581 = arith.index_cast %1580 : i32 to index
        %1582 = memref.load %arg1[%1581] : memref<686xf32, #tpu.memory_space<smem>>
        %1583 = vector.extract_strided_slice %1564 {offsets = [1, 0], sizes = [8, 128], strides = [1, 1]} : vector<14x128xf32> to vector<8x128xf32>
        %1584 = vector.broadcast %1582 : f32 to vector<8x128xf32>
        %1585 = arith.mulf %1584, %1583 : vector<8x128xf32>
        %1586 = arith.addf %1575, %1585 : vector<8x128xf32>
        %c7_i32_1356 = arith.constant 7 : i32
        %1587 = arith.muli %arg10, %c7_i32_1356 : i32
        %c2_i32_1357 = arith.constant 2 : i32
        %1588 = arith.addi %1587, %c2_i32_1357 : i32
        %c7_i32_1358 = arith.constant 7 : i32
        %1589 = arith.muli %1588, %c7_i32_1358 : i32
        %c343_i32_1359 = arith.constant 343 : i32
        %1590 = arith.addi %c343_i32_1359, %1589 : i32
        %c6_i32_1360 = arith.constant 6 : i32
        %1591 = arith.addi %1590, %c6_i32_1360 : i32
        %1592 = arith.index_cast %1591 : i32 to index
        %1593 = memref.load %arg1[%1592] : memref<686xf32, #tpu.memory_space<smem>>
        %1594 = vector.extract_strided_slice %1564 {offsets = [2, 0], sizes = [8, 128], strides = [1, 1]} : vector<14x128xf32> to vector<8x128xf32>
        %1595 = vector.broadcast %1593 : f32 to vector<8x128xf32>
        %1596 = arith.mulf %1595, %1594 : vector<8x128xf32>
        %1597 = arith.addf %1586, %1596 : vector<8x128xf32>
        %c7_i32_1361 = arith.constant 7 : i32
        %1598 = arith.muli %arg10, %c7_i32_1361 : i32
        %c3_i32_1362 = arith.constant 3 : i32
        %1599 = arith.addi %1598, %c3_i32_1362 : i32
        %c7_i32_1363 = arith.constant 7 : i32
        %1600 = arith.muli %1599, %c7_i32_1363 : i32
        %c343_i32_1364 = arith.constant 343 : i32
        %1601 = arith.addi %c343_i32_1364, %1600 : i32
        %c6_i32_1365 = arith.constant 6 : i32
        %1602 = arith.addi %1601, %c6_i32_1365 : i32
        %1603 = arith.index_cast %1602 : i32 to index
        %1604 = memref.load %arg1[%1603] : memref<686xf32, #tpu.memory_space<smem>>
        %1605 = vector.extract_strided_slice %1564 {offsets = [3, 0], sizes = [8, 128], strides = [1, 1]} : vector<14x128xf32> to vector<8x128xf32>
        %1606 = vector.broadcast %1604 : f32 to vector<8x128xf32>
        %1607 = arith.mulf %1606, %1605 : vector<8x128xf32>
        %1608 = arith.addf %1597, %1607 : vector<8x128xf32>
        %c7_i32_1366 = arith.constant 7 : i32
        %1609 = arith.muli %arg10, %c7_i32_1366 : i32
        %c4_i32_1367 = arith.constant 4 : i32
        %1610 = arith.addi %1609, %c4_i32_1367 : i32
        %c7_i32_1368 = arith.constant 7 : i32
        %1611 = arith.muli %1610, %c7_i32_1368 : i32
        %c343_i32_1369 = arith.constant 343 : i32
        %1612 = arith.addi %c343_i32_1369, %1611 : i32
        %c6_i32_1370 = arith.constant 6 : i32
        %1613 = arith.addi %1612, %c6_i32_1370 : i32
        %1614 = arith.index_cast %1613 : i32 to index
        %1615 = memref.load %arg1[%1614] : memref<686xf32, #tpu.memory_space<smem>>
        %1616 = vector.extract_strided_slice %1564 {offsets = [4, 0], sizes = [8, 128], strides = [1, 1]} : vector<14x128xf32> to vector<8x128xf32>
        %1617 = vector.broadcast %1615 : f32 to vector<8x128xf32>
        %1618 = arith.mulf %1617, %1616 : vector<8x128xf32>
        %1619 = arith.addf %1608, %1618 : vector<8x128xf32>
        %c7_i32_1371 = arith.constant 7 : i32
        %1620 = arith.muli %arg10, %c7_i32_1371 : i32
        %c5_i32_1372 = arith.constant 5 : i32
        %1621 = arith.addi %1620, %c5_i32_1372 : i32
        %c7_i32_1373 = arith.constant 7 : i32
        %1622 = arith.muli %1621, %c7_i32_1373 : i32
        %c343_i32_1374 = arith.constant 343 : i32
        %1623 = arith.addi %c343_i32_1374, %1622 : i32
        %c6_i32_1375 = arith.constant 6 : i32
        %1624 = arith.addi %1623, %c6_i32_1375 : i32
        %1625 = arith.index_cast %1624 : i32 to index
        %1626 = memref.load %arg1[%1625] : memref<686xf32, #tpu.memory_space<smem>>
        %1627 = vector.extract_strided_slice %1564 {offsets = [5, 0], sizes = [8, 128], strides = [1, 1]} : vector<14x128xf32> to vector<8x128xf32>
        %1628 = vector.broadcast %1626 : f32 to vector<8x128xf32>
        %1629 = arith.mulf %1628, %1627 : vector<8x128xf32>
        %1630 = arith.addf %1619, %1629 : vector<8x128xf32>
        %c7_i32_1376 = arith.constant 7 : i32
        %1631 = arith.muli %arg10, %c7_i32_1376 : i32
        %c6_i32_1377 = arith.constant 6 : i32
        %1632 = arith.addi %1631, %c6_i32_1377 : i32
        %c7_i32_1378 = arith.constant 7 : i32
        %1633 = arith.muli %1632, %c7_i32_1378 : i32
        %c343_i32_1379 = arith.constant 343 : i32
        %1634 = arith.addi %c343_i32_1379, %1633 : i32
        %c6_i32_1380 = arith.constant 6 : i32
        %1635 = arith.addi %1634, %c6_i32_1380 : i32
        %1636 = arith.index_cast %1635 : i32 to index
        %1637 = memref.load %arg1[%1636] : memref<686xf32, #tpu.memory_space<smem>>
        %1638 = vector.extract_strided_slice %1564 {offsets = [6, 0], sizes = [8, 128], strides = [1, 1]} : vector<14x128xf32> to vector<8x128xf32>
        %1639 = vector.broadcast %1637 : f32 to vector<8x128xf32>
        %1640 = arith.mulf %1639, %1638 : vector<8x128xf32>
        %1641 = arith.addf %1630, %1640 : vector<8x128xf32>
        scf.yield %1641 : vector<8x128xf32>
      }
      %c7_i32_1134 = arith.constant 7 : i32
      %c0_1135 = arith.constant 0 : index
      %1082 = memref.load %arg2[%c0_1135] : memref<1xf32, #tpu.memory_space<smem>>
      %1083 = vector.broadcast %1082 : f32 to vector<8x128xf32>
      %1084 = arith.addf %1081, %1083 : vector<8x128xf32>
      %1085 = arith.negf %1084 : vector<8x128xf32>
      %1086 = math.exp %1085 : vector<8x128xf32>
      %cst_1136 = arith.constant 1.000000e+00 : f32
      %1087 = vector.broadcast %cst_1136 : f32 to vector<8x128xf32>
      %1088 = arith.addf %1087, %1086 : vector<8x128xf32>
      %1089 = arith.divf %1087, %1088 : vector<8x128xf32>
      %1090 = vector.shape_cast %1089 : vector<8x128xf32> to vector<1x8x128xf32>
      %1091 = arith.index_cast %arg9 : i32 to index
      %c0_1137 = arith.constant 0 : index
      %c0_1138 = arith.constant 0 : index
      %1092 = vector.load %arg7[%1091, %c0_1137, %c0_1138] : memref<8x8x128xf32, #tpu.memory_space<vmem>>, vector<1x8x128xf32>
      tpu.vector_store %arg7[%1091, %c0_1137, %c0_1138], %1090 {strides = array<i32>} : memref<8x8x128xf32, #tpu.memory_space<vmem>>, vector<1x8x128xf32>,
    }
    %c8_i32_779 = arith.constant 8 : i32
    %c0_780 = arith.constant 0 : index
    %c0_781 = arith.constant 0 : index
    %c0_782 = arith.constant 0 : index
    %721 = vector.load %arg7[%c0_780, %c0_781, %c0_782] : memref<8x8x128xf32, #tpu.memory_space<vmem>>, vector<1x1x20xf32>
    %722 = vector.shape_cast %721 : vector<1x1x20xf32> to vector<20xf32>
    %c0_783 = arith.constant 0 : index
    %c0_784 = arith.constant 0 : index
    %723 = vector.load %arg8[%c0_783, %c0_784] : memref<1x1280xf32, #tpu.memory_space<vmem>>, vector<1x20xf32>
    %724 = vector.shape_cast %723 : vector<1x20xf32> to vector<20xf32>
    %725 = vector.shape_cast %722 : vector<20xf32> to vector<1x20xf32>
    tpu.vector_store %arg8[%c0_783, %c0_784], %725 {strides = array<i32>} : memref<1x1280xf32, #tpu.memory_space<vmem>>, vector<1x20xf32>,
    %c0_785 = arith.constant 0 : index
    %c1_786 = arith.constant 1 : index
    %c0_787 = arith.constant 0 : index
    %726 = vector.load %arg7[%c0_785, %c1_786, %c0_787] : memref<8x8x128xf32, #tpu.memory_space<vmem>>, vector<1x1x20xf32>
    %727 = vector.shape_cast %726 : vector<1x1x20xf32> to vector<20xf32>
    %c0_788 = arith.constant 0 : index
    %c20_789 = arith.constant 20 : index
    %728 = vector.load %arg8[%c0_788, %c20_789] : memref<1x1280xf32, #tpu.memory_space<vmem>>, vector<1x20xf32>
    %729 = vector.shape_cast %728 : vector<1x20xf32> to vector<20xf32>
    %730 = vector.shape_cast %727 : vector<20xf32> to vector<1x20xf32>
    tpu.vector_store %arg8[%c0_788, %c20_789], %730 {strides = array<i32>} : memref<1x1280xf32, #tpu.memory_space<vmem>>, vector<1x20xf32>,
    %c0_790 = arith.constant 0 : index
    %c2 = arith.constant 2 : index
    %c0_791 = arith.constant 0 : index
    %731 = vector.load %arg7[%c0_790, %c2, %c0_791] : memref<8x8x128xf32, #tpu.memory_space<vmem>>, vector<1x1x20xf32>
    %732 = vector.shape_cast %731 : vector<1x1x20xf32> to vector<20xf32>
    %c0_792 = arith.constant 0 : index
    %c40_793 = arith.constant 40 : index
    %733 = vector.load %arg8[%c0_792, %c40_793] : memref<1x1280xf32, #tpu.memory_space<vmem>>, vector<1x20xf32>
    %734 = vector.shape_cast %733 : vector<1x20xf32> to vector<20xf32>
    %735 = vector.shape_cast %732 : vector<20xf32> to vector<1x20xf32>
    tpu.vector_store %arg8[%c0_792, %c40_793], %735 {strides = array<i32>} : memref<1x1280xf32, #tpu.memory_space<vmem>>, vector<1x20xf32>,
    %c0_794 = arith.constant 0 : index
    %c3_795 = arith.constant 3 : index
    %c0_796 = arith.constant 0 : index
    %736 = vector.load %arg7[%c0_794, %c3_795, %c0_796] : memref<8x8x128xf32, #tpu.memory_space<vmem>>, vector<1x1x20xf32>
    %737 = vector.shape_cast %736 : vector<1x1x20xf32> to vector<20xf32>
    %c0_797 = arith.constant 0 : index
    %c60_798 = arith.constant 60 : index
    %738 = vector.load %arg8[%c0_797, %c60_798] : memref<1x1280xf32, #tpu.memory_space<vmem>>, vector<1x20xf32>
    %739 = vector.shape_cast %738 : vector<1x20xf32> to vector<20xf32>
    %740 = vector.shape_cast %737 : vector<20xf32> to vector<1x20xf32>
    tpu.vector_store %arg8[%c0_797, %c60_798], %740 {strides = array<i32>} : memref<1x1280xf32, #tpu.memory_space<vmem>>, vector<1x20xf32>,
    %c0_799 = arith.constant 0 : index
    %c4_800 = arith.constant 4 : index
    %c0_801 = arith.constant 0 : index
    %741 = vector.load %arg7[%c0_799, %c4_800, %c0_801] : memref<8x8x128xf32, #tpu.memory_space<vmem>>, vector<1x1x20xf32>
    %742 = vector.shape_cast %741 : vector<1x1x20xf32> to vector<20xf32>
    %c0_802 = arith.constant 0 : index
    %c80_803 = arith.constant 80 : index
    %743 = vector.load %arg8[%c0_802, %c80_803] : memref<1x1280xf32, #tpu.memory_space<vmem>>, vector<1x20xf32>
    %744 = vector.shape_cast %743 : vector<1x20xf32> to vector<20xf32>
    %745 = vector.shape_cast %742 : vector<20xf32> to vector<1x20xf32>
    tpu.vector_store %arg8[%c0_802, %c80_803], %745 {strides = array<i32>} : memref<1x1280xf32, #tpu.memory_space<vmem>>, vector<1x20xf32>,
    %c0_804 = arith.constant 0 : index
    %c5_805 = arith.constant 5 : index
    %c0_806 = arith.constant 0 : index
    %746 = vector.load %arg7[%c0_804, %c5_805, %c0_806] : memref<8x8x128xf32, #tpu.memory_space<vmem>>, vector<1x1x20xf32>
    %747 = vector.shape_cast %746 : vector<1x1x20xf32> to vector<20xf32>
    %c0_807 = arith.constant 0 : index
    %c100_808 = arith.constant 100 : index
    %748 = vector.load %arg8[%c0_807, %c100_808] : memref<1x1280xf32, #tpu.memory_space<vmem>>, vector<1x20xf32>
    %749 = vector.shape_cast %748 : vector<1x20xf32> to vector<20xf32>
    %750 = vector.shape_cast %747 : vector<20xf32> to vector<1x20xf32>
    tpu.vector_store %arg8[%c0_807, %c100_808], %750 {strides = array<i32>} : memref<1x1280xf32, #tpu.memory_space<vmem>>, vector<1x20xf32>,
    %c0_809 = arith.constant 0 : index
    %c6_810 = arith.constant 6 : index
    %c0_811 = arith.constant 0 : index
    %751 = vector.load %arg7[%c0_809, %c6_810, %c0_811] : memref<8x8x128xf32, #tpu.memory_space<vmem>>, vector<1x1x20xf32>
    %752 = vector.shape_cast %751 : vector<1x1x20xf32> to vector<20xf32>
    %c0_812 = arith.constant 0 : index
    %c120_813 = arith.constant 120 : index
    %753 = vector.load %arg8[%c0_812, %c120_813] : memref<1x1280xf32, #tpu.memory_space<vmem>>, vector<1x20xf32>
    %754 = vector.shape_cast %753 : vector<1x20xf32> to vector<20xf32>
    %755 = vector.shape_cast %752 : vector<20xf32> to vector<1x20xf32>
    tpu.vector_store %arg8[%c0_812, %c120_813], %755 {strides = array<i32>} : memref<1x1280xf32, #tpu.memory_space<vmem>>, vector<1x20xf32>,
    %c0_814 = arith.constant 0 : index
    %c7_815 = arith.constant 7 : index
    %c0_816 = arith.constant 0 : index
    %756 = vector.load %arg7[%c0_814, %c7_815, %c0_816] : memref<8x8x128xf32, #tpu.memory_space<vmem>>, vector<1x1x20xf32>
    %757 = vector.shape_cast %756 : vector<1x1x20xf32> to vector<20xf32>
    %c0_817 = arith.constant 0 : index
    %c140_818 = arith.constant 140 : index
    %758 = vector.load %arg8[%c0_817, %c140_818] : memref<1x1280xf32, #tpu.memory_space<vmem>>, vector<1x20xf32>
    %759 = vector.shape_cast %758 : vector<1x20xf32> to vector<20xf32>
    %760 = vector.shape_cast %757 : vector<20xf32> to vector<1x20xf32>
    tpu.vector_store %arg8[%c0_817, %c140_818], %760 {strides = array<i32>} : memref<1x1280xf32, #tpu.memory_space<vmem>>, vector<1x20xf32>,
    %c1_819 = arith.constant 1 : index
    %c0_820 = arith.constant 0 : index
    %c0_821 = arith.constant 0 : index
    %761 = vector.load %arg7[%c1_819, %c0_820, %c0_821] : memref<8x8x128xf32, #tpu.memory_space<vmem>>, vector<1x1x20xf32>
    %762 = vector.shape_cast %761 : vector<1x1x20xf32> to vector<20xf32>
    %c0_822 = arith.constant 0 : index
    %c160_823 = arith.constant 160 : index
    %763 = vector.load %arg8[%c0_822, %c160_823] : memref<1x1280xf32, #tpu.memory_space<vmem>>, vector<1x20xf32>
    %764 = vector.shape_cast %763 : vector<1x20xf32> to vector<20xf32>
    %765 = vector.shape_cast %762 : vector<20xf32> to vector<1x20xf32>
    tpu.vector_store %arg8[%c0_822, %c160_823], %765 {strides = array<i32>} : memref<1x1280xf32, #tpu.memory_space<vmem>>, vector<1x20xf32>,
    %c1_824 = arith.constant 1 : index
    %c1_825 = arith.constant 1 : index
    %c0_826 = arith.constant 0 : index
    %766 = vector.load %arg7[%c1_824, %c1_825, %c0_826] : memref<8x8x128xf32, #tpu.memory_space<vmem>>, vector<1x1x20xf32>
    %767 = vector.shape_cast %766 : vector<1x1x20xf32> to vector<20xf32>
    %c0_827 = arith.constant 0 : index
    %c180_828 = arith.constant 180 : index
    %768 = vector.load %arg8[%c0_827, %c180_828] : memref<1x1280xf32, #tpu.memory_space<vmem>>, vector<1x20xf32>
    %769 = vector.shape_cast %768 : vector<1x20xf32> to vector<20xf32>
    %770 = vector.shape_cast %767 : vector<20xf32> to vector<1x20xf32>
    tpu.vector_store %arg8[%c0_827, %c180_828], %770 {strides = array<i32>} : memref<1x1280xf32, #tpu.memory_space<vmem>>, vector<1x20xf32>,
    %c1_829 = arith.constant 1 : index
    %c2_830 = arith.constant 2 : index
    %c0_831 = arith.constant 0 : index
    %771 = vector.load %arg7[%c1_829, %c2_830, %c0_831] : memref<8x8x128xf32, #tpu.memory_space<vmem>>, vector<1x1x20xf32>
    %772 = vector.shape_cast %771 : vector<1x1x20xf32> to vector<20xf32>
    %c0_832 = arith.constant 0 : index
    %c200_833 = arith.constant 200 : index
    %773 = vector.load %arg8[%c0_832, %c200_833] : memref<1x1280xf32, #tpu.memory_space<vmem>>, vector<1x20xf32>
    %774 = vector.shape_cast %773 : vector<1x20xf32> to vector<20xf32>
    %775 = vector.shape_cast %772 : vector<20xf32> to vector<1x20xf32>
    tpu.vector_store %arg8[%c0_832, %c200_833], %775 {strides = array<i32>} : memref<1x1280xf32, #tpu.memory_space<vmem>>, vector<1x20xf32>,
    %c1_834 = arith.constant 1 : index
    %c3_835 = arith.constant 3 : index
    %c0_836 = arith.constant 0 : index
    %776 = vector.load %arg7[%c1_834, %c3_835, %c0_836] : memref<8x8x128xf32, #tpu.memory_space<vmem>>, vector<1x1x20xf32>
    %777 = vector.shape_cast %776 : vector<1x1x20xf32> to vector<20xf32>
    %c0_837 = arith.constant 0 : index
    %c220_838 = arith.constant 220 : index
    %778 = vector.load %arg8[%c0_837, %c220_838] : memref<1x1280xf32, #tpu.memory_space<vmem>>, vector<1x20xf32>
    %779 = vector.shape_cast %778 : vector<1x20xf32> to vector<20xf32>
    %780 = vector.shape_cast %777 : vector<20xf32> to vector<1x20xf32>
    tpu.vector_store %arg8[%c0_837, %c220_838], %780 {strides = array<i32>} : memref<1x1280xf32, #tpu.memory_space<vmem>>, vector<1x20xf32>,
    %c1_839 = arith.constant 1 : index
    %c4_840 = arith.constant 4 : index
    %c0_841 = arith.constant 0 : index
    %781 = vector.load %arg7[%c1_839, %c4_840, %c0_841] : memref<8x8x128xf32, #tpu.memory_space<vmem>>, vector<1x1x20xf32>
    %782 = vector.shape_cast %781 : vector<1x1x20xf32> to vector<20xf32>
    %c0_842 = arith.constant 0 : index
    %c240_843 = arith.constant 240 : index
    %783 = vector.load %arg8[%c0_842, %c240_843] : memref<1x1280xf32, #tpu.memory_space<vmem>>, vector<1x20xf32>
    %784 = vector.shape_cast %783 : vector<1x20xf32> to vector<20xf32>
    %785 = vector.shape_cast %782 : vector<20xf32> to vector<1x20xf32>
    tpu.vector_store %arg8[%c0_842, %c240_843], %785 {strides = array<i32>} : memref<1x1280xf32, #tpu.memory_space<vmem>>, vector<1x20xf32>,
    %c1_844 = arith.constant 1 : index
    %c5_845 = arith.constant 5 : index
    %c0_846 = arith.constant 0 : index
    %786 = vector.load %arg7[%c1_844, %c5_845, %c0_846] : memref<8x8x128xf32, #tpu.memory_space<vmem>>, vector<1x1x20xf32>
    %787 = vector.shape_cast %786 : vector<1x1x20xf32> to vector<20xf32>
    %c0_847 = arith.constant 0 : index
    %c260_848 = arith.constant 260 : index
    %788 = vector.load %arg8[%c0_847, %c260_848] : memref<1x1280xf32, #tpu.memory_space<vmem>>, vector<1x20xf32>
    %789 = vector.shape_cast %788 : vector<1x20xf32> to vector<20xf32>
    %790 = vector.shape_cast %787 : vector<20xf32> to vector<1x20xf32>
    tpu.vector_store %arg8[%c0_847, %c260_848], %790 {strides = array<i32>} : memref<1x1280xf32, #tpu.memory_space<vmem>>, vector<1x20xf32>,
    %c1_849 = arith.constant 1 : index
    %c6_850 = arith.constant 6 : index
    %c0_851 = arith.constant 0 : index
    %791 = vector.load %arg7[%c1_849, %c6_850, %c0_851] : memref<8x8x128xf32, #tpu.memory_space<vmem>>, vector<1x1x20xf32>
    %792 = vector.shape_cast %791 : vector<1x1x20xf32> to vector<20xf32>
    %c0_852 = arith.constant 0 : index
    %c280_853 = arith.constant 280 : index
    %793 = vector.load %arg8[%c0_852, %c280_853] : memref<1x1280xf32, #tpu.memory_space<vmem>>, vector<1x20xf32>
    %794 = vector.shape_cast %793 : vector<1x20xf32> to vector<20xf32>
    %795 = vector.shape_cast %792 : vector<20xf32> to vector<1x20xf32>
    tpu.vector_store %arg8[%c0_852, %c280_853], %795 {strides = array<i32>} : memref<1x1280xf32, #tpu.memory_space<vmem>>, vector<1x20xf32>,
    %c1_854 = arith.constant 1 : index
    %c7_855 = arith.constant 7 : index
    %c0_856 = arith.constant 0 : index
    %796 = vector.load %arg7[%c1_854, %c7_855, %c0_856] : memref<8x8x128xf32, #tpu.memory_space<vmem>>, vector<1x1x20xf32>
    %797 = vector.shape_cast %796 : vector<1x1x20xf32> to vector<20xf32>
    %c0_857 = arith.constant 0 : index
    %c300_858 = arith.constant 300 : index
    %798 = vector.load %arg8[%c0_857, %c300_858] : memref<1x1280xf32, #tpu.memory_space<vmem>>, vector<1x20xf32>
    %799 = vector.shape_cast %798 : vector<1x20xf32> to vector<20xf32>
    %800 = vector.shape_cast %797 : vector<20xf32> to vector<1x20xf32>
    tpu.vector_store %arg8[%c0_857, %c300_858], %800 {strides = array<i32>} : memref<1x1280xf32, #tpu.memory_space<vmem>>, vector<1x20xf32>,
    %c2_859 = arith.constant 2 : index
    %c0_860 = arith.constant 0 : index
    %c0_861 = arith.constant 0 : index
    %801 = vector.load %arg7[%c2_859, %c0_860, %c0_861] : memref<8x8x128xf32, #tpu.memory_space<vmem>>, vector<1x1x20xf32>
    %802 = vector.shape_cast %801 : vector<1x1x20xf32> to vector<20xf32>
    %c0_862 = arith.constant 0 : index
    %c320_863 = arith.constant 320 : index
    %803 = vector.load %arg8[%c0_862, %c320_863] : memref<1x1280xf32, #tpu.memory_space<vmem>>, vector<1x20xf32>
    %804 = vector.shape_cast %803 : vector<1x20xf32> to vector<20xf32>
    %805 = vector.shape_cast %802 : vector<20xf32> to vector<1x20xf32>
    tpu.vector_store %arg8[%c0_862, %c320_863], %805 {strides = array<i32>} : memref<1x1280xf32, #tpu.memory_space<vmem>>, vector<1x20xf32>,
    %c2_864 = arith.constant 2 : index
    %c1_865 = arith.constant 1 : index
    %c0_866 = arith.constant 0 : index
    %806 = vector.load %arg7[%c2_864, %c1_865, %c0_866] : memref<8x8x128xf32, #tpu.memory_space<vmem>>, vector<1x1x20xf32>
    %807 = vector.shape_cast %806 : vector<1x1x20xf32> to vector<20xf32>
    %c0_867 = arith.constant 0 : index
    %c340_868 = arith.constant 340 : index
    %808 = vector.load %arg8[%c0_867, %c340_868] : memref<1x1280xf32, #tpu.memory_space<vmem>>, vector<1x20xf32>
    %809 = vector.shape_cast %808 : vector<1x20xf32> to vector<20xf32>
    %810 = vector.shape_cast %807 : vector<20xf32> to vector<1x20xf32>
    tpu.vector_store %arg8[%c0_867, %c340_868], %810 {strides = array<i32>} : memref<1x1280xf32, #tpu.memory_space<vmem>>, vector<1x20xf32>,
    %c2_869 = arith.constant 2 : index
    %c2_870 = arith.constant 2 : index
    %c0_871 = arith.constant 0 : index
    %811 = vector.load %arg7[%c2_869, %c2_870, %c0_871] : memref<8x8x128xf32, #tpu.memory_space<vmem>>, vector<1x1x20xf32>
    %812 = vector.shape_cast %811 : vector<1x1x20xf32> to vector<20xf32>
    %c0_872 = arith.constant 0 : index
    %c360_873 = arith.constant 360 : index
    %813 = vector.load %arg8[%c0_872, %c360_873] : memref<1x1280xf32, #tpu.memory_space<vmem>>, vector<1x20xf32>
    %814 = vector.shape_cast %813 : vector<1x20xf32> to vector<20xf32>
    %815 = vector.shape_cast %812 : vector<20xf32> to vector<1x20xf32>
    tpu.vector_store %arg8[%c0_872, %c360_873], %815 {strides = array<i32>} : memref<1x1280xf32, #tpu.memory_space<vmem>>, vector<1x20xf32>,
    %c2_874 = arith.constant 2 : index
    %c3_875 = arith.constant 3 : index
    %c0_876 = arith.constant 0 : index
    %816 = vector.load %arg7[%c2_874, %c3_875, %c0_876] : memref<8x8x128xf32, #tpu.memory_space<vmem>>, vector<1x1x20xf32>
    %817 = vector.shape_cast %816 : vector<1x1x20xf32> to vector<20xf32>
    %c0_877 = arith.constant 0 : index
    %c380_878 = arith.constant 380 : index
    %818 = vector.load %arg8[%c0_877, %c380_878] : memref<1x1280xf32, #tpu.memory_space<vmem>>, vector<1x20xf32>
    %819 = vector.shape_cast %818 : vector<1x20xf32> to vector<20xf32>
    %820 = vector.shape_cast %817 : vector<20xf32> to vector<1x20xf32>
    tpu.vector_store %arg8[%c0_877, %c380_878], %820 {strides = array<i32>} : memref<1x1280xf32, #tpu.memory_space<vmem>>, vector<1x20xf32>,
    %c2_879 = arith.constant 2 : index
    %c4_880 = arith.constant 4 : index
    %c0_881 = arith.constant 0 : index
    %821 = vector.load %arg7[%c2_879, %c4_880, %c0_881] : memref<8x8x128xf32, #tpu.memory_space<vmem>>, vector<1x1x20xf32>
    %822 = vector.shape_cast %821 : vector<1x1x20xf32> to vector<20xf32>
    %c0_882 = arith.constant 0 : index
    %c400_883 = arith.constant 400 : index
    %823 = vector.load %arg8[%c0_882, %c400_883] : memref<1x1280xf32, #tpu.memory_space<vmem>>, vector<1x20xf32>
    %824 = vector.shape_cast %823 : vector<1x20xf32> to vector<20xf32>
    %825 = vector.shape_cast %822 : vector<20xf32> to vector<1x20xf32>
    tpu.vector_store %arg8[%c0_882, %c400_883], %825 {strides = array<i32>} : memref<1x1280xf32, #tpu.memory_space<vmem>>, vector<1x20xf32>,
    %c2_884 = arith.constant 2 : index
    %c5_885 = arith.constant 5 : index
    %c0_886 = arith.constant 0 : index
    %826 = vector.load %arg7[%c2_884, %c5_885, %c0_886] : memref<8x8x128xf32, #tpu.memory_space<vmem>>, vector<1x1x20xf32>
    %827 = vector.shape_cast %826 : vector<1x1x20xf32> to vector<20xf32>
    %c0_887 = arith.constant 0 : index
    %c420_888 = arith.constant 420 : index
    %828 = vector.load %arg8[%c0_887, %c420_888] : memref<1x1280xf32, #tpu.memory_space<vmem>>, vector<1x20xf32>
    %829 = vector.shape_cast %828 : vector<1x20xf32> to vector<20xf32>
    %830 = vector.shape_cast %827 : vector<20xf32> to vector<1x20xf32>
    tpu.vector_store %arg8[%c0_887, %c420_888], %830 {strides = array<i32>} : memref<1x1280xf32, #tpu.memory_space<vmem>>, vector<1x20xf32>,
    %c2_889 = arith.constant 2 : index
    %c6_890 = arith.constant 6 : index
    %c0_891 = arith.constant 0 : index
    %831 = vector.load %arg7[%c2_889, %c6_890, %c0_891] : memref<8x8x128xf32, #tpu.memory_space<vmem>>, vector<1x1x20xf32>
    %832 = vector.shape_cast %831 : vector<1x1x20xf32> to vector<20xf32>
    %c0_892 = arith.constant 0 : index
    %c440_893 = arith.constant 440 : index
    %833 = vector.load %arg8[%c0_892, %c440_893] : memref<1x1280xf32, #tpu.memory_space<vmem>>, vector<1x20xf32>
    %834 = vector.shape_cast %833 : vector<1x20xf32> to vector<20xf32>
    %835 = vector.shape_cast %832 : vector<20xf32> to vector<1x20xf32>
    tpu.vector_store %arg8[%c0_892, %c440_893], %835 {strides = array<i32>} : memref<1x1280xf32, #tpu.memory_space<vmem>>, vector<1x20xf32>,
    %c2_894 = arith.constant 2 : index
    %c7_895 = arith.constant 7 : index
    %c0_896 = arith.constant 0 : index
    %836 = vector.load %arg7[%c2_894, %c7_895, %c0_896] : memref<8x8x128xf32, #tpu.memory_space<vmem>>, vector<1x1x20xf32>
    %837 = vector.shape_cast %836 : vector<1x1x20xf32> to vector<20xf32>
    %c0_897 = arith.constant 0 : index
    %c460_898 = arith.constant 460 : index
    %838 = vector.load %arg8[%c0_897, %c460_898] : memref<1x1280xf32, #tpu.memory_space<vmem>>, vector<1x20xf32>
    %839 = vector.shape_cast %838 : vector<1x20xf32> to vector<20xf32>
    %840 = vector.shape_cast %837 : vector<20xf32> to vector<1x20xf32>
    tpu.vector_store %arg8[%c0_897, %c460_898], %840 {strides = array<i32>} : memref<1x1280xf32, #tpu.memory_space<vmem>>, vector<1x20xf32>,
    %c3_899 = arith.constant 3 : index
    %c0_900 = arith.constant 0 : index
    %c0_901 = arith.constant 0 : index
    %841 = vector.load %arg7[%c3_899, %c0_900, %c0_901] : memref<8x8x128xf32, #tpu.memory_space<vmem>>, vector<1x1x20xf32>
    %842 = vector.shape_cast %841 : vector<1x1x20xf32> to vector<20xf32>
    %c0_902 = arith.constant 0 : index
    %c480_903 = arith.constant 480 : index
    %843 = vector.load %arg8[%c0_902, %c480_903] : memref<1x1280xf32, #tpu.memory_space<vmem>>, vector<1x20xf32>
    %844 = vector.shape_cast %843 : vector<1x20xf32> to vector<20xf32>
    %845 = vector.shape_cast %842 : vector<20xf32> to vector<1x20xf32>
    tpu.vector_store %arg8[%c0_902, %c480_903], %845 {strides = array<i32>} : memref<1x1280xf32, #tpu.memory_space<vmem>>, vector<1x20xf32>,
    %c3_904 = arith.constant 3 : index
    %c1_905 = arith.constant 1 : index
    %c0_906 = arith.constant 0 : index
    %846 = vector.load %arg7[%c3_904, %c1_905, %c0_906] : memref<8x8x128xf32, #tpu.memory_space<vmem>>, vector<1x1x20xf32>
    %847 = vector.shape_cast %846 : vector<1x1x20xf32> to vector<20xf32>
    %c0_907 = arith.constant 0 : index
    %c500_908 = arith.constant 500 : index
    %848 = vector.load %arg8[%c0_907, %c500_908] : memref<1x1280xf32, #tpu.memory_space<vmem>>, vector<1x20xf32>
    %849 = vector.shape_cast %848 : vector<1x20xf32> to vector<20xf32>
    %850 = vector.shape_cast %847 : vector<20xf32> to vector<1x20xf32>
    tpu.vector_store %arg8[%c0_907, %c500_908], %850 {strides = array<i32>} : memref<1x1280xf32, #tpu.memory_space<vmem>>, vector<1x20xf32>,
    %c3_909 = arith.constant 3 : index
    %c2_910 = arith.constant 2 : index
    %c0_911 = arith.constant 0 : index
    %851 = vector.load %arg7[%c3_909, %c2_910, %c0_911] : memref<8x8x128xf32, #tpu.memory_space<vmem>>, vector<1x1x20xf32>
    %852 = vector.shape_cast %851 : vector<1x1x20xf32> to vector<20xf32>
    %c0_912 = arith.constant 0 : index
    %c520_913 = arith.constant 520 : index
    %853 = vector.load %arg8[%c0_912, %c520_913] : memref<1x1280xf32, #tpu.memory_space<vmem>>, vector<1x20xf32>
    %854 = vector.shape_cast %853 : vector<1x20xf32> to vector<20xf32>
    %855 = vector.shape_cast %852 : vector<20xf32> to vector<1x20xf32>
    tpu.vector_store %arg8[%c0_912, %c520_913], %855 {strides = array<i32>} : memref<1x1280xf32, #tpu.memory_space<vmem>>, vector<1x20xf32>,
    %c3_914 = arith.constant 3 : index
    %c3_915 = arith.constant 3 : index
    %c0_916 = arith.constant 0 : index
    %856 = vector.load %arg7[%c3_914, %c3_915, %c0_916] : memref<8x8x128xf32, #tpu.memory_space<vmem>>, vector<1x1x20xf32>
    %857 = vector.shape_cast %856 : vector<1x1x20xf32> to vector<20xf32>
    %c0_917 = arith.constant 0 : index
    %c540_918 = arith.constant 540 : index
    %858 = vector.load %arg8[%c0_917, %c540_918] : memref<1x1280xf32, #tpu.memory_space<vmem>>, vector<1x20xf32>
    %859 = vector.shape_cast %858 : vector<1x20xf32> to vector<20xf32>
    %860 = vector.shape_cast %857 : vector<20xf32> to vector<1x20xf32>
    tpu.vector_store %arg8[%c0_917, %c540_918], %860 {strides = array<i32>} : memref<1x1280xf32, #tpu.memory_space<vmem>>, vector<1x20xf32>,
    %c3_919 = arith.constant 3 : index
    %c4_920 = arith.constant 4 : index
    %c0_921 = arith.constant 0 : index
    %861 = vector.load %arg7[%c3_919, %c4_920, %c0_921] : memref<8x8x128xf32, #tpu.memory_space<vmem>>, vector<1x1x20xf32>
    %862 = vector.shape_cast %861 : vector<1x1x20xf32> to vector<20xf32>
    %c0_922 = arith.constant 0 : index
    %c560_923 = arith.constant 560 : index
    %863 = vector.load %arg8[%c0_922, %c560_923] : memref<1x1280xf32, #tpu.memory_space<vmem>>, vector<1x20xf32>
    %864 = vector.shape_cast %863 : vector<1x20xf32> to vector<20xf32>
    %865 = vector.shape_cast %862 : vector<20xf32> to vector<1x20xf32>
    tpu.vector_store %arg8[%c0_922, %c560_923], %865 {strides = array<i32>} : memref<1x1280xf32, #tpu.memory_space<vmem>>, vector<1x20xf32>,
    %c3_924 = arith.constant 3 : index
    %c5_925 = arith.constant 5 : index
    %c0_926 = arith.constant 0 : index
    %866 = vector.load %arg7[%c3_924, %c5_925, %c0_926] : memref<8x8x128xf32, #tpu.memory_space<vmem>>, vector<1x1x20xf32>
    %867 = vector.shape_cast %866 : vector<1x1x20xf32> to vector<20xf32>
    %c0_927 = arith.constant 0 : index
    %c580_928 = arith.constant 580 : index
    %868 = vector.load %arg8[%c0_927, %c580_928] : memref<1x1280xf32, #tpu.memory_space<vmem>>, vector<1x20xf32>
    %869 = vector.shape_cast %868 : vector<1x20xf32> to vector<20xf32>
    %870 = vector.shape_cast %867 : vector<20xf32> to vector<1x20xf32>
    tpu.vector_store %arg8[%c0_927, %c580_928], %870 {strides = array<i32>} : memref<1x1280xf32, #tpu.memory_space<vmem>>, vector<1x20xf32>,
    %c3_929 = arith.constant 3 : index
    %c6_930 = arith.constant 6 : index
    %c0_931 = arith.constant 0 : index
    %871 = vector.load %arg7[%c3_929, %c6_930, %c0_931] : memref<8x8x128xf32, #tpu.memory_space<vmem>>, vector<1x1x20xf32>
    %872 = vector.shape_cast %871 : vector<1x1x20xf32> to vector<20xf32>
    %c0_932 = arith.constant 0 : index
    %c600_933 = arith.constant 600 : index
    %873 = vector.load %arg8[%c0_932, %c600_933] : memref<1x1280xf32, #tpu.memory_space<vmem>>, vector<1x20xf32>
    %874 = vector.shape_cast %873 : vector<1x20xf32> to vector<20xf32>
    %875 = vector.shape_cast %872 : vector<20xf32> to vector<1x20xf32>
    tpu.vector_store %arg8[%c0_932, %c600_933], %875 {strides = array<i32>} : memref<1x1280xf32, #tpu.memory_space<vmem>>, vector<1x20xf32>,
    %c3_934 = arith.constant 3 : index
    %c7_935 = arith.constant 7 : index
    %c0_936 = arith.constant 0 : index
    %876 = vector.load %arg7[%c3_934, %c7_935, %c0_936] : memref<8x8x128xf32, #tpu.memory_space<vmem>>, vector<1x1x20xf32>
    %877 = vector.shape_cast %876 : vector<1x1x20xf32> to vector<20xf32>
    %c0_937 = arith.constant 0 : index
    %c620_938 = arith.constant 620 : index
    %878 = vector.load %arg8[%c0_937, %c620_938] : memref<1x1280xf32, #tpu.memory_space<vmem>>, vector<1x20xf32>
    %879 = vector.shape_cast %878 : vector<1x20xf32> to vector<20xf32>
    %880 = vector.shape_cast %877 : vector<20xf32> to vector<1x20xf32>
    tpu.vector_store %arg8[%c0_937, %c620_938], %880 {strides = array<i32>} : memref<1x1280xf32, #tpu.memory_space<vmem>>, vector<1x20xf32>,
    %c4_939 = arith.constant 4 : index
    %c0_940 = arith.constant 0 : index
    %c0_941 = arith.constant 0 : index
    %881 = vector.load %arg7[%c4_939, %c0_940, %c0_941] : memref<8x8x128xf32, #tpu.memory_space<vmem>>, vector<1x1x20xf32>
    %882 = vector.shape_cast %881 : vector<1x1x20xf32> to vector<20xf32>
    %c0_942 = arith.constant 0 : index
    %c640_943 = arith.constant 640 : index
    %883 = vector.load %arg8[%c0_942, %c640_943] : memref<1x1280xf32, #tpu.memory_space<vmem>>, vector<1x20xf32>
    %884 = vector.shape_cast %883 : vector<1x20xf32> to vector<20xf32>
    %885 = vector.shape_cast %882 : vector<20xf32> to vector<1x20xf32>
    tpu.vector_store %arg8[%c0_942, %c640_943], %885 {strides = array<i32>} : memref<1x1280xf32, #tpu.memory_space<vmem>>, vector<1x20xf32>,
    %c4_944 = arith.constant 4 : index
    %c1_945 = arith.constant 1 : index
    %c0_946 = arith.constant 0 : index
    %886 = vector.load %arg7[%c4_944, %c1_945, %c0_946] : memref<8x8x128xf32, #tpu.memory_space<vmem>>, vector<1x1x20xf32>
    %887 = vector.shape_cast %886 : vector<1x1x20xf32> to vector<20xf32>
    %c0_947 = arith.constant 0 : index
    %c660_948 = arith.constant 660 : index
    %888 = vector.load %arg8[%c0_947, %c660_948] : memref<1x1280xf32, #tpu.memory_space<vmem>>, vector<1x20xf32>
    %889 = vector.shape_cast %888 : vector<1x20xf32> to vector<20xf32>
    %890 = vector.shape_cast %887 : vector<20xf32> to vector<1x20xf32>
    tpu.vector_store %arg8[%c0_947, %c660_948], %890 {strides = array<i32>} : memref<1x1280xf32, #tpu.memory_space<vmem>>, vector<1x20xf32>,
    %c4_949 = arith.constant 4 : index
    %c2_950 = arith.constant 2 : index
    %c0_951 = arith.constant 0 : index
    %891 = vector.load %arg7[%c4_949, %c2_950, %c0_951] : memref<8x8x128xf32, #tpu.memory_space<vmem>>, vector<1x1x20xf32>
    %892 = vector.shape_cast %891 : vector<1x1x20xf32> to vector<20xf32>
    %c0_952 = arith.constant 0 : index
    %c680_953 = arith.constant 680 : index
    %893 = vector.load %arg8[%c0_952, %c680_953] : memref<1x1280xf32, #tpu.memory_space<vmem>>, vector<1x20xf32>
    %894 = vector.shape_cast %893 : vector<1x20xf32> to vector<20xf32>
    %895 = vector.shape_cast %892 : vector<20xf32> to vector<1x20xf32>
    tpu.vector_store %arg8[%c0_952, %c680_953], %895 {strides = array<i32>} : memref<1x1280xf32, #tpu.memory_space<vmem>>, vector<1x20xf32>,
    %c4_954 = arith.constant 4 : index
    %c3_955 = arith.constant 3 : index
    %c0_956 = arith.constant 0 : index
    %896 = vector.load %arg7[%c4_954, %c3_955, %c0_956] : memref<8x8x128xf32, #tpu.memory_space<vmem>>, vector<1x1x20xf32>
    %897 = vector.shape_cast %896 : vector<1x1x20xf32> to vector<20xf32>
    %c0_957 = arith.constant 0 : index
    %c700_958 = arith.constant 700 : index
    %898 = vector.load %arg8[%c0_957, %c700_958] : memref<1x1280xf32, #tpu.memory_space<vmem>>, vector<1x20xf32>
    %899 = vector.shape_cast %898 : vector<1x20xf32> to vector<20xf32>
    %900 = vector.shape_cast %897 : vector<20xf32> to vector<1x20xf32>
    tpu.vector_store %arg8[%c0_957, %c700_958], %900 {strides = array<i32>} : memref<1x1280xf32, #tpu.memory_space<vmem>>, vector<1x20xf32>,
    %c4_959 = arith.constant 4 : index
    %c4_960 = arith.constant 4 : index
    %c0_961 = arith.constant 0 : index
    %901 = vector.load %arg7[%c4_959, %c4_960, %c0_961] : memref<8x8x128xf32, #tpu.memory_space<vmem>>, vector<1x1x20xf32>
    %902 = vector.shape_cast %901 : vector<1x1x20xf32> to vector<20xf32>
    %c0_962 = arith.constant 0 : index
    %c720_963 = arith.constant 720 : index
    %903 = vector.load %arg8[%c0_962, %c720_963] : memref<1x1280xf32, #tpu.memory_space<vmem>>, vector<1x20xf32>
    %904 = vector.shape_cast %903 : vector<1x20xf32> to vector<20xf32>
    %905 = vector.shape_cast %902 : vector<20xf32> to vector<1x20xf32>
    tpu.vector_store %arg8[%c0_962, %c720_963], %905 {strides = array<i32>} : memref<1x1280xf32, #tpu.memory_space<vmem>>, vector<1x20xf32>,
    %c4_964 = arith.constant 4 : index
    %c5_965 = arith.constant 5 : index
    %c0_966 = arith.constant 0 : index
    %906 = vector.load %arg7[%c4_964, %c5_965, %c0_966] : memref<8x8x128xf32, #tpu.memory_space<vmem>>, vector<1x1x20xf32>
    %907 = vector.shape_cast %906 : vector<1x1x20xf32> to vector<20xf32>
    %c0_967 = arith.constant 0 : index
    %c740_968 = arith.constant 740 : index
    %908 = vector.load %arg8[%c0_967, %c740_968] : memref<1x1280xf32, #tpu.memory_space<vmem>>, vector<1x20xf32>
    %909 = vector.shape_cast %908 : vector<1x20xf32> to vector<20xf32>
    %910 = vector.shape_cast %907 : vector<20xf32> to vector<1x20xf32>
    tpu.vector_store %arg8[%c0_967, %c740_968], %910 {strides = array<i32>} : memref<1x1280xf32, #tpu.memory_space<vmem>>, vector<1x20xf32>,
    %c4_969 = arith.constant 4 : index
    %c6_970 = arith.constant 6 : index
    %c0_971 = arith.constant 0 : index
    %911 = vector.load %arg7[%c4_969, %c6_970, %c0_971] : memref<8x8x128xf32, #tpu.memory_space<vmem>>, vector<1x1x20xf32>
    %912 = vector.shape_cast %911 : vector<1x1x20xf32> to vector<20xf32>
    %c0_972 = arith.constant 0 : index
    %c760_973 = arith.constant 760 : index
    %913 = vector.load %arg8[%c0_972, %c760_973] : memref<1x1280xf32, #tpu.memory_space<vmem>>, vector<1x20xf32>
    %914 = vector.shape_cast %913 : vector<1x20xf32> to vector<20xf32>
    %915 = vector.shape_cast %912 : vector<20xf32> to vector<1x20xf32>
    tpu.vector_store %arg8[%c0_972, %c760_973], %915 {strides = array<i32>} : memref<1x1280xf32, #tpu.memory_space<vmem>>, vector<1x20xf32>,
    %c4_974 = arith.constant 4 : index
    %c7_975 = arith.constant 7 : index
    %c0_976 = arith.constant 0 : index
    %916 = vector.load %arg7[%c4_974, %c7_975, %c0_976] : memref<8x8x128xf32, #tpu.memory_space<vmem>>, vector<1x1x20xf32>
    %917 = vector.shape_cast %916 : vector<1x1x20xf32> to vector<20xf32>
    %c0_977 = arith.constant 0 : index
    %c780_978 = arith.constant 780 : index
    %918 = vector.load %arg8[%c0_977, %c780_978] : memref<1x1280xf32, #tpu.memory_space<vmem>>, vector<1x20xf32>
    %919 = vector.shape_cast %918 : vector<1x20xf32> to vector<20xf32>
    %920 = vector.shape_cast %917 : vector<20xf32> to vector<1x20xf32>
    tpu.vector_store %arg8[%c0_977, %c780_978], %920 {strides = array<i32>} : memref<1x1280xf32, #tpu.memory_space<vmem>>, vector<1x20xf32>,
    %c5_979 = arith.constant 5 : index
    %c0_980 = arith.constant 0 : index
    %c0_981 = arith.constant 0 : index
    %921 = vector.load %arg7[%c5_979, %c0_980, %c0_981] : memref<8x8x128xf32, #tpu.memory_space<vmem>>, vector<1x1x20xf32>
    %922 = vector.shape_cast %921 : vector<1x1x20xf32> to vector<20xf32>
    %c0_982 = arith.constant 0 : index
    %c800_983 = arith.constant 800 : index
    %923 = vector.load %arg8[%c0_982, %c800_983] : memref<1x1280xf32, #tpu.memory_space<vmem>>, vector<1x20xf32>
    %924 = vector.shape_cast %923 : vector<1x20xf32> to vector<20xf32>
    %925 = vector.shape_cast %922 : vector<20xf32> to vector<1x20xf32>
    tpu.vector_store %arg8[%c0_982, %c800_983], %925 {strides = array<i32>} : memref<1x1280xf32, #tpu.memory_space<vmem>>, vector<1x20xf32>,
    %c5_984 = arith.constant 5 : index
    %c1_985 = arith.constant 1 : index
    %c0_986 = arith.constant 0 : index
    %926 = vector.load %arg7[%c5_984, %c1_985, %c0_986] : memref<8x8x128xf32, #tpu.memory_space<vmem>>, vector<1x1x20xf32>
    %927 = vector.shape_cast %926 : vector<1x1x20xf32> to vector<20xf32>
    %c0_987 = arith.constant 0 : index
    %c820_988 = arith.constant 820 : index
    %928 = vector.load %arg8[%c0_987, %c820_988] : memref<1x1280xf32, #tpu.memory_space<vmem>>, vector<1x20xf32>
    %929 = vector.shape_cast %928 : vector<1x20xf32> to vector<20xf32>
    %930 = vector.shape_cast %927 : vector<20xf32> to vector<1x20xf32>
    tpu.vector_store %arg8[%c0_987, %c820_988], %930 {strides = array<i32>} : memref<1x1280xf32, #tpu.memory_space<vmem>>, vector<1x20xf32>,
    %c5_989 = arith.constant 5 : index
    %c2_990 = arith.constant 2 : index
    %c0_991 = arith.constant 0 : index
    %931 = vector.load %arg7[%c5_989, %c2_990, %c0_991] : memref<8x8x128xf32, #tpu.memory_space<vmem>>, vector<1x1x20xf32>
    %932 = vector.shape_cast %931 : vector<1x1x20xf32> to vector<20xf32>
    %c0_992 = arith.constant 0 : index
    %c840_993 = arith.constant 840 : index
    %933 = vector.load %arg8[%c0_992, %c840_993] : memref<1x1280xf32, #tpu.memory_space<vmem>>, vector<1x20xf32>
    %934 = vector.shape_cast %933 : vector<1x20xf32> to vector<20xf32>
    %935 = vector.shape_cast %932 : vector<20xf32> to vector<1x20xf32>
    tpu.vector_store %arg8[%c0_992, %c840_993], %935 {strides = array<i32>} : memref<1x1280xf32, #tpu.memory_space<vmem>>, vector<1x20xf32>,
    %c5_994 = arith.constant 5 : index
    %c3_995 = arith.constant 3 : index
    %c0_996 = arith.constant 0 : index
    %936 = vector.load %arg7[%c5_994, %c3_995, %c0_996] : memref<8x8x128xf32, #tpu.memory_space<vmem>>, vector<1x1x20xf32>
    %937 = vector.shape_cast %936 : vector<1x1x20xf32> to vector<20xf32>
    %c0_997 = arith.constant 0 : index
    %c860_998 = arith.constant 860 : index
    %938 = vector.load %arg8[%c0_997, %c860_998] : memref<1x1280xf32, #tpu.memory_space<vmem>>, vector<1x20xf32>
    %939 = vector.shape_cast %938 : vector<1x20xf32> to vector<20xf32>
    %940 = vector.shape_cast %937 : vector<20xf32> to vector<1x20xf32>
    tpu.vector_store %arg8[%c0_997, %c860_998], %940 {strides = array<i32>} : memref<1x1280xf32, #tpu.memory_space<vmem>>, vector<1x20xf32>,
    %c5_999 = arith.constant 5 : index
    %c4_1000 = arith.constant 4 : index
    %c0_1001 = arith.constant 0 : index
    %941 = vector.load %arg7[%c5_999, %c4_1000, %c0_1001] : memref<8x8x128xf32, #tpu.memory_space<vmem>>, vector<1x1x20xf32>
    %942 = vector.shape_cast %941 : vector<1x1x20xf32> to vector<20xf32>
    %c0_1002 = arith.constant 0 : index
    %c880_1003 = arith.constant 880 : index
    %943 = vector.load %arg8[%c0_1002, %c880_1003] : memref<1x1280xf32, #tpu.memory_space<vmem>>, vector<1x20xf32>
    %944 = vector.shape_cast %943 : vector<1x20xf32> to vector<20xf32>
    %945 = vector.shape_cast %942 : vector<20xf32> to vector<1x20xf32>
    tpu.vector_store %arg8[%c0_1002, %c880_1003], %945 {strides = array<i32>} : memref<1x1280xf32, #tpu.memory_space<vmem>>, vector<1x20xf32>,
    %c5_1004 = arith.constant 5 : index
    %c5_1005 = arith.constant 5 : index
    %c0_1006 = arith.constant 0 : index
    %946 = vector.load %arg7[%c5_1004, %c5_1005, %c0_1006] : memref<8x8x128xf32, #tpu.memory_space<vmem>>, vector<1x1x20xf32>
    %947 = vector.shape_cast %946 : vector<1x1x20xf32> to vector<20xf32>
    %c0_1007 = arith.constant 0 : index
    %c900_1008 = arith.constant 900 : index
    %948 = vector.load %arg8[%c0_1007, %c900_1008] : memref<1x1280xf32, #tpu.memory_space<vmem>>, vector<1x20xf32>
    %949 = vector.shape_cast %948 : vector<1x20xf32> to vector<20xf32>
    %950 = vector.shape_cast %947 : vector<20xf32> to vector<1x20xf32>
    tpu.vector_store %arg8[%c0_1007, %c900_1008], %950 {strides = array<i32>} : memref<1x1280xf32, #tpu.memory_space<vmem>>, vector<1x20xf32>,
    %c5_1009 = arith.constant 5 : index
    %c6_1010 = arith.constant 6 : index
    %c0_1011 = arith.constant 0 : index
    %951 = vector.load %arg7[%c5_1009, %c6_1010, %c0_1011] : memref<8x8x128xf32, #tpu.memory_space<vmem>>, vector<1x1x20xf32>
    %952 = vector.shape_cast %951 : vector<1x1x20xf32> to vector<20xf32>
    %c0_1012 = arith.constant 0 : index
    %c920_1013 = arith.constant 920 : index
    %953 = vector.load %arg8[%c0_1012, %c920_1013] : memref<1x1280xf32, #tpu.memory_space<vmem>>, vector<1x20xf32>
    %954 = vector.shape_cast %953 : vector<1x20xf32> to vector<20xf32>
    %955 = vector.shape_cast %952 : vector<20xf32> to vector<1x20xf32>
    tpu.vector_store %arg8[%c0_1012, %c920_1013], %955 {strides = array<i32>} : memref<1x1280xf32, #tpu.memory_space<vmem>>, vector<1x20xf32>,
    %c5_1014 = arith.constant 5 : index
    %c7_1015 = arith.constant 7 : index
    %c0_1016 = arith.constant 0 : index
    %956 = vector.load %arg7[%c5_1014, %c7_1015, %c0_1016] : memref<8x8x128xf32, #tpu.memory_space<vmem>>, vector<1x1x20xf32>
    %957 = vector.shape_cast %956 : vector<1x1x20xf32> to vector<20xf32>
    %c0_1017 = arith.constant 0 : index
    %c940_1018 = arith.constant 940 : index
    %958 = vector.load %arg8[%c0_1017, %c940_1018] : memref<1x1280xf32, #tpu.memory_space<vmem>>, vector<1x20xf32>
    %959 = vector.shape_cast %958 : vector<1x20xf32> to vector<20xf32>
    %960 = vector.shape_cast %957 : vector<20xf32> to vector<1x20xf32>
    tpu.vector_store %arg8[%c0_1017, %c940_1018], %960 {strides = array<i32>} : memref<1x1280xf32, #tpu.memory_space<vmem>>, vector<1x20xf32>,
    %c6_1019 = arith.constant 6 : index
    %c0_1020 = arith.constant 0 : index
    %c0_1021 = arith.constant 0 : index
    %961 = vector.load %arg7[%c6_1019, %c0_1020, %c0_1021] : memref<8x8x128xf32, #tpu.memory_space<vmem>>, vector<1x1x20xf32>
    %962 = vector.shape_cast %961 : vector<1x1x20xf32> to vector<20xf32>
    %c0_1022 = arith.constant 0 : index
    %c960_1023 = arith.constant 960 : index
    %963 = vector.load %arg8[%c0_1022, %c960_1023] : memref<1x1280xf32, #tpu.memory_space<vmem>>, vector<1x20xf32>
    %964 = vector.shape_cast %963 : vector<1x20xf32> to vector<20xf32>
    %965 = vector.shape_cast %962 : vector<20xf32> to vector<1x20xf32>
    tpu.vector_store %arg8[%c0_1022, %c960_1023], %965 {strides = array<i32>} : memref<1x1280xf32, #tpu.memory_space<vmem>>, vector<1x20xf32>,
    %c6_1024 = arith.constant 6 : index
    %c1_1025 = arith.constant 1 : index
    %c0_1026 = arith.constant 0 : index
    %966 = vector.load %arg7[%c6_1024, %c1_1025, %c0_1026] : memref<8x8x128xf32, #tpu.memory_space<vmem>>, vector<1x1x20xf32>
    %967 = vector.shape_cast %966 : vector<1x1x20xf32> to vector<20xf32>
    %c0_1027 = arith.constant 0 : index
    %c980_1028 = arith.constant 980 : index
    %968 = vector.load %arg8[%c0_1027, %c980_1028] : memref<1x1280xf32, #tpu.memory_space<vmem>>, vector<1x20xf32>
    %969 = vector.shape_cast %968 : vector<1x20xf32> to vector<20xf32>
    %970 = vector.shape_cast %967 : vector<20xf32> to vector<1x20xf32>
    tpu.vector_store %arg8[%c0_1027, %c980_1028], %970 {strides = array<i32>} : memref<1x1280xf32, #tpu.memory_space<vmem>>, vector<1x20xf32>,
    %c6_1029 = arith.constant 6 : index
    %c2_1030 = arith.constant 2 : index
    %c0_1031 = arith.constant 0 : index
    %971 = vector.load %arg7[%c6_1029, %c2_1030, %c0_1031] : memref<8x8x128xf32, #tpu.memory_space<vmem>>, vector<1x1x20xf32>
    %972 = vector.shape_cast %971 : vector<1x1x20xf32> to vector<20xf32>
    %c0_1032 = arith.constant 0 : index
    %c1000_1033 = arith.constant 1000 : index
    %973 = vector.load %arg8[%c0_1032, %c1000_1033] : memref<1x1280xf32, #tpu.memory_space<vmem>>, vector<1x20xf32>
    %974 = vector.shape_cast %973 : vector<1x20xf32> to vector<20xf32>
    %975 = vector.shape_cast %972 : vector<20xf32> to vector<1x20xf32>
    tpu.vector_store %arg8[%c0_1032, %c1000_1033], %975 {strides = array<i32>} : memref<1x1280xf32, #tpu.memory_space<vmem>>, vector<1x20xf32>,
    %c6_1034 = arith.constant 6 : index
    %c3_1035 = arith.constant 3 : index
    %c0_1036 = arith.constant 0 : index
    %976 = vector.load %arg7[%c6_1034, %c3_1035, %c0_1036] : memref<8x8x128xf32, #tpu.memory_space<vmem>>, vector<1x1x20xf32>
    %977 = vector.shape_cast %976 : vector<1x1x20xf32> to vector<20xf32>
    %c0_1037 = arith.constant 0 : index
    %c1020_1038 = arith.constant 1020 : index
    %978 = vector.load %arg8[%c0_1037, %c1020_1038] : memref<1x1280xf32, #tpu.memory_space<vmem>>, vector<1x20xf32>
    %979 = vector.shape_cast %978 : vector<1x20xf32> to vector<20xf32>
    %980 = vector.shape_cast %977 : vector<20xf32> to vector<1x20xf32>
    tpu.vector_store %arg8[%c0_1037, %c1020_1038], %980 {strides = array<i32>} : memref<1x1280xf32, #tpu.memory_space<vmem>>, vector<1x20xf32>,
    %c6_1039 = arith.constant 6 : index
    %c4_1040 = arith.constant 4 : index
    %c0_1041 = arith.constant 0 : index
    %981 = vector.load %arg7[%c6_1039, %c4_1040, %c0_1041] : memref<8x8x128xf32, #tpu.memory_space<vmem>>, vector<1x1x20xf32>
    %982 = vector.shape_cast %981 : vector<1x1x20xf32> to vector<20xf32>
    %c0_1042 = arith.constant 0 : index
    %c1040_1043 = arith.constant 1040 : index
    %983 = vector.load %arg8[%c0_1042, %c1040_1043] : memref<1x1280xf32, #tpu.memory_space<vmem>>, vector<1x20xf32>
    %984 = vector.shape_cast %983 : vector<1x20xf32> to vector<20xf32>
    %985 = vector.shape_cast %982 : vector<20xf32> to vector<1x20xf32>
    tpu.vector_store %arg8[%c0_1042, %c1040_1043], %985 {strides = array<i32>} : memref<1x1280xf32, #tpu.memory_space<vmem>>, vector<1x20xf32>,
    %c6_1044 = arith.constant 6 : index
    %c5_1045 = arith.constant 5 : index
    %c0_1046 = arith.constant 0 : index
    %986 = vector.load %arg7[%c6_1044, %c5_1045, %c0_1046] : memref<8x8x128xf32, #tpu.memory_space<vmem>>, vector<1x1x20xf32>
    %987 = vector.shape_cast %986 : vector<1x1x20xf32> to vector<20xf32>
    %c0_1047 = arith.constant 0 : index
    %c1060_1048 = arith.constant 1060 : index
    %988 = vector.load %arg8[%c0_1047, %c1060_1048] : memref<1x1280xf32, #tpu.memory_space<vmem>>, vector<1x20xf32>
    %989 = vector.shape_cast %988 : vector<1x20xf32> to vector<20xf32>
    %990 = vector.shape_cast %987 : vector<20xf32> to vector<1x20xf32>
    tpu.vector_store %arg8[%c0_1047, %c1060_1048], %990 {strides = array<i32>} : memref<1x1280xf32, #tpu.memory_space<vmem>>, vector<1x20xf32>,
    %c6_1049 = arith.constant 6 : index
    %c6_1050 = arith.constant 6 : index
    %c0_1051 = arith.constant 0 : index
    %991 = vector.load %arg7[%c6_1049, %c6_1050, %c0_1051] : memref<8x8x128xf32, #tpu.memory_space<vmem>>, vector<1x1x20xf32>
    %992 = vector.shape_cast %991 : vector<1x1x20xf32> to vector<20xf32>
    %c0_1052 = arith.constant 0 : index
    %c1080_1053 = arith.constant 1080 : index
    %993 = vector.load %arg8[%c0_1052, %c1080_1053] : memref<1x1280xf32, #tpu.memory_space<vmem>>, vector<1x20xf32>
    %994 = vector.shape_cast %993 : vector<1x20xf32> to vector<20xf32>
    %995 = vector.shape_cast %992 : vector<20xf32> to vector<1x20xf32>
    tpu.vector_store %arg8[%c0_1052, %c1080_1053], %995 {strides = array<i32>} : memref<1x1280xf32, #tpu.memory_space<vmem>>, vector<1x20xf32>,
    %c6_1054 = arith.constant 6 : index
    %c7_1055 = arith.constant 7 : index
    %c0_1056 = arith.constant 0 : index
    %996 = vector.load %arg7[%c6_1054, %c7_1055, %c0_1056] : memref<8x8x128xf32, #tpu.memory_space<vmem>>, vector<1x1x20xf32>
    %997 = vector.shape_cast %996 : vector<1x1x20xf32> to vector<20xf32>
    %c0_1057 = arith.constant 0 : index
    %c1100_1058 = arith.constant 1100 : index
    %998 = vector.load %arg8[%c0_1057, %c1100_1058] : memref<1x1280xf32, #tpu.memory_space<vmem>>, vector<1x20xf32>
    %999 = vector.shape_cast %998 : vector<1x20xf32> to vector<20xf32>
    %1000 = vector.shape_cast %997 : vector<20xf32> to vector<1x20xf32>
    tpu.vector_store %arg8[%c0_1057, %c1100_1058], %1000 {strides = array<i32>} : memref<1x1280xf32, #tpu.memory_space<vmem>>, vector<1x20xf32>,
    %c7_1059 = arith.constant 7 : index
    %c0_1060 = arith.constant 0 : index
    %c0_1061 = arith.constant 0 : index
    %1001 = vector.load %arg7[%c7_1059, %c0_1060, %c0_1061] : memref<8x8x128xf32, #tpu.memory_space<vmem>>, vector<1x1x20xf32>
    %1002 = vector.shape_cast %1001 : vector<1x1x20xf32> to vector<20xf32>
    %c0_1062 = arith.constant 0 : index
    %c1120_1063 = arith.constant 1120 : index
    %1003 = vector.load %arg8[%c0_1062, %c1120_1063] : memref<1x1280xf32, #tpu.memory_space<vmem>>, vector<1x20xf32>
    %1004 = vector.shape_cast %1003 : vector<1x20xf32> to vector<20xf32>
    %1005 = vector.shape_cast %1002 : vector<20xf32> to vector<1x20xf32>
    tpu.vector_store %arg8[%c0_1062, %c1120_1063], %1005 {strides = array<i32>} : memref<1x1280xf32, #tpu.memory_space<vmem>>, vector<1x20xf32>,
    %c7_1064 = arith.constant 7 : index
    %c1_1065 = arith.constant 1 : index
    %c0_1066 = arith.constant 0 : index
    %1006 = vector.load %arg7[%c7_1064, %c1_1065, %c0_1066] : memref<8x8x128xf32, #tpu.memory_space<vmem>>, vector<1x1x20xf32>
    %1007 = vector.shape_cast %1006 : vector<1x1x20xf32> to vector<20xf32>
    %c0_1067 = arith.constant 0 : index
    %c1140_1068 = arith.constant 1140 : index
    %1008 = vector.load %arg8[%c0_1067, %c1140_1068] : memref<1x1280xf32, #tpu.memory_space<vmem>>, vector<1x20xf32>
    %1009 = vector.shape_cast %1008 : vector<1x20xf32> to vector<20xf32>
    %1010 = vector.shape_cast %1007 : vector<20xf32> to vector<1x20xf32>
    tpu.vector_store %arg8[%c0_1067, %c1140_1068], %1010 {strides = array<i32>} : memref<1x1280xf32, #tpu.memory_space<vmem>>, vector<1x20xf32>,
    %c7_1069 = arith.constant 7 : index
    %c2_1070 = arith.constant 2 : index
    %c0_1071 = arith.constant 0 : index
    %1011 = vector.load %arg7[%c7_1069, %c2_1070, %c0_1071] : memref<8x8x128xf32, #tpu.memory_space<vmem>>, vector<1x1x20xf32>
    %1012 = vector.shape_cast %1011 : vector<1x1x20xf32> to vector<20xf32>
    %c0_1072 = arith.constant 0 : index
    %c1160_1073 = arith.constant 1160 : index
    %1013 = vector.load %arg8[%c0_1072, %c1160_1073] : memref<1x1280xf32, #tpu.memory_space<vmem>>, vector<1x20xf32>
    %1014 = vector.shape_cast %1013 : vector<1x20xf32> to vector<20xf32>
    %1015 = vector.shape_cast %1012 : vector<20xf32> to vector<1x20xf32>
    tpu.vector_store %arg8[%c0_1072, %c1160_1073], %1015 {strides = array<i32>} : memref<1x1280xf32, #tpu.memory_space<vmem>>, vector<1x20xf32>,
    %c7_1074 = arith.constant 7 : index
    %c3_1075 = arith.constant 3 : index
    %c0_1076 = arith.constant 0 : index
    %1016 = vector.load %arg7[%c7_1074, %c3_1075, %c0_1076] : memref<8x8x128xf32, #tpu.memory_space<vmem>>, vector<1x1x20xf32>
    %1017 = vector.shape_cast %1016 : vector<1x1x20xf32> to vector<20xf32>
    %c0_1077 = arith.constant 0 : index
    %c1180_1078 = arith.constant 1180 : index
    %1018 = vector.load %arg8[%c0_1077, %c1180_1078] : memref<1x1280xf32, #tpu.memory_space<vmem>>, vector<1x20xf32>
    %1019 = vector.shape_cast %1018 : vector<1x20xf32> to vector<20xf32>
    %1020 = vector.shape_cast %1017 : vector<20xf32> to vector<1x20xf32>
    tpu.vector_store %arg8[%c0_1077, %c1180_1078], %1020 {strides = array<i32>} : memref<1x1280xf32, #tpu.memory_space<vmem>>, vector<1x20xf32>,
    %c7_1079 = arith.constant 7 : index
    %c4_1080 = arith.constant 4 : index
    %c0_1081 = arith.constant 0 : index
    %1021 = vector.load %arg7[%c7_1079, %c4_1080, %c0_1081] : memref<8x8x128xf32, #tpu.memory_space<vmem>>, vector<1x1x20xf32>
    %1022 = vector.shape_cast %1021 : vector<1x1x20xf32> to vector<20xf32>
    %c0_1082 = arith.constant 0 : index
    %c1200_1083 = arith.constant 1200 : index
    %1023 = vector.load %arg8[%c0_1082, %c1200_1083] : memref<1x1280xf32, #tpu.memory_space<vmem>>, vector<1x20xf32>
    %1024 = vector.shape_cast %1023 : vector<1x20xf32> to vector<20xf32>
    %1025 = vector.shape_cast %1022 : vector<20xf32> to vector<1x20xf32>
    tpu.vector_store %arg8[%c0_1082, %c1200_1083], %1025 {strides = array<i32>} : memref<1x1280xf32, #tpu.memory_space<vmem>>, vector<1x20xf32>,
    %c7_1084 = arith.constant 7 : index
    %c5_1085 = arith.constant 5 : index
    %c0_1086 = arith.constant 0 : index
    %1026 = vector.load %arg7[%c7_1084, %c5_1085, %c0_1086] : memref<8x8x128xf32, #tpu.memory_space<vmem>>, vector<1x1x20xf32>
    %1027 = vector.shape_cast %1026 : vector<1x1x20xf32> to vector<20xf32>
    %c0_1087 = arith.constant 0 : index
    %c1220_1088 = arith.constant 1220 : index
    %1028 = vector.load %arg8[%c0_1087, %c1220_1088] : memref<1x1280xf32, #tpu.memory_space<vmem>>, vector<1x20xf32>
    %1029 = vector.shape_cast %1028 : vector<1x20xf32> to vector<20xf32>
    %1030 = vector.shape_cast %1027 : vector<20xf32> to vector<1x20xf32>
    tpu.vector_store %arg8[%c0_1087, %c1220_1088], %1030 {strides = array<i32>} : memref<1x1280xf32, #tpu.memory_space<vmem>>, vector<1x20xf32>,
    %c7_1089 = arith.constant 7 : index
    %c6_1090 = arith.constant 6 : index
    %c0_1091 = arith.constant 0 : index
    %1031 = vector.load %arg7[%c7_1089, %c6_1090, %c0_1091] : memref<8x8x128xf32, #tpu.memory_space<vmem>>, vector<1x1x20xf32>
    %1032 = vector.shape_cast %1031 : vector<1x1x20xf32> to vector<20xf32>
    %c0_1092 = arith.constant 0 : index
    %c1240_1093 = arith.constant 1240 : index
    %1033 = vector.load %arg8[%c0_1092, %c1240_1093] : memref<1x1280xf32, #tpu.memory_space<vmem>>, vector<1x20xf32>
    %1034 = vector.shape_cast %1033 : vector<1x20xf32> to vector<20xf32>
    %1035 = vector.shape_cast %1032 : vector<20xf32> to vector<1x20xf32>
    tpu.vector_store %arg8[%c0_1092, %c1240_1093], %1035 {strides = array<i32>} : memref<1x1280xf32, #tpu.memory_space<vmem>>, vector<1x20xf32>,
    %c7_1094 = arith.constant 7 : index
    %c7_1095 = arith.constant 7 : index
    %c0_1096 = arith.constant 0 : index
    %1036 = vector.load %arg7[%c7_1094, %c7_1095, %c0_1096] : memref<8x8x128xf32, #tpu.memory_space<vmem>>, vector<1x1x20xf32>
    %1037 = vector.shape_cast %1036 : vector<1x1x20xf32> to vector<20xf32>
    %c0_1097 = arith.constant 0 : index
    %c1260_1098 = arith.constant 1260 : index
    %1038 = vector.load %arg8[%c0_1097, %c1260_1098] : memref<1x1280xf32, #tpu.memory_space<vmem>>, vector<1x20xf32>
    %1039 = vector.shape_cast %1038 : vector<1x20xf32> to vector<20xf32>
    %1040 = vector.shape_cast %1037 : vector<20xf32> to vector<1x20xf32>
    tpu.vector_store %arg8[%c0_1097, %c1260_1098], %1040 {strides = array<i32>} : memref<1x1280xf32, #tpu.memory_space<vmem>>, vector<1x20xf32>,
    %c0_1099 = arith.constant 0 : index
    %c0_1100 = arith.constant 0 : index
    %1041 = vector.load %arg8[%c0_1099, %c0_1100] : memref<1x1280xf32, #tpu.memory_space<vmem>>, vector<1x1024xf32>
    %1042 = vector.shape_cast %1041 : vector<1x1024xf32> to vector<1024xf32>
    %c0_1101 = arith.constant 0 : index
    %c0_1102 = arith.constant 0 : index
    %c0_1103 = arith.constant 0 : index
    %1043 = vector.load %arg3[%c0_1101, %c0_1102, %c0_1103] : memref<1x12x1280xf32, #tpu.memory_space<vmem>>, vector<1x8x1024xf32>
    %1044 = vector.shape_cast %1043 : vector<1x8x1024xf32> to vector<8x1024xf32>
    %1045 = vector.shape_cast %1042 : vector<1024xf32> to vector<1x1024xf32>
    %1046 = vector.broadcast %1045 : vector<1x1024xf32> to vector<8x1024xf32>
    %1047 = arith.mulf %1044, %1046 : vector<8x1024xf32>
    %c0_1104 = arith.constant 0 : index
    %c0_1105 = arith.constant 0 : index
    %c0_1106 = arith.constant 0 : index
    %1048 = vector.load %arg4[%c0_1104, %c0_1105, %c0_1106] : memref<1x12x1280xf32, #tpu.memory_space<vmem>>, vector<1x8x1024xf32>
    %1049 = vector.shape_cast %1048 : vector<1x8x1024xf32> to vector<8x1024xf32>
    %1050 = vector.shape_cast %1047 : vector<8x1024xf32> to vector<1x8x1024xf32>
    tpu.vector_store %arg4[%c0_1104, %c0_1105, %c0_1106], %1050 {strides = array<i32>} : memref<1x12x1280xf32, #tpu.memory_space<vmem>>, vector<1x8x1024xf32>,
    %c0_1107 = arith.constant 0 : index
    %c8_1108 = arith.constant 8 : index
    %c0_1109 = arith.constant 0 : index
    %1051 = vector.load %arg3[%c0_1107, %c8_1108, %c0_1109] : memref<1x12x1280xf32, #tpu.memory_space<vmem>>, vector<1x4x1024xf32>
    %1052 = vector.shape_cast %1051 : vector<1x4x1024xf32> to vector<4x1024xf32>
    %1053 = vector.shape_cast %1042 : vector<1024xf32> to vector<1x1024xf32>
    %1054 = vector.broadcast %1053 : vector<1x1024xf32> to vector<4x1024xf32>
    %1055 = arith.mulf %1052, %1054 : vector<4x1024xf32>
    %c0_1110 = arith.constant 0 : index
    %c8_1111 = arith.constant 8 : index
    %c0_1112 = arith.constant 0 : index
    %1056 = vector.load %arg4[%c0_1110, %c8_1111, %c0_1112] : memref<1x12x1280xf32, #tpu.memory_space<vmem>>, vector<1x4x1024xf32>
    %1057 = vector.shape_cast %1056 : vector<1x4x1024xf32> to vector<4x1024xf32>
    %1058 = vector.shape_cast %1055 : vector<4x1024xf32> to vector<1x4x1024xf32>
    tpu.vector_store %arg4[%c0_1110, %c8_1111, %c0_1112], %1058 {strides = array<i32>} : memref<1x12x1280xf32, #tpu.memory_space<vmem>>, vector<1x4x1024xf32>,
    %c0_1113 = arith.constant 0 : index
    %c1024_1114 = arith.constant 1024 : index
    %1059 = vector.load %arg8[%c0_1113, %c1024_1114] : memref<1x1280xf32, #tpu.memory_space<vmem>>, vector<1x256xf32>
    %1060 = vector.shape_cast %1059 : vector<1x256xf32> to vector<256xf32>
    %c0_1115 = arith.constant 0 : index
    %c0_1116 = arith.constant 0 : index
    %c1024_1117 = arith.constant 1024 : index
    %1061 = vector.load %arg3[%c0_1115, %c0_1116, %c1024_1117] : memref<1x12x1280xf32, #tpu.memory_space<vmem>>, vector<1x8x256xf32>
    %1062 = vector.shape_cast %1061 : vector<1x8x256xf32> to vector<8x256xf32>
    %1063 = vector.shape_cast %1060 : vector<256xf32> to vector<1x256xf32>
    %1064 = vector.broadcast %1063 : vector<1x256xf32> to vector<8x256xf32>
    %1065 = arith.mulf %1062, %1064 : vector<8x256xf32>
    %c0_1118 = arith.constant 0 : index
    %c0_1119 = arith.constant 0 : index
    %c1024_1120 = arith.constant 1024 : index
    %1066 = vector.load %arg4[%c0_1118, %c0_1119, %c1024_1120] : memref<1x12x1280xf32, #tpu.memory_space<vmem>>, vector<1x8x256xf32>
    %1067 = vector.shape_cast %1066 : vector<1x8x256xf32> to vector<8x256xf32>
    %1068 = vector.shape_cast %1065 : vector<8x256xf32> to vector<1x8x256xf32>
    tpu.vector_store %arg4[%c0_1118, %c0_1119, %c1024_1120], %1068 {strides = array<i32>} : memref<1x12x1280xf32, #tpu.memory_space<vmem>>, vector<1x8x256xf32>,
    %c0_1121 = arith.constant 0 : index
    %c8_1122 = arith.constant 8 : index
    %c1024_1123 = arith.constant 1024 : index
    %1069 = vector.load %arg3[%c0_1121, %c8_1122, %c1024_1123] : memref<1x12x1280xf32, #tpu.memory_space<vmem>>, vector<1x4x256xf32>
    %1070 = vector.shape_cast %1069 : vector<1x4x256xf32> to vector<4x256xf32>
    %1071 = vector.shape_cast %1060 : vector<256xf32> to vector<1x256xf32>
    %1072 = vector.broadcast %1071 : vector<1x256xf32> to vector<4x256xf32>
    %1073 = arith.mulf %1070, %1072 : vector<4x256xf32>
    %c0_1124 = arith.constant 0 : index
    %c8_1125 = arith.constant 8 : index
    %c1024_1126 = arith.constant 1024 : index
    %1074 = vector.load %arg4[%c0_1124, %c8_1125, %c1024_1126] : memref<1x12x1280xf32, #tpu.memory_space<vmem>>, vector<1x4x256xf32>
    %1075 = vector.shape_cast %1074 : vector<1x4x256xf32> to vector<4x256xf32>
    %1076 = vector.shape_cast %1073 : vector<4x256xf32> to vector<1x4x256xf32>
    tpu.vector_store %arg4[%c0_1124, %c8_1125, %c1024_1126], %1076 {strides = array<i32>} : memref<1x12x1280xf32, #tpu.memory_space<vmem>>, vector<1x4x256xf32>,
    return
  }
  func.func @transform_0(%arg0: i32) -> i32 {
    %c0_i32 = arith.constant 0 : i32
    %c0_i32_0 = arith.constant 0 : i32
    return %c0_i32 : i32
  }
  func.func @transform_1(%arg0: i32) -> i32 {
    %c0_i32 = arith.constant 0 : i32
    %c0_i32_0 = arith.constant 0 : i32
    return %c0_i32 : i32
  }
  func.func @transform_2(%arg0: i32) -> (i32, i32, i32) {
    %c0_i32 = arith.constant 0 : i32
    %c0_i32_0 = arith.constant 0 : i32
    %c0_i32_1 = arith.constant 0 : i32
    return %arg0, %c0_i32, %c0_i32_0 : i32, i32, i32
  }
  func.func @transform_3(%arg0: i32) -> (i32, i32, i32) {
    %c0_i32 = arith.constant 0 : i32
    %c0_i32_0 = arith.constant 0 : i32
    %c0_i32_1 = arith.constant 0 : i32
    return %arg0, %c0_i32, %c0_i32_0 : i32, i32, i32
  }
}

</mosaic_0001>

<llo_original>
// kernel: tpu_custom_call.1
$region0: #{tpu_custom_call.1}
  #allocation0 [shape = 'u32[]', space=smem, size = 0x4, offset = 0x4, fixed_abs, tag = 'smem constant byte address 0x4 - core index']
  #allocation1 [shape = 'u32[144,128]{1,0:T(1,128)}', space=vmem, size = 0x12000, scoped, tag = 'internal scratch']
  #allocation2 [shape = 'f32[2,14,14,128]{3,2,1,0:T(8,128)}', space=vmem, size = 0x38000, scoped, tag = 'scratch operand']
  #allocation3 [shape = 'f32[2,1280]{1,0:T(2,128)}', space=vmem, size = 0x2800, scoped, tag = 'scratch operand']
  #allocation4 [shape = 'f32[8,8,128]{2,1,0:T(8,128)}', space=vmem, size = 0x8000, scoped, tag = 'scratch operand']
  #allocation5 [shape = 'f32[1,1280]{1,0:T(1,128)}', space=vmem, size = 0x1400, scoped, tag = 'scratch operand']
  #allocation6 [shape = 'f32[1]{0:T(128)S(6)}', space=smem, size = 0x200, scoped, tag = 'scoped memory for tpu_custom_call.1']
  %s0 = inlined_call_operand.vmem [shape: f32[686], index: 0, kind: input, shape index: {}]
  %s1 = inlined_call_operand.<no memory space> [shape: f32[1], index: 1, kind: input, shape index: {}]
  %s2 = inlined_call_operand.vmem [shape: f32[2,12,1280], index: 2, kind: input, shape index: {}]
  %s3 = inlined_call_operand.vmem [shape: f32[2,12,1280], index: 3, kind: output, shape index: {}]
  %s4 = sld [smem:[#allocation0]]
  $region70: #{tpu_custom_call.1} parent=0
    _
  %s6 = ssub.s32 1, %s4
  %s7 = scalar_select 0, %s6, %s4
  %8 = sst [smem:[#allocation6]] %s1
  $region1: #{tpu_custom_call.1} parent=0
    #allocation7 [shape = 'u8[3072]{0}', space=smem, size = 0xc00, scoped, tag = 'input window, operand 0, single buffered']
    #allocation8 [shape = 's32[2]{0}', space=sflag, size = 0x8, scoped, tag = 'scoped memory for tpu_custom_call.1']
    %9 = vsyncpa [#allocation8], 0
    loop: start=0, step=1, limit=4
    $region2: #{tpu_custom_call.1} parent=1 // loop_pre_header
      _
    $region3: #{tpu_custom_call.1} parent=1 // loop_header
      %s11 = sphi 0, %s15
      %p12 = scmp.ge.s32.totalorder %s11, 4
      %s19 = sphi 0, %s19
      %s21 = sphi 0, %s19
      %s22 = sphi 0, %s21
      %s36 = sphi 0, %s22
      %s40 = sphi 0, %s40
      %s42 = sphi 0, %s40
      %s43 = sphi 0, %s42
      %s57 = sphi 0, %s43
      %s63 = sphi 0, %s65
      %s66 = sphi 0, %s63
      %s67 = sphi 0, %s66
      %s83 = sphi 0, %s67
      %s89 = sphi 0, %s91
      %s92 = sphi 0, %s89
      %s93 = sphi 0, %s92
      %s109 = sphi 0, %s93
    $region4: #{tpu_custom_call.1} parent=1 // loop_header_branch
      %14 = sbr.rel (%p12) target = $region8
    $region5: #{tpu_custom_call.1} parent=1 // loop_body
      %s16 = ssub.s32 %s11, 1
      %s17 = ssub.s32 %s11, 2
      %s18 = sadd.s32 %s11, 1
      %s20 = sadd.s32 %s19, 1
      %p23 = scmp.eq.s32.totalorder %s11, 1
      %p24 = scmp.ne.s32.totalorder %s19, %s21
      %p25 = scmp.eq.s32.totalorder %s11, 0
      %p26 = por %p24, %p25
      %p27 = scmp.ne.s32.totalorder %s19, %s21
      %p28 = scmp.eq.s32.totalorder %s16, 1
      %p29 = por %p27, %p28
      %p30 = scmp.ne.s32.totalorder %s21, %s22
      %p31 = scmp.eq.s32.totalorder %s16, 0
      %p32 = por %p30, %p31
      %p33 = scmp.ne.s32.totalorder %s21, %s22
      %p34 = scmp.eq.s32.totalorder %s17, 1
      %p35 = por %p33, %p34
      %p37 = scmp.ne.s32.totalorder %s22, %s36
      %p38 = scmp.eq.s32.totalorder %s17, 0
      %p39 = por %p37, %p38
      %s41 = sadd.s32 %s40, 1
      %p44 = scmp.eq.s32.totalorder %s11, 1
      %p45 = scmp.ne.s32.totalorder %s40, %s42
      %p46 = scmp.eq.s32.totalorder %s11, 0
      %p47 = por %p45, %p46
      %p48 = scmp.ne.s32.totalorder %s40, %s42
      %p49 = scmp.eq.s32.totalorder %s16, 1
      %p50 = por %p48, %p49
      %p51 = scmp.ne.s32.totalorder %s42, %s43
      %p52 = scmp.eq.s32.totalorder %s16, 0
      %p53 = por %p51, %p52
      %p54 = scmp.ne.s32.totalorder %s42, %s43
      %p55 = scmp.eq.s32.totalorder %s17, 1
      %p56 = por %p54, %p55
      %p58 = scmp.ne.s32.totalorder %s43, %s57
      %p59 = scmp.eq.s32.totalorder %s17, 0
      %p60 = por %p58, %p59
      %s61 = ssub.s32 %s11, %s18
      %p62 = scmp.eq.s32.totalorder %s61, 0
      %s64 = sadd.s32 %s63, 1
      %s65 = scalar_select %p62, %s63, %s64
      %p68 = pneg %p62
      %p69 = scmp.eq.s32.totalorder %s11, 1
      %p70 = por %p68, %p69
      %p71 = scmp.ne.s32.totalorder %s63, %s66
      %p72 = scmp.eq.s32.totalorder %s11, 0
      %p73 = por %p71, %p72
      %p74 = scmp.ne.s32.totalorder %s63, %s66
      %p75 = scmp.eq.s32.totalorder %s16, 1
      %p76 = por %p74, %p75
      %p77 = scmp.ne.s32.totalorder %s66, %s67
      %p78 = scmp.eq.s32.totalorder %s16, 0
      %p79 = por %p77, %p78
      %p80 = scmp.ne.s32.totalorder %s66, %s67
      %p81 = scmp.eq.s32.totalorder %s17, 1
      %p82 = por %p80, %p81
      %p84 = scmp.ne.s32.totalorder %s67, %s83
      %p85 = scmp.eq.s32.totalorder %s17, 0
      %p86 = por %p84, %p85
      %s87 = ssub.s32 %s11, %s18
      %p88 = scmp.eq.s32.totalorder %s87, 0
      %s90 = sadd.s32 %s89, 1
      %s91 = scalar_select %p88, %s89, %s90
      %p94 = pneg %p88
      %p95 = scmp.eq.s32.totalorder %s11, 1
      %p96 = por %p94, %p95
      %p97 = scmp.ne.s32.totalorder %s89, %s92
      %p98 = scmp.eq.s32.totalorder %s11, 0
      %p99 = por %p97, %p98
      %p100 = scmp.ne.s32.totalorder %s89, %s92
      %p101 = scmp.eq.s32.totalorder %s16, 1
      %p102 = por %p100, %p101
      %p103 = scmp.ne.s32.totalorder %s92, %s93
      %p104 = scmp.eq.s32.totalorder %s16, 0
      %p105 = por %p103, %p104
      %p106 = scmp.ne.s32.totalorder %s92, %s93
      %p107 = scmp.eq.s32.totalorder %s17, 1
      %p108 = por %p106, %p107
      %p110 = scmp.ne.s32.totalorder %s93, %s109
      %p111 = scmp.eq.s32.totalorder %s17, 0
      %p112 = por %p110, %p111
      %p113 = scmp.le.s32.totalorder 1, %s11
      %p114 = scmp.lt.s32.totalorder %s11, 3
      %p115 = pnand %p113, %p114
      %p116 = pneg %p115
      // Predicated region
      $region9: #{tpu_custom_call.1} parent=5 // pred_check
        _
      $region10: #{tpu_custom_call.1} parent=5 // pred_check_branch
        %118 = sbr.rel (%p115) target = $region12
      $region11: #{tpu_custom_call.1} parent=5 // pred_region
        %s119 = ssub.s32 %s11, 1
        // Predicated region
        $region13: #{tpu_custom_call.1} parent=11 // pred_check
          %p120 = pneg %p32
        $region14: #{tpu_custom_call.1} parent=11 // pred_check_branch
          %122 = sbr.rel (%p120) target = $region16
        $region15: #{tpu_custom_call.1} parent=11 // pred_region
          %s124 = ssub.s32 96, 96
          %125 = vsyncadd [#allocation8], %s124
          %s127 = sshll.u32 %s0, 4
          %s128 = int_to_ptr.vmem [resolvable:$true] %s127
          %130 = dma.vmem_to_smem %s128, 96, [#allocation7], [#allocation8]
        $region16: #{tpu_custom_call.1} parent=11 // pred_fallthru
          _
        // Predicated region
        $region17: #{tpu_custom_call.1} parent=11 // pred_check
          %p131 = pneg %p53
        $region18: #{tpu_custom_call.1} parent=11 // pred_check_branch
          %133 = sbr.rel (%p131) target = $region20
        $region19: #{tpu_custom_call.1} parent=11 // pred_region
          _
        $region20: #{tpu_custom_call.1} parent=11 // pred_fallthru
          _
      $region12: #{tpu_custom_call.1} parent=5 // pred_fallthru
        _
      %p134 = scmp.lt.s32.totalorder %s11, 2
      // Predicated region
      $region21: #{tpu_custom_call.1} parent=5 // pred_check
        %p135 = pneg %p134
      $region22: #{tpu_custom_call.1} parent=5 // pred_check_branch
        %137 = sbr.rel (%p135) target = $region24
      $region23: #{tpu_custom_call.1} parent=5 // pred_region
        // Predicated region
        $region25: #{tpu_custom_call.1} parent=23 // pred_check
          %p138 = pneg %p73
        $region26: #{tpu_custom_call.1} parent=23 // pred_check_branch
          %140 = sbr.rel (%p138) target = $region28
        $region27: #{tpu_custom_call.1} parent=23 // pred_region
          %p141 = scmp.lt.s32.totalorder %s11, 1
          %s142 = scalar_select %p141, %s11, 1
          %s143 = smul.addr %s142, 20
          %s144 = smul.addr %s143, 8
          %s145 = scalar_lea.vmem %s2, %s144
        $region28: #{tpu_custom_call.1} parent=23 // pred_fallthru
          _
      $region24: #{tpu_custom_call.1} parent=5 // pred_fallthru
        _
      %p146 = scmp.le.s32.totalorder 1, %s11
      %p147 = scmp.lt.s32.totalorder %s11, 3
      %p148 = pnand %p146, %p147
      %p149 = pneg %p148
      // Predicated region
      $region29: #{tpu_custom_call.1} parent=5 // pred_check
        _
      $region30: #{tpu_custom_call.1} parent=5 // pred_check_branch
        %151 = sbr.rel (%p148) target = $region32
      $region31: #{tpu_custom_call.1} parent=5 // pred_region
        %s152 = ssub.s32 %s11, 1
        // Predicated region
        $region33: #{tpu_custom_call.1} parent=31 // pred_check
          %p153 = pneg %p32
        $region34: #{tpu_custom_call.1} parent=31 // pred_check_branch
          %155 = sbr.rel (%p153) target = $region36
        $region35: #{tpu_custom_call.1} parent=31 // pred_region
          %156 = dma.done [#allocation8], 96
        $region36: #{tpu_custom_call.1} parent=31 // pred_fallthru
          _
        %157 = sfence
        %p158 = pneg %p32
        %p159 = pneg %p29
        %p160 = pneg %p53
        %p161 = pneg %p50
        %p162 = scmp.lt.s32.totalorder %s16, 1
        %s163 = scalar_select %p162, %s16, 1
        %s164 = smul.addr %s163, 20
        %s165 = smul.addr %s164, 8
        %s166 = scalar_lea.vmem %s2, %s165
        %p167 = pneg %p79
        %p168 = pneg %p76
        %p169 = pneg %p105
        %p170 = pneg %p102
        %p171 = scmp.lt.s32.totalorder %s16, 1
        %s172 = scalar_select %p171, %s16, 1
        %s173 = smul.addr %s172, 20
        %s174 = smul.addr %s173, 8
        %s175 = scalar_lea.vmem %s3, %s174
        %p176 = scmp.lt.s32.totalorder %s16, 1
        %s177 = scalar_select %p176, %s16, 1
        %s178 = smul.addr %s177, 20
        %s179 = smul.addr %s178, 8
        %s180 = scalar_lea.vmem %s2, %s179
        %p181 = scmp.lt.s32.totalorder %s16, 1
        %s182 = scalar_select %p181, %s16, 1
        %s183 = smul.addr %s182, 20
        %s184 = smul.addr %s183, 8
        %s185 = scalar_lea.vmem %s3, %s184
        %186 = vst [vmem:[#allocation2] sm:$0xff] 0.0
        %187 = vst [vmem:[#allocation2 + $0x8] sm:$0x3f] 0.0
        %188 = vst [vmem:[#allocation2 + $0x10] sm:$0xff] 0.0
        %189 = vst [vmem:[#allocation2 + $0x18] sm:$0x3f] 0.0
        %190 = vst [vmem:[#allocation2 + $0x20] sm:$0xff] 0.0
        %191 = vst [vmem:[#allocation2 + $0x28] sm:$0x3f] 0.0
        %s192 = scalar_lea.vmem [#allocation2], 176
        %193 = vst [vmem:[%s192] sm:$0xff] 0.0
        %194 = vst [vmem:[%s192 + $0x8] sm:$0x3f] 0.0
        %195 = vst [vmem:[%s192 + $0x10] sm:$0xff] 0.0
        %196 = vst [vmem:[%s192 + $0x18] sm:$0x3f] 0.0
        %197 = vst [vmem:[%s192 + $0x20] sm:$0xff] 0.0
        %198 = vst [vmem:[%s192 + $0x28] sm:$0x3f] 0.0
        %s199 = scalar_lea.vmem [#allocation2], 48
        %200 = vst [vmem:[%s199] sm:$0x7] 0.0
        %201 = vst [vmem:[%s199 + $0x10] sm:$0x7] 0.0
        %202 = vst [vmem:[%s199 + $0x20] sm:$0x7] 0.0
        %203 = vst [vmem:[%s199 + $0x30] sm:$0x7] 0.0
        %204 = vst [vmem:[%s199 + $0x40] sm:$0x7] 0.0
        %205 = vst [vmem:[%s199 + $0x50] sm:$0x7] 0.0
        %206 = vst [vmem:[%s199 + $0x60] sm:$0x7] 0.0
        %207 = vst [vmem:[%s199 + $0x70] sm:$0x7] 0.0
        %208 = vst [vmem:[%s199 + $0xb] sm:$0x7] 0.0
        %209 = vst [vmem:[%s199 + $0x1b] sm:$0x7] 0.0
        %210 = vst [vmem:[%s199 + $0x2b] sm:$0x7] 0.0
        %211 = vst [vmem:[%s199 + $0x3b] sm:$0x7] 0.0
        %212 = vst [vmem:[%s199 + $0x4b] sm:$0x7] 0.0
        %213 = vst [vmem:[%s199 + $0x5b] sm:$0x7] 0.0
        %214 = vst [vmem:[%s199 + $0x6b] sm:$0x7] 0.0
        %215 = vst [vmem:[%s199 + $0x7b] sm:$0x7] 0.0
        %vm216 = vcmask 23552
        %217 = vst.msk [vmem:[%s199 + $0x3] sm:$0xff] %vm216, 0.0
        %218 = vst.msk [vmem:[%s199 + $0x13] sm:$0xff] %vm216, 0.0
        %219 = vst.msk [vmem:[%s199 + $0x23] sm:$0xff] %vm216, 0.0
        %220 = vst.msk [vmem:[%s199 + $0x33] sm:$0xff] %vm216, 0.0
        %221 = vst.msk [vmem:[%s199 + $0x43] sm:$0xff] %vm216, 0.0
        %222 = vst.msk [vmem:[%s199 + $0x53] sm:$0xff] %vm216, 0.0
        %223 = vst.msk [vmem:[%s199 + $0x63] sm:$0xff] %vm216, 0.0
        %224 = vst.msk [vmem:[%s199 + $0x73] sm:$0xff] %vm216, 0.0
        %vm225 = vcmask 1047736
        %226 = vst.msk [vmem:[%s199 + $0x3] sm:$0xff] %vm225, 0.0
        %227 = vst.msk [vmem:[%s199 + $0x13] sm:$0xff] %vm225, 0.0
        %228 = vst.msk [vmem:[%s199 + $0x23] sm:$0xff] %vm225, 0.0
        %229 = vst.msk [vmem:[%s199 + $0x33] sm:$0xff] %vm225, 0.0
        %230 = vst.msk [vmem:[%s199 + $0x43] sm:$0xff] %vm225, 0.0
        %231 = vst.msk [vmem:[%s199 + $0x53] sm:$0xff] %vm225, 0.0
        %232 = vst.msk [vmem:[%s199 + $0x63] sm:$0xff] %vm225, 0.0
        %233 = vst.msk [vmem:[%s199 + $0x73] sm:$0xff] %vm225, 0.0
        %s234 = scalar_lea.vmem [#allocation2], 224
        %235 = vst [vmem:[%s234] sm:$0xff] 0.0
        %236 = vst [vmem:[%s234 + $0x8] sm:$0x3f] 0.0
        %237 = vst [vmem:[%s234 + $0x10] sm:$0xff] 0.0
        %238 = vst [vmem:[%s234 + $0x18] sm:$0x3f] 0.0
        %239 = vst [vmem:[%s234 + $0x20] sm:$0xff] 0.0
        %240 = vst [vmem:[%s234 + $0x28] sm:$0x3f] 0.0
        %s241 = scalar_lea.vmem [#allocation2], 400
        %242 = vst [vmem:[%s241] sm:$0xff] 0.0
        %243 = vst [vmem:[%s241 + $0x8] sm:$0x3f] 0.0
        %244 = vst [vmem:[%s241 + $0x10] sm:$0xff] 0.0
        %245 = vst [vmem:[%s241 + $0x18] sm:$0x3f] 0.0
        %246 = vst [vmem:[%s241 + $0x20] sm:$0xff] 0.0
        %247 = vst [vmem:[%s241 + $0x28] sm:$0x3f] 0.0
        %s248 = scalar_lea.vmem [#allocation2], 272
        %249 = vst [vmem:[%s248] sm:$0x7] 0.0
        %250 = vst [vmem:[%s248 + $0x10] sm:$0x7] 0.0
        %251 = vst [vmem:[%s248 + $0x20] sm:$0x7] 0.0
        %252 = vst [vmem:[%s248 + $0x30] sm:$0x7] 0.0
        %253 = vst [vmem:[%s248 + $0x40] sm:$0x7] 0.0
        %254 = vst [vmem:[%s248 + $0x50] sm:$0x7] 0.0
        %255 = vst [vmem:[%s248 + $0x60] sm:$0x7] 0.0
        %256 = vst [vmem:[%s248 + $0x70] sm:$0x7] 0.0
        %257 = vst [vmem:[%s248 + $0xb] sm:$0x7] 0.0
        %258 = vst [vmem:[%s248 + $0x1b] sm:$0x7] 0.0
        %259 = vst [vmem:[%s248 + $0x2b] sm:$0x7] 0.0
        %260 = vst [vmem:[%s248 + $0x3b] sm:$0x7] 0.0
        %261 = vst [vmem:[%s248 + $0x4b] sm:$0x7] 0.0
        %262 = vst [vmem:[%s248 + $0x5b] sm:$0x7] 0.0
        %263 = vst [vmem:[%s248 + $0x6b] sm:$0x7] 0.0
        %264 = vst [vmem:[%s248 + $0x7b] sm:$0x7] 0.0
        %265 = vst.msk [vmem:[%s248 + $0x3] sm:$0xff] %vm216, 0.0
        %266 = vst.msk [vmem:[%s248 + $0x13] sm:$0xff] %vm216, 0.0
        %267 = vst.msk [vmem:[%s248 + $0x23] sm:$0xff] %vm216, 0.0
        %268 = vst.msk [vmem:[%s248 + $0x33] sm:$0xff] %vm216, 0.0
        %269 = vst.msk [vmem:[%s248 + $0x43] sm:$0xff] %vm216, 0.0
        %270 = vst.msk [vmem:[%s248 + $0x53] sm:$0xff] %vm216, 0.0
        %271 = vst.msk [vmem:[%s248 + $0x63] sm:$0xff] %vm216, 0.0
        %272 = vst.msk [vmem:[%s248 + $0x73] sm:$0xff] %vm216, 0.0
        %273 = vst.msk [vmem:[%s248 + $0x3] sm:$0xff] %vm225, 0.0
        %274 = vst.msk [vmem:[%s248 + $0x13] sm:$0xff] %vm225, 0.0
        %275 = vst.msk [vmem:[%s248 + $0x23] sm:$0xff] %vm225, 0.0
        %276 = vst.msk [vmem:[%s248 + $0x33] sm:$0xff] %vm225, 0.0
        %277 = vst.msk [vmem:[%s248 + $0x43] sm:$0xff] %vm225, 0.0
        %278 = vst.msk [vmem:[%s248 + $0x53] sm:$0xff] %vm225, 0.0
        %279 = vst.msk [vmem:[%s248 + $0x63] sm:$0xff] %vm225, 0.0
        %280 = vst.msk [vmem:[%s248 + $0x73] sm:$0xff] %vm225, 0.0
        %v281 = vld [vmem:[%s180] sm:$0xff]
        %v282 = vld [vmem:[%s180 + $0x8] sm:$0xff]
        %v283 = vld [vmem:[%s180 + $0x10] sm:$0xff]
        %v284 = vld [vmem:[%s180 + $0x18] sm:$0xff]
        %v285 = vld [vmem:[%s180 + $0x20] sm:$0xff]
        %v286 = vld [vmem:[%s180 + $0x28] sm:$0xff]
        %v287 = vld [vmem:[%s180 + $0x30] sm:$0xff]
        %v288 = vld [vmem:[%s180 + $0x38] sm:$0xff]
        %v289 = vrot.slane %v281, 4
        %v290 = vmax.f32 %v281, %v289
        %v291 = vrot.slane %v290, 2
        %v292 = vmax.f32 %v290, %v291
        %v293 = vrot.slane %v292, 1
        %v294 = vmax.f32 %v292, %v293
        %v295 = vrot.slane %v282, 4
        %v296 = vmax.f32 %v282, %v295
        %v297 = vrot.slane %v296, 2
        %v298 = vmax.f32 %v296, %v297
        %v299 = vrot.slane %v298, 1
        %v300 = vmax.f32 %v298, %v299
        %v301 = vrot.slane %v283, 4
        %v302 = vmax.f32 %v283, %v301
        %v303 = vrot.slane %v302, 2
        %v304 = vmax.f32 %v302, %v303
        %v305 = vrot.slane %v304, 1
        %v306 = vmax.f32 %v304, %v305
        %v307 = vrot.slane %v284, 4
        %v308 = vmax.f32 %v284, %v307
        %v309 = vrot.slane %v308, 2
        %v310 = vmax.f32 %v308, %v309
        %v311 = vrot.slane %v310, 1
        %v312 = vmax.f32 %v310, %v311
        %v313 = vrot.slane %v285, 4
        %v314 = vmax.f32 %v285, %v313
        %v315 = vrot.slane %v314, 2
        %v316 = vmax.f32 %v314, %v315
        %v317 = vrot.slane %v316, 1
        %v318 = vmax.f32 %v316, %v317
        %v319 = vrot.slane %v286, 4
        %v320 = vmax.f32 %v286, %v319
        %v321 = vrot.slane %v320, 2
        %v322 = vmax.f32 %v320, %v321
        %v323 = vrot.slane %v322, 1
        %v324 = vmax.f32 %v322, %v323
        %v325 = vrot.slane %v287, 4
        %v326 = vmax.f32 %v287, %v325
        %v327 = vrot.slane %v326, 2
        %v328 = vmax.f32 %v326, %v327
        %v329 = vrot.slane %v328, 1
        %v330 = vmax.f32 %v328, %v329
        %v331 = vrot.slane %v288, 4
        %v332 = vmax.f32 %v288, %v331
        %v333 = vrot.slane %v332, 2
        %v334 = vmax.f32 %v332, %v333
        %v335 = vrot.slane %v334, 1
        %v336 = vmax.f32 %v334, %v335
        %v337 = vrot.slane %v281, 4
        %v338 = vadd.f32 %v281, %v337
        %v339 = vrot.slane %v338, 2
        %v340 = vadd.f32 %v338, %v339
        %v341 = vrot.slane %v340, 1
        %v342 = vadd.f32 %v340, %v341
        %v343 = vrot.slane %v282, 4
        %v344 = vadd.f32 %v282, %v343
        %v345 = vrot.slane %v344, 2
        %v346 = vadd.f32 %v344, %v345
        %v347 = vrot.slane %v346, 1
        %v348 = vadd.f32 %v346, %v347
        %v349 = vrot.slane %v283, 4
        %v350 = vadd.f32 %v283, %v349
        %v351 = vrot.slane %v350, 2
        %v352 = vadd.f32 %v350, %v351
        %v353 = vrot.slane %v352, 1
        %v354 = vadd.f32 %v352, %v353
        %v355 = vrot.slane %v284, 4
        %v356 = vadd.f32 %v284, %v355
        %v357 = vrot.slane %v356, 2
        %v358 = vadd.f32 %v356, %v357
        %v359 = vrot.slane %v358, 1
        %v360 = vadd.f32 %v358, %v359
        %v361 = vrot.slane %v285, 4
        %v362 = vadd.f32 %v285, %v361
        %v363 = vrot.slane %v362, 2
        %v364 = vadd.f32 %v362, %v363
        %v365 = vrot.slane %v364, 1
        %v366 = vadd.f32 %v364, %v365
        %v367 = vrot.slane %v286, 4
        %v368 = vadd.f32 %v286, %v367
        %v369 = vrot.slane %v368, 2
        %v370 = vadd.f32 %v368, %v369
        %v371 = vrot.slane %v370, 1
        %v372 = vadd.f32 %v370, %v371
        %v373 = vrot.slane %v287, 4
        %v374 = vadd.f32 %v287, %v373
        %v375 = vrot.slane %v374, 2
        %v376 = vadd.f32 %v374, %v375
        %v377 = vrot.slane %v376, 1
        %v378 = vadd.f32 %v376, %v377
        %v379 = vrot.slane %v288, 4
        %v380 = vadd.f32 %v288, %v379
        %v381 = vrot.slane %v380, 2
        %v382 = vadd.f32 %v380, %v381
        %v383 = vrot.slane %v382, 1
        %v384 = vadd.f32 %v382, %v383
        %v385 = vld [vmem:[%s180 + $0x50] sm:$0xf]
        %v386 = vld [vmem:[%s180 + $0x58] sm:$0xf]
        %v387 = vld [vmem:[%s180 + $0x60] sm:$0xf]
        %v388 = vld [vmem:[%s180 + $0x68] sm:$0xf]
        %v389 = vld [vmem:[%s180 + $0x70] sm:$0xf]
        %v390 = vld [vmem:[%s180 + $0x78] sm:$0xf]
        %v391 = vld [vmem:[%s180 + $0x80] sm:$0xf]
        %v392 = vld [vmem:[%s180 + $0x88] sm:$0xf]
        %vm393 = vcmask 1043456
        %v394 = vsel %vm393, %v385, -inf
        %v395 = vrot.slane %v394, 4
        %v396 = vmax.f32 %v394, %v395
        %v397 = vrot.slane %v396, 2
        %v398 = vmax.f32 %v396, %v397
        %v399 = vrot.slane %v398, 1
        %v400 = vmax.f32 %v398, %v399
        %v401 = vsel %vm393, %v386, -inf
        %v402 = vrot.slane %v401, 4
        %v403 = vmax.f32 %v401, %v402
        %v404 = vrot.slane %v403, 2
        %v405 = vmax.f32 %v403, %v404
        %v406 = vrot.slane %v405, 1
        %v407 = vmax.f32 %v405, %v406
        %v408 = vsel %vm393, %v387, -inf
        %v409 = vrot.slane %v408, 4
        %v410 = vmax.f32 %v408, %v409
        %v411 = vrot.slane %v410, 2
        %v412 = vmax.f32 %v410, %v411
        %v413 = vrot.slane %v412, 1
        %v414 = vmax.f32 %v412, %v413
        %v415 = vsel %vm393, %v388, -inf
        %v416 = vrot.slane %v415, 4
        %v417 = vmax.f32 %v415, %v416
        %v418 = vrot.slane %v417, 2
        %v419 = vmax.f32 %v417, %v418
        %v420 = vrot.slane %v419, 1
        %v421 = vmax.f32 %v419, %v420
        %v422 = vsel %vm393, %v389, -inf
        %v423 = vrot.slane %v422, 4
        %v424 = vmax.f32 %v422, %v423
        %v425 = vrot.slane %v424, 2
        %v426 = vmax.f32 %v424, %v425
        %v427 = vrot.slane %v426, 1
        %v428 = vmax.f32 %v426, %v427
        %v429 = vsel %vm393, %v390, -inf
        %v430 = vrot.slane %v429, 4
        %v431 = vmax.f32 %v429, %v430
        %v432 = vrot.slane %v431, 2
        %v433 = vmax.f32 %v431, %v432
        %v434 = vrot.slane %v433, 1
        %v435 = vmax.f32 %v433, %v434
        %v436 = vsel %vm393, %v391, -inf
        %v437 = vrot.slane %v436, 4
        %v438 = vmax.f32 %v436, %v437
        %v439 = vrot.slane %v438, 2
        %v440 = vmax.f32 %v438, %v439
        %v441 = vrot.slane %v440, 1
        %v442 = vmax.f32 %v440, %v441
        %v443 = vsel %vm393, %v392, -inf
        %v444 = vrot.slane %v443, 4
        %v445 = vmax.f32 %v443, %v444
        %v446 = vrot.slane %v445, 2
        %v447 = vmax.f32 %v445, %v446
        %v448 = vrot.slane %v447, 1
        %v449 = vmax.f32 %v447, %v448
        %v450 = vmax.f32 %v294, %v400
        %v451 = vmax.f32 %v300, %v407
        %v452 = vmax.f32 %v306, %v414
        %v453 = vmax.f32 %v312, %v421
        %v454 = vmax.f32 %v318, %v428
        %v455 = vmax.f32 %v324, %v435
        %v456 = vmax.f32 %v330, %v442
        %v457 = vmax.f32 %v336, %v449
        %v458 = vsel %vm393, %v385, 0.0
        %v459 = vrot.slane %v458, 4
        %v460 = vadd.f32 %v458, %v459
        %v461 = vrot.slane %v460, 2
        %v462 = vadd.f32 %v460, %v461
        %v463 = vrot.slane %v462, 1
        %v464 = vadd.f32 %v462, %v463
        %v465 = vsel %vm393, %v386, 0.0
        %v466 = vrot.slane %v465, 4
        %v467 = vadd.f32 %v465, %v466
        %v468 = vrot.slane %v467, 2
        %v469 = vadd.f32 %v467, %v468
        %v470 = vrot.slane %v469, 1
        %v471 = vadd.f32 %v469, %v470
        %v472 = vsel %vm393, %v387, 0.0
        %v473 = vrot.slane %v472, 4
        %v474 = vadd.f32 %v472, %v473
        %v475 = vrot.slane %v474, 2
        %v476 = vadd.f32 %v474, %v475
        %v477 = vrot.slane %v476, 1
        %v478 = vadd.f32 %v476, %v477
        %v479 = vsel %vm393, %v388, 0.0
        %v480 = vrot.slane %v479, 4
        %v481 = vadd.f32 %v479, %v480
        %v482 = vrot.slane %v481, 2
        %v483 = vadd.f32 %v481, %v482
        %v484 = vrot.slane %v483, 1
        %v485 = vadd.f32 %v483, %v484
        %v486 = vsel %vm393, %v389, 0.0
        %v487 = vrot.slane %v486, 4
        %v488 = vadd.f32 %v486, %v487
        %v489 = vrot.slane %v488, 2
        %v490 = vadd.f32 %v488, %v489
        %v491 = vrot.slane %v490, 1
        %v492 = vadd.f32 %v490, %v491
        %v493 = vsel %vm393, %v390, 0.0
        %v494 = vrot.slane %v493, 4
        %v495 = vadd.f32 %v493, %v494
        %v496 = vrot.slane %v495, 2
        %v497 = vadd.f32 %v495, %v496
        %v498 = vrot.slane %v497, 1
        %v499 = vadd.f32 %v497, %v498
        %v500 = vsel %vm393, %v391, 0.0
        %v501 = vrot.slane %v500, 4
        %v502 = vadd.f32 %v500, %v501
        %v503 = vrot.slane %v502, 2
        %v504 = vadd.f32 %v502, %v503
        %v505 = vrot.slane %v504, 1
        %v506 = vadd.f32 %v504, %v505
        %v507 = vsel %vm393, %v392, 0.0
        %v508 = vrot.slane %v507, 4
        %v509 = vadd.f32 %v507, %v508
        %v510 = vrot.slane %v509, 2
        %v511 = vadd.f32 %v509, %v510
        %v512 = vrot.slane %v511, 1
        %v513 = vadd.f32 %v511, %v512
        %v514 = vadd.f32 %v342, %v464
        %v515 = vadd.f32 %v348, %v471
        %v516 = vadd.f32 %v354, %v478
        %v517 = vadd.f32 %v360, %v485
        %v518 = vadd.f32 %v366, %v492
        %v519 = vadd.f32 %v372, %v499
        %v520 = vadd.f32 %v378, %v506
        %v521 = vadd.f32 %v384, %v513
        %v530 = vcombine.low %v450, %v451
        %v531 = vcombine.low %v452, %v453
        %v532 = vcombine.low %v454, %v455
        %v533 = vcombine.low %v456, %v457
        %v535 = vunpack.c.l.s4 1966171168
        %v536 = vunpack.c.0.s8 %v535
        %v537 = vlaneseq
        %v538 = vshrl.u32 %v537, 7
        %v539 = vsub.s32 %v536, %v538
        %v540 = vrot.slane %v530, %v539
        %v542 = vunpack.c.l.s4 1966171168
        %v543 = vunpack.c.0.s8 %v542
        %v544 = vlaneseq
        %v545 = vshrl.u32 %v544, 7
        %v546 = vsub.s32 %v543, %v545
        %v547 = vrot.slane %v531, %v546
        %v549 = vunpack.c.l.s4 1966171168
        %v550 = vunpack.c.0.s8 %v549
        %v551 = vlaneseq
        %v552 = vshrl.u32 %v551, 7
        %v553 = vsub.s32 %v550, %v552
        %v554 = vrot.slane %v532, %v553
        %v556 = vunpack.c.l.s4 1966171168
        %v557 = vunpack.c.0.s8 %v556
        %v558 = vlaneseq
        %v559 = vshrl.u32 %v558, 7
        %v560 = vsub.s32 %v557, %v559
        %v561 = vrot.slane %v533, %v560
        %v562 = vcombine.low %v540, %v547
        %v563 = vcombine.low %v554, %v561
        %v565 = vunpack.c.l.s4 1966171168
        %v566 = vunpack.c.0.s8 %v565
        %v567 = vlaneseq
        %v568 = vshrl.u32 %v567, 7
        %v569 = vsub.s32 %v566, %v568
        %v570 = vrot.slane %v562, %v569
        %v572 = vunpack.c.l.s4 1966171168
        %v573 = vunpack.c.0.s8 %v572
        %v574 = vlaneseq
        %v575 = vshrl.u32 %v574, 7
        %v576 = vsub.s32 %v573, %v575
        %v577 = vrot.slane %v563, %v576
        %v578 = vcombine.low %v570, %v577
        %580 = vst [vmem:[#allocation3] ss:$2 sm:$0xff] %v578
        %v589 = vcombine.low %v514, %v515
        %v590 = vcombine.low %v516, %v517
        %v591 = vcombine.low %v518, %v519
        %v592 = vcombine.low %v520, %v521
        %v594 = vunpack.c.l.s4 1966171168
        %v595 = vunpack.c.0.s8 %v594
        %v596 = vlaneseq
        %v597 = vshrl.u32 %v596, 7
        %v598 = vsub.s32 %v595, %v597
        %v599 = vrot.slane %v589, %v598
        %v601 = vunpack.c.l.s4 1966171168
        %v602 = vunpack.c.0.s8 %v601
        %v603 = vlaneseq
        %v604 = vshrl.u32 %v603, 7
        %v605 = vsub.s32 %v602, %v604
        %v606 = vrot.slane %v590, %v605
        %v608 = vunpack.c.l.s4 1966171168
        %v609 = vunpack.c.0.s8 %v608
        %v610 = vlaneseq
        %v611 = vshrl.u32 %v610, 7
        %v612 = vsub.s32 %v609, %v611
        %v613 = vrot.slane %v591, %v612
        %v615 = vunpack.c.l.s4 1966171168
        %v616 = vunpack.c.0.s8 %v615
        %v617 = vlaneseq
        %v618 = vshrl.u32 %v617, 7
        %v619 = vsub.s32 %v616, %v618
        %v620 = vrot.slane %v592, %v619
        %v621 = vcombine.low %v599, %v606
        %v622 = vcombine.low %v613, %v620
        %v624 = vunpack.c.l.s4 1966171168
        %v625 = vunpack.c.0.s8 %v624
        %v626 = vlaneseq
        %v627 = vshrl.u32 %v626, 7
        %v628 = vsub.s32 %v625, %v627
        %v629 = vrot.slane %v621, %v628
        %v631 = vunpack.c.l.s4 1966171168
        %v632 = vunpack.c.0.s8 %v631
        %v633 = vlaneseq
        %v634 = vshrl.u32 %v633, 7
        %v635 = vsub.s32 %v632, %v634
        %v636 = vrot.slane %v622, %v635
        %v637 = vcombine.low %v629, %v636
        %s639 = scalar_lea.vmem [#allocation3], 1
        %640 = vst [vmem:[%s639] ss:$2 sm:$0xff] %v637
        %v641 = vld [vmem:[%s180 + $0x40] sm:$0xff]
        %v642 = vld [vmem:[%s180 + $0x48] sm:$0xff]
        %v643 = vrot.slane %v641, 4
        %v644 = vmax.f32 %v641, %v643
        %v645 = vrot.slane %v644, 2
        %v646 = vmax.f32 %v644, %v645
        %v647 = vrot.slane %v646, 1
        %v648 = vmax.f32 %v646, %v647
        %v649 = vrot.slane %v642, 4
        %v650 = vmax.f32 %v642, %v649
        %v651 = vrot.slane %v650, 2
        %v652 = vmax.f32 %v650, %v651
        %v653 = vrot.slane %v652, 1
        %v654 = vmax.f32 %v652, %v653
        %v655 = vrot.slane %v641, 4
        %v656 = vadd.f32 %v641, %v655
        %v657 = vrot.slane %v656, 2
        %v658 = vadd.f32 %v656, %v657
        %v659 = vrot.slane %v658, 1
        %v660 = vadd.f32 %v658, %v659
        %v661 = vrot.slane %v642, 4
        %v662 = vadd.f32 %v642, %v661
        %v663 = vrot.slane %v662, 2
        %v664 = vadd.f32 %v662, %v663
        %v665 = vrot.slane %v664, 1
        %v666 = vadd.f32 %v664, %v665
        %v667 = vld [vmem:[%s180 + $0x90] sm:$0xf]
        %v668 = vld [vmem:[%s180 + $0x98] sm:$0xf]
        %v669 = vsel %vm393, %v667, -inf
        %v670 = vrot.slane %v669, 4
        %v671 = vmax.f32 %v669, %v670
        %v672 = vrot.slane %v671, 2
        %v673 = vmax.f32 %v671, %v672
        %v674 = vrot.slane %v673, 1
        %v675 = vmax.f32 %v673, %v674
        %v676 = vsel %vm393, %v668, -inf
        %v677 = vrot.slane %v676, 4
        %v678 = vmax.f32 %v676, %v677
        %v679 = vrot.slane %v678, 2
        %v680 = vmax.f32 %v678, %v679
        %v681 = vrot.slane %v680, 1
        %v682 = vmax.f32 %v680, %v681
        %v683 = vmax.f32 %v648, %v675
        %v684 = vmax.f32 %v654, %v682
        %v685 = vsel %vm393, %v667, 0.0
        %v686 = vrot.slane %v685, 4
        %v687 = vadd.f32 %v685, %v686
        %v688 = vrot.slane %v687, 2
        %v689 = vadd.f32 %v687, %v688
        %v690 = vrot.slane %v689, 1
        %v691 = vadd.f32 %v689, %v690
        %v692 = vsel %vm393, %v668, 0.0
        %v693 = vrot.slane %v692, 4
        %v694 = vadd.f32 %v692, %v693
        %v695 = vrot.slane %v694, 2
        %v696 = vadd.f32 %v694, %v695
        %v697 = vrot.slane %v696, 1
        %v698 = vadd.f32 %v696, %v697
        %v699 = vadd.f32 %v660, %v691
        %v700 = vadd.f32 %v666, %v698
        %v703 = vcombine.low %v683, %v684
        %v705 = vunpack.c.l.s4 1966171168
        %v706 = vunpack.c.0.s8 %v705
        %v707 = vlaneseq
        %v708 = vshrl.u32 %v707, 7
        %v709 = vsub.s32 %v706, %v708
        %v710 = vrot.slane %v703, %v709
        %v712 = vunpack.c.l.s4 1966171168
        %v713 = vunpack.c.0.s8 %v712
        %v714 = vlaneseq
        %v715 = vshrl.u32 %v714, 7
        %v716 = vsub.s32 %v713, %v715
        %v717 = vrot.slane %v710, %v716
        %v719 = vlaneseq
        %vm720 = vcmp.ge.s32.totalorder %v719, 0
        %vm721 = vcmp.lt.s32.totalorder %v719, 256
        %vm722 = vmand %vm720, %vm721
        %s723 = scalar_lea.vmem [#allocation3], 16
        %724 = vst.msk [vmem:[%s723] ss:$2 sm:$0x3] %vm722, %v717
        %v727 = vcombine.low %v699, %v700
        %v729 = vunpack.c.l.s4 1966171168
        %v730 = vunpack.c.0.s8 %v729
        %v731 = vlaneseq
        %v732 = vshrl.u32 %v731, 7
        %v733 = vsub.s32 %v730, %v732
        %v734 = vrot.slane %v727, %v733
        %v736 = vunpack.c.l.s4 1966171168
        %v737 = vunpack.c.0.s8 %v736
        %v738 = vlaneseq
        %v739 = vshrl.u32 %v738, 7
        %v740 = vsub.s32 %v737, %v739
        %v741 = vrot.slane %v734, %v740
        %s743 = scalar_lea.vmem [#allocation3], 17
        %744 = vst.msk [vmem:[%s743] ss:$2 sm:$0x3] %vm722, %v741
        %v745 = vld [vmem:[#allocation3] sm:$0x1]
        %v747 = vlaneseq
        %v748 = vshrl.u32 %v747, 7
        %v749 = vsub.s32 0, %v748
        %v750 = vrot.slane %v745, %v749
        %751 = vrot.lane.b32.xlu0 %v750, 3
        %v752 = vpop.permute.xlu0 %751
        %vm754 = vcmask 180248
        %755 = vst.msk [vmem:[%s199 + $0x3] sm:$0x1] %vm754, %v752
        %v756 = vld [vmem:[#allocation3 + $0x1] sm:$0x1]
        %v758 = vlaneseq
        %v759 = vshrl.u32 %v758, 7
        %v760 = vsub.s32 0, %v759
        %v761 = vrot.slane %v756, %v760
        %762 = vrot.lane.b32.xlu0 %v761, 3
        %v763 = vpop.permute.xlu0 %762
        %765 = vst.msk [vmem:[%s248 + $0x3] sm:$0x1] %vm754, %v763
        %v766 = vld [vmem:[#allocation3] sm:$0x1]
        %v768 = vlaneseq
        %v769 = vshrl.u32 %v768, 7
        %v770 = vsub.s32 0, %v769
        %v771 = vrot.slane %v766, %v770
        %772 = vrot.lane.b32.xlu0 %v771, 111
        %v773 = vpop.permute.xlu0 %772
        %775 = vst.msk [vmem:[%s199 + $0x4] sm:$0x1] %vm754, %v773
        %v776 = vld [vmem:[#allocation3 + $0x1] sm:$0x1]
        %v778 = vlaneseq
        %v779 = vshrl.u32 %v778, 7
        %v780 = vsub.s32 0, %v779
        %v781 = vrot.slane %v776, %v780
        %782 = vrot.lane.b32.xlu0 %v781, 111
        %v783 = vpop.permute.xlu0 %782
        %785 = vst.msk [vmem:[%s248 + $0x4] sm:$0x1] %vm754, %v783
        %v786 = vld [vmem:[#allocation3] sm:$0x1]
        %v788 = vlaneseq
        %v789 = vshrl.u32 %v788, 7
        %v790 = vsub.s32 0, %v789
        %v791 = vrot.slane %v786, %v790
        %792 = vrot.lane.b32.xlu0 %v791, 91
        %v793 = vpop.permute.xlu0 %792
        %795 = vst.msk [vmem:[%s199 + $0x5] sm:$0x1] %vm754, %v793
        %v796 = vld [vmem:[#allocation3 + $0x1] sm:$0x1]
        %v798 = vlaneseq
        %v799 = vshrl.u32 %v798, 7
        %v800 = vsub.s32 0, %v799
        %v801 = vrot.slane %v796, %v800
        %802 = vrot.lane.b32.xlu0 %v801, 91
        %v803 = vpop.permute.xlu0 %802
        %805 = vst.msk [vmem:[%s248 + $0x5] sm:$0x1] %vm754, %v803
        %v806 = vld [vmem:[#allocation3] sm:$0x1]
        %v808 = vlaneseq
        %v809 = vshrl.u32 %v808, 7
        %v810 = vsub.s32 0, %v809
        %v811 = vrot.slane %v806, %v810
        %812 = vrot.lane.b32.xlu0 %v811, 71
        %v813 = vpop.permute.xlu0 %812
        %815 = vst.msk [vmem:[%s199 + $0x6] sm:$0x1] %vm754, %v813
        %v816 = vld [vmem:[#allocation3 + $0x1] sm:$0x1]
        %v818 = vlaneseq
        %v819 = vshrl.u32 %v818, 7
        %v820 = vsub.s32 0, %v819
        %v821 = vrot.slane %v816, %v820
        %822 = vrot.lane.b32.xlu0 %v821, 71
        %v823 = vpop.permute.xlu0 %822
        %825 = vst.msk [vmem:[%s248 + $0x6] sm:$0x1] %vm754, %v823
        %v826 = vld [vmem:[#allocation3] sm:$0x1]
        %v828 = vlaneseq
        %v829 = vshrl.u32 %v828, 7
        %v830 = vsub.s32 0, %v829
        %v831 = vrot.slane %v826, %v830
        %832 = vrot.lane.b32.xlu0 %v831, 51
        %v833 = vpop.permute.xlu0 %832
        %835 = vst.msk [vmem:[%s199 + $0x7] sm:$0x1] %vm754, %v833
        %v836 = vld [vmem:[#allocation3 + $0x1] sm:$0x1]
        %v838 = vlaneseq
        %v839 = vshrl.u32 %v838, 7
        %v840 = vsub.s32 0, %v839
        %v841 = vrot.slane %v836, %v840
        %842 = vrot.lane.b32.xlu0 %v841, 51
        %v843 = vpop.permute.xlu0 %842
        %845 = vst.msk [vmem:[%s248 + $0x7] sm:$0x1] %vm754, %v843
        %v846 = vld [vmem:[#allocation3] sm:$0x1]
        %v848 = vlaneseq
        %v849 = vshrl.u32 %v848, 7
        %v850 = vsub.s32 0, %v849
        %v851 = vrot.slane %v846, %v850
        %852 = vrot.lane.b32.xlu0 %v851, 31
        %v853 = vpop.permute.xlu0 %852
        %855 = vst.msk [vmem:[%s199 + $0x8] sm:$0x1] %vm754, %v853
        %v856 = vld [vmem:[#allocation3 + $0x1] sm:$0x1]
        %v858 = vlaneseq
        %v859 = vshrl.u32 %v858, 7
        %v860 = vsub.s32 0, %v859
        %v861 = vrot.slane %v856, %v860
        %862 = vrot.lane.b32.xlu0 %v861, 31
        %v863 = vpop.permute.xlu0 %862
        %865 = vst.msk [vmem:[%s248 + $0x8] sm:$0x1] %vm754, %v863
        %v866 = vld [vmem:[#allocation3] sm:$0x5]
        %v868 = vlaneseq
        %v869 = vshrl.u32 %v868, 7
        %v870 = vsub.s32 0, %v869
        %v871 = vrot.slane %v866, %v870
        %v872 = vlaneseq
        %v873 = vshrl.u32 %v872, 7
        %v874 = vsub.s32 2, %v873
        %v875 = vrot.slane %v866, %v874
        %876 = vrot.lane.b32.xlu0 %v871, 11
        %v877 = vpop.permute.xlu0 %876
        %878 = vrot.lane.b32.xlu0 %v875, 11
        %v879 = vpop.permute.xlu0 %878
        %vm880 = vcmask 89088
        %v881 = vsel %vm880, %v877, %v879
        %883 = vst.msk [vmem:[%s199 + $0x9] sm:$0x1] %vm754, %v881
        %v884 = vld [vmem:[#allocation3 + $0x1] sm:$0x5]
        %v886 = vlaneseq
        %v887 = vshrl.u32 %v886, 7
        %v888 = vsub.s32 0, %v887
        %v889 = vrot.slane %v884, %v888
        %v890 = vlaneseq
        %v891 = vshrl.u32 %v890, 7
        %v892 = vsub.s32 2, %v891
        %v893 = vrot.slane %v884, %v892
        %894 = vrot.lane.b32.xlu0 %v889, 11
        %v895 = vpop.permute.xlu0 %894
        %896 = vrot.lane.b32.xlu0 %v893, 11
        %v897 = vpop.permute.xlu0 %896
        %v898 = vsel %vm880, %v895, %v897
        %900 = vst.msk [vmem:[%s248 + $0x9] sm:$0x1] %vm754, %v898
        %v901 = vld [vmem:[#allocation3 + $0x2] sm:$0x1]
        %v903 = vlaneseq
        %v904 = vshrl.u32 %v903, 7
        %v905 = vsub.s32 0, %v904
        %v906 = vrot.slane %v901, %v905
        %907 = vrot.lane.b32.xlu0 %v906, 119
        %v908 = vpop.permute.xlu0 %907
        %910 = vst.msk [vmem:[%s199 + $0xa] sm:$0x1] %vm754, %v908
        %v911 = vld [vmem:[#allocation3 + $0x3] sm:$0x1]
        %v913 = vlaneseq
        %v914 = vshrl.u32 %v913, 7
        %v915 = vsub.s32 0, %v914
        %v916 = vrot.slane %v911, %v915
        %917 = vrot.lane.b32.xlu0 %v916, 119
        %v918 = vpop.permute.xlu0 %917
        %920 = vst.msk [vmem:[%s248 + $0xa] sm:$0x1] %vm754, %v918
        %v921 = vld [vmem:[#allocation3 + $0x2] sm:$0x1]
        %v923 = vlaneseq
        %v924 = vshrl.u32 %v923, 7
        %v925 = vsub.s32 0, %v924
        %v926 = vrot.slane %v921, %v925
        %927 = vrot.lane.b32.xlu0 %v926, 99
        %v928 = vpop.permute.xlu0 %927
        %s930 = scalar_lea.vmem [#allocation2], 64
        %931 = vst.msk [vmem:[%s930 + $0x3] sm:$0x1] %vm754, %v928
        %v932 = vld [vmem:[#allocation3 + $0x3] sm:$0x1]
        %v934 = vlaneseq
        %v935 = vshrl.u32 %v934, 7
        %v936 = vsub.s32 0, %v935
        %v937 = vrot.slane %v932, %v936
        %938 = vrot.lane.b32.xlu0 %v937, 99
        %v939 = vpop.permute.xlu0 %938
        %s941 = scalar_lea.vmem [#allocation2], 288
        %942 = vst.msk [vmem:[%s941 + $0x3] sm:$0x1] %vm754, %v939
        %v943 = vld [vmem:[#allocation3 + $0x2] sm:$0x1]
        %v945 = vlaneseq
        %v946 = vshrl.u32 %v945, 7
        %v947 = vsub.s32 0, %v946
        %v948 = vrot.slane %v943, %v947
        %949 = vrot.lane.b32.xlu0 %v948, 79
        %v950 = vpop.permute.xlu0 %949
        %952 = vst.msk [vmem:[%s930 + $0x4] sm:$0x1] %vm754, %v950
        %v953 = vld [vmem:[#allocation3 + $0x3] sm:$0x1]
        %v955 = vlaneseq
        %v956 = vshrl.u32 %v955, 7
        %v957 = vsub.s32 0, %v956
        %v958 = vrot.slane %v953, %v957
        %959 = vrot.lane.b32.xlu0 %v958, 79
        %v960 = vpop.permute.xlu0 %959
        %962 = vst.msk [vmem:[%s941 + $0x4] sm:$0x1] %vm754, %v960
        %v963 = vld [vmem:[#allocation3 + $0x2] sm:$0x1]
        %v965 = vlaneseq
        %v966 = vshrl.u32 %v965, 7
        %v967 = vsub.s32 0, %v966
        %v968 = vrot.slane %v963, %v967
        %969 = vrot.lane.b32.xlu0 %v968, 59
        %v970 = vpop.permute.xlu0 %969
        %972 = vst.msk [vmem:[%s930 + $0x5] sm:$0x1] %vm754, %v970
        %v973 = vld [vmem:[#allocation3 + $0x3] sm:$0x1]
        %v975 = vlaneseq
        %v976 = vshrl.u32 %v975, 7
        %v977 = vsub.s32 0, %v976
        %v978 = vrot.slane %v973, %v977
        %979 = vrot.lane.b32.xlu0 %v978, 59
        %v980 = vpop.permute.xlu0 %979
        %982 = vst.msk [vmem:[%s941 + $0x5] sm:$0x1] %vm754, %v980
        %v983 = vld [vmem:[#allocation3 + $0x2] sm:$0x1]
        %v985 = vlaneseq
        %v986 = vshrl.u32 %v985, 7
        %v987 = vsub.s32 0, %v986
        %v988 = vrot.slane %v983, %v987
        %989 = vrot.lane.b32.xlu0 %v988, 39
        %v990 = vpop.permute.xlu0 %989
        %992 = vst.msk [vmem:[%s930 + $0x6] sm:$0x1] %vm754, %v990
        %v993 = vld [vmem:[#allocation3 + $0x3] sm:$0x1]
        %v995 = vlaneseq
        %v996 = vshrl.u32 %v995, 7
        %v997 = vsub.s32 0, %v996
        %v998 = vrot.slane %v993, %v997
        %999 = vrot.lane.b32.xlu0 %v998, 39
        %v1000 = vpop.permute.xlu0 %999
        %1002 = vst.msk [vmem:[%s941 + $0x6] sm:$0x1] %vm754, %v1000
        %v1003 = vld [vmem:[#allocation3 + $0x2] sm:$0x5]
        %v1005 = vlaneseq
        %v1006 = vshrl.u32 %v1005, 7
        %v1007 = vsub.s32 0, %v1006
        %v1008 = vrot.slane %v1003, %v1007
        %v1009 = vlaneseq
        %v1010 = vshrl.u32 %v1009, 7
        %v1011 = vsub.s32 2, %v1010
        %v1012 = vrot.slane %v1003, %v1011
        %1013 = vrot.lane.b32.xlu0 %v1008, 19
        %v1014 = vpop.permute.xlu0 %1013
        %1015 = vrot.lane.b32.xlu0 %v1012, 19
        %v1016 = vpop.permute.xlu0 %1015
        %vm1017 = vcmask 154624
        %v1018 = vsel %vm1017, %v1014, %v1016
        %1020 = vst.msk [vmem:[%s930 + $0x7] sm:$0x1] %vm754, %v1018
        %v1021 = vld [vmem:[#allocation3 + $0x3] sm:$0x5]
        %v1023 = vlaneseq
        %v1024 = vshrl.u32 %v1023, 7
        %v1025 = vsub.s32 0, %v1024
        %v1026 = vrot.slane %v1021, %v1025
        %v1027 = vlaneseq
        %v1028 = vshrl.u32 %v1027, 7
        %v1029 = vsub.s32 2, %v1028
        %v1030 = vrot.slane %v1021, %v1029
        %1031 = vrot.lane.b32.xlu0 %v1026, 19
        %v1032 = vpop.permute.xlu0 %1031
        %1033 = vrot.lane.b32.xlu0 %v1030, 19
        %v1034 = vpop.permute.xlu0 %1033
        %v1035 = vsel %vm1017, %v1032, %v1034
        %1037 = vst.msk [vmem:[%s941 + $0x7] sm:$0x1] %vm754, %v1035
        %v1038 = vld [vmem:[#allocation3 + $0x4] sm:$0x1]
        %v1040 = vlaneseq
        %v1041 = vshrl.u32 %v1040, 7
        %v1042 = vsub.s32 0, %v1041
        %v1043 = vrot.slane %v1038, %v1042
        %1044 = vrot.lane.b32.xlu0 %v1043, 127
        %v1045 = vpop.permute.xlu0 %1044
        %1047 = vst.msk [vmem:[%s930 + $0x8] sm:$0x1] %vm754, %v1045
        %v1048 = vld [vmem:[#allocation3 + $0x5] sm:$0x1]
        %v1050 = vlaneseq
        %v1051 = vshrl.u32 %v1050, 7
        %v1052 = vsub.s32 0, %v1051
        %v1053 = vrot.slane %v1048, %v1052
        %1054 = vrot.lane.b32.xlu0 %v1053, 127
        %v1055 = vpop.permute.xlu0 %1054
        %1057 = vst.msk [vmem:[%s941 + $0x8] sm:$0x1] %vm754, %v1055
        %v1058 = vld [vmem:[#allocation3 + $0x4] sm:$0x1]
        %v1060 = vlaneseq
        %v1061 = vshrl.u32 %v1060, 7
        %v1062 = vsub.s32 0, %v1061
        %v1063 = vrot.slane %v1058, %v1062
        %1064 = vrot.lane.b32.xlu0 %v1063, 107
        %v1065 = vpop.permute.xlu0 %1064
        %1067 = vst.msk [vmem:[%s930 + $0x9] sm:$0x1] %vm754, %v1065
        %v1068 = vld [vmem:[#allocation3 + $0x5] sm:$0x1]
        %v1070 = vlaneseq
        %v1071 = vshrl.u32 %v1070, 7
        %v1072 = vsub.s32 0, %v1071
        %v1073 = vrot.slane %v1068, %v1072
        %1074 = vrot.lane.b32.xlu0 %v1073, 107
        %v1075 = vpop.permute.xlu0 %1074
        %1077 = vst.msk [vmem:[%s941 + $0x9] sm:$0x1] %vm754, %v1075
        %v1078 = vld [vmem:[#allocation3 + $0x4] sm:$0x1]
        %v1080 = vlaneseq
        %v1081 = vshrl.u32 %v1080, 7
        %v1082 = vsub.s32 0, %v1081
        %v1083 = vrot.slane %v1078, %v1082
        %1084 = vrot.lane.b32.xlu0 %v1083, 87
        %v1085 = vpop.permute.xlu0 %1084
        %1087 = vst.msk [vmem:[%s930 + $0xa] sm:$0x1] %vm754, %v1085
        %v1088 = vld [vmem:[#allocation3 + $0x5] sm:$0x1]
        %v1090 = vlaneseq
        %v1091 = vshrl.u32 %v1090, 7
        %v1092 = vsub.s32 0, %v1091
        %v1093 = vrot.slane %v1088, %v1092
        %1094 = vrot.lane.b32.xlu0 %v1093, 87
        %v1095 = vpop.permute.xlu0 %1094
        %1097 = vst.msk [vmem:[%s941 + $0xa] sm:$0x1] %vm754, %v1095
        %v1098 = vld [vmem:[#allocation3 + $0x4] sm:$0x1]
        %v1100 = vlaneseq
        %v1101 = vshrl.u32 %v1100, 7
        %v1102 = vsub.s32 0, %v1101
        %v1103 = vrot.slane %v1098, %v1102
        %1104 = vrot.lane.b32.xlu0 %v1103, 67
        %v1105 = vpop.permute.xlu0 %1104
        %s1107 = scalar_lea.vmem [#allocation2], 80
        %1108 = vst.msk [vmem:[%s1107 + $0x3] sm:$0x1] %vm754, %v1105
        %v1109 = vld [vmem:[#allocation3 + $0x5] sm:$0x1]
        %v1111 = vlaneseq
        %v1112 = vshrl.u32 %v1111, 7
        %v1113 = vsub.s32 0, %v1112
        %v1114 = vrot.slane %v1109, %v1113
        %1115 = vrot.lane.b32.xlu0 %v1114, 67
        %v1116 = vpop.permute.xlu0 %1115
        %s1118 = scalar_lea.vmem [#allocation2], 304
        %1119 = vst.msk [vmem:[%s1118 + $0x3] sm:$0x1] %vm754, %v1116
        %v1120 = vld [vmem:[#allocation3 + $0x4] sm:$0x1]
        %v1122 = vlaneseq
        %v1123 = vshrl.u32 %v1122, 7
        %v1124 = vsub.s32 0, %v1123
        %v1125 = vrot.slane %v1120, %v1124
        %1126 = vrot.lane.b32.xlu0 %v1125, 47
        %v1127 = vpop.permute.xlu0 %1126
        %1129 = vst.msk [vmem:[%s1107 + $0x4] sm:$0x1] %vm754, %v1127
        %v1130 = vld [vmem:[#allocation3 + $0x5] sm:$0x1]
        %v1132 = vlaneseq
        %v1133 = vshrl.u32 %v1132, 7
        %v1134 = vsub.s32 0, %v1133
        %v1135 = vrot.slane %v1130, %v1134
        %1136 = vrot.lane.b32.xlu0 %v1135, 47
        %v1137 = vpop.permute.xlu0 %1136
        %1139 = vst.msk [vmem:[%s1118 + $0x4] sm:$0x1] %vm754, %v1137
        %v1140 = vld [vmem:[#allocation3 + $0x4] sm:$0x1]
        %v1142 = vlaneseq
        %v1143 = vshrl.u32 %v1142, 7
        %v1144 = vsub.s32 0, %v1143
        %v1145 = vrot.slane %v1140, %v1144
        %1146 = vrot.lane.b32.xlu0 %v1145, 27
        %v1147 = vpop.permute.xlu0 %1146
        %1149 = vst.msk [vmem:[%s1107 + $0x5] sm:$0x1] %vm754, %v1147
        %v1150 = vld [vmem:[#allocation3 + $0x5] sm:$0x1]
        %v1152 = vlaneseq
        %v1153 = vshrl.u32 %v1152, 7
        %v1154 = vsub.s32 0, %v1153
        %v1155 = vrot.slane %v1150, %v1154
        %1156 = vrot.lane.b32.xlu0 %v1155, 27
        %v1157 = vpop.permute.xlu0 %1156
        %1159 = vst.msk [vmem:[%s1118 + $0x5] sm:$0x1] %vm754, %v1157
        %v1160 = vld [vmem:[#allocation3 + $0x4] sm:$0x5]
        %v1162 = vlaneseq
        %v1163 = vshrl.u32 %v1162, 7
        %v1164 = vsub.s32 0, %v1163
        %v1165 = vrot.slane %v1160, %v1164
        %v1166 = vlaneseq
        %v1167 = vshrl.u32 %v1166, 7
        %v1168 = vsub.s32 2, %v1167
        %v1169 = vrot.slane %v1160, %v1168
        %1170 = vrot.lane.b32.xlu0 %v1165, 7
        %v1171 = vpop.permute.xlu0 %1170
        %1172 = vrot.lane.b32.xlu0 %v1169, 7
        %v1173 = vpop.permute.xlu0 %1172
        %vm1174 = vcmask 56320
        %v1175 = vsel %vm1174, %v1171, %v1173
        %1177 = vst.msk [vmem:[%s1107 + $0x6] sm:$0x1] %vm754, %v1175
        %v1178 = vld [vmem:[#allocation3 + $0x5] sm:$0x5]
        %v1180 = vlaneseq
        %v1181 = vshrl.u32 %v1180, 7
        %v1182 = vsub.s32 0, %v1181
        %v1183 = vrot.slane %v1178, %v1182
        %v1184 = vlaneseq
        %v1185 = vshrl.u32 %v1184, 7
        %v1186 = vsub.s32 2, %v1185
        %v1187 = vrot.slane %v1178, %v1186
        %1188 = vrot.lane.b32.xlu0 %v1183, 7
        %v1189 = vpop.permute.xlu0 %1188
        %1190 = vrot.lane.b32.xlu0 %v1187, 7
        %v1191 = vpop.permute.xlu0 %1190
        %v1192 = vsel %vm1174, %v1189, %v1191
        %1194 = vst.msk [vmem:[%s1118 + $0x6] sm:$0x1] %vm754, %v1192
        %v1195 = vld [vmem:[#allocation3 + $0x6] sm:$0x1]
        %v1197 = vlaneseq
        %v1198 = vshrl.u32 %v1197, 7
        %v1199 = vsub.s32 0, %v1198
        %v1200 = vrot.slane %v1195, %v1199
        %1201 = vrot.lane.b32.xlu0 %v1200, 115
        %v1202 = vpop.permute.xlu0 %1201
        %1204 = vst.msk [vmem:[%s1107 + $0x7] sm:$0x1] %vm754, %v1202
        %v1205 = vld [vmem:[#allocation3 + $0x7] sm:$0x1]
        %v1207 = vlaneseq
        %v1208 = vshrl.u32 %v1207, 7
        %v1209 = vsub.s32 0, %v1208
        %v1210 = vrot.slane %v1205, %v1209
        %1211 = vrot.lane.b32.xlu0 %v1210, 115
        %v1212 = vpop.permute.xlu0 %1211
        %1214 = vst.msk [vmem:[%s1118 + $0x7] sm:$0x1] %vm754, %v1212
        %v1215 = vld [vmem:[#allocation3 + $0x6] sm:$0x1]
        %v1217 = vlaneseq
        %v1218 = vshrl.u32 %v1217, 7
        %v1219 = vsub.s32 0, %v1218
        %v1220 = vrot.slane %v1215, %v1219
        %1221 = vrot.lane.b32.xlu0 %v1220, 95
        %v1222 = vpop.permute.xlu0 %1221
        %1224 = vst.msk [vmem:[%s1107 + $0x8] sm:$0x1] %vm754, %v1222
        %v1225 = vld [vmem:[#allocation3 + $0x7] sm:$0x1]
        %v1227 = vlaneseq
        %v1228 = vshrl.u32 %v1227, 7
        %v1229 = vsub.s32 0, %v1228
        %v1230 = vrot.slane %v1225, %v1229
        %1231 = vrot.lane.b32.xlu0 %v1230, 95
        %v1232 = vpop.permute.xlu0 %1231
        %1234 = vst.msk [vmem:[%s1118 + $0x8] sm:$0x1] %vm754, %v1232
        %v1235 = vld [vmem:[#allocation3 + $0x6] sm:$0x1]
        %v1237 = vlaneseq
        %v1238 = vshrl.u32 %v1237, 7
        %v1239 = vsub.s32 0, %v1238
        %v1240 = vrot.slane %v1235, %v1239
        %1241 = vrot.lane.b32.xlu0 %v1240, 75
        %v1242 = vpop.permute.xlu0 %1241
        %1244 = vst.msk [vmem:[%s1107 + $0x9] sm:$0x1] %vm754, %v1242
        %v1245 = vld [vmem:[#allocation3 + $0x7] sm:$0x1]
        %v1247 = vlaneseq
        %v1248 = vshrl.u32 %v1247, 7
        %v1249 = vsub.s32 0, %v1248
        %v1250 = vrot.slane %v1245, %v1249
        %1251 = vrot.lane.b32.xlu0 %v1250, 75
        %v1252 = vpop.permute.xlu0 %1251
        %1254 = vst.msk [vmem:[%s1118 + $0x9] sm:$0x1] %vm754, %v1252
        %v1255 = vld [vmem:[#allocation3 + $0x6] sm:$0x1]
        %v1257 = vlaneseq
        %v1258 = vshrl.u32 %v1257, 7
        %v1259 = vsub.s32 0, %v1258
        %v1260 = vrot.slane %v1255, %v1259
        %1261 = vrot.lane.b32.xlu0 %v1260, 55
        %v1262 = vpop.permute.xlu0 %1261
        %1264 = vst.msk [vmem:[%s1107 + $0xa] sm:$0x1] %vm754, %v1262
        %v1265 = vld [vmem:[#allocation3 + $0x7] sm:$0x1]
        %v1267 = vlaneseq
        %v1268 = vshrl.u32 %v1267, 7
        %v1269 = vsub.s32 0, %v1268
        %v1270 = vrot.slane %v1265, %v1269
        %1271 = vrot.lane.b32.xlu0 %v1270, 55
        %v1272 = vpop.permute.xlu0 %1271
        %1274 = vst.msk [vmem:[%s1118 + $0xa] sm:$0x1] %vm754, %v1272
        %v1275 = vld [vmem:[#allocation3 + $0x6] sm:$0x1]
        %v1277 = vlaneseq
        %v1278 = vshrl.u32 %v1277, 7
        %v1279 = vsub.s32 0, %v1278
        %v1280 = vrot.slane %v1275, %v1279
        %1281 = vrot.lane.b32.xlu0 %v1280, 35
        %v1282 = vpop.permute.xlu0 %1281
        %s1284 = scalar_lea.vmem [#allocation2], 96
        %1285 = vst.msk [vmem:[%s1284 + $0x3] sm:$0x1] %vm754, %v1282
        %v1286 = vld [vmem:[#allocation3 + $0x7] sm:$0x1]
        %v1288 = vlaneseq
        %v1289 = vshrl.u32 %v1288, 7
        %v1290 = vsub.s32 0, %v1289
        %v1291 = vrot.slane %v1286, %v1290
        %1292 = vrot.lane.b32.xlu0 %v1291, 35
        %v1293 = vpop.permute.xlu0 %1292
        %s1295 = scalar_lea.vmem [#allocation2], 320
        %1296 = vst.msk [vmem:[%s1295 + $0x3] sm:$0x1] %vm754, %v1293
        %v1297 = vld [vmem:[#allocation3 + $0x6] sm:$0x5]
        %v1299 = vlaneseq
        %v1300 = vshrl.u32 %v1299, 7
        %v1301 = vsub.s32 0, %v1300
        %v1302 = vrot.slane %v1297, %v1301
        %v1303 = vlaneseq
        %v1304 = vshrl.u32 %v1303, 7
        %v1305 = vsub.s32 2, %v1304
        %v1306 = vrot.slane %v1297, %v1305
        %1307 = vrot.lane.b32.xlu0 %v1302, 15
        %v1308 = vpop.permute.xlu0 %1307
        %1309 = vrot.lane.b32.xlu0 %v1306, 15
        %v1310 = vpop.permute.xlu0 %1309
        %vm1311 = vcmask 121856
        %v1312 = vsel %vm1311, %v1308, %v1310
        %1314 = vst.msk [vmem:[%s1284 + $0x4] sm:$0x1] %vm754, %v1312
        %v1315 = vld [vmem:[#allocation3 + $0x7] sm:$0x5]
        %v1317 = vlaneseq
        %v1318 = vshrl.u32 %v1317, 7
        %v1319 = vsub.s32 0, %v1318
        %v1320 = vrot.slane %v1315, %v1319
        %v1321 = vlaneseq
        %v1322 = vshrl.u32 %v1321, 7
        %v1323 = vsub.s32 2, %v1322
        %v1324 = vrot.slane %v1315, %v1323
        %1325 = vrot.lane.b32.xlu0 %v1320, 15
        %v1326 = vpop.permute.xlu0 %1325
        %1327 = vrot.lane.b32.xlu0 %v1324, 15
        %v1328 = vpop.permute.xlu0 %1327
        %v1329 = vsel %vm1311, %v1326, %v1328
        %1331 = vst.msk [vmem:[%s1295 + $0x4] sm:$0x1] %vm754, %v1329
        %v1332 = vld [vmem:[#allocation3 + $0x8] sm:$0x1]
        %v1334 = vlaneseq
        %v1335 = vshrl.u32 %v1334, 7
        %v1336 = vsub.s32 0, %v1335
        %v1337 = vrot.slane %v1332, %v1336
        %1338 = vrot.lane.b32.xlu0 %v1337, 123
        %v1339 = vpop.permute.xlu0 %1338
        %1341 = vst.msk [vmem:[%s1284 + $0x5] sm:$0x1] %vm754, %v1339
        %v1342 = vld [vmem:[#allocation3 + $0x9] sm:$0x1]
        %v1344 = vlaneseq
        %v1345 = vshrl.u32 %v1344, 7
        %v1346 = vsub.s32 0, %v1345
        %v1347 = vrot.slane %v1342, %v1346
        %1348 = vrot.lane.b32.xlu0 %v1347, 123
        %v1349 = vpop.permute.xlu0 %1348
        %1351 = vst.msk [vmem:[%s1295 + $0x5] sm:$0x1] %vm754, %v1349
        %v1352 = vld [vmem:[#allocation3 + $0x8] sm:$0x1]
        %v1354 = vlaneseq
        %v1355 = vshrl.u32 %v1354, 7
        %v1356 = vsub.s32 0, %v1355
        %v1357 = vrot.slane %v1352, %v1356
        %1358 = vrot.lane.b32.xlu0 %v1357, 103
        %v1359 = vpop.permute.xlu0 %1358
        %1361 = vst.msk [vmem:[%s1284 + $0x6] sm:$0x1] %vm754, %v1359
        %v1362 = vld [vmem:[#allocation3 + $0x9] sm:$0x1]
        %v1364 = vlaneseq
        %v1365 = vshrl.u32 %v1364, 7
        %v1366 = vsub.s32 0, %v1365
        %v1367 = vrot.slane %v1362, %v1366
        %1368 = vrot.lane.b32.xlu0 %v1367, 103
        %v1369 = vpop.permute.xlu0 %1368
        %1371 = vst.msk [vmem:[%s1295 + $0x6] sm:$0x1] %vm754, %v1369
        %v1372 = vld [vmem:[#allocation3 + $0x8] sm:$0x1]
        %v1374 = vlaneseq
        %v1375 = vshrl.u32 %v1374, 7
        %v1376 = vsub.s32 0, %v1375
        %v1377 = vrot.slane %v1372, %v1376
        %1378 = vrot.lane.b32.xlu0 %v1377, 83
        %v1379 = vpop.permute.xlu0 %1378
        %1381 = vst.msk [vmem:[%s1284 + $0x7] sm:$0x1] %vm754, %v1379
        %v1382 = vld [vmem:[#allocation3 + $0x9] sm:$0x1]
        %v1384 = vlaneseq
        %v1385 = vshrl.u32 %v1384, 7
        %v1386 = vsub.s32 0, %v1385
        %v1387 = vrot.slane %v1382, %v1386
        %1388 = vrot.lane.b32.xlu0 %v1387, 83
        %v1389 = vpop.permute.xlu0 %1388
        %1391 = vst.msk [vmem:[%s1295 + $0x7] sm:$0x1] %vm754, %v1389
        %v1392 = vld [vmem:[#allocation3 + $0x8] sm:$0x1]
        %v1394 = vlaneseq
        %v1395 = vshrl.u32 %v1394, 7
        %v1396 = vsub.s32 0, %v1395
        %v1397 = vrot.slane %v1392, %v1396
        %1398 = vrot.lane.b32.xlu0 %v1397, 63
        %v1399 = vpop.permute.xlu0 %1398
        %1401 = vst.msk [vmem:[%s1284 + $0x8] sm:$0x1] %vm754, %v1399
        %v1402 = vld [vmem:[#allocation3 + $0x9] sm:$0x1]
        %v1404 = vlaneseq
        %v1405 = vshrl.u32 %v1404, 7
        %v1406 = vsub.s32 0, %v1405
        %v1407 = vrot.slane %v1402, %v1406
        %1408 = vrot.lane.b32.xlu0 %v1407, 63
        %v1409 = vpop.permute.xlu0 %1408
        %1411 = vst.msk [vmem:[%s1295 + $0x8] sm:$0x1] %vm754, %v1409
        %v1412 = vld [vmem:[#allocation3 + $0x8] sm:$0x1]
        %v1414 = vlaneseq
        %v1415 = vshrl.u32 %v1414, 7
        %v1416 = vsub.s32 0, %v1415
        %v1417 = vrot.slane %v1412, %v1416
        %1418 = vrot.lane.b32.xlu0 %v1417, 43
        %v1419 = vpop.permute.xlu0 %1418
        %1421 = vst.msk [vmem:[%s1284 + $0x9] sm:$0x1] %vm754, %v1419
        %v1422 = vld [vmem:[#allocation3 + $0x9] sm:$0x1]
        %v1424 = vlaneseq
        %v1425 = vshrl.u32 %v1424, 7
        %v1426 = vsub.s32 0, %v1425
        %v1427 = vrot.slane %v1422, %v1426
        %1428 = vrot.lane.b32.xlu0 %v1427, 43
        %v1429 = vpop.permute.xlu0 %1428
        %1431 = vst.msk [vmem:[%s1295 + $0x9] sm:$0x1] %vm754, %v1429
        %v1432 = vld [vmem:[#allocation3 + $0x8] sm:$0x1]
        %v1434 = vlaneseq
        %v1435 = vshrl.u32 %v1434, 7
        %v1436 = vsub.s32 0, %v1435
        %v1437 = vrot.slane %v1432, %v1436
        %1438 = vrot.lane.b32.xlu0 %v1437, 23
        %v1439 = vpop.permute.xlu0 %1438
        %1441 = vst.msk [vmem:[%s1284 + $0xa] sm:$0x1] %vm754, %v1439
        %v1442 = vld [vmem:[#allocation3 + $0x9] sm:$0x1]
        %v1444 = vlaneseq
        %v1445 = vshrl.u32 %v1444, 7
        %v1446 = vsub.s32 0, %v1445
        %v1447 = vrot.slane %v1442, %v1446
        %1448 = vrot.lane.b32.xlu0 %v1447, 23
        %v1449 = vpop.permute.xlu0 %1448
        %1451 = vst.msk [vmem:[%s1295 + $0xa] sm:$0x1] %vm754, %v1449
        %v1452 = vld [vmem:[#allocation3 + $0xa] sm:$0x1]
        %v1454 = vlaneseq
        %v1455 = vshrl.u32 %v1454, 7
        %v1456 = vsub.s32 0, %v1455
        %v1457 = vrot.slane %v1452, %v1456
        %1458 = vrot.lane.b32.xlu0 %v1457, 3
        %v1459 = vpop.permute.xlu0 %1458
        %s1461 = scalar_lea.vmem [#allocation2], 112
        %1462 = vst.msk [vmem:[%s1461 + $0x3] sm:$0x1] %vm754, %v1459
        %v1463 = vld [vmem:[#allocation3 + $0xb] sm:$0x1]
        %v1465 = vlaneseq
        %v1466 = vshrl.u32 %v1465, 7
        %v1467 = vsub.s32 0, %v1466
        %v1468 = vrot.slane %v1463, %v1467
        %1469 = vrot.lane.b32.xlu0 %v1468, 3
        %v1470 = vpop.permute.xlu0 %1469
        %s1472 = scalar_lea.vmem [#allocation2], 336
        %1473 = vst.msk [vmem:[%s1472 + $0x3] sm:$0x1] %vm754, %v1470
        %v1474 = vld [vmem:[#allocation3 + $0xa] sm:$0x1]
        %v1476 = vlaneseq
        %v1477 = vshrl.u32 %v1476, 7
        %v1478 = vsub.s32 0, %v1477
        %v1479 = vrot.slane %v1474, %v1478
        %1480 = vrot.lane.b32.xlu0 %v1479, 111
        %v1481 = vpop.permute.xlu0 %1480
        %1483 = vst.msk [vmem:[%s1461 + $0x4] sm:$0x1] %vm754, %v1481
        %v1484 = vld [vmem:[#allocation3 + $0xb] sm:$0x1]
        %v1486 = vlaneseq
        %v1487 = vshrl.u32 %v1486, 7
        %v1488 = vsub.s32 0, %v1487
        %v1489 = vrot.slane %v1484, %v1488
        %1490 = vrot.lane.b32.xlu0 %v1489, 111
        %v1491 = vpop.permute.xlu0 %1490
        %1493 = vst.msk [vmem:[%s1472 + $0x4] sm:$0x1] %vm754, %v1491
        %v1494 = vld [vmem:[#allocation3 + $0xa] sm:$0x1]
        %v1496 = vlaneseq
        %v1497 = vshrl.u32 %v1496, 7
        %v1498 = vsub.s32 0, %v1497
        %v1499 = vrot.slane %v1494, %v1498
        %1500 = vrot.lane.b32.xlu0 %v1499, 91
        %v1501 = vpop.permute.xlu0 %1500
        %1503 = vst.msk [vmem:[%s1461 + $0x5] sm:$0x1] %vm754, %v1501
        %v1504 = vld [vmem:[#allocation3 + $0xb] sm:$0x1]
        %v1506 = vlaneseq
        %v1507 = vshrl.u32 %v1506, 7
        %v1508 = vsub.s32 0, %v1507
        %v1509 = vrot.slane %v1504, %v1508
        %1510 = vrot.lane.b32.xlu0 %v1509, 91
        %v1511 = vpop.permute.xlu0 %1510
        %1513 = vst.msk [vmem:[%s1472 + $0x5] sm:$0x1] %vm754, %v1511
        %v1514 = vld [vmem:[#allocation3 + $0xa] sm:$0x1]
        %v1516 = vlaneseq
        %v1517 = vshrl.u32 %v1516, 7
        %v1518 = vsub.s32 0, %v1517
        %v1519 = vrot.slane %v1514, %v1518
        %1520 = vrot.lane.b32.xlu0 %v1519, 71
        %v1521 = vpop.permute.xlu0 %1520
        %1523 = vst.msk [vmem:[%s1461 + $0x6] sm:$0x1] %vm754, %v1521
        %v1524 = vld [vmem:[#allocation3 + $0xb] sm:$0x1]
        %v1526 = vlaneseq
        %v1527 = vshrl.u32 %v1526, 7
        %v1528 = vsub.s32 0, %v1527
        %v1529 = vrot.slane %v1524, %v1528
        %1530 = vrot.lane.b32.xlu0 %v1529, 71
        %v1531 = vpop.permute.xlu0 %1530
        %1533 = vst.msk [vmem:[%s1472 + $0x6] sm:$0x1] %vm754, %v1531
        %v1534 = vld [vmem:[#allocation3 + $0xa] sm:$0x1]
        %v1536 = vlaneseq
        %v1537 = vshrl.u32 %v1536, 7
        %v1538 = vsub.s32 0, %v1537
        %v1539 = vrot.slane %v1534, %v1538
        %1540 = vrot.lane.b32.xlu0 %v1539, 51
        %v1541 = vpop.permute.xlu0 %1540
        %1543 = vst.msk [vmem:[%s1461 + $0x7] sm:$0x1] %vm754, %v1541
        %v1544 = vld [vmem:[#allocation3 + $0xb] sm:$0x1]
        %v1546 = vlaneseq
        %v1547 = vshrl.u32 %v1546, 7
        %v1548 = vsub.s32 0, %v1547
        %v1549 = vrot.slane %v1544, %v1548
        %1550 = vrot.lane.b32.xlu0 %v1549, 51
        %v1551 = vpop.permute.xlu0 %1550
        %1553 = vst.msk [vmem:[%s1472 + $0x7] sm:$0x1] %vm754, %v1551
        %v1554 = vld [vmem:[#allocation3 + $0xa] sm:$0x1]
        %v1556 = vlaneseq
        %v1557 = vshrl.u32 %v1556, 7
        %v1558 = vsub.s32 0, %v1557
        %v1559 = vrot.slane %v1554, %v1558
        %1560 = vrot.lane.b32.xlu0 %v1559, 31
        %v1561 = vpop.permute.xlu0 %1560
        %1563 = vst.msk [vmem:[%s1461 + $0x8] sm:$0x1] %vm754, %v1561
        %v1564 = vld [vmem:[#allocation3 + $0xb] sm:$0x1]
        %v1566 = vlaneseq
        %v1567 = vshrl.u32 %v1566, 7
        %v1568 = vsub.s32 0, %v1567
        %v1569 = vrot.slane %v1564, %v1568
        %1570 = vrot.lane.b32.xlu0 %v1569, 31
        %v1571 = vpop.permute.xlu0 %1570
        %1573 = vst.msk [vmem:[%s1472 + $0x8] sm:$0x1] %vm754, %v1571
        %v1574 = vld [vmem:[#allocation3 + $0xa] sm:$0x5]
        %v1576 = vlaneseq
        %v1577 = vshrl.u32 %v1576, 7
        %v1578 = vsub.s32 0, %v1577
        %v1579 = vrot.slane %v1574, %v1578
        %v1580 = vlaneseq
        %v1581 = vshrl.u32 %v1580, 7
        %v1582 = vsub.s32 2, %v1581
        %v1583 = vrot.slane %v1574, %v1582
        %1584 = vrot.lane.b32.xlu0 %v1579, 11
        %v1585 = vpop.permute.xlu0 %1584
        %1586 = vrot.lane.b32.xlu0 %v1583, 11
        %v1587 = vpop.permute.xlu0 %1586
        %v1588 = vsel %vm880, %v1585, %v1587
        %1590 = vst.msk [vmem:[%s1461 + $0x9] sm:$0x1] %vm754, %v1588
        %v1591 = vld [vmem:[#allocation3 + $0xb] sm:$0x5]
        %v1593 = vlaneseq
        %v1594 = vshrl.u32 %v1593, 7
        %v1595 = vsub.s32 0, %v1594
        %v1596 = vrot.slane %v1591, %v1595
        %v1597 = vlaneseq
        %v1598 = vshrl.u32 %v1597, 7
        %v1599 = vsub.s32 2, %v1598
        %v1600 = vrot.slane %v1591, %v1599
        %1601 = vrot.lane.b32.xlu0 %v1596, 11
        %v1602 = vpop.permute.xlu0 %1601
        %1603 = vrot.lane.b32.xlu0 %v1600, 11
        %v1604 = vpop.permute.xlu0 %1603
        %v1605 = vsel %vm880, %v1602, %v1604
        %1607 = vst.msk [vmem:[%s1472 + $0x9] sm:$0x1] %vm754, %v1605
        %v1608 = vld [vmem:[#allocation3 + $0xc] sm:$0x1]
        %v1610 = vlaneseq
        %v1611 = vshrl.u32 %v1610, 7
        %v1612 = vsub.s32 0, %v1611
        %v1613 = vrot.slane %v1608, %v1612
        %1614 = vrot.lane.b32.xlu0 %v1613, 119
        %v1615 = vpop.permute.xlu0 %1614
        %1617 = vst.msk [vmem:[%s1461 + $0xa] sm:$0x1] %vm754, %v1615
        %v1618 = vld [vmem:[#allocation3 + $0xd] sm:$0x1]
        %v1620 = vlaneseq
        %v1621 = vshrl.u32 %v1620, 7
        %v1622 = vsub.s32 0, %v1621
        %v1623 = vrot.slane %v1618, %v1622
        %1624 = vrot.lane.b32.xlu0 %v1623, 119
        %v1625 = vpop.permute.xlu0 %1624
        %1627 = vst.msk [vmem:[%s1472 + $0xa] sm:$0x1] %vm754, %v1625
        %v1628 = vld [vmem:[#allocation3 + $0xc] sm:$0x1]
        %v1630 = vlaneseq
        %v1631 = vshrl.u32 %v1630, 7
        %v1632 = vsub.s32 0, %v1631
        %v1633 = vrot.slane %v1628, %v1632
        %1634 = vrot.lane.b32.xlu0 %v1633, 99
        %v1635 = vpop.permute.xlu0 %1634
        %s1637 = scalar_lea.vmem [#allocation2], 128
        %1638 = vst.msk [vmem:[%s1637 + $0x3] sm:$0x1] %vm754, %v1635
        %v1639 = vld [vmem:[#allocation3 + $0xd] sm:$0x1]
        %v1641 = vlaneseq
        %v1642 = vshrl.u32 %v1641, 7
        %v1643 = vsub.s32 0, %v1642
        %v1644 = vrot.slane %v1639, %v1643
        %1645 = vrot.lane.b32.xlu0 %v1644, 99
        %v1646 = vpop.permute.xlu0 %1645
        %s1648 = scalar_lea.vmem [#allocation2], 352
        %1649 = vst.msk [vmem:[%s1648 + $0x3] sm:$0x1] %vm754, %v1646
        %v1650 = vld [vmem:[#allocation3 + $0xc] sm:$0x1]
        %v1652 = vlaneseq
        %v1653 = vshrl.u32 %v1652, 7
        %v1654 = vsub.s32 0, %v1653
        %v1655 = vrot.slane %v1650, %v1654
        %1656 = vrot.lane.b32.xlu0 %v1655, 79
        %v1657 = vpop.permute.xlu0 %1656
        %1659 = vst.msk [vmem:[%s1637 + $0x4] sm:$0x1] %vm754, %v1657
        %v1660 = vld [vmem:[#allocation3 + $0xd] sm:$0x1]
        %v1662 = vlaneseq
        %v1663 = vshrl.u32 %v1662, 7
        %v1664 = vsub.s32 0, %v1663
        %v1665 = vrot.slane %v1660, %v1664
        %1666 = vrot.lane.b32.xlu0 %v1665, 79
        %v1667 = vpop.permute.xlu0 %1666
        %1669 = vst.msk [vmem:[%s1648 + $0x4] sm:$0x1] %vm754, %v1667
        %v1670 = vld [vmem:[#allocation3 + $0xc] sm:$0x1]
        %v1672 = vlaneseq
        %v1673 = vshrl.u32 %v1672, 7
        %v1674 = vsub.s32 0, %v1673
        %v1675 = vrot.slane %v1670, %v1674
        %1676 = vrot.lane.b32.xlu0 %v1675, 59
        %v1677 = vpop.permute.xlu0 %1676
        %1679 = vst.msk [vmem:[%s1637 + $0x5] sm:$0x1] %vm754, %v1677
        %v1680 = vld [vmem:[#allocation3 + $0xd] sm:$0x1]
        %v1682 = vlaneseq
        %v1683 = vshrl.u32 %v1682, 7
        %v1684 = vsub.s32 0, %v1683
        %v1685 = vrot.slane %v1680, %v1684
        %1686 = vrot.lane.b32.xlu0 %v1685, 59
        %v1687 = vpop.permute.xlu0 %1686
        %1689 = vst.msk [vmem:[%s1648 + $0x5] sm:$0x1] %vm754, %v1687
        %v1690 = vld [vmem:[#allocation3 + $0xc] sm:$0x1]
        %v1692 = vlaneseq
        %v1693 = vshrl.u32 %v1692, 7
        %v1694 = vsub.s32 0, %v1693
        %v1695 = vrot.slane %v1690, %v1694
        %1696 = vrot.lane.b32.xlu0 %v1695, 39
        %v1697 = vpop.permute.xlu0 %1696
        %1699 = vst.msk [vmem:[%s1637 + $0x6] sm:$0x1] %vm754, %v1697
        %v1700 = vld [vmem:[#allocation3 + $0xd] sm:$0x1]
        %v1702 = vlaneseq
        %v1703 = vshrl.u32 %v1702, 7
        %v1704 = vsub.s32 0, %v1703
        %v1705 = vrot.slane %v1700, %v1704
        %1706 = vrot.lane.b32.xlu0 %v1705, 39
        %v1707 = vpop.permute.xlu0 %1706
        %1709 = vst.msk [vmem:[%s1648 + $0x6] sm:$0x1] %vm754, %v1707
        %v1710 = vld [vmem:[#allocation3 + $0xc] sm:$0x5]
        %v1712 = vlaneseq
        %v1713 = vshrl.u32 %v1712, 7
        %v1714 = vsub.s32 0, %v1713
        %v1715 = vrot.slane %v1710, %v1714
        %v1716 = vlaneseq
        %v1717 = vshrl.u32 %v1716, 7
        %v1718 = vsub.s32 2, %v1717
        %v1719 = vrot.slane %v1710, %v1718
        %1720 = vrot.lane.b32.xlu0 %v1715, 19
        %v1721 = vpop.permute.xlu0 %1720
        %1722 = vrot.lane.b32.xlu0 %v1719, 19
        %v1723 = vpop.permute.xlu0 %1722
        %v1724 = vsel %vm1017, %v1721, %v1723
        %1726 = vst.msk [vmem:[%s1637 + $0x7] sm:$0x1] %vm754, %v1724
        %v1727 = vld [vmem:[#allocation3 + $0xd] sm:$0x5]
        %v1729 = vlaneseq
        %v1730 = vshrl.u32 %v1729, 7
        %v1731 = vsub.s32 0, %v1730
        %v1732 = vrot.slane %v1727, %v1731
        %v1733 = vlaneseq
        %v1734 = vshrl.u32 %v1733, 7
        %v1735 = vsub.s32 2, %v1734
        %v1736 = vrot.slane %v1727, %v1735
        %1737 = vrot.lane.b32.xlu0 %v1732, 19
        %v1738 = vpop.permute.xlu0 %1737
        %1739 = vrot.lane.b32.xlu0 %v1736, 19
        %v1740 = vpop.permute.xlu0 %1739
        %v1741 = vsel %vm1017, %v1738, %v1740
        %1743 = vst.msk [vmem:[%s1648 + $0x7] sm:$0x1] %vm754, %v1741
        %v1744 = vld [vmem:[#allocation3 + $0xe] sm:$0x1]
        %v1746 = vlaneseq
        %v1747 = vshrl.u32 %v1746, 7
        %v1748 = vsub.s32 0, %v1747
        %v1749 = vrot.slane %v1744, %v1748
        %1750 = vrot.lane.b32.xlu0 %v1749, 127
        %v1751 = vpop.permute.xlu0 %1750
        %1753 = vst.msk [vmem:[%s1637 + $0x8] sm:$0x1] %vm754, %v1751
        %v1754 = vld [vmem:[#allocation3 + $0xf] sm:$0x1]
        %v1756 = vlaneseq
        %v1757 = vshrl.u32 %v1756, 7
        %v1758 = vsub.s32 0, %v1757
        %v1759 = vrot.slane %v1754, %v1758
        %1760 = vrot.lane.b32.xlu0 %v1759, 127
        %v1761 = vpop.permute.xlu0 %1760
        %1763 = vst.msk [vmem:[%s1648 + $0x8] sm:$0x1] %vm754, %v1761
        %v1764 = vld [vmem:[#allocation3 + $0xe] sm:$0x1]
        %v1766 = vlaneseq
        %v1767 = vshrl.u32 %v1766, 7
        %v1768 = vsub.s32 0, %v1767
        %v1769 = vrot.slane %v1764, %v1768
        %1770 = vrot.lane.b32.xlu0 %v1769, 107
        %v1771 = vpop.permute.xlu0 %1770
        %1773 = vst.msk [vmem:[%s1637 + $0x9] sm:$0x1] %vm754, %v1771
        %v1774 = vld [vmem:[#allocation3 + $0xf] sm:$0x1]
        %v1776 = vlaneseq
        %v1777 = vshrl.u32 %v1776, 7
        %v1778 = vsub.s32 0, %v1777
        %v1779 = vrot.slane %v1774, %v1778
        %1780 = vrot.lane.b32.xlu0 %v1779, 107
        %v1781 = vpop.permute.xlu0 %1780
        %1783 = vst.msk [vmem:[%s1648 + $0x9] sm:$0x1] %vm754, %v1781
        %v1784 = vld [vmem:[#allocation3 + $0xe] sm:$0x1]
        %v1786 = vlaneseq
        %v1787 = vshrl.u32 %v1786, 7
        %v1788 = vsub.s32 0, %v1787
        %v1789 = vrot.slane %v1784, %v1788
        %1790 = vrot.lane.b32.xlu0 %v1789, 87
        %v1791 = vpop.permute.xlu0 %1790
        %1793 = vst.msk [vmem:[%s1637 + $0xa] sm:$0x1] %vm754, %v1791
        %v1794 = vld [vmem:[#allocation3 + $0xf] sm:$0x1]
        %v1796 = vlaneseq
        %v1797 = vshrl.u32 %v1796, 7
        %v1798 = vsub.s32 0, %v1797
        %v1799 = vrot.slane %v1794, %v1798
        %1800 = vrot.lane.b32.xlu0 %v1799, 87
        %v1801 = vpop.permute.xlu0 %1800
        %1803 = vst.msk [vmem:[%s1648 + $0xa] sm:$0x1] %vm754, %v1801
        %v1804 = vld [vmem:[#allocation3 + $0xe] sm:$0x1]
        %v1806 = vlaneseq
        %v1807 = vshrl.u32 %v1806, 7
        %v1808 = vsub.s32 0, %v1807
        %v1809 = vrot.slane %v1804, %v1808
        %1810 = vrot.lane.b32.xlu0 %v1809, 67
        %v1811 = vpop.permute.xlu0 %1810
        %s1813 = scalar_lea.vmem [#allocation2], 144
        %1814 = vst.msk [vmem:[%s1813 + $0x3] sm:$0x1] %vm754, %v1811
        %v1815 = vld [vmem:[#allocation3 + $0xf] sm:$0x1]
        %v1817 = vlaneseq
        %v1818 = vshrl.u32 %v1817, 7
        %v1819 = vsub.s32 0, %v1818
        %v1820 = vrot.slane %v1815, %v1819
        %1821 = vrot.lane.b32.xlu0 %v1820, 67
        %v1822 = vpop.permute.xlu0 %1821
        %s1824 = scalar_lea.vmem [#allocation2], 368
        %1825 = vst.msk [vmem:[%s1824 + $0x3] sm:$0x1] %vm754, %v1822
        %v1826 = vld [vmem:[#allocation3 + $0xe] sm:$0x1]
        %v1828 = vlaneseq
        %v1829 = vshrl.u32 %v1828, 7
        %v1830 = vsub.s32 0, %v1829
        %v1831 = vrot.slane %v1826, %v1830
        %1832 = vrot.lane.b32.xlu0 %v1831, 47
        %v1833 = vpop.permute.xlu0 %1832
        %1835 = vst.msk [vmem:[%s1813 + $0x4] sm:$0x1] %vm754, %v1833
        %v1836 = vld [vmem:[#allocation3 + $0xf] sm:$0x1]
        %v1838 = vlaneseq
        %v1839 = vshrl.u32 %v1838, 7
        %v1840 = vsub.s32 0, %v1839
        %v1841 = vrot.slane %v1836, %v1840
        %1842 = vrot.lane.b32.xlu0 %v1841, 47
        %v1843 = vpop.permute.xlu0 %1842
        %1845 = vst.msk [vmem:[%s1824 + $0x4] sm:$0x1] %vm754, %v1843
        %v1846 = vld [vmem:[#allocation3 + $0xe] sm:$0x1]
        %v1848 = vlaneseq
        %v1849 = vshrl.u32 %v1848, 7
        %v1850 = vsub.s32 0, %v1849
        %v1851 = vrot.slane %v1846, %v1850
        %1852 = vrot.lane.b32.xlu0 %v1851, 27
        %v1853 = vpop.permute.xlu0 %1852
        %1855 = vst.msk [vmem:[%s1813 + $0x5] sm:$0x1] %vm754, %v1853
        %v1856 = vld [vmem:[#allocation3 + $0xf] sm:$0x1]
        %v1858 = vlaneseq
        %v1859 = vshrl.u32 %v1858, 7
        %v1860 = vsub.s32 0, %v1859
        %v1861 = vrot.slane %v1856, %v1860
        %1862 = vrot.lane.b32.xlu0 %v1861, 27
        %v1863 = vpop.permute.xlu0 %1862
        %1865 = vst.msk [vmem:[%s1824 + $0x5] sm:$0x1] %vm754, %v1863
        %v1866 = vld [vmem:[#allocation3 + $0xe] sm:$0x5]
        %v1868 = vlaneseq
        %v1869 = vshrl.u32 %v1868, 7
        %v1870 = vsub.s32 0, %v1869
        %v1871 = vrot.slane %v1866, %v1870
        %v1872 = vlaneseq
        %v1873 = vshrl.u32 %v1872, 7
        %v1874 = vsub.s32 2, %v1873
        %v1875 = vrot.slane %v1866, %v1874
        %1876 = vrot.lane.b32.xlu0 %v1871, 7
        %v1877 = vpop.permute.xlu0 %1876
        %1878 = vrot.lane.b32.xlu0 %v1875, 7
        %v1879 = vpop.permute.xlu0 %1878
        %v1880 = vsel %vm1174, %v1877, %v1879
        %1882 = vst.msk [vmem:[%s1813 + $0x6] sm:$0x1] %vm754, %v1880
        %v1883 = vld [vmem:[#allocation3 + $0xf] sm:$0x5]
        %v1885 = vlaneseq
        %v1886 = vshrl.u32 %v1885, 7
        %v1887 = vsub.s32 0, %v1886
        %v1888 = vrot.slane %v1883, %v1887
        %v1889 = vlaneseq
        %v1890 = vshrl.u32 %v1889, 7
        %v1891 = vsub.s32 2, %v1890
        %v1892 = vrot.slane %v1883, %v1891
        %1893 = vrot.lane.b32.xlu0 %v1888, 7
        %v1894 = vpop.permute.xlu0 %1893
        %1895 = vrot.lane.b32.xlu0 %v1892, 7
        %v1896 = vpop.permute.xlu0 %1895
        %v1897 = vsel %vm1174, %v1894, %v1896
        %1899 = vst.msk [vmem:[%s1824 + $0x6] sm:$0x1] %vm754, %v1897
        %v1900 = vld [vmem:[#allocation3 + $0x10] sm:$0x1]
        %v1902 = vlaneseq
        %v1903 = vshrl.u32 %v1902, 7
        %v1904 = vsub.s32 0, %v1903
        %v1905 = vrot.slane %v1900, %v1904
        %1906 = vrot.lane.b32.xlu0 %v1905, 115
        %v1907 = vpop.permute.xlu0 %1906
        %1909 = vst.msk [vmem:[%s1813 + $0x7] sm:$0x1] %vm754, %v1907
        %v1910 = vld [vmem:[#allocation3 + $0x11] sm:$0x1]
        %v1912 = vlaneseq
        %v1913 = vshrl.u32 %v1912, 7
        %v1914 = vsub.s32 0, %v1913
        %v1915 = vrot.slane %v1910, %v1914
        %1916 = vrot.lane.b32.xlu0 %v1915, 115
        %v1917 = vpop.permute.xlu0 %1916
        %1919 = vst.msk [vmem:[%s1824 + $0x7] sm:$0x1] %vm754, %v1917
        %v1920 = vld [vmem:[#allocation3 + $0x10] sm:$0x1]
        %v1922 = vlaneseq
        %v1923 = vshrl.u32 %v1922, 7
        %v1924 = vsub.s32 0, %v1923
        %v1925 = vrot.slane %v1920, %v1924
        %1926 = vrot.lane.b32.xlu0 %v1925, 95
        %v1927 = vpop.permute.xlu0 %1926
        %1929 = vst.msk [vmem:[%s1813 + $0x8] sm:$0x1] %vm754, %v1927
        %v1930 = vld [vmem:[#allocation3 + $0x11] sm:$0x1]
        %v1932 = vlaneseq
        %v1933 = vshrl.u32 %v1932, 7
        %v1934 = vsub.s32 0, %v1933
        %v1935 = vrot.slane %v1930, %v1934
        %1936 = vrot.lane.b32.xlu0 %v1935, 95
        %v1937 = vpop.permute.xlu0 %1936
        %1939 = vst.msk [vmem:[%s1824 + $0x8] sm:$0x1] %vm754, %v1937
        %v1940 = vld [vmem:[#allocation3 + $0x10] sm:$0x1]
        %v1942 = vlaneseq
        %v1943 = vshrl.u32 %v1942, 7
        %v1944 = vsub.s32 0, %v1943
        %v1945 = vrot.slane %v1940, %v1944
        %1946 = vrot.lane.b32.xlu0 %v1945, 75
        %v1947 = vpop.permute.xlu0 %1946
        %1949 = vst.msk [vmem:[%s1813 + $0x9] sm:$0x1] %vm754, %v1947
        %v1950 = vld [vmem:[#allocation3 + $0x11] sm:$0x1]
        %v1952 = vlaneseq
        %v1953 = vshrl.u32 %v1952, 7
        %v1954 = vsub.s32 0, %v1953
        %v1955 = vrot.slane %v1950, %v1954
        %1956 = vrot.lane.b32.xlu0 %v1955, 75
        %v1957 = vpop.permute.xlu0 %1956
        %1959 = vst.msk [vmem:[%s1824 + $0x9] sm:$0x1] %vm754, %v1957
        %v1960 = vld [vmem:[#allocation3 + $0x10] sm:$0x1]
        %v1962 = vlaneseq
        %v1963 = vshrl.u32 %v1962, 7
        %v1964 = vsub.s32 0, %v1963
        %v1965 = vrot.slane %v1960, %v1964
        %1966 = vrot.lane.b32.xlu0 %v1965, 55
        %v1967 = vpop.permute.xlu0 %1966
        %1969 = vst.msk [vmem:[%s1813 + $0xa] sm:$0x1] %vm754, %v1967
        %v1970 = vld [vmem:[#allocation3 + $0x11] sm:$0x1]
        %v1972 = vlaneseq
        %v1973 = vshrl.u32 %v1972, 7
        %v1974 = vsub.s32 0, %v1973
        %v1975 = vrot.slane %v1970, %v1974
        %1976 = vrot.lane.b32.xlu0 %v1975, 55
        %v1977 = vpop.permute.xlu0 %1976
        %1979 = vst.msk [vmem:[%s1824 + $0xa] sm:$0x1] %vm754, %v1977
        %v1980 = vld [vmem:[#allocation3 + $0x10] sm:$0x1]
        %v1982 = vlaneseq
        %v1983 = vshrl.u32 %v1982, 7
        %v1984 = vsub.s32 0, %v1983
        %v1985 = vrot.slane %v1980, %v1984
        %1986 = vrot.lane.b32.xlu0 %v1985, 35
        %v1987 = vpop.permute.xlu0 %1986
        %s1989 = scalar_lea.vmem [#allocation2], 160
        %1990 = vst.msk [vmem:[%s1989 + $0x3] sm:$0x1] %vm754, %v1987
        %v1991 = vld [vmem:[#allocation3 + $0x11] sm:$0x1]
        %v1993 = vlaneseq
        %v1994 = vshrl.u32 %v1993, 7
        %v1995 = vsub.s32 0, %v1994
        %v1996 = vrot.slane %v1991, %v1995
        %1997 = vrot.lane.b32.xlu0 %v1996, 35
        %v1998 = vpop.permute.xlu0 %1997
        %s2000 = scalar_lea.vmem [#allocation2], 384
        %2001 = vst.msk [vmem:[%s2000 + $0x3] sm:$0x1] %vm754, %v1998
        %v2002 = vld [vmem:[#allocation3 + $0x10] sm:$0x5]
        %v2004 = vlaneseq
        %v2005 = vshrl.u32 %v2004, 7
        %v2006 = vsub.s32 0, %v2005
        %v2007 = vrot.slane %v2002, %v2006
        %v2008 = vlaneseq
        %v2009 = vshrl.u32 %v2008, 7
        %v2010 = vsub.s32 2, %v2009
        %v2011 = vrot.slane %v2002, %v2010
        %2012 = vrot.lane.b32.xlu0 %v2007, 15
        %v2013 = vpop.permute.xlu0 %2012
        %2014 = vrot.lane.b32.xlu0 %v2011, 15
        %v2015 = vpop.permute.xlu0 %2014
        %v2016 = vsel %vm1311, %v2013, %v2015
        %2018 = vst.msk [vmem:[%s1989 + $0x4] sm:$0x1] %vm754, %v2016
        %v2019 = vld [vmem:[#allocation3 + $0x11] sm:$0x5]
        %v2021 = vlaneseq
        %v2022 = vshrl.u32 %v2021, 7
        %v2023 = vsub.s32 0, %v2022
        %v2024 = vrot.slane %v2019, %v2023
        %v2025 = vlaneseq
        %v2026 = vshrl.u32 %v2025, 7
        %v2027 = vsub.s32 2, %v2026
        %v2028 = vrot.slane %v2019, %v2027
        %2029 = vrot.lane.b32.xlu0 %v2024, 15
        %v2030 = vpop.permute.xlu0 %2029
        %2031 = vrot.lane.b32.xlu0 %v2028, 15
        %v2032 = vpop.permute.xlu0 %2031
        %v2033 = vsel %vm1311, %v2030, %v2032
        %2035 = vst.msk [vmem:[%s2000 + $0x4] sm:$0x1] %vm754, %v2033
        %v2036 = vld [vmem:[#allocation3 + $0x12] sm:$0x1]
        %v2038 = vlaneseq
        %v2039 = vshrl.u32 %v2038, 7
        %v2040 = vsub.s32 0, %v2039
        %v2041 = vrot.slane %v2036, %v2040
        %2042 = vrot.lane.b32.xlu0 %v2041, 123
        %v2043 = vpop.permute.xlu0 %2042
        %2045 = vst.msk [vmem:[%s1989 + $0x5] sm:$0x1] %vm754, %v2043
        %v2046 = vld [vmem:[#allocation3 + $0x13] sm:$0x1]
        %v2048 = vlaneseq
        %v2049 = vshrl.u32 %v2048, 7
        %v2050 = vsub.s32 0, %v2049
        %v2051 = vrot.slane %v2046, %v2050
        %2052 = vrot.lane.b32.xlu0 %v2051, 123
        %v2053 = vpop.permute.xlu0 %2052
        %2055 = vst.msk [vmem:[%s2000 + $0x5] sm:$0x1] %vm754, %v2053
        %v2056 = vld [vmem:[#allocation3 + $0x12] sm:$0x1]
        %v2058 = vlaneseq
        %v2059 = vshrl.u32 %v2058, 7
        %v2060 = vsub.s32 0, %v2059
        %v2061 = vrot.slane %v2056, %v2060
        %2062 = vrot.lane.b32.xlu0 %v2061, 103
        %v2063 = vpop.permute.xlu0 %2062
        %2065 = vst.msk [vmem:[%s1989 + $0x6] sm:$0x1] %vm754, %v2063
        %v2066 = vld [vmem:[#allocation3 + $0x13] sm:$0x1]
        %v2068 = vlaneseq
        %v2069 = vshrl.u32 %v2068, 7
        %v2070 = vsub.s32 0, %v2069
        %v2071 = vrot.slane %v2066, %v2070
        %2072 = vrot.lane.b32.xlu0 %v2071, 103
        %v2073 = vpop.permute.xlu0 %2072
        %2075 = vst.msk [vmem:[%s2000 + $0x6] sm:$0x1] %vm754, %v2073
        %v2076 = vld [vmem:[#allocation3 + $0x12] sm:$0x1]
        %v2078 = vlaneseq
        %v2079 = vshrl.u32 %v2078, 7
        %v2080 = vsub.s32 0, %v2079
        %v2081 = vrot.slane %v2076, %v2080
        %2082 = vrot.lane.b32.xlu0 %v2081, 83
        %v2083 = vpop.permute.xlu0 %2082
        %2085 = vst.msk [vmem:[%s1989 + $0x7] sm:$0x1] %vm754, %v2083
        %v2086 = vld [vmem:[#allocation3 + $0x13] sm:$0x1]
        %v2088 = vlaneseq
        %v2089 = vshrl.u32 %v2088, 7
        %v2090 = vsub.s32 0, %v2089
        %v2091 = vrot.slane %v2086, %v2090
        %2092 = vrot.lane.b32.xlu0 %v2091, 83
        %v2093 = vpop.permute.xlu0 %2092
        %2095 = vst.msk [vmem:[%s2000 + $0x7] sm:$0x1] %vm754, %v2093
        %v2096 = vld [vmem:[#allocation3 + $0x12] sm:$0x1]
        %v2098 = vlaneseq
        %v2099 = vshrl.u32 %v2098, 7
        %v2100 = vsub.s32 0, %v2099
        %v2101 = vrot.slane %v2096, %v2100
        %2102 = vrot.lane.b32.xlu0 %v2101, 63
        %v2103 = vpop.permute.xlu0 %2102
        %2105 = vst.msk [vmem:[%s1989 + $0x8] sm:$0x1] %vm754, %v2103
        %v2106 = vld [vmem:[#allocation3 + $0x13] sm:$0x1]
        %v2108 = vlaneseq
        %v2109 = vshrl.u32 %v2108, 7
        %v2110 = vsub.s32 0, %v2109
        %v2111 = vrot.slane %v2106, %v2110
        %2112 = vrot.lane.b32.xlu0 %v2111, 63
        %v2113 = vpop.permute.xlu0 %2112
        %2115 = vst.msk [vmem:[%s2000 + $0x8] sm:$0x1] %vm754, %v2113
        %v2116 = vld [vmem:[#allocation3 + $0x12] sm:$0x1]
        %v2118 = vlaneseq
        %v2119 = vshrl.u32 %v2118, 7
        %v2120 = vsub.s32 0, %v2119
        %v2121 = vrot.slane %v2116, %v2120
        %2122 = vrot.lane.b32.xlu0 %v2121, 43
        %v2123 = vpop.permute.xlu0 %2122
        %2125 = vst.msk [vmem:[%s1989 + $0x9] sm:$0x1] %vm754, %v2123
        %v2126 = vld [vmem:[#allocation3 + $0x13] sm:$0x1]
        %v2128 = vlaneseq
        %v2129 = vshrl.u32 %v2128, 7
        %v2130 = vsub.s32 0, %v2129
        %v2131 = vrot.slane %v2126, %v2130
        %2132 = vrot.lane.b32.xlu0 %v2131, 43
        %v2133 = vpop.permute.xlu0 %2132
        %2135 = vst.msk [vmem:[%s2000 + $0x9] sm:$0x1] %vm754, %v2133
        %v2136 = vld [vmem:[#allocation3 + $0x12] sm:$0x1]
        %v2138 = vlaneseq
        %v2139 = vshrl.u32 %v2138, 7
        %v2140 = vsub.s32 0, %v2139
        %v2141 = vrot.slane %v2136, %v2140
        %2142 = vrot.lane.b32.xlu0 %v2141, 23
        %v2143 = vpop.permute.xlu0 %2142
        %2145 = vst.msk [vmem:[%s1989 + $0xa] sm:$0x1] %vm754, %v2143
        %v2146 = vld [vmem:[#allocation3 + $0x13] sm:$0x1]
        %v2148 = vlaneseq
        %v2149 = vshrl.u32 %v2148, 7
        %v2150 = vsub.s32 0, %v2149
        %v2151 = vrot.slane %v2146, %v2150
        %2152 = vrot.lane.b32.xlu0 %v2151, 23
        %v2153 = vpop.permute.xlu0 %2152
        %2155 = vst.msk [vmem:[%s2000 + $0xa] sm:$0x1] %vm754, %v2153
        loop: start=0, step=1, limit=8
        $region37: #{tpu_custom_call.1} parent=31 // loop_pre_header
          _
        $region38: #{tpu_custom_call.1} parent=31 // loop_header
          %s2157 = sphi 0, %s2161
          %p2158 = scmp.ge.s32.totalorder %s2157, 8
        $region39: #{tpu_custom_call.1} parent=31 // loop_header_branch
          %2160 = sbr.rel (%p2158) target = $region43
        $region40: #{tpu_custom_call.1} parent=31 // loop_body
          loop: start=0, step=1, limit=7
          $region44: #{tpu_custom_call.1} parent=40 // loop_pre_header
            _
          $region45: #{tpu_custom_call.1} parent=40 // loop_header
            %s2163 = sphi 0, %s2167
            %p2164 = scmp.ge.s32.totalorder %s2163, 7
            %v2168 = vphi 0.0, %v2748
          $region46: #{tpu_custom_call.1} parent=40 // loop_header_branch
            %2166 = sbr.rel (%p2164) target = $region50
          $region47: #{tpu_custom_call.1} parent=40 // loop_body
            %s2169 = sadd.s32 %s2157, %s2163
            %s2170 = smul.u32 %s2169, 16
            %s2171 = scalar_lea.vmem [#allocation2], %s2170
            %v2172 = vld [vmem:[%s2171] sm:$0xff]
            %v2173 = vld [vmem:[%s2171 + $0x8] sm:$0x3f]
            %s2174 = smul.u32 %s2163, 49
            %s2175 = sld [smem:[#allocation7 + %s2174]]
            %v2176 = vstv %s2175
            %v2177 = vmul.f32 %v2176, %v2172
            %v2178 = vadd.f32 %v2168, %v2177
            %s2179 = smul.u32 %s2163, 7
            %s2180 = sadd.s32 %s2179, 1
            %s2181 = smul.u32 %s2180, 7
            %s2182 = sld [smem:[#allocation7 + %s2181]]
            %v2183 = vstv %s2182
            %v2184 = vmul.f32 %v2183, %v2172
            %v2185 = vmul.f32 %v2183, %v2173
            %vm2188 = vcmask 1046528
            %v2189 = vrot.slane %v2184, 1
            %v2190 = vrot.slane %v2185, 1
            %v2191 = vsel %vm2188, %v2189, %v2190
            %v2193 = vadd.f32 %v2178, %v2191
            %s2194 = sadd.s32 %s2179, 2
            %s2195 = smul.u32 %s2194, 7
            %s2196 = sld [smem:[#allocation7 + %s2195]]
            %v2197 = vstv %s2196
            %v2198 = vmul.f32 %v2197, %v2172
            %v2199 = vmul.f32 %v2197, %v2173
            %vm2202 = vcmask 1045504
            %v2203 = vrot.slane %v2198, 2
            %v2204 = vrot.slane %v2199, 2
            %v2205 = vsel %vm2202, %v2203, %v2204
            %v2207 = vadd.f32 %v2193, %v2205
            %s2208 = sadd.s32 %s2179, 3
            %s2209 = smul.u32 %s2208, 7
            %s2210 = sld [smem:[#allocation7 + %s2209]]
            %v2211 = vstv %s2210
            %v2212 = vmul.f32 %v2211, %v2172
            %v2213 = vmul.f32 %v2211, %v2173
            %vm2216 = vcmask 1044480
            %v2217 = vrot.slane %v2212, 3
            %v2218 = vrot.slane %v2213, 3
            %v2219 = vsel %vm2216, %v2217, %v2218
            %v2221 = vadd.f32 %v2207, %v2219
            %s2222 = sadd.s32 %s2179, 4
            %s2223 = smul.u32 %s2222, 7
            %s2224 = sld [smem:[#allocation7 + %s2223]]
            %v2225 = vstv %s2224
            %v2226 = vmul.f32 %v2225, %v2172
            %v2227 = vmul.f32 %v2225, %v2173
            %v2230 = vrot.slane %v2226, 4
            %v2231 = vrot.slane %v2227, 4
            %v2232 = vsel %vm393, %v2230, %v2231
            %v2234 = vadd.f32 %v2221, %v2232
            %s2235 = sadd.s32 %s2179, 5
            %s2236 = smul.u32 %s2235, 7
            %s2237 = sld [smem:[#allocation7 + %s2236]]
            %v2238 = vstv %s2237
            %v2239 = vmul.f32 %v2238, %v2172
            %v2240 = vmul.f32 %v2238, %v2173
            %vm2243 = vcmask 1042432
            %v2244 = vrot.slane %v2239, 5
            %v2245 = vrot.slane %v2240, 5
            %v2246 = vsel %vm2243, %v2244, %v2245
            %v2248 = vadd.f32 %v2234, %v2246
            %s2249 = sadd.s32 %s2179, 6
            %s2250 = smul.u32 %s2249, 7
            %s2251 = sld [smem:[#allocation7 + %s2250]]
            %v2252 = vstv %s2251
            %v2253 = vmul.f32 %v2252, %v2172
            %v2254 = vmul.f32 %v2252, %v2173
            %vm2257 = vcmask 1041408
            %v2258 = vrot.slane %v2253, 6
            %v2259 = vrot.slane %v2254, 6
            %v2260 = vsel %vm2257, %v2258, %v2259
            %v2262 = vadd.f32 %v2248, %v2260
            %2263 = vrot.lane.b32.xlu0 %v2172, 127
            %v2264 = vpop.permute.xlu0 %2263
            %2265 = vrot.lane.b32.xlu0 %v2173, 127
            %v2266 = vpop.permute.xlu0 %2265
            %s2267 = sadd.s32 %s2174, 1
            %s2268 = sld [smem:[#allocation7 + %s2267]]
            %v2269 = vstv %s2268
            %v2270 = vmul.f32 %v2269, %v2264
            %v2271 = vadd.f32 %v2262, %v2270
            %s2272 = sadd.s32 %s2181, 1
            %s2273 = sld [smem:[#allocation7 + %s2272]]
            %v2274 = vstv %s2273
            %v2275 = vmul.f32 %v2274, %v2264
            %v2276 = vmul.f32 %v2274, %v2266
            %v2279 = vrot.slane %v2275, 1
            %v2280 = vrot.slane %v2276, 1
            %v2281 = vsel %vm2188, %v2279, %v2280
            %v2283 = vadd.f32 %v2271, %v2281
            %s2284 = sadd.s32 %s2195, 1
            %s2285 = sld [smem:[#allocation7 + %s2284]]
            %v2286 = vstv %s2285
            %v2287 = vmul.f32 %v2286, %v2264
            %v2288 = vmul.f32 %v2286, %v2266
            %v2291 = vrot.slane %v2287, 2
            %v2292 = vrot.slane %v2288, 2
            %v2293 = vsel %vm2202, %v2291, %v2292
            %v2295 = vadd.f32 %v2283, %v2293
            %s2296 = sadd.s32 %s2209, 1
            %s2297 = sld [smem:[#allocation7 + %s2296]]
            %v2298 = vstv %s2297
            %v2299 = vmul.f32 %v2298, %v2264
            %v2300 = vmul.f32 %v2298, %v2266
            %v2303 = vrot.slane %v2299, 3
            %v2304 = vrot.slane %v2300, 3
            %v2305 = vsel %vm2216, %v2303, %v2304
            %v2307 = vadd.f32 %v2295, %v2305
            %s2308 = sadd.s32 %s2223, 1
            %s2309 = sld [smem:[#allocation7 + %s2308]]
            %v2310 = vstv %s2309
            %v2311 = vmul.f32 %v2310, %v2264
            %v2312 = vmul.f32 %v2310, %v2266
            %v2315 = vrot.slane %v2311, 4
            %v2316 = vrot.slane %v2312, 4
            %v2317 = vsel %vm393, %v2315, %v2316
            %v2319 = vadd.f32 %v2307, %v2317
            %s2320 = sadd.s32 %s2236, 1
            %s2321 = sld [smem:[#allocation7 + %s2320]]
            %v2322 = vstv %s2321
            %v2323 = vmul.f32 %v2322, %v2264
            %v2324 = vmul.f32 %v2322, %v2266
            %v2327 = vrot.slane %v2323, 5
            %v2328 = vrot.slane %v2324, 5
            %v2329 = vsel %vm2243, %v2327, %v2328
            %v2331 = vadd.f32 %v2319, %v2329
            %s2332 = sadd.s32 %s2250, 1
            %s2333 = sld [smem:[#allocation7 + %s2332]]
            %v2334 = vstv %s2333
            %v2335 = vmul.f32 %v2334, %v2264
            %v2336 = vmul.f32 %v2334, %v2266
            %v2339 = vrot.slane %v2335, 6
            %v2340 = vrot.slane %v2336, 6
            %v2341 = vsel %vm2257, %v2339, %v2340
            %v2343 = vadd.f32 %v2331, %v2341
            %2344 = vrot.lane.b32.xlu0 %v2172, 126
            %v2345 = vpop.permute.xlu0 %2344
            %2346 = vrot.lane.b32.xlu0 %v2173, 126
            %v2347 = vpop.permute.xlu0 %2346
            %s2348 = sadd.s32 %s2174, 2
            %s2349 = sld [smem:[#allocation7 + %s2348]]
            %v2350 = vstv %s2349
            %v2351 = vmul.f32 %v2350, %v2345
            %v2352 = vadd.f32 %v2343, %v2351
            %s2353 = sadd.s32 %s2181, 2
            %s2354 = sld [smem:[#allocation7 + %s2353]]
            %v2355 = vstv %s2354
            %v2356 = vmul.f32 %v2355, %v2345
            %v2357 = vmul.f32 %v2355, %v2347
            %v2360 = vrot.slane %v2356, 1
            %v2361 = vrot.slane %v2357, 1
            %v2362 = vsel %vm2188, %v2360, %v2361
            %v2364 = vadd.f32 %v2352, %v2362
            %s2365 = sadd.s32 %s2195, 2
            %s2366 = sld [smem:[#allocation7 + %s2365]]
            %v2367 = vstv %s2366
            %v2368 = vmul.f32 %v2367, %v2345
            %v2369 = vmul.f32 %v2367, %v2347
            %v2372 = vrot.slane %v2368, 2
            %v2373 = vrot.slane %v2369, 2
            %v2374 = vsel %vm2202, %v2372, %v2373
            %v2376 = vadd.f32 %v2364, %v2374
            %s2377 = sadd.s32 %s2209, 2
            %s2378 = sld [smem:[#allocation7 + %s2377]]
            %v2379 = vstv %s2378
            %v2380 = vmul.f32 %v2379, %v2345
            %v2381 = vmul.f32 %v2379, %v2347
            %v2384 = vrot.slane %v2380, 3
            %v2385 = vrot.slane %v2381, 3
            %v2386 = vsel %vm2216, %v2384, %v2385
            %v2388 = vadd.f32 %v2376, %v2386
            %s2389 = sadd.s32 %s2223, 2
            %s2390 = sld [smem:[#allocation7 + %s2389]]
            %v2391 = vstv %s2390
            %v2392 = vmul.f32 %v2391, %v2345
            %v2393 = vmul.f32 %v2391, %v2347
            %v2396 = vrot.slane %v2392, 4
            %v2397 = vrot.slane %v2393, 4
            %v2398 = vsel %vm393, %v2396, %v2397
            %v2400 = vadd.f32 %v2388, %v2398
            %s2401 = sadd.s32 %s2236, 2
            %s2402 = sld [smem:[#allocation7 + %s2401]]
            %v2403 = vstv %s2402
            %v2404 = vmul.f32 %v2403, %v2345
            %v2405 = vmul.f32 %v2403, %v2347
            %v2408 = vrot.slane %v2404, 5
            %v2409 = vrot.slane %v2405, 5
            %v2410 = vsel %vm2243, %v2408, %v2409
            %v2412 = vadd.f32 %v2400, %v2410
            %s2413 = sadd.s32 %s2250, 2
            %s2414 = sld [smem:[#allocation7 + %s2413]]
            %v2415 = vstv %s2414
            %v2416 = vmul.f32 %v2415, %v2345
            %v2417 = vmul.f32 %v2415, %v2347
            %v2420 = vrot.slane %v2416, 6
            %v2421 = vrot.slane %v2417, 6
            %v2422 = vsel %vm2257, %v2420, %v2421
            %v2424 = vadd.f32 %v2412, %v2422
            %2425 = vrot.lane.b32.xlu0 %v2172, 125
            %v2426 = vpop.permute.xlu0 %2425
            %2427 = vrot.lane.b32.xlu0 %v2173, 125
            %v2428 = vpop.permute.xlu0 %2427
            %s2429 = sadd.s32 %s2174, 3
            %s2430 = sld [smem:[#allocation7 + %s2429]]
            %v2431 = vstv %s2430
            %v2432 = vmul.f32 %v2431, %v2426
            %v2433 = vadd.f32 %v2424, %v2432
            %s2434 = sadd.s32 %s2181, 3
            %s2435 = sld [smem:[#allocation7 + %s2434]]
            %v2436 = vstv %s2435
            %v2437 = vmul.f32 %v2436, %v2426
            %v2438 = vmul.f32 %v2436, %v2428
            %v2441 = vrot.slane %v2437, 1
            %v2442 = vrot.slane %v2438, 1
            %v2443 = vsel %vm2188, %v2441, %v2442
            %v2445 = vadd.f32 %v2433, %v2443
            %s2446 = sadd.s32 %s2195, 3
            %s2447 = sld [smem:[#allocation7 + %s2446]]
            %v2448 = vstv %s2447
            %v2449 = vmul.f32 %v2448, %v2426
            %v2450 = vmul.f32 %v2448, %v2428
            %v2453 = vrot.slane %v2449, 2
            %v2454 = vrot.slane %v2450, 2
            %v2455 = vsel %vm2202, %v2453, %v2454
            %v2457 = vadd.f32 %v2445, %v2455
            %s2458 = sadd.s32 %s2209, 3
            %s2459 = sld [smem:[#allocation7 + %s2458]]
            %v2460 = vstv %s2459
            %v2461 = vmul.f32 %v2460, %v2426
            %v2462 = vmul.f32 %v2460, %v2428
            %v2465 = vrot.slane %v2461, 3
            %v2466 = vrot.slane %v2462, 3
            %v2467 = vsel %vm2216, %v2465, %v2466
            %v2469 = vadd.f32 %v2457, %v2467
            %s2470 = sadd.s32 %s2223, 3
            %s2471 = sld [smem:[#allocation7 + %s2470]]
            %v2472 = vstv %s2471
            %v2473 = vmul.f32 %v2472, %v2426
            %v2474 = vmul.f32 %v2472, %v2428
            %v2477 = vrot.slane %v2473, 4
            %v2478 = vrot.slane %v2474, 4
            %v2479 = vsel %vm393, %v2477, %v2478
            %v2481 = vadd.f32 %v2469, %v2479
            %s2482 = sadd.s32 %s2236, 3
            %s2483 = sld [smem:[#allocation7 + %s2482]]
            %v2484 = vstv %s2483
            %v2485 = vmul.f32 %v2484, %v2426
            %v2486 = vmul.f32 %v2484, %v2428
            %v2489 = vrot.slane %v2485, 5
            %v2490 = vrot.slane %v2486, 5
            %v2491 = vsel %vm2243, %v2489, %v2490
            %v2493 = vadd.f32 %v2481, %v2491
            %s2494 = sadd.s32 %s2250, 3
            %s2495 = sld [smem:[#allocation7 + %s2494]]
            %v2496 = vstv %s2495
            %v2497 = vmul.f32 %v2496, %v2426
            %v2498 = vmul.f32 %v2496, %v2428
            %v2501 = vrot.slane %v2497, 6
            %v2502 = vrot.slane %v2498, 6
            %v2503 = vsel %vm2257, %v2501, %v2502
            %v2505 = vadd.f32 %v2493, %v2503
            %2506 = vrot.lane.b32.xlu0 %v2172, 124
            %v2507 = vpop.permute.xlu0 %2506
            %2508 = vrot.lane.b32.xlu0 %v2173, 124
            %v2509 = vpop.permute.xlu0 %2508
            %s2510 = sadd.s32 %s2174, 4
            %s2511 = sld [smem:[#allocation7 + %s2510]]
            %v2512 = vstv %s2511
            %v2513 = vmul.f32 %v2512, %v2507
            %v2514 = vadd.f32 %v2505, %v2513
            %s2515 = sadd.s32 %s2181, 4
            %s2516 = sld [smem:[#allocation7 + %s2515]]
            %v2517 = vstv %s2516
            %v2518 = vmul.f32 %v2517, %v2507
            %v2519 = vmul.f32 %v2517, %v2509
            %v2522 = vrot.slane %v2518, 1
            %v2523 = vrot.slane %v2519, 1
            %v2524 = vsel %vm2188, %v2522, %v2523
            %v2526 = vadd.f32 %v2514, %v2524
            %s2527 = sadd.s32 %s2195, 4
            %s2528 = sld [smem:[#allocation7 + %s2527]]
            %v2529 = vstv %s2528
            %v2530 = vmul.f32 %v2529, %v2507
            %v2531 = vmul.f32 %v2529, %v2509
            %v2534 = vrot.slane %v2530, 2
            %v2535 = vrot.slane %v2531, 2
            %v2536 = vsel %vm2202, %v2534, %v2535
            %v2538 = vadd.f32 %v2526, %v2536
            %s2539 = sadd.s32 %s2209, 4
            %s2540 = sld [smem:[#allocation7 + %s2539]]
            %v2541 = vstv %s2540
            %v2542 = vmul.f32 %v2541, %v2507
            %v2543 = vmul.f32 %v2541, %v2509
            %v2546 = vrot.slane %v2542, 3
            %v2547 = vrot.slane %v2543, 3
            %v2548 = vsel %vm2216, %v2546, %v2547
            %v2550 = vadd.f32 %v2538, %v2548
            %s2551 = sadd.s32 %s2223, 4
            %s2552 = sld [smem:[#allocation7 + %s2551]]
            %v2553 = vstv %s2552
            %v2554 = vmul.f32 %v2553, %v2507
            %v2555 = vmul.f32 %v2553, %v2509
            %v2558 = vrot.slane %v2554, 4
            %v2559 = vrot.slane %v2555, 4
            %v2560 = vsel %vm393, %v2558, %v2559
            %v2562 = vadd.f32 %v2550, %v2560
            %s2563 = sadd.s32 %s2236, 4
            %s2564 = sld [smem:[#allocation7 + %s2563]]
            %v2565 = vstv %s2564
            %v2566 = vmul.f32 %v2565, %v2507
            %v2567 = vmul.f32 %v2565, %v2509
            %v2570 = vrot.slane %v2566, 5
            %v2571 = vrot.slane %v2567, 5
            %v2572 = vsel %vm2243, %v2570, %v2571
            %v2574 = vadd.f32 %v2562, %v2572
            %s2575 = sadd.s32 %s2250, 4
            %s2576 = sld [smem:[#allocation7 + %s2575]]
            %v2577 = vstv %s2576
            %v2578 = vmul.f32 %v2577, %v2507
            %v2579 = vmul.f32 %v2577, %v2509
            %v2582 = vrot.slane %v2578, 6
            %v2583 = vrot.slane %v2579, 6
            %v2584 = vsel %vm2257, %v2582, %v2583
            %v2586 = vadd.f32 %v2574, %v2584
            %2587 = vrot.lane.b32.xlu0 %v2172, 123
            %v2588 = vpop.permute.xlu0 %2587
            %2589 = vrot.lane.b32.xlu0 %v2173, 123
            %v2590 = vpop.permute.xlu0 %2589
            %s2591 = sadd.s32 %s2174, 5
            %s2592 = sld [smem:[#allocation7 + %s2591]]
            %v2593 = vstv %s2592
            %v2594 = vmul.f32 %v2593, %v2588
            %v2595 = vadd.f32 %v2586, %v2594
            %s2596 = sadd.s32 %s2181, 5
            %s2597 = sld [smem:[#allocation7 + %s2596]]
            %v2598 = vstv %s2597
            %v2599 = vmul.f32 %v2598, %v2588
            %v2600 = vmul.f32 %v2598, %v2590
            %v2603 = vrot.slane %v2599, 1
            %v2604 = vrot.slane %v2600, 1
            %v2605 = vsel %vm2188, %v2603, %v2604
            %v2607 = vadd.f32 %v2595, %v2605
            %s2608 = sadd.s32 %s2195, 5
            %s2609 = sld [smem:[#allocation7 + %s2608]]
            %v2610 = vstv %s2609
            %v2611 = vmul.f32 %v2610, %v2588
            %v2612 = vmul.f32 %v2610, %v2590
            %v2615 = vrot.slane %v2611, 2
            %v2616 = vrot.slane %v2612, 2
            %v2617 = vsel %vm2202, %v2615, %v2616
            %v2619 = vadd.f32 %v2607, %v2617
            %s2620 = sadd.s32 %s2209, 5
            %s2621 = sld [smem:[#allocation7 + %s2620]]
            %v2622 = vstv %s2621
            %v2623 = vmul.f32 %v2622, %v2588
            %v2624 = vmul.f32 %v2622, %v2590
            %v2627 = vrot.slane %v2623, 3
            %v2628 = vrot.slane %v2624, 3
            %v2629 = vsel %vm2216, %v2627, %v2628
            %v2631 = vadd.f32 %v2619, %v2629
            %s2632 = sadd.s32 %s2223, 5
            %s2633 = sld [smem:[#allocation7 + %s2632]]
            %v2634 = vstv %s2633
            %v2635 = vmul.f32 %v2634, %v2588
            %v2636 = vmul.f32 %v2634, %v2590
            %v2639 = vrot.slane %v2635, 4
            %v2640 = vrot.slane %v2636, 4
            %v2641 = vsel %vm393, %v2639, %v2640
            %v2643 = vadd.f32 %v2631, %v2641
            %s2644 = sadd.s32 %s2236, 5
            %s2645 = sld [smem:[#allocation7 + %s2644]]
            %v2646 = vstv %s2645
            %v2647 = vmul.f32 %v2646, %v2588
            %v2648 = vmul.f32 %v2646, %v2590
            %v2651 = vrot.slane %v2647, 5
            %v2652 = vrot.slane %v2648, 5
            %v2653 = vsel %vm2243, %v2651, %v2652
            %v2655 = vadd.f32 %v2643, %v2653
            %s2656 = sadd.s32 %s2250, 5
            %s2657 = sld [smem:[#allocation7 + %s2656]]
            %v2658 = vstv %s2657
            %v2659 = vmul.f32 %v2658, %v2588
            %v2660 = vmul.f32 %v2658, %v2590
            %v2663 = vrot.slane %v2659, 6
            %v2664 = vrot.slane %v2660, 6
            %v2665 = vsel %vm2257, %v2663, %v2664
            %v2667 = vadd.f32 %v2655, %v2665
            %2668 = vrot.lane.b32.xlu0 %v2172, 122
            %v2669 = vpop.permute.xlu0 %2668
            %2670 = vrot.lane.b32.xlu0 %v2173, 122
            %v2671 = vpop.permute.xlu0 %2670
            %s2672 = sadd.s32 %s2174, 6
            %s2673 = sld [smem:[#allocation7 + %s2672]]
            %v2674 = vstv %s2673
            %v2675 = vmul.f32 %v2674, %v2669
            %v2676 = vadd.f32 %v2667, %v2675
            %s2677 = sadd.s32 %s2181, 6
            %s2678 = sld [smem:[#allocation7 + %s2677]]
            %v2679 = vstv %s2678
            %v2680 = vmul.f32 %v2679, %v2669
            %v2681 = vmul.f32 %v2679, %v2671
            %v2684 = vrot.slane %v2680, 1
            %v2685 = vrot.slane %v2681, 1
            %v2686 = vsel %vm2188, %v2684, %v2685
            %v2688 = vadd.f32 %v2676, %v2686
            %s2689 = sadd.s32 %s2195, 6
            %s2690 = sld [smem:[#allocation7 + %s2689]]
            %v2691 = vstv %s2690
            %v2692 = vmul.f32 %v2691, %v2669
            %v2693 = vmul.f32 %v2691, %v2671
            %v2696 = vrot.slane %v2692, 2
            %v2697 = vrot.slane %v2693, 2
            %v2698 = vsel %vm2202, %v2696, %v2697
            %v2700 = vadd.f32 %v2688, %v2698
            %s2701 = sadd.s32 %s2209, 6
            %s2702 = sld [smem:[#allocation7 + %s2701]]
            %v2703 = vstv %s2702
            %v2704 = vmul.f32 %v2703, %v2669
            %v2705 = vmul.f32 %v2703, %v2671
            %v2708 = vrot.slane %v2704, 3
            %v2709 = vrot.slane %v2705, 3
            %v2710 = vsel %vm2216, %v2708, %v2709
            %v2712 = vadd.f32 %v2700, %v2710
            %s2713 = sadd.s32 %s2223, 6
            %s2714 = sld [smem:[#allocation7 + %s2713]]
            %v2715 = vstv %s2714
            %v2716 = vmul.f32 %v2715, %v2669
            %v2717 = vmul.f32 %v2715, %v2671
            %v2720 = vrot.slane %v2716, 4
            %v2721 = vrot.slane %v2717, 4
            %v2722 = vsel %vm393, %v2720, %v2721
            %v2724 = vadd.f32 %v2712, %v2722
            %s2725 = sadd.s32 %s2236, 6
            %s2726 = sld [smem:[#allocation7 + %s2725]]
            %v2727 = vstv %s2726
            %v2728 = vmul.f32 %v2727, %v2669
            %v2729 = vmul.f32 %v2727, %v2671
            %v2732 = vrot.slane %v2728, 5
            %v2733 = vrot.slane %v2729, 5
            %v2734 = vsel %vm2243, %v2732, %v2733
            %v2736 = vadd.f32 %v2724, %v2734
            %s2737 = sadd.s32 %s2250, 6
            %s2738 = sld [smem:[#allocation7 + %s2737]]
            %v2739 = vstv %s2738
            %v2740 = vmul.f32 %v2739, %v2669
            %v2741 = vmul.f32 %v2739, %v2671
            %v2744 = vrot.slane %v2740, 6
            %v2745 = vrot.slane %v2741, 6
            %v2746 = vsel %vm2257, %v2744, %v2745
            %v2748 = vadd.f32 %v2736, %v2746
          $region48: #{tpu_custom_call.1} parent=40 // loop_footer
            %s2167 = sadd.s32 1, %s2163
          $region49: #{tpu_custom_call.1} parent=40 // loop_footer_branch
            %2162 = sbr.rel target = $region45
          $region50: #{tpu_custom_call.1} parent=40 // loop_exit
            _
          loop: start=0, step=1, limit=7
          $region51: #{tpu_custom_call.1} parent=40 // loop_pre_header
            _
          $region52: #{tpu_custom_call.1} parent=40 // loop_header
            %s2750 = sphi 0, %s2754
            %p2751 = scmp.ge.s32.totalorder %s2750, 7
            %v2755 = vphi %v2168, %v3343
          $region53: #{tpu_custom_call.1} parent=40 // loop_header_branch
            %2753 = sbr.rel (%p2751) target = $region57
          $region54: #{tpu_custom_call.1} parent=40 // loop_body
            %s2756 = sadd.s32 %s2157, %s2750
            %s2757 = smul.u32 %s2756, 16
            %s2758 = sadd.s32 %s2757, 224
            %s2759 = scalar_lea.vmem [#allocation2], %s2758
            %v2760 = vld [vmem:[%s2759] sm:$0xff]
            %v2761 = vld [vmem:[%s2759 + $0x8] sm:$0x3f]
            %s2762 = smul.u32 %s2750, 49
            %s2763 = sadd.s32 %s2762, 343
            %s2764 = sld [smem:[#allocation7 + %s2763]]
            %v2765 = vstv %s2764
            %v2766 = vmul.f32 %v2765, %v2760
            %v2767 = vadd.f32 %v2755, %v2766
            %s2768 = smul.u32 %s2750, 7
            %s2769 = sadd.s32 %s2768, 1
            %s2770 = smul.u32 %s2769, 7
            %s2771 = sadd.s32 %s2770, 343
            %s2772 = sld [smem:[#allocation7 + %s2771]]
            %v2773 = vstv %s2772
            %v2774 = vmul.f32 %v2773, %v2760
            %v2775 = vmul.f32 %v2773, %v2761
            %vm2778 = vcmask 1046528
            %v2779 = vrot.slane %v2774, 1
            %v2780 = vrot.slane %v2775, 1
            %v2781 = vsel %vm2778, %v2779, %v2780
            %v2783 = vadd.f32 %v2767, %v2781
            %s2784 = sadd.s32 %s2768, 2
            %s2785 = smul.u32 %s2784, 7
            %s2786 = sadd.s32 %s2785, 343
            %s2787 = sld [smem:[#allocation7 + %s2786]]
            %v2788 = vstv %s2787
            %v2789 = vmul.f32 %v2788, %v2760
            %v2790 = vmul.f32 %v2788, %v2761
            %vm2793 = vcmask 1045504
            %v2794 = vrot.slane %v2789, 2
            %v2795 = vrot.slane %v2790, 2
            %v2796 = vsel %vm2793, %v2794, %v2795
            %v2798 = vadd.f32 %v2783, %v2796
            %s2799 = sadd.s32 %s2768, 3
            %s2800 = smul.u32 %s2799, 7
            %s2801 = sadd.s32 %s2800, 343
            %s2802 = sld [smem:[#allocation7 + %s2801]]
            %v2803 = vstv %s2802
            %v2804 = vmul.f32 %v2803, %v2760
            %v2805 = vmul.f32 %v2803, %v2761
            %vm2808 = vcmask 1044480
            %v2809 = vrot.slane %v2804, 3
            %v2810 = vrot.slane %v2805, 3
            %v2811 = vsel %vm2808, %v2809, %v2810
            %v2813 = vadd.f32 %v2798, %v2811
            %s2814 = sadd.s32 %s2768, 4
            %s2815 = smul.u32 %s2814, 7
            %s2816 = sadd.s32 %s2815, 343
            %s2817 = sld [smem:[#allocation7 + %s2816]]
            %v2818 = vstv %s2817
            %v2819 = vmul.f32 %v2818, %v2760
            %v2820 = vmul.f32 %v2818, %v2761
            %v2823 = vrot.slane %v2819, 4
            %v2824 = vrot.slane %v2820, 4
            %v2825 = vsel %vm393, %v2823, %v2824
            %v2827 = vadd.f32 %v2813, %v2825
            %s2828 = sadd.s32 %s2768, 5
            %s2829 = smul.u32 %s2828, 7
            %s2830 = sadd.s32 %s2829, 343
            %s2831 = sld [smem:[#allocation7 + %s2830]]
            %v2832 = vstv %s2831
            %v2833 = vmul.f32 %v2832, %v2760
            %v2834 = vmul.f32 %v2832, %v2761
            %vm2837 = vcmask 1042432
            %v2838 = vrot.slane %v2833, 5
            %v2839 = vrot.slane %v2834, 5
            %v2840 = vsel %vm2837, %v2838, %v2839
            %v2842 = vadd.f32 %v2827, %v2840
            %s2843 = sadd.s32 %s2768, 6
            %s2844 = smul.u32 %s2843, 7
            %s2845 = sadd.s32 %s2844, 343
            %s2846 = sld [smem:[#allocation7 + %s2845]]
            %v2847 = vstv %s2846
            %v2848 = vmul.f32 %v2847, %v2760
            %v2849 = vmul.f32 %v2847, %v2761
            %vm2852 = vcmask 1041408
            %v2853 = vrot.slane %v2848, 6
            %v2854 = vrot.slane %v2849, 6
            %v2855 = vsel %vm2852, %v2853, %v2854
            %v2857 = vadd.f32 %v2842, %v2855
            %2858 = vrot.lane.b32.xlu0 %v2760, 127
            %v2859 = vpop.permute.xlu0 %2858
            %2860 = vrot.lane.b32.xlu0 %v2761, 127
            %v2861 = vpop.permute.xlu0 %2860
            %s2862 = sadd.s32 %s2762, 344
            %s2863 = sld [smem:[#allocation7 + %s2862]]
            %v2864 = vstv %s2863
            %v2865 = vmul.f32 %v2864, %v2859
            %v2866 = vadd.f32 %v2857, %v2865
            %s2867 = sadd.s32 %s2770, 344
            %s2868 = sld [smem:[#allocation7 + %s2867]]
            %v2869 = vstv %s2868
            %v2870 = vmul.f32 %v2869, %v2859
            %v2871 = vmul.f32 %v2869, %v2861
            %v2874 = vrot.slane %v2870, 1
            %v2875 = vrot.slane %v2871, 1
            %v2876 = vsel %vm2778, %v2874, %v2875
            %v2878 = vadd.f32 %v2866, %v2876
            %s2879 = sadd.s32 %s2785, 344
            %s2880 = sld [smem:[#allocation7 + %s2879]]
            %v2881 = vstv %s2880
            %v2882 = vmul.f32 %v2881, %v2859
            %v2883 = vmul.f32 %v2881, %v2861
            %v2886 = vrot.slane %v2882, 2
            %v2887 = vrot.slane %v2883, 2
            %v2888 = vsel %vm2793, %v2886, %v2887
            %v2890 = vadd.f32 %v2878, %v2888
            %s2891 = sadd.s32 %s2800, 344
            %s2892 = sld [smem:[#allocation7 + %s2891]]
            %v2893 = vstv %s2892
            %v2894 = vmul.f32 %v2893, %v2859
            %v2895 = vmul.f32 %v2893, %v2861
            %v2898 = vrot.slane %v2894, 3
            %v2899 = vrot.slane %v2895, 3
            %v2900 = vsel %vm2808, %v2898, %v2899
            %v2902 = vadd.f32 %v2890, %v2900
            %s2903 = sadd.s32 %s2815, 344
            %s2904 = sld [smem:[#allocation7 + %s2903]]
            %v2905 = vstv %s2904
            %v2906 = vmul.f32 %v2905, %v2859
            %v2907 = vmul.f32 %v2905, %v2861
            %v2910 = vrot.slane %v2906, 4
            %v2911 = vrot.slane %v2907, 4
            %v2912 = vsel %vm393, %v2910, %v2911
            %v2914 = vadd.f32 %v2902, %v2912
            %s2915 = sadd.s32 %s2829, 344
            %s2916 = sld [smem:[#allocation7 + %s2915]]
            %v2917 = vstv %s2916
            %v2918 = vmul.f32 %v2917, %v2859
            %v2919 = vmul.f32 %v2917, %v2861
            %v2922 = vrot.slane %v2918, 5
            %v2923 = vrot.slane %v2919, 5
            %v2924 = vsel %vm2837, %v2922, %v2923
            %v2926 = vadd.f32 %v2914, %v2924
            %s2927 = sadd.s32 %s2844, 344
            %s2928 = sld [smem:[#allocation7 + %s2927]]
            %v2929 = vstv %s2928
            %v2930 = vmul.f32 %v2929, %v2859
            %v2931 = vmul.f32 %v2929, %v2861
            %v2934 = vrot.slane %v2930, 6
            %v2935 = vrot.slane %v2931, 6
            %v2936 = vsel %vm2852, %v2934, %v2935
            %v2938 = vadd.f32 %v2926, %v2936
            %2939 = vrot.lane.b32.xlu0 %v2760, 126
            %v2940 = vpop.permute.xlu0 %2939
            %2941 = vrot.lane.b32.xlu0 %v2761, 126
            %v2942 = vpop.permute.xlu0 %2941
            %s2943 = sadd.s32 %s2762, 345
            %s2944 = sld [smem:[#allocation7 + %s2943]]
            %v2945 = vstv %s2944
            %v2946 = vmul.f32 %v2945, %v2940
            %v2947 = vadd.f32 %v2938, %v2946
            %s2948 = sadd.s32 %s2770, 345
            %s2949 = sld [smem:[#allocation7 + %s2948]]
            %v2950 = vstv %s2949
            %v2951 = vmul.f32 %v2950, %v2940
            %v2952 = vmul.f32 %v2950, %v2942
            %v2955 = vrot.slane %v2951, 1
            %v2956 = vrot.slane %v2952, 1
            %v2957 = vsel %vm2778, %v2955, %v2956
            %v2959 = vadd.f32 %v2947, %v2957
            %s2960 = sadd.s32 %s2785, 345
            %s2961 = sld [smem:[#allocation7 + %s2960]]
            %v2962 = vstv %s2961
            %v2963 = vmul.f32 %v2962, %v2940
            %v2964 = vmul.f32 %v2962, %v2942
            %v2967 = vrot.slane %v2963, 2
            %v2968 = vrot.slane %v2964, 2
            %v2969 = vsel %vm2793, %v2967, %v2968
            %v2971 = vadd.f32 %v2959, %v2969
            %s2972 = sadd.s32 %s2800, 345
            %s2973 = sld [smem:[#allocation7 + %s2972]]
            %v2974 = vstv %s2973
            %v2975 = vmul.f32 %v2974, %v2940
            %v2976 = vmul.f32 %v2974, %v2942
            %v2979 = vrot.slane %v2975, 3
            %v2980 = vrot.slane %v2976, 3
            %v2981 = vsel %vm2808, %v2979, %v2980
            %v2983 = vadd.f32 %v2971, %v2981
            %s2984 = sadd.s32 %s2815, 345
            %s2985 = sld [smem:[#allocation7 + %s2984]]
            %v2986 = vstv %s2985
            %v2987 = vmul.f32 %v2986, %v2940
            %v2988 = vmul.f32 %v2986, %v2942
            %v2991 = vrot.slane %v2987, 4
            %v2992 = vrot.slane %v2988, 4
            %v2993 = vsel %vm393, %v2991, %v2992
            %v2995 = vadd.f32 %v2983, %v2993
            %s2996 = sadd.s32 %s2829, 345
            %s2997 = sld [smem:[#allocation7 + %s2996]]
            %v2998 = vstv %s2997
            %v2999 = vmul.f32 %v2998, %v2940
            %v3000 = vmul.f32 %v2998, %v2942
            %v3003 = vrot.slane %v2999, 5
            %v3004 = vrot.slane %v3000, 5
            %v3005 = vsel %vm2837, %v3003, %v3004
            %v3007 = vadd.f32 %v2995, %v3005
            %s3008 = sadd.s32 %s2844, 345
            %s3009 = sld [smem:[#allocation7 + %s3008]]
            %v3010 = vstv %s3009
            %v3011 = vmul.f32 %v3010, %v2940
            %v3012 = vmul.f32 %v3010, %v2942
            %v3015 = vrot.slane %v3011, 6
            %v3016 = vrot.slane %v3012, 6
            %v3017 = vsel %vm2852, %v3015, %v3016
            %v3019 = vadd.f32 %v3007, %v3017
            %3020 = vrot.lane.b32.xlu0 %v2760, 125
            %v3021 = vpop.permute.xlu0 %3020
            %3022 = vrot.lane.b32.xlu0 %v2761, 125
            %v3023 = vpop.permute.xlu0 %3022
            %s3024 = sadd.s32 %s2762, 346
            %s3025 = sld [smem:[#allocation7 + %s3024]]
            %v3026 = vstv %s3025
            %v3027 = vmul.f32 %v3026, %v3021
            %v3028 = vadd.f32 %v3019, %v3027
            %s3029 = sadd.s32 %s2770, 346
            %s3030 = sld [smem:[#allocation7 + %s3029]]
            %v3031 = vstv %s3030
            %v3032 = vmul.f32 %v3031, %v3021
            %v3033 = vmul.f32 %v3031, %v3023
            %v3036 = vrot.slane %v3032, 1
            %v3037 = vrot.slane %v3033, 1
            %v3038 = vsel %vm2778, %v3036, %v3037
            %v3040 = vadd.f32 %v3028, %v3038
            %s3041 = sadd.s32 %s2785, 346
            %s3042 = sld [smem:[#allocation7 + %s3041]]
            %v3043 = vstv %s3042
            %v3044 = vmul.f32 %v3043, %v3021
            %v3045 = vmul.f32 %v3043, %v3023
            %v3048 = vrot.slane %v3044, 2
            %v3049 = vrot.slane %v3045, 2
            %v3050 = vsel %vm2793, %v3048, %v3049
            %v3052 = vadd.f32 %v3040, %v3050
            %s3053 = sadd.s32 %s2800, 346
            %s3054 = sld [smem:[#allocation7 + %s3053]]
            %v3055 = vstv %s3054
            %v3056 = vmul.f32 %v3055, %v3021
            %v3057 = vmul.f32 %v3055, %v3023
            %v3060 = vrot.slane %v3056, 3
            %v3061 = vrot.slane %v3057, 3
            %v3062 = vsel %vm2808, %v3060, %v3061
            %v3064 = vadd.f32 %v3052, %v3062
            %s3065 = sadd.s32 %s2815, 346
            %s3066 = sld [smem:[#allocation7 + %s3065]]
            %v3067 = vstv %s3066
            %v3068 = vmul.f32 %v3067, %v3021
            %v3069 = vmul.f32 %v3067, %v3023
            %v3072 = vrot.slane %v3068, 4
            %v3073 = vrot.slane %v3069, 4
            %v3074 = vsel %vm393, %v3072, %v3073
            %v3076 = vadd.f32 %v3064, %v3074
            %s3077 = sadd.s32 %s2829, 346
            %s3078 = sld [smem:[#allocation7 + %s3077]]
            %v3079 = vstv %s3078
            %v3080 = vmul.f32 %v3079, %v3021
            %v3081 = vmul.f32 %v3079, %v3023
            %v3084 = vrot.slane %v3080, 5
            %v3085 = vrot.slane %v3081, 5
            %v3086 = vsel %vm2837, %v3084, %v3085
            %v3088 = vadd.f32 %v3076, %v3086
            %s3089 = sadd.s32 %s2844, 346
            %s3090 = sld [smem:[#allocation7 + %s3089]]
            %v3091 = vstv %s3090
            %v3092 = vmul.f32 %v3091, %v3021
            %v3093 = vmul.f32 %v3091, %v3023
            %v3096 = vrot.slane %v3092, 6
            %v3097 = vrot.slane %v3093, 6
            %v3098 = vsel %vm2852, %v3096, %v3097
            %v3100 = vadd.f32 %v3088, %v3098
            %3101 = vrot.lane.b32.xlu0 %v2760, 124
            %v3102 = vpop.permute.xlu0 %3101
            %3103 = vrot.lane.b32.xlu0 %v2761, 124
            %v3104 = vpop.permute.xlu0 %3103
            %s3105 = sadd.s32 %s2762, 347
            %s3106 = sld [smem:[#allocation7 + %s3105]]
            %v3107 = vstv %s3106
            %v3108 = vmul.f32 %v3107, %v3102
            %v3109 = vadd.f32 %v3100, %v3108
            %s3110 = sadd.s32 %s2770, 347
            %s3111 = sld [smem:[#allocation7 + %s3110]]
            %v3112 = vstv %s3111
            %v3113 = vmul.f32 %v3112, %v3102
            %v3114 = vmul.f32 %v3112, %v3104
            %v3117 = vrot.slane %v3113, 1
            %v3118 = vrot.slane %v3114, 1
            %v3119 = vsel %vm2778, %v3117, %v3118
            %v3121 = vadd.f32 %v3109, %v3119
            %s3122 = sadd.s32 %s2785, 347
            %s3123 = sld [smem:[#allocation7 + %s3122]]
            %v3124 = vstv %s3123
            %v3125 = vmul.f32 %v3124, %v3102
            %v3126 = vmul.f32 %v3124, %v3104
            %v3129 = vrot.slane %v3125, 2
            %v3130 = vrot.slane %v3126, 2
            %v3131 = vsel %vm2793, %v3129, %v3130
            %v3133 = vadd.f32 %v3121, %v3131
            %s3134 = sadd.s32 %s2800, 347
            %s3135 = sld [smem:[#allocation7 + %s3134]]
            %v3136 = vstv %s3135
            %v3137 = vmul.f32 %v3136, %v3102
            %v3138 = vmul.f32 %v3136, %v3104
            %v3141 = vrot.slane %v3137, 3
            %v3142 = vrot.slane %v3138, 3
            %v3143 = vsel %vm2808, %v3141, %v3142
            %v3145 = vadd.f32 %v3133, %v3143
            %s3146 = sadd.s32 %s2815, 347
            %s3147 = sld [smem:[#allocation7 + %s3146]]
            %v3148 = vstv %s3147
            %v3149 = vmul.f32 %v3148, %v3102
            %v3150 = vmul.f32 %v3148, %v3104
            %v3153 = vrot.slane %v3149, 4
            %v3154 = vrot.slane %v3150, 4
            %v3155 = vsel %vm393, %v3153, %v3154
            %v3157 = vadd.f32 %v3145, %v3155
            %s3158 = sadd.s32 %s2829, 347
            %s3159 = sld [smem:[#allocation7 + %s3158]]
            %v3160 = vstv %s3159
            %v3161 = vmul.f32 %v3160, %v3102
            %v3162 = vmul.f32 %v3160, %v3104
            %v3165 = vrot.slane %v3161, 5
            %v3166 = vrot.slane %v3162, 5
            %v3167 = vsel %vm2837, %v3165, %v3166
            %v3169 = vadd.f32 %v3157, %v3167
            %s3170 = sadd.s32 %s2844, 347
            %s3171 = sld [smem:[#allocation7 + %s3170]]
            %v3172 = vstv %s3171
            %v3173 = vmul.f32 %v3172, %v3102
            %v3174 = vmul.f32 %v3172, %v3104
            %v3177 = vrot.slane %v3173, 6
            %v3178 = vrot.slane %v3174, 6
            %v3179 = vsel %vm2852, %v3177, %v3178
            %v3181 = vadd.f32 %v3169, %v3179
            %3182 = vrot.lane.b32.xlu0 %v2760, 123
            %v3183 = vpop.permute.xlu0 %3182
            %3184 = vrot.lane.b32.xlu0 %v2761, 123
            %v3185 = vpop.permute.xlu0 %3184
            %s3186 = sadd.s32 %s2762, 348
            %s3187 = sld [smem:[#allocation7 + %s3186]]
            %v3188 = vstv %s3187
            %v3189 = vmul.f32 %v3188, %v3183
            %v3190 = vadd.f32 %v3181, %v3189
            %s3191 = sadd.s32 %s2770, 348
            %s3192 = sld [smem:[#allocation7 + %s3191]]
            %v3193 = vstv %s3192
            %v3194 = vmul.f32 %v3193, %v3183
            %v3195 = vmul.f32 %v3193, %v3185
            %v3198 = vrot.slane %v3194, 1
            %v3199 = vrot.slane %v3195, 1
            %v3200 = vsel %vm2778, %v3198, %v3199
            %v3202 = vadd.f32 %v3190, %v3200
            %s3203 = sadd.s32 %s2785, 348
            %s3204 = sld [smem:[#allocation7 + %s3203]]
            %v3205 = vstv %s3204
            %v3206 = vmul.f32 %v3205, %v3183
            %v3207 = vmul.f32 %v3205, %v3185
            %v3210 = vrot.slane %v3206, 2
            %v3211 = vrot.slane %v3207, 2
            %v3212 = vsel %vm2793, %v3210, %v3211
            %v3214 = vadd.f32 %v3202, %v3212
            %s3215 = sadd.s32 %s2800, 348
            %s3216 = sld [smem:[#allocation7 + %s3215]]
            %v3217 = vstv %s3216
            %v3218 = vmul.f32 %v3217, %v3183
            %v3219 = vmul.f32 %v3217, %v3185
            %v3222 = vrot.slane %v3218, 3
            %v3223 = vrot.slane %v3219, 3
            %v3224 = vsel %vm2808, %v3222, %v3223
            %v3226 = vadd.f32 %v3214, %v3224
            %s3227 = sadd.s32 %s2815, 348
            %s3228 = sld [smem:[#allocation7 + %s3227]]
            %v3229 = vstv %s3228
            %v3230 = vmul.f32 %v3229, %v3183
            %v3231 = vmul.f32 %v3229, %v3185
            %v3234 = vrot.slane %v3230, 4
            %v3235 = vrot.slane %v3231, 4
            %v3236 = vsel %vm393, %v3234, %v3235
            %v3238 = vadd.f32 %v3226, %v3236
            %s3239 = sadd.s32 %s2829, 348
            %s3240 = sld [smem:[#allocation7 + %s3239]]
            %v3241 = vstv %s3240
            %v3242 = vmul.f32 %v3241, %v3183
            %v3243 = vmul.f32 %v3241, %v3185
            %v3246 = vrot.slane %v3242, 5
            %v3247 = vrot.slane %v3243, 5
            %v3248 = vsel %vm2837, %v3246, %v3247
            %v3250 = vadd.f32 %v3238, %v3248
            %s3251 = sadd.s32 %s2844, 348
            %s3252 = sld [smem:[#allocation7 + %s3251]]
            %v3253 = vstv %s3252
            %v3254 = vmul.f32 %v3253, %v3183
            %v3255 = vmul.f32 %v3253, %v3185
            %v3258 = vrot.slane %v3254, 6
            %v3259 = vrot.slane %v3255, 6
            %v3260 = vsel %vm2852, %v3258, %v3259
            %v3262 = vadd.f32 %v3250, %v3260
            %3263 = vrot.lane.b32.xlu0 %v2760, 122
            %v3264 = vpop.permute.xlu0 %3263
            %3265 = vrot.lane.b32.xlu0 %v2761, 122
            %v3266 = vpop.permute.xlu0 %3265
            %s3267 = sadd.s32 %s2762, 349
            %s3268 = sld [smem:[#allocation7 + %s3267]]
            %v3269 = vstv %s3268
            %v3270 = vmul.f32 %v3269, %v3264
            %v3271 = vadd.f32 %v3262, %v3270
            %s3272 = sadd.s32 %s2770, 349
            %s3273 = sld [smem:[#allocation7 + %s3272]]
            %v3274 = vstv %s3273
            %v3275 = vmul.f32 %v3274, %v3264
            %v3276 = vmul.f32 %v3274, %v3266
            %v3279 = vrot.slane %v3275, 1
            %v3280 = vrot.slane %v3276, 1
            %v3281 = vsel %vm2778, %v3279, %v3280
            %v3283 = vadd.f32 %v3271, %v3281
            %s3284 = sadd.s32 %s2785, 349
            %s3285 = sld [smem:[#allocation7 + %s3284]]
            %v3286 = vstv %s3285
            %v3287 = vmul.f32 %v3286, %v3264
            %v3288 = vmul.f32 %v3286, %v3266
            %v3291 = vrot.slane %v3287, 2
            %v3292 = vrot.slane %v3288, 2
            %v3293 = vsel %vm2793, %v3291, %v3292
            %v3295 = vadd.f32 %v3283, %v3293
            %s3296 = sadd.s32 %s2800, 349
            %s3297 = sld [smem:[#allocation7 + %s3296]]
            %v3298 = vstv %s3297
            %v3299 = vmul.f32 %v3298, %v3264
            %v3300 = vmul.f32 %v3298, %v3266
            %v3303 = vrot.slane %v3299, 3
            %v3304 = vrot.slane %v3300, 3
            %v3305 = vsel %vm2808, %v3303, %v3304
            %v3307 = vadd.f32 %v3295, %v3305
            %s3308 = sadd.s32 %s2815, 349
            %s3309 = sld [smem:[#allocation7 + %s3308]]
            %v3310 = vstv %s3309
            %v3311 = vmul.f32 %v3310, %v3264
            %v3312 = vmul.f32 %v3310, %v3266
            %v3315 = vrot.slane %v3311, 4
            %v3316 = vrot.slane %v3312, 4
            %v3317 = vsel %vm393, %v3315, %v3316
            %v3319 = vadd.f32 %v3307, %v3317
            %s3320 = sadd.s32 %s2829, 349
            %s3321 = sld [smem:[#allocation7 + %s3320]]
            %v3322 = vstv %s3321
            %v3323 = vmul.f32 %v3322, %v3264
            %v3324 = vmul.f32 %v3322, %v3266
            %v3327 = vrot.slane %v3323, 5
            %v3328 = vrot.slane %v3324, 5
            %v3329 = vsel %vm2837, %v3327, %v3328
            %v3331 = vadd.f32 %v3319, %v3329
            %s3332 = sadd.s32 %s2844, 349
            %s3333 = sld [smem:[#allocation7 + %s3332]]
            %v3334 = vstv %s3333
            %v3335 = vmul.f32 %v3334, %v3264
            %v3336 = vmul.f32 %v3334, %v3266
            %v3339 = vrot.slane %v3335, 6
            %v3340 = vrot.slane %v3336, 6
            %v3341 = vsel %vm2852, %v3339, %v3340
            %v3343 = vadd.f32 %v3331, %v3341
          $region55: #{tpu_custom_call.1} parent=40 // loop_footer
            %s2754 = sadd.s32 1, %s2750
          $region56: #{tpu_custom_call.1} parent=40 // loop_footer_branch
            %2749 = sbr.rel target = $region52
          $region57: #{tpu_custom_call.1} parent=40 // loop_exit
            _
          %s3344 = sld [smem:[#allocation6]]
          %v3345 = vstv %s3344
          %v3346 = vadd.f32 %v2755, %v3345
          %v3347 = vxor.u32 %v3346, 2147483648
          %v3348 = vmul.f32 %v3347, 1.442695
          %v3349 = vpow.pop %v3348
          %v3350 = vadd.f32 %v3349, 1.0
          %v3351 = vrcp.pop %v3350
          %v3352 = vmul.f32 1.0, %v3351
          %s3353 = smul.u32 %s2157, 8
          %s3354 = scalar_lea.vmem [#allocation4], %s3353
          %3355 = vst [vmem:[%s3354] sm:$0xff] %v3352
        $region41: #{tpu_custom_call.1} parent=31 // loop_footer
          %s2161 = sadd.s32 1, %s2157
        $region42: #{tpu_custom_call.1} parent=31 // loop_footer_branch
          %2156 = sbr.rel target = $region38
        $region43: #{tpu_custom_call.1} parent=31 // loop_exit
          _
        %v3356 = vld [vmem:[#allocation4] sm:$0x1]
        %vm3357 = vcmp.lt.s32.totalorder %v719, 20
        %vm3358 = vmand %vm720, %vm3357
        %3359 = vst.msk [vmem:[#allocation5] sm:$0x1] %vm3358, %v3356
        %v3360 = vld [vmem:[#allocation4 + $0x1] sm:$0x1]
        %v3363 = vunpack.c.l.s4 1966171168
        %v3364 = vunpack.c.0.s8 %v3363
        %v3365 = vlaneseq
        %v3366 = vshrl.u32 %v3365, 7
        %v3367 = vsub.s32 %v3364, %v3366
        %v3368 = vrot.slane %v3360, %v3367
        %v3370 = vunpack.c.l.s4 1966171168
        %v3371 = vunpack.c.0.s8 %v3370
        %v3372 = vlaneseq
        %v3373 = vshrl.u32 %v3372, 7
        %v3374 = vsub.s32 %v3371, %v3373
        %v3375 = vrot.slane %v3368, %v3374
        %3376 = vrot.lane.b32.xlu0 %v3375, 20
        %v3377 = vpop.permute.xlu0 %3376
        %vm3379 = vcmp.ge.s32.totalorder %v719, 20
        %vm3380 = vcmp.lt.s32.totalorder %v719, 40
        %vm3381 = vmand %vm3379, %vm3380
        %3382 = vst.msk [vmem:[#allocation5] sm:$0x1] %vm3381, %v3377
        %v3383 = vld [vmem:[#allocation4 + $0x2] sm:$0x1]
        %v3386 = vunpack.c.l.s4 1966171168
        %v3387 = vunpack.c.0.s8 %v3386
        %v3388 = vlaneseq
        %v3389 = vshrl.u32 %v3388, 7
        %v3390 = vsub.s32 %v3387, %v3389
        %v3391 = vrot.slane %v3383, %v3390
        %v3393 = vunpack.c.l.s4 1966171168
        %v3394 = vunpack.c.0.s8 %v3393
        %v3395 = vlaneseq
        %v3396 = vshrl.u32 %v3395, 7
        %v3397 = vsub.s32 %v3394, %v3396
        %v3398 = vrot.slane %v3391, %v3397
        %3399 = vrot.lane.b32.xlu0 %v3398, 40
        %v3400 = vpop.permute.xlu0 %3399
        %vm3402 = vcmp.ge.s32.totalorder %v719, 40
        %vm3403 = vcmp.lt.s32.totalorder %v719, 60
        %vm3404 = vmand %vm3402, %vm3403
        %3405 = vst.msk [vmem:[#allocation5] sm:$0x1] %vm3404, %v3400
        %v3406 = vld [vmem:[#allocation4 + $0x3] sm:$0x1]
        %v3409 = vunpack.c.l.s4 1966171168
        %v3410 = vunpack.c.0.s8 %v3409
        %v3411 = vlaneseq
        %v3412 = vshrl.u32 %v3411, 7
        %v3413 = vsub.s32 %v3410, %v3412
        %v3414 = vrot.slane %v3406, %v3413
        %v3416 = vunpack.c.l.s4 1966171168
        %v3417 = vunpack.c.0.s8 %v3416
        %v3418 = vlaneseq
        %v3419 = vshrl.u32 %v3418, 7
        %v3420 = vsub.s32 %v3417, %v3419
        %v3421 = vrot.slane %v3414, %v3420
        %3422 = vrot.lane.b32.xlu0 %v3421, 60
        %v3423 = vpop.permute.xlu0 %3422
        %vm3425 = vcmp.ge.s32.totalorder %v719, 60
        %vm3426 = vcmp.lt.s32.totalorder %v719, 80
        %vm3427 = vmand %vm3425, %vm3426
        %3428 = vst.msk [vmem:[#allocation5] sm:$0x1] %vm3427, %v3423
        %v3429 = vld [vmem:[#allocation4 + $0x4] sm:$0x1]
        %v3432 = vunpack.c.l.s4 1966171168
        %v3433 = vunpack.c.0.s8 %v3432
        %v3434 = vlaneseq
        %v3435 = vshrl.u32 %v3434, 7
        %v3436 = vsub.s32 %v3433, %v3435
        %v3437 = vrot.slane %v3429, %v3436
        %v3439 = vunpack.c.l.s4 1966171168
        %v3440 = vunpack.c.0.s8 %v3439
        %v3441 = vlaneseq
        %v3442 = vshrl.u32 %v3441, 7
        %v3443 = vsub.s32 %v3440, %v3442
        %v3444 = vrot.slane %v3437, %v3443
        %3445 = vrot.lane.b32.xlu0 %v3444, 80
        %v3446 = vpop.permute.xlu0 %3445
        %vm3448 = vcmp.ge.s32.totalorder %v719, 80
        %vm3449 = vcmp.lt.s32.totalorder %v719, 100
        %vm3450 = vmand %vm3448, %vm3449
        %3451 = vst.msk [vmem:[#allocation5] sm:$0x1] %vm3450, %v3446
        %v3452 = vld [vmem:[#allocation4 + $0x5] sm:$0x1]
        %v3455 = vunpack.c.l.s4 1966171168
        %v3456 = vunpack.c.0.s8 %v3455
        %v3457 = vlaneseq
        %v3458 = vshrl.u32 %v3457, 7
        %v3459 = vsub.s32 %v3456, %v3458
        %v3460 = vrot.slane %v3452, %v3459
        %v3462 = vunpack.c.l.s4 1966171168
        %v3463 = vunpack.c.0.s8 %v3462
        %v3464 = vlaneseq
        %v3465 = vshrl.u32 %v3464, 7
        %v3466 = vsub.s32 %v3463, %v3465
        %v3467 = vrot.slane %v3460, %v3466
        %3468 = vrot.lane.b32.xlu0 %v3467, 100
        %v3469 = vpop.permute.xlu0 %3468
        %vm3471 = vcmp.ge.s32.totalorder %v719, 100
        %vm3472 = vcmp.lt.s32.totalorder %v719, 120
        %vm3473 = vmand %vm3471, %vm3472
        %3474 = vst.msk [vmem:[#allocation5] sm:$0x1] %vm3473, %v3469
        %v3475 = vld [vmem:[#allocation4 + $0x6] sm:$0x1]
        %v3478 = vunpack.c.l.s4 1966171168
        %v3479 = vunpack.c.0.s8 %v3478
        %v3480 = vlaneseq
        %v3481 = vshrl.u32 %v3480, 7
        %v3482 = vsub.s32 %v3479, %v3481
        %v3483 = vrot.slane %v3475, %v3482
        %v3485 = vunpack.c.l.s4 1966171168
        %v3486 = vunpack.c.0.s8 %v3485
        %v3487 = vlaneseq
        %v3488 = vshrl.u32 %v3487, 7
        %v3489 = vsub.s32 %v3486, %v3488
        %v3490 = vrot.slane %v3483, %v3489
        %3491 = vrot.lane.b32.xlu0 %v3490, 120
        %v3492 = vpop.permute.xlu0 %3491
        %v3493 = vrot.slane %v3492, 7
        %vm3494 = vcmask 982016
        %v3495 = vsel %vm3494, %v3493, %v3492
        %vm3497 = vcmp.ge.s32.totalorder %v719, 120
        %vm3498 = vcmp.lt.s32.totalorder %v719, 140
        %vm3499 = vmand %vm3497, %vm3498
        %3500 = vst.msk [vmem:[#allocation5] sm:$0x3] %vm3499, %v3495
        %v3501 = vld [vmem:[#allocation4 + $0x7] sm:$0x1]
        %v3504 = vunpack.c.l.s4 1966171168
        %v3505 = vunpack.c.0.s8 %v3504
        %v3506 = vlaneseq
        %v3507 = vshrl.u32 %v3506, 7
        %v3508 = vsub.s32 %v3505, %v3507
        %v3509 = vrot.slane %v3501, %v3508
        %v3511 = vunpack.c.l.s4 1966171168
        %v3512 = vunpack.c.0.s8 %v3511
        %v3513 = vlaneseq
        %v3514 = vshrl.u32 %v3513, 7
        %v3515 = vsub.s32 %v3512, %v3514
        %v3516 = vrot.slane %v3509, %v3515
        %3517 = vrot.lane.b32.xlu0 %v3516, 12
        %v3518 = vpop.permute.xlu0 %3517
        %vm3520 = vcmp.ge.s32.totalorder %v719, 12
        %vm3521 = vcmp.lt.s32.totalorder %v719, 32
        %vm3522 = vmand %vm3520, %vm3521
        %3523 = vst.msk [vmem:[#allocation5 + $0x1] sm:$0x1] %vm3522, %v3518
        %s3524 = scalar_lea.vmem [#allocation4], 8
        %v3525 = vld [vmem:[%s3524] sm:$0x1]
        %v3528 = vunpack.c.l.s4 1966171168
        %v3529 = vunpack.c.0.s8 %v3528
        %v3530 = vlaneseq
        %v3531 = vshrl.u32 %v3530, 7
        %v3532 = vsub.s32 %v3529, %v3531
        %v3533 = vrot.slane %v3525, %v3532
        %v3535 = vunpack.c.l.s4 1966171168
        %v3536 = vunpack.c.0.s8 %v3535
        %v3537 = vlaneseq
        %v3538 = vshrl.u32 %v3537, 7
        %v3539 = vsub.s32 %v3536, %v3538
        %v3540 = vrot.slane %v3533, %v3539
        %3541 = vrot.lane.b32.xlu0 %v3540, 32
        %v3542 = vpop.permute.xlu0 %3541
        %vm3544 = vcmp.ge.s32.totalorder %v719, 32
        %vm3545 = vcmp.lt.s32.totalorder %v719, 52
        %vm3546 = vmand %vm3544, %vm3545
        %3547 = vst.msk [vmem:[#allocation5 + $0x1] sm:$0x1] %vm3546, %v3542
        %v3548 = vld [vmem:[%s3524 + $0x1] sm:$0x1]
        %v3551 = vunpack.c.l.s4 1966171168
        %v3552 = vunpack.c.0.s8 %v3551
        %v3553 = vlaneseq
        %v3554 = vshrl.u32 %v3553, 7
        %v3555 = vsub.s32 %v3552, %v3554
        %v3556 = vrot.slane %v3548, %v3555
        %v3558 = vunpack.c.l.s4 1966171168
        %v3559 = vunpack.c.0.s8 %v3558
        %v3560 = vlaneseq
        %v3561 = vshrl.u32 %v3560, 7
        %v3562 = vsub.s32 %v3559, %v3561
        %v3563 = vrot.slane %v3556, %v3562
        %3564 = vrot.lane.b32.xlu0 %v3563, 52
        %v3565 = vpop.permute.xlu0 %3564
        %vm3567 = vcmp.ge.s32.totalorder %v719, 52
        %vm3568 = vcmp.lt.s32.totalorder %v719, 72
        %vm3569 = vmand %vm3567, %vm3568
        %3570 = vst.msk [vmem:[#allocation5 + $0x1] sm:$0x1] %vm3569, %v3565
        %v3571 = vld [vmem:[%s3524 + $0x2] sm:$0x1]
        %v3574 = vunpack.c.l.s4 1966171168
        %v3575 = vunpack.c.0.s8 %v3574
        %v3576 = vlaneseq
        %v3577 = vshrl.u32 %v3576, 7
        %v3578 = vsub.s32 %v3575, %v3577
        %v3579 = vrot.slane %v3571, %v3578
        %v3581 = vunpack.c.l.s4 1966171168
        %v3582 = vunpack.c.0.s8 %v3581
        %v3583 = vlaneseq
        %v3584 = vshrl.u32 %v3583, 7
        %v3585 = vsub.s32 %v3582, %v3584
        %v3586 = vrot.slane %v3579, %v3585
        %3587 = vrot.lane.b32.xlu0 %v3586, 72
        %v3588 = vpop.permute.xlu0 %3587
        %vm3590 = vcmp.ge.s32.totalorder %v719, 72
        %vm3591 = vcmp.lt.s32.totalorder %v719, 92
        %vm3592 = vmand %vm3590, %vm3591
        %3593 = vst.msk [vmem:[#allocation5 + $0x1] sm:$0x1] %vm3592, %v3588
        %v3594 = vld [vmem:[%s3524 + $0x3] sm:$0x1]
        %v3597 = vunpack.c.l.s4 1966171168
        %v3598 = vunpack.c.0.s8 %v3597
        %v3599 = vlaneseq
        %v3600 = vshrl.u32 %v3599, 7
        %v3601 = vsub.s32 %v3598, %v3600
        %v3602 = vrot.slane %v3594, %v3601
        %v3604 = vunpack.c.l.s4 1966171168
        %v3605 = vunpack.c.0.s8 %v3604
        %v3606 = vlaneseq
        %v3607 = vshrl.u32 %v3606, 7
        %v3608 = vsub.s32 %v3605, %v3607
        %v3609 = vrot.slane %v3602, %v3608
        %3610 = vrot.lane.b32.xlu0 %v3609, 92
        %v3611 = vpop.permute.xlu0 %3610
        %vm3613 = vcmp.ge.s32.totalorder %v719, 92
        %vm3614 = vcmp.lt.s32.totalorder %v719, 112
        %vm3615 = vmand %vm3613, %vm3614
        %3616 = vst.msk [vmem:[#allocation5 + $0x1] sm:$0x1] %vm3615, %v3611
        %v3617 = vld [vmem:[%s3524 + $0x4] sm:$0x1]
        %v3620 = vunpack.c.l.s4 1966171168
        %v3621 = vunpack.c.0.s8 %v3620
        %v3622 = vlaneseq
        %v3623 = vshrl.u32 %v3622, 7
        %v3624 = vsub.s32 %v3621, %v3623
        %v3625 = vrot.slane %v3617, %v3624
        %v3627 = vunpack.c.l.s4 1966171168
        %v3628 = vunpack.c.0.s8 %v3627
        %v3629 = vlaneseq
        %v3630 = vshrl.u32 %v3629, 7
        %v3631 = vsub.s32 %v3628, %v3630
        %v3632 = vrot.slane %v3625, %v3631
        %3633 = vrot.lane.b32.xlu0 %v3632, 112
        %v3634 = vpop.permute.xlu0 %3633
        %v3635 = vrot.slane %v3634, 7
        %vm3636 = vcmask 916480
        %v3637 = vsel %vm3636, %v3635, %v3634
        %vm3639 = vcmp.ge.s32.totalorder %v719, 112
        %vm3640 = vcmp.lt.s32.totalorder %v719, 132
        %vm3641 = vmand %vm3639, %vm3640
        %3642 = vst.msk [vmem:[#allocation5 + $0x1] sm:$0x3] %vm3641, %v3637
        %v3643 = vld [vmem:[%s3524 + $0x5] sm:$0x1]
        %v3646 = vunpack.c.l.s4 1966171168
        %v3647 = vunpack.c.0.s8 %v3646
        %v3648 = vlaneseq
        %v3649 = vshrl.u32 %v3648, 7
        %v3650 = vsub.s32 %v3647, %v3649
        %v3651 = vrot.slane %v3643, %v3650
        %v3653 = vunpack.c.l.s4 1966171168
        %v3654 = vunpack.c.0.s8 %v3653
        %v3655 = vlaneseq
        %v3656 = vshrl.u32 %v3655, 7
        %v3657 = vsub.s32 %v3654, %v3656
        %v3658 = vrot.slane %v3651, %v3657
        %3659 = vrot.lane.b32.xlu0 %v3658, 4
        %v3660 = vpop.permute.xlu0 %3659
        %vm3662 = vcmp.ge.s32.totalorder %v719, 4
        %vm3663 = vcmp.lt.s32.totalorder %v719, 24
        %vm3664 = vmand %vm3662, %vm3663
        %3665 = vst.msk [vmem:[#allocation5 + $0x2] sm:$0x1] %vm3664, %v3660
        %v3666 = vld [vmem:[%s3524 + $0x6] sm:$0x1]
        %v3669 = vunpack.c.l.s4 1966171168
        %v3670 = vunpack.c.0.s8 %v3669
        %v3671 = vlaneseq
        %v3672 = vshrl.u32 %v3671, 7
        %v3673 = vsub.s32 %v3670, %v3672
        %v3674 = vrot.slane %v3666, %v3673
        %v3676 = vunpack.c.l.s4 1966171168
        %v3677 = vunpack.c.0.s8 %v3676
        %v3678 = vlaneseq
        %v3679 = vshrl.u32 %v3678, 7
        %v3680 = vsub.s32 %v3677, %v3679
        %v3681 = vrot.slane %v3674, %v3680
        %3682 = vrot.lane.b32.xlu0 %v3681, 24
        %v3683 = vpop.permute.xlu0 %3682
        %vm3685 = vcmp.ge.s32.totalorder %v719, 24
        %vm3686 = vcmp.lt.s32.totalorder %v719, 44
        %vm3687 = vmand %vm3685, %vm3686
        %3688 = vst.msk [vmem:[#allocation5 + $0x2] sm:$0x1] %vm3687, %v3683
        %v3689 = vld [vmem:[%s3524 + $0x7] sm:$0x1]
        %v3692 = vunpack.c.l.s4 1966171168
        %v3693 = vunpack.c.0.s8 %v3692
        %v3694 = vlaneseq
        %v3695 = vshrl.u32 %v3694, 7
        %v3696 = vsub.s32 %v3693, %v3695
        %v3697 = vrot.slane %v3689, %v3696
        %v3699 = vunpack.c.l.s4 1966171168
        %v3700 = vunpack.c.0.s8 %v3699
        %v3701 = vlaneseq
        %v3702 = vshrl.u32 %v3701, 7
        %v3703 = vsub.s32 %v3700, %v3702
        %v3704 = vrot.slane %v3697, %v3703
        %3705 = vrot.lane.b32.xlu0 %v3704, 44
        %v3706 = vpop.permute.xlu0 %3705
        %vm3708 = vcmp.ge.s32.totalorder %v719, 44
        %vm3709 = vcmp.lt.s32.totalorder %v719, 64
        %vm3710 = vmand %vm3708, %vm3709
        %3711 = vst.msk [vmem:[#allocation5 + $0x2] sm:$0x1] %vm3710, %v3706
        %s3712 = scalar_lea.vmem [#allocation4], 16
        %v3713 = vld [vmem:[%s3712] sm:$0x1]
        %v3716 = vunpack.c.l.s4 1966171168
        %v3717 = vunpack.c.0.s8 %v3716
        %v3718 = vlaneseq
        %v3719 = vshrl.u32 %v3718, 7
        %v3720 = vsub.s32 %v3717, %v3719
        %v3721 = vrot.slane %v3713, %v3720
        %v3723 = vunpack.c.l.s4 1966171168
        %v3724 = vunpack.c.0.s8 %v3723
        %v3725 = vlaneseq
        %v3726 = vshrl.u32 %v3725, 7
        %v3727 = vsub.s32 %v3724, %v3726
        %v3728 = vrot.slane %v3721, %v3727
        %3729 = vrot.lane.b32.xlu0 %v3728, 64
        %v3730 = vpop.permute.xlu0 %3729
        %vm3732 = vcmp.ge.s32.totalorder %v719, 64
        %vm3733 = vcmp.lt.s32.totalorder %v719, 84
        %vm3734 = vmand %vm3732, %vm3733
        %3735 = vst.msk [vmem:[#allocation5 + $0x2] sm:$0x1] %vm3734, %v3730
        %v3736 = vld [vmem:[%s3712 + $0x1] sm:$0x1]
        %v3739 = vunpack.c.l.s4 1966171168
        %v3740 = vunpack.c.0.s8 %v3739
        %v3741 = vlaneseq
        %v3742 = vshrl.u32 %v3741, 7
        %v3743 = vsub.s32 %v3740, %v3742
        %v3744 = vrot.slane %v3736, %v3743
        %v3746 = vunpack.c.l.s4 1966171168
        %v3747 = vunpack.c.0.s8 %v3746
        %v3748 = vlaneseq
        %v3749 = vshrl.u32 %v3748, 7
        %v3750 = vsub.s32 %v3747, %v3749
        %v3751 = vrot.slane %v3744, %v3750
        %3752 = vrot.lane.b32.xlu0 %v3751, 84
        %v3753 = vpop.permute.xlu0 %3752
        %vm3755 = vcmp.ge.s32.totalorder %v719, 84
        %vm3756 = vcmp.lt.s32.totalorder %v719, 104
        %vm3757 = vmand %vm3755, %vm3756
        %3758 = vst.msk [vmem:[#allocation5 + $0x2] sm:$0x1] %vm3757, %v3753
        %v3759 = vld [vmem:[%s3712 + $0x2] sm:$0x1]
        %v3762 = vunpack.c.l.s4 1966171168
        %v3763 = vunpack.c.0.s8 %v3762
        %v3764 = vlaneseq
        %v3765 = vshrl.u32 %v3764, 7
        %v3766 = vsub.s32 %v3763, %v3765
        %v3767 = vrot.slane %v3759, %v3766
        %v3769 = vunpack.c.l.s4 1966171168
        %v3770 = vunpack.c.0.s8 %v3769
        %v3771 = vlaneseq
        %v3772 = vshrl.u32 %v3771, 7
        %v3773 = vsub.s32 %v3770, %v3772
        %v3774 = vrot.slane %v3767, %v3773
        %3775 = vrot.lane.b32.xlu0 %v3774, 104
        %v3776 = vpop.permute.xlu0 %3775
        %vm3778 = vcmp.ge.s32.totalorder %v719, 104
        %vm3779 = vcmp.lt.s32.totalorder %v719, 124
        %vm3780 = vmand %vm3778, %vm3779
        %3781 = vst.msk [vmem:[#allocation5 + $0x2] sm:$0x1] %vm3780, %v3776
        %v3782 = vld [vmem:[%s3712 + $0x3] sm:$0x1]
        %v3785 = vunpack.c.l.s4 1966171168
        %v3786 = vunpack.c.0.s8 %v3785
        %v3787 = vlaneseq
        %v3788 = vshrl.u32 %v3787, 7
        %v3789 = vsub.s32 %v3786, %v3788
        %v3790 = vrot.slane %v3782, %v3789
        %v3792 = vunpack.c.l.s4 1966171168
        %v3793 = vunpack.c.0.s8 %v3792
        %v3794 = vlaneseq
        %v3795 = vshrl.u32 %v3794, 7
        %v3796 = vsub.s32 %v3793, %v3795
        %v3797 = vrot.slane %v3790, %v3796
        %3798 = vrot.lane.b32.xlu0 %v3797, 124
        %v3799 = vpop.permute.xlu0 %3798
        %v3800 = vrot.slane %v3799, 7
        %vm3801 = vcmask 1014784
        %v3802 = vsel %vm3801, %v3800, %v3799
        %vm3804 = vcmp.ge.s32.totalorder %v719, 124
        %vm3805 = vcmp.lt.s32.totalorder %v719, 144
        %vm3806 = vmand %vm3804, %vm3805
        %3807 = vst.msk [vmem:[#allocation5 + $0x2] sm:$0x3] %vm3806, %v3802
        %v3808 = vld [vmem:[%s3712 + $0x4] sm:$0x1]
        %v3811 = vunpack.c.l.s4 1966171168
        %v3812 = vunpack.c.0.s8 %v3811
        %v3813 = vlaneseq
        %v3814 = vshrl.u32 %v3813, 7
        %v3815 = vsub.s32 %v3812, %v3814
        %v3816 = vrot.slane %v3808, %v3815
        %v3818 = vunpack.c.l.s4 1966171168
        %v3819 = vunpack.c.0.s8 %v3818
        %v3820 = vlaneseq
        %v3821 = vshrl.u32 %v3820, 7
        %v3822 = vsub.s32 %v3819, %v3821
        %v3823 = vrot.slane %v3816, %v3822
        %3824 = vrot.lane.b32.xlu0 %v3823, 16
        %v3825 = vpop.permute.xlu0 %3824
        %vm3827 = vcmp.ge.s32.totalorder %v719, 16
        %vm3828 = vcmp.lt.s32.totalorder %v719, 36
        %vm3829 = vmand %vm3827, %vm3828
        %3830 = vst.msk [vmem:[#allocation5 + $0x3] sm:$0x1] %vm3829, %v3825
        %v3831 = vld [vmem:[%s3712 + $0x5] sm:$0x1]
        %v3834 = vunpack.c.l.s4 1966171168
        %v3835 = vunpack.c.0.s8 %v3834
        %v3836 = vlaneseq
        %v3837 = vshrl.u32 %v3836, 7
        %v3838 = vsub.s32 %v3835, %v3837
        %v3839 = vrot.slane %v3831, %v3838
        %v3841 = vunpack.c.l.s4 1966171168
        %v3842 = vunpack.c.0.s8 %v3841
        %v3843 = vlaneseq
        %v3844 = vshrl.u32 %v3843, 7
        %v3845 = vsub.s32 %v3842, %v3844
        %v3846 = vrot.slane %v3839, %v3845
        %3847 = vrot.lane.b32.xlu0 %v3846, 36
        %v3848 = vpop.permute.xlu0 %3847
        %vm3850 = vcmp.ge.s32.totalorder %v719, 36
        %vm3851 = vcmp.lt.s32.totalorder %v719, 56
        %vm3852 = vmand %vm3850, %vm3851
        %3853 = vst.msk [vmem:[#allocation5 + $0x3] sm:$0x1] %vm3852, %v3848
        %v3854 = vld [vmem:[%s3712 + $0x6] sm:$0x1]
        %v3857 = vunpack.c.l.s4 1966171168
        %v3858 = vunpack.c.0.s8 %v3857
        %v3859 = vlaneseq
        %v3860 = vshrl.u32 %v3859, 7
        %v3861 = vsub.s32 %v3858, %v3860
        %v3862 = vrot.slane %v3854, %v3861
        %v3864 = vunpack.c.l.s4 1966171168
        %v3865 = vunpack.c.0.s8 %v3864
        %v3866 = vlaneseq
        %v3867 = vshrl.u32 %v3866, 7
        %v3868 = vsub.s32 %v3865, %v3867
        %v3869 = vrot.slane %v3862, %v3868
        %3870 = vrot.lane.b32.xlu0 %v3869, 56
        %v3871 = vpop.permute.xlu0 %3870
        %vm3873 = vcmp.ge.s32.totalorder %v719, 56
        %vm3874 = vcmp.lt.s32.totalorder %v719, 76
        %vm3875 = vmand %vm3873, %vm3874
        %3876 = vst.msk [vmem:[#allocation5 + $0x3] sm:$0x1] %vm3875, %v3871
        %v3877 = vld [vmem:[%s3712 + $0x7] sm:$0x1]
        %v3880 = vunpack.c.l.s4 1966171168
        %v3881 = vunpack.c.0.s8 %v3880
        %v3882 = vlaneseq
        %v3883 = vshrl.u32 %v3882, 7
        %v3884 = vsub.s32 %v3881, %v3883
        %v3885 = vrot.slane %v3877, %v3884
        %v3887 = vunpack.c.l.s4 1966171168
        %v3888 = vunpack.c.0.s8 %v3887
        %v3889 = vlaneseq
        %v3890 = vshrl.u32 %v3889, 7
        %v3891 = vsub.s32 %v3888, %v3890
        %v3892 = vrot.slane %v3885, %v3891
        %3893 = vrot.lane.b32.xlu0 %v3892, 76
        %v3894 = vpop.permute.xlu0 %3893
        %vm3896 = vcmp.ge.s32.totalorder %v719, 76
        %vm3897 = vcmp.lt.s32.totalorder %v719, 96
        %vm3898 = vmand %vm3896, %vm3897
        %3899 = vst.msk [vmem:[#allocation5 + $0x3] sm:$0x1] %vm3898, %v3894
        %s3900 = scalar_lea.vmem [#allocation4], 24
        %v3901 = vld [vmem:[%s3900] sm:$0x1]
        %v3904 = vunpack.c.l.s4 1966171168
        %v3905 = vunpack.c.0.s8 %v3904
        %v3906 = vlaneseq
        %v3907 = vshrl.u32 %v3906, 7
        %v3908 = vsub.s32 %v3905, %v3907
        %v3909 = vrot.slane %v3901, %v3908
        %v3911 = vunpack.c.l.s4 1966171168
        %v3912 = vunpack.c.0.s8 %v3911
        %v3913 = vlaneseq
        %v3914 = vshrl.u32 %v3913, 7
        %v3915 = vsub.s32 %v3912, %v3914
        %v3916 = vrot.slane %v3909, %v3915
        %3917 = vrot.lane.b32.xlu0 %v3916, 96
        %v3918 = vpop.permute.xlu0 %3917
        %vm3920 = vcmp.ge.s32.totalorder %v719, 96
        %vm3921 = vcmp.lt.s32.totalorder %v719, 116
        %vm3922 = vmand %vm3920, %vm3921
        %3923 = vst.msk [vmem:[#allocation5 + $0x3] sm:$0x1] %vm3922, %v3918
        %v3924 = vld [vmem:[%s3900 + $0x1] sm:$0x1]
        %v3927 = vunpack.c.l.s4 1966171168
        %v3928 = vunpack.c.0.s8 %v3927
        %v3929 = vlaneseq
        %v3930 = vshrl.u32 %v3929, 7
        %v3931 = vsub.s32 %v3928, %v3930
        %v3932 = vrot.slane %v3924, %v3931
        %v3934 = vunpack.c.l.s4 1966171168
        %v3935 = vunpack.c.0.s8 %v3934
        %v3936 = vlaneseq
        %v3937 = vshrl.u32 %v3936, 7
        %v3938 = vsub.s32 %v3935, %v3937
        %v3939 = vrot.slane %v3932, %v3938
        %3940 = vrot.lane.b32.xlu0 %v3939, 116
        %v3941 = vpop.permute.xlu0 %3940
        %v3942 = vrot.slane %v3941, 7
        %vm3943 = vcmask 949248
        %v3944 = vsel %vm3943, %v3942, %v3941
        %vm3946 = vcmp.ge.s32.totalorder %v719, 116
        %vm3947 = vcmp.lt.s32.totalorder %v719, 136
        %vm3948 = vmand %vm3946, %vm3947
        %3949 = vst.msk [vmem:[#allocation5 + $0x3] sm:$0x3] %vm3948, %v3944
        %v3950 = vld [vmem:[%s3900 + $0x2] sm:$0x1]
        %v3953 = vunpack.c.l.s4 1966171168
        %v3954 = vunpack.c.0.s8 %v3953
        %v3955 = vlaneseq
        %v3956 = vshrl.u32 %v3955, 7
        %v3957 = vsub.s32 %v3954, %v3956
        %v3958 = vrot.slane %v3950, %v3957
        %v3960 = vunpack.c.l.s4 1966171168
        %v3961 = vunpack.c.0.s8 %v3960
        %v3962 = vlaneseq
        %v3963 = vshrl.u32 %v3962, 7
        %v3964 = vsub.s32 %v3961, %v3963
        %v3965 = vrot.slane %v3958, %v3964
        %3966 = vrot.lane.b32.xlu0 %v3965, 8
        %v3967 = vpop.permute.xlu0 %3966
        %vm3969 = vcmp.ge.s32.totalorder %v719, 8
        %vm3970 = vcmp.lt.s32.totalorder %v719, 28
        %vm3971 = vmand %vm3969, %vm3970
        %3972 = vst.msk [vmem:[#allocation5 + $0x4] sm:$0x1] %vm3971, %v3967
        %v3973 = vld [vmem:[%s3900 + $0x3] sm:$0x1]
        %v3976 = vunpack.c.l.s4 1966171168
        %v3977 = vunpack.c.0.s8 %v3976
        %v3978 = vlaneseq
        %v3979 = vshrl.u32 %v3978, 7
        %v3980 = vsub.s32 %v3977, %v3979
        %v3981 = vrot.slane %v3973, %v3980
        %v3983 = vunpack.c.l.s4 1966171168
        %v3984 = vunpack.c.0.s8 %v3983
        %v3985 = vlaneseq
        %v3986 = vshrl.u32 %v3985, 7
        %v3987 = vsub.s32 %v3984, %v3986
        %v3988 = vrot.slane %v3981, %v3987
        %3989 = vrot.lane.b32.xlu0 %v3988, 28
        %v3990 = vpop.permute.xlu0 %3989
        %vm3992 = vcmp.ge.s32.totalorder %v719, 28
        %vm3993 = vcmp.lt.s32.totalorder %v719, 48
        %vm3994 = vmand %vm3992, %vm3993
        %3995 = vst.msk [vmem:[#allocation5 + $0x4] sm:$0x1] %vm3994, %v3990
        %v3996 = vld [vmem:[%s3900 + $0x4] sm:$0x1]
        %v3999 = vunpack.c.l.s4 1966171168
        %v4000 = vunpack.c.0.s8 %v3999
        %v4001 = vlaneseq
        %v4002 = vshrl.u32 %v4001, 7
        %v4003 = vsub.s32 %v4000, %v4002
        %v4004 = vrot.slane %v3996, %v4003
        %v4006 = vunpack.c.l.s4 1966171168
        %v4007 = vunpack.c.0.s8 %v4006
        %v4008 = vlaneseq
        %v4009 = vshrl.u32 %v4008, 7
        %v4010 = vsub.s32 %v4007, %v4009
        %v4011 = vrot.slane %v4004, %v4010
        %4012 = vrot.lane.b32.xlu0 %v4011, 48
        %v4013 = vpop.permute.xlu0 %4012
        %vm4015 = vcmp.ge.s32.totalorder %v719, 48
        %vm4016 = vcmp.lt.s32.totalorder %v719, 68
        %vm4017 = vmand %vm4015, %vm4016
        %4018 = vst.msk [vmem:[#allocation5 + $0x4] sm:$0x1] %vm4017, %v4013
        %v4019 = vld [vmem:[%s3900 + $0x5] sm:$0x1]
        %v4022 = vunpack.c.l.s4 1966171168
        %v4023 = vunpack.c.0.s8 %v4022
        %v4024 = vlaneseq
        %v4025 = vshrl.u32 %v4024, 7
        %v4026 = vsub.s32 %v4023, %v4025
        %v4027 = vrot.slane %v4019, %v4026
        %v4029 = vunpack.c.l.s4 1966171168
        %v4030 = vunpack.c.0.s8 %v4029
        %v4031 = vlaneseq
        %v4032 = vshrl.u32 %v4031, 7
        %v4033 = vsub.s32 %v4030, %v4032
        %v4034 = vrot.slane %v4027, %v4033
        %4035 = vrot.lane.b32.xlu0 %v4034, 68
        %v4036 = vpop.permute.xlu0 %4035
        %vm4038 = vcmp.ge.s32.totalorder %v719, 68
        %vm4039 = vcmp.lt.s32.totalorder %v719, 88
        %vm4040 = vmand %vm4038, %vm4039
        %4041 = vst.msk [vmem:[#allocation5 + $0x4] sm:$0x1] %vm4040, %v4036
        %v4042 = vld [vmem:[%s3900 + $0x6] sm:$0x1]
        %v4045 = vunpack.c.l.s4 1966171168
        %v4046 = vunpack.c.0.s8 %v4045
        %v4047 = vlaneseq
        %v4048 = vshrl.u32 %v4047, 7
        %v4049 = vsub.s32 %v4046, %v4048
        %v4050 = vrot.slane %v4042, %v4049
        %v4052 = vunpack.c.l.s4 1966171168
        %v4053 = vunpack.c.0.s8 %v4052
        %v4054 = vlaneseq
        %v4055 = vshrl.u32 %v4054, 7
        %v4056 = vsub.s32 %v4053, %v4055
        %v4057 = vrot.slane %v4050, %v4056
        %4058 = vrot.lane.b32.xlu0 %v4057, 88
        %v4059 = vpop.permute.xlu0 %4058
        %vm4061 = vcmp.ge.s32.totalorder %v719, 88
        %vm4062 = vcmp.lt.s32.totalorder %v719, 108
        %vm4063 = vmand %vm4061, %vm4062
        %4064 = vst.msk [vmem:[#allocation5 + $0x4] sm:$0x1] %vm4063, %v4059
        %v4065 = vld [vmem:[%s3900 + $0x7] sm:$0x1]
        %v4068 = vunpack.c.l.s4 1966171168
        %v4069 = vunpack.c.0.s8 %v4068
        %v4070 = vlaneseq
        %v4071 = vshrl.u32 %v4070, 7
        %v4072 = vsub.s32 %v4069, %v4071
        %v4073 = vrot.slane %v4065, %v4072
        %v4075 = vunpack.c.l.s4 1966171168
        %v4076 = vunpack.c.0.s8 %v4075
        %v4077 = vlaneseq
        %v4078 = vshrl.u32 %v4077, 7
        %v4079 = vsub.s32 %v4076, %v4078
        %v4080 = vrot.slane %v4073, %v4079
        %4081 = vrot.lane.b32.xlu0 %v4080, 108
        %v4082 = vpop.permute.xlu0 %4081
        %vm4084 = vcmp.ge.s32.totalorder %v719, 108
        %vm4085 = vcmp.lt.s32.totalorder %v719, 128
        %vm4086 = vmand %vm4084, %vm4085
        %4087 = vst.msk [vmem:[#allocation5 + $0x4] sm:$0x1] %vm4086, %v4082
        %s4088 = scalar_lea.vmem [#allocation4], 32
        %v4089 = vld [vmem:[%s4088] sm:$0x1]
        %4090 = vst.msk [vmem:[#allocation5 + $0x5] sm:$0x1] %vm3358, %v4089
        %v4091 = vld [vmem:[%s4088 + $0x1] sm:$0x1]
        %v4094 = vunpack.c.l.s4 1966171168
        %v4095 = vunpack.c.0.s8 %v4094
        %v4096 = vlaneseq
        %v4097 = vshrl.u32 %v4096, 7
        %v4098 = vsub.s32 %v4095, %v4097
        %v4099 = vrot.slane %v4091, %v4098
        %v4101 = vunpack.c.l.s4 1966171168
        %v4102 = vunpack.c.0.s8 %v4101
        %v4103 = vlaneseq
        %v4104 = vshrl.u32 %v4103, 7
        %v4105 = vsub.s32 %v4102, %v4104
        %v4106 = vrot.slane %v4099, %v4105
        %4107 = vrot.lane.b32.xlu0 %v4106, 20
        %v4108 = vpop.permute.xlu0 %4107
        %4110 = vst.msk [vmem:[#allocation5 + $0x5] sm:$0x1] %vm3381, %v4108
        %v4111 = vld [vmem:[%s4088 + $0x2] sm:$0x1]
        %v4114 = vunpack.c.l.s4 1966171168
        %v4115 = vunpack.c.0.s8 %v4114
        %v4116 = vlaneseq
        %v4117 = vshrl.u32 %v4116, 7
        %v4118 = vsub.s32 %v4115, %v4117
        %v4119 = vrot.slane %v4111, %v4118
        %v4121 = vunpack.c.l.s4 1966171168
        %v4122 = vunpack.c.0.s8 %v4121
        %v4123 = vlaneseq
        %v4124 = vshrl.u32 %v4123, 7
        %v4125 = vsub.s32 %v4122, %v4124
        %v4126 = vrot.slane %v4119, %v4125
        %4127 = vrot.lane.b32.xlu0 %v4126, 40
        %v4128 = vpop.permute.xlu0 %4127
        %4130 = vst.msk [vmem:[#allocation5 + $0x5] sm:$0x1] %vm3404, %v4128
        %v4131 = vld [vmem:[%s4088 + $0x3] sm:$0x1]
        %v4134 = vunpack.c.l.s4 1966171168
        %v4135 = vunpack.c.0.s8 %v4134
        %v4136 = vlaneseq
        %v4137 = vshrl.u32 %v4136, 7
        %v4138 = vsub.s32 %v4135, %v4137
        %v4139 = vrot.slane %v4131, %v4138
        %v4141 = vunpack.c.l.s4 1966171168
        %v4142 = vunpack.c.0.s8 %v4141
        %v4143 = vlaneseq
        %v4144 = vshrl.u32 %v4143, 7
        %v4145 = vsub.s32 %v4142, %v4144
        %v4146 = vrot.slane %v4139, %v4145
        %4147 = vrot.lane.b32.xlu0 %v4146, 60
        %v4148 = vpop.permute.xlu0 %4147
        %4150 = vst.msk [vmem:[#allocation5 + $0x5] sm:$0x1] %vm3427, %v4148
        %v4151 = vld [vmem:[%s4088 + $0x4] sm:$0x1]
        %v4154 = vunpack.c.l.s4 1966171168
        %v4155 = vunpack.c.0.s8 %v4154
        %v4156 = vlaneseq
        %v4157 = vshrl.u32 %v4156, 7
        %v4158 = vsub.s32 %v4155, %v4157
        %v4159 = vrot.slane %v4151, %v4158
        %v4161 = vunpack.c.l.s4 1966171168
        %v4162 = vunpack.c.0.s8 %v4161
        %v4163 = vlaneseq
        %v4164 = vshrl.u32 %v4163, 7
        %v4165 = vsub.s32 %v4162, %v4164
        %v4166 = vrot.slane %v4159, %v4165
        %4167 = vrot.lane.b32.xlu0 %v4166, 80
        %v4168 = vpop.permute.xlu0 %4167
        %4170 = vst.msk [vmem:[#allocation5 + $0x5] sm:$0x1] %vm3450, %v4168
        %v4171 = vld [vmem:[%s4088 + $0x5] sm:$0x1]
        %v4174 = vunpack.c.l.s4 1966171168
        %v4175 = vunpack.c.0.s8 %v4174
        %v4176 = vlaneseq
        %v4177 = vshrl.u32 %v4176, 7
        %v4178 = vsub.s32 %v4175, %v4177
        %v4179 = vrot.slane %v4171, %v4178
        %v4181 = vunpack.c.l.s4 1966171168
        %v4182 = vunpack.c.0.s8 %v4181
        %v4183 = vlaneseq
        %v4184 = vshrl.u32 %v4183, 7
        %v4185 = vsub.s32 %v4182, %v4184
        %v4186 = vrot.slane %v4179, %v4185
        %4187 = vrot.lane.b32.xlu0 %v4186, 100
        %v4188 = vpop.permute.xlu0 %4187
        %4190 = vst.msk [vmem:[#allocation5 + $0x5] sm:$0x1] %vm3473, %v4188
        %v4191 = vld [vmem:[%s4088 + $0x6] sm:$0x1]
        %v4194 = vunpack.c.l.s4 1966171168
        %v4195 = vunpack.c.0.s8 %v4194
        %v4196 = vlaneseq
        %v4197 = vshrl.u32 %v4196, 7
        %v4198 = vsub.s32 %v4195, %v4197
        %v4199 = vrot.slane %v4191, %v4198
        %v4201 = vunpack.c.l.s4 1966171168
        %v4202 = vunpack.c.0.s8 %v4201
        %v4203 = vlaneseq
        %v4204 = vshrl.u32 %v4203, 7
        %v4205 = vsub.s32 %v4202, %v4204
        %v4206 = vrot.slane %v4199, %v4205
        %4207 = vrot.lane.b32.xlu0 %v4206, 120
        %v4208 = vpop.permute.xlu0 %4207
        %v4209 = vrot.slane %v4208, 7
        %v4210 = vsel %vm3494, %v4209, %v4208
        %4212 = vst.msk [vmem:[#allocation5 + $0x5] sm:$0x3] %vm3499, %v4210
        %v4213 = vld [vmem:[%s4088 + $0x7] sm:$0x1]
        %v4216 = vunpack.c.l.s4 1966171168
        %v4217 = vunpack.c.0.s8 %v4216
        %v4218 = vlaneseq
        %v4219 = vshrl.u32 %v4218, 7
        %v4220 = vsub.s32 %v4217, %v4219
        %v4221 = vrot.slane %v4213, %v4220
        %v4223 = vunpack.c.l.s4 1966171168
        %v4224 = vunpack.c.0.s8 %v4223
        %v4225 = vlaneseq
        %v4226 = vshrl.u32 %v4225, 7
        %v4227 = vsub.s32 %v4224, %v4226
        %v4228 = vrot.slane %v4221, %v4227
        %4229 = vrot.lane.b32.xlu0 %v4228, 12
        %v4230 = vpop.permute.xlu0 %4229
        %4232 = vst.msk [vmem:[#allocation5 + $0x6] sm:$0x1] %vm3522, %v4230
        %s4233 = scalar_lea.vmem [#allocation4], 40
        %v4234 = vld [vmem:[%s4233] sm:$0x1]
        %v4237 = vunpack.c.l.s4 1966171168
        %v4238 = vunpack.c.0.s8 %v4237
        %v4239 = vlaneseq
        %v4240 = vshrl.u32 %v4239, 7
        %v4241 = vsub.s32 %v4238, %v4240
        %v4242 = vrot.slane %v4234, %v4241
        %v4244 = vunpack.c.l.s4 1966171168
        %v4245 = vunpack.c.0.s8 %v4244
        %v4246 = vlaneseq
        %v4247 = vshrl.u32 %v4246, 7
        %v4248 = vsub.s32 %v4245, %v4247
        %v4249 = vrot.slane %v4242, %v4248
        %4250 = vrot.lane.b32.xlu0 %v4249, 32
        %v4251 = vpop.permute.xlu0 %4250
        %4253 = vst.msk [vmem:[#allocation5 + $0x6] sm:$0x1] %vm3546, %v4251
        %v4254 = vld [vmem:[%s4233 + $0x1] sm:$0x1]
        %v4257 = vunpack.c.l.s4 1966171168
        %v4258 = vunpack.c.0.s8 %v4257
        %v4259 = vlaneseq
        %v4260 = vshrl.u32 %v4259, 7
        %v4261 = vsub.s32 %v4258, %v4260
        %v4262 = vrot.slane %v4254, %v4261
        %v4264 = vunpack.c.l.s4 1966171168
        %v4265 = vunpack.c.0.s8 %v4264
        %v4266 = vlaneseq
        %v4267 = vshrl.u32 %v4266, 7
        %v4268 = vsub.s32 %v4265, %v4267
        %v4269 = vrot.slane %v4262, %v4268
        %4270 = vrot.lane.b32.xlu0 %v4269, 52
        %v4271 = vpop.permute.xlu0 %4270
        %4273 = vst.msk [vmem:[#allocation5 + $0x6] sm:$0x1] %vm3569, %v4271
        %v4274 = vld [vmem:[%s4233 + $0x2] sm:$0x1]
        %v4277 = vunpack.c.l.s4 1966171168
        %v4278 = vunpack.c.0.s8 %v4277
        %v4279 = vlaneseq
        %v4280 = vshrl.u32 %v4279, 7
        %v4281 = vsub.s32 %v4278, %v4280
        %v4282 = vrot.slane %v4274, %v4281
        %v4284 = vunpack.c.l.s4 1966171168
        %v4285 = vunpack.c.0.s8 %v4284
        %v4286 = vlaneseq
        %v4287 = vshrl.u32 %v4286, 7
        %v4288 = vsub.s32 %v4285, %v4287
        %v4289 = vrot.slane %v4282, %v4288
        %4290 = vrot.lane.b32.xlu0 %v4289, 72
        %v4291 = vpop.permute.xlu0 %4290
        %4293 = vst.msk [vmem:[#allocation5 + $0x6] sm:$0x1] %vm3592, %v4291
        %v4294 = vld [vmem:[%s4233 + $0x3] sm:$0x1]
        %v4297 = vunpack.c.l.s4 1966171168
        %v4298 = vunpack.c.0.s8 %v4297
        %v4299 = vlaneseq
        %v4300 = vshrl.u32 %v4299, 7
        %v4301 = vsub.s32 %v4298, %v4300
        %v4302 = vrot.slane %v4294, %v4301
        %v4304 = vunpack.c.l.s4 1966171168
        %v4305 = vunpack.c.0.s8 %v4304
        %v4306 = vlaneseq
        %v4307 = vshrl.u32 %v4306, 7
        %v4308 = vsub.s32 %v4305, %v4307
        %v4309 = vrot.slane %v4302, %v4308
        %4310 = vrot.lane.b32.xlu0 %v4309, 92
        %v4311 = vpop.permute.xlu0 %4310
        %4313 = vst.msk [vmem:[#allocation5 + $0x6] sm:$0x1] %vm3615, %v4311
        %v4314 = vld [vmem:[%s4233 + $0x4] sm:$0x1]
        %v4317 = vunpack.c.l.s4 1966171168
        %v4318 = vunpack.c.0.s8 %v4317
        %v4319 = vlaneseq
        %v4320 = vshrl.u32 %v4319, 7
        %v4321 = vsub.s32 %v4318, %v4320
        %v4322 = vrot.slane %v4314, %v4321
        %v4324 = vunpack.c.l.s4 1966171168
        %v4325 = vunpack.c.0.s8 %v4324
        %v4326 = vlaneseq
        %v4327 = vshrl.u32 %v4326, 7
        %v4328 = vsub.s32 %v4325, %v4327
        %v4329 = vrot.slane %v4322, %v4328
        %4330 = vrot.lane.b32.xlu0 %v4329, 112
        %v4331 = vpop.permute.xlu0 %4330
        %v4332 = vrot.slane %v4331, 7
        %v4333 = vsel %vm3636, %v4332, %v4331
        %4335 = vst.msk [vmem:[#allocation5 + $0x6] sm:$0x3] %vm3641, %v4333
        %v4336 = vld [vmem:[%s4233 + $0x5] sm:$0x1]
        %v4339 = vunpack.c.l.s4 1966171168
        %v4340 = vunpack.c.0.s8 %v4339
        %v4341 = vlaneseq
        %v4342 = vshrl.u32 %v4341, 7
        %v4343 = vsub.s32 %v4340, %v4342
        %v4344 = vrot.slane %v4336, %v4343
        %v4346 = vunpack.c.l.s4 1966171168
        %v4347 = vunpack.c.0.s8 %v4346
        %v4348 = vlaneseq
        %v4349 = vshrl.u32 %v4348, 7
        %v4350 = vsub.s32 %v4347, %v4349
        %v4351 = vrot.slane %v4344, %v4350
        %4352 = vrot.lane.b32.xlu0 %v4351, 4
        %v4353 = vpop.permute.xlu0 %4352
        %4355 = vst.msk [vmem:[#allocation5 + $0x7] sm:$0x1] %vm3664, %v4353
        %v4356 = vld [vmem:[%s4233 + $0x6] sm:$0x1]
        %v4359 = vunpack.c.l.s4 1966171168
        %v4360 = vunpack.c.0.s8 %v4359
        %v4361 = vlaneseq
        %v4362 = vshrl.u32 %v4361, 7
        %v4363 = vsub.s32 %v4360, %v4362
        %v4364 = vrot.slane %v4356, %v4363
        %v4366 = vunpack.c.l.s4 1966171168
        %v4367 = vunpack.c.0.s8 %v4366
        %v4368 = vlaneseq
        %v4369 = vshrl.u32 %v4368, 7
        %v4370 = vsub.s32 %v4367, %v4369
        %v4371 = vrot.slane %v4364, %v4370
        %4372 = vrot.lane.b32.xlu0 %v4371, 24
        %v4373 = vpop.permute.xlu0 %4372
        %4375 = vst.msk [vmem:[#allocation5 + $0x7] sm:$0x1] %vm3687, %v4373
        %v4376 = vld [vmem:[%s4233 + $0x7] sm:$0x1]
        %v4379 = vunpack.c.l.s4 1966171168
        %v4380 = vunpack.c.0.s8 %v4379
        %v4381 = vlaneseq
        %v4382 = vshrl.u32 %v4381, 7
        %v4383 = vsub.s32 %v4380, %v4382
        %v4384 = vrot.slane %v4376, %v4383
        %v4386 = vunpack.c.l.s4 1966171168
        %v4387 = vunpack.c.0.s8 %v4386
        %v4388 = vlaneseq
        %v4389 = vshrl.u32 %v4388, 7
        %v4390 = vsub.s32 %v4387, %v4389
        %v4391 = vrot.slane %v4384, %v4390
        %4392 = vrot.lane.b32.xlu0 %v4391, 44
        %v4393 = vpop.permute.xlu0 %4392
        %4395 = vst.msk [vmem:[#allocation5 + $0x7] sm:$0x1] %vm3710, %v4393
        %s4396 = scalar_lea.vmem [#allocation4], 48
        %v4397 = vld [vmem:[%s4396] sm:$0x1]
        %v4400 = vunpack.c.l.s4 1966171168
        %v4401 = vunpack.c.0.s8 %v4400
        %v4402 = vlaneseq
        %v4403 = vshrl.u32 %v4402, 7
        %v4404 = vsub.s32 %v4401, %v4403
        %v4405 = vrot.slane %v4397, %v4404
        %v4407 = vunpack.c.l.s4 1966171168
        %v4408 = vunpack.c.0.s8 %v4407
        %v4409 = vlaneseq
        %v4410 = vshrl.u32 %v4409, 7
        %v4411 = vsub.s32 %v4408, %v4410
        %v4412 = vrot.slane %v4405, %v4411
        %4413 = vrot.lane.b32.xlu0 %v4412, 64
        %v4414 = vpop.permute.xlu0 %4413
        %4416 = vst.msk [vmem:[#allocation5 + $0x7] sm:$0x1] %vm3734, %v4414
        %v4417 = vld [vmem:[%s4396 + $0x1] sm:$0x1]
        %v4420 = vunpack.c.l.s4 1966171168
        %v4421 = vunpack.c.0.s8 %v4420
        %v4422 = vlaneseq
        %v4423 = vshrl.u32 %v4422, 7
        %v4424 = vsub.s32 %v4421, %v4423
        %v4425 = vrot.slane %v4417, %v4424
        %v4427 = vunpack.c.l.s4 1966171168
        %v4428 = vunpack.c.0.s8 %v4427
        %v4429 = vlaneseq
        %v4430 = vshrl.u32 %v4429, 7
        %v4431 = vsub.s32 %v4428, %v4430
        %v4432 = vrot.slane %v4425, %v4431
        %4433 = vrot.lane.b32.xlu0 %v4432, 84
        %v4434 = vpop.permute.xlu0 %4433
        %4436 = vst.msk [vmem:[#allocation5 + $0x7] sm:$0x1] %vm3757, %v4434
        %v4437 = vld [vmem:[%s4396 + $0x2] sm:$0x1]
        %v4440 = vunpack.c.l.s4 1966171168
        %v4441 = vunpack.c.0.s8 %v4440
        %v4442 = vlaneseq
        %v4443 = vshrl.u32 %v4442, 7
        %v4444 = vsub.s32 %v4441, %v4443
        %v4445 = vrot.slane %v4437, %v4444
        %v4447 = vunpack.c.l.s4 1966171168
        %v4448 = vunpack.c.0.s8 %v4447
        %v4449 = vlaneseq
        %v4450 = vshrl.u32 %v4449, 7
        %v4451 = vsub.s32 %v4448, %v4450
        %v4452 = vrot.slane %v4445, %v4451
        %4453 = vrot.lane.b32.xlu0 %v4452, 104
        %v4454 = vpop.permute.xlu0 %4453
        %4456 = vst.msk [vmem:[#allocation5 + $0x7] sm:$0x1] %vm3780, %v4454
        %v4457 = vld [vmem:[%s4396 + $0x3] sm:$0x1]
        %v4460 = vunpack.c.l.s4 1966171168
        %v4461 = vunpack.c.0.s8 %v4460
        %v4462 = vlaneseq
        %v4463 = vshrl.u32 %v4462, 7
        %v4464 = vsub.s32 %v4461, %v4463
        %v4465 = vrot.slane %v4457, %v4464
        %v4467 = vunpack.c.l.s4 1966171168
        %v4468 = vunpack.c.0.s8 %v4467
        %v4469 = vlaneseq
        %v4470 = vshrl.u32 %v4469, 7
        %v4471 = vsub.s32 %v4468, %v4470
        %v4472 = vrot.slane %v4465, %v4471
        %4473 = vrot.lane.b32.xlu0 %v4472, 124
        %v4474 = vpop.permute.xlu0 %4473
        %v4475 = vrot.slane %v4474, 7
        %v4476 = vsel %vm3801, %v4475, %v4474
        %4478 = vst.msk [vmem:[#allocation5 + $0x7] sm:$0x3] %vm3806, %v4476
        %v4479 = vld [vmem:[%s4396 + $0x4] sm:$0x1]
        %v4482 = vunpack.c.l.s4 1966171168
        %v4483 = vunpack.c.0.s8 %v4482
        %v4484 = vlaneseq
        %v4485 = vshrl.u32 %v4484, 7
        %v4486 = vsub.s32 %v4483, %v4485
        %v4487 = vrot.slane %v4479, %v4486
        %v4489 = vunpack.c.l.s4 1966171168
        %v4490 = vunpack.c.0.s8 %v4489
        %v4491 = vlaneseq
        %v4492 = vshrl.u32 %v4491, 7
        %v4493 = vsub.s32 %v4490, %v4492
        %v4494 = vrot.slane %v4487, %v4493
        %4495 = vrot.lane.b32.xlu0 %v4494, 16
        %v4496 = vpop.permute.xlu0 %4495
        %4498 = vst.msk [vmem:[#allocation5 + $0x8] sm:$0x1] %vm3829, %v4496
        %v4499 = vld [vmem:[%s4396 + $0x5] sm:$0x1]
        %v4502 = vunpack.c.l.s4 1966171168
        %v4503 = vunpack.c.0.s8 %v4502
        %v4504 = vlaneseq
        %v4505 = vshrl.u32 %v4504, 7
        %v4506 = vsub.s32 %v4503, %v4505
        %v4507 = vrot.slane %v4499, %v4506
        %v4509 = vunpack.c.l.s4 1966171168
        %v4510 = vunpack.c.0.s8 %v4509
        %v4511 = vlaneseq
        %v4512 = vshrl.u32 %v4511, 7
        %v4513 = vsub.s32 %v4510, %v4512
        %v4514 = vrot.slane %v4507, %v4513
        %4515 = vrot.lane.b32.xlu0 %v4514, 36
        %v4516 = vpop.permute.xlu0 %4515
        %4518 = vst.msk [vmem:[#allocation5 + $0x8] sm:$0x1] %vm3852, %v4516
        %v4519 = vld [vmem:[%s4396 + $0x6] sm:$0x1]
        %v4522 = vunpack.c.l.s4 1966171168
        %v4523 = vunpack.c.0.s8 %v4522
        %v4524 = vlaneseq
        %v4525 = vshrl.u32 %v4524, 7
        %v4526 = vsub.s32 %v4523, %v4525
        %v4527 = vrot.slane %v4519, %v4526
        %v4529 = vunpack.c.l.s4 1966171168
        %v4530 = vunpack.c.0.s8 %v4529
        %v4531 = vlaneseq
        %v4532 = vshrl.u32 %v4531, 7
        %v4533 = vsub.s32 %v4530, %v4532
        %v4534 = vrot.slane %v4527, %v4533
        %4535 = vrot.lane.b32.xlu0 %v4534, 56
        %v4536 = vpop.permute.xlu0 %4535
        %4538 = vst.msk [vmem:[#allocation5 + $0x8] sm:$0x1] %vm3875, %v4536
        %v4539 = vld [vmem:[%s4396 + $0x7] sm:$0x1]
        %v4542 = vunpack.c.l.s4 1966171168
        %v4543 = vunpack.c.0.s8 %v4542
        %v4544 = vlaneseq
        %v4545 = vshrl.u32 %v4544, 7
        %v4546 = vsub.s32 %v4543, %v4545
        %v4547 = vrot.slane %v4539, %v4546
        %v4549 = vunpack.c.l.s4 1966171168
        %v4550 = vunpack.c.0.s8 %v4549
        %v4551 = vlaneseq
        %v4552 = vshrl.u32 %v4551, 7
        %v4553 = vsub.s32 %v4550, %v4552
        %v4554 = vrot.slane %v4547, %v4553
        %4555 = vrot.lane.b32.xlu0 %v4554, 76
        %v4556 = vpop.permute.xlu0 %4555
        %4558 = vst.msk [vmem:[#allocation5 + $0x8] sm:$0x1] %vm3898, %v4556
        %s4559 = scalar_lea.vmem [#allocation4], 56
        %v4560 = vld [vmem:[%s4559] sm:$0x1]
        %v4563 = vunpack.c.l.s4 1966171168
        %v4564 = vunpack.c.0.s8 %v4563
        %v4565 = vlaneseq
        %v4566 = vshrl.u32 %v4565, 7
        %v4567 = vsub.s32 %v4564, %v4566
        %v4568 = vrot.slane %v4560, %v4567
        %v4570 = vunpack.c.l.s4 1966171168
        %v4571 = vunpack.c.0.s8 %v4570
        %v4572 = vlaneseq
        %v4573 = vshrl.u32 %v4572, 7
        %v4574 = vsub.s32 %v4571, %v4573
        %v4575 = vrot.slane %v4568, %v4574
        %4576 = vrot.lane.b32.xlu0 %v4575, 96
        %v4577 = vpop.permute.xlu0 %4576
        %4579 = vst.msk [vmem:[#allocation5 + $0x8] sm:$0x1] %vm3922, %v4577
        %v4580 = vld [vmem:[%s4559 + $0x1] sm:$0x1]
        %v4583 = vunpack.c.l.s4 1966171168
        %v4584 = vunpack.c.0.s8 %v4583
        %v4585 = vlaneseq
        %v4586 = vshrl.u32 %v4585, 7
        %v4587 = vsub.s32 %v4584, %v4586
        %v4588 = vrot.slane %v4580, %v4587
        %v4590 = vunpack.c.l.s4 1966171168
        %v4591 = vunpack.c.0.s8 %v4590
        %v4592 = vlaneseq
        %v4593 = vshrl.u32 %v4592, 7
        %v4594 = vsub.s32 %v4591, %v4593
        %v4595 = vrot.slane %v4588, %v4594
        %4596 = vrot.lane.b32.xlu0 %v4595, 116
        %v4597 = vpop.permute.xlu0 %4596
        %v4598 = vrot.slane %v4597, 7
        %v4599 = vsel %vm3943, %v4598, %v4597
        %4601 = vst.msk [vmem:[#allocation5 + $0x8] sm:$0x3] %vm3948, %v4599
        %v4602 = vld [vmem:[%s4559 + $0x2] sm:$0x1]
        %v4605 = vunpack.c.l.s4 1966171168
        %v4606 = vunpack.c.0.s8 %v4605
        %v4607 = vlaneseq
        %v4608 = vshrl.u32 %v4607, 7
        %v4609 = vsub.s32 %v4606, %v4608
        %v4610 = vrot.slane %v4602, %v4609
        %v4612 = vunpack.c.l.s4 1966171168
        %v4613 = vunpack.c.0.s8 %v4612
        %v4614 = vlaneseq
        %v4615 = vshrl.u32 %v4614, 7
        %v4616 = vsub.s32 %v4613, %v4615
        %v4617 = vrot.slane %v4610, %v4616
        %4618 = vrot.lane.b32.xlu0 %v4617, 8
        %v4619 = vpop.permute.xlu0 %4618
        %4621 = vst.msk [vmem:[#allocation5 + $0x9] sm:$0x1] %vm3971, %v4619
        %v4622 = vld [vmem:[%s4559 + $0x3] sm:$0x1]
        %v4625 = vunpack.c.l.s4 1966171168
        %v4626 = vunpack.c.0.s8 %v4625
        %v4627 = vlaneseq
        %v4628 = vshrl.u32 %v4627, 7
        %v4629 = vsub.s32 %v4626, %v4628
        %v4630 = vrot.slane %v4622, %v4629
        %v4632 = vunpack.c.l.s4 1966171168
        %v4633 = vunpack.c.0.s8 %v4632
        %v4634 = vlaneseq
        %v4635 = vshrl.u32 %v4634, 7
        %v4636 = vsub.s32 %v4633, %v4635
        %v4637 = vrot.slane %v4630, %v4636
        %4638 = vrot.lane.b32.xlu0 %v4637, 28
        %v4639 = vpop.permute.xlu0 %4638
        %4641 = vst.msk [vmem:[#allocation5 + $0x9] sm:$0x1] %vm3994, %v4639
        %v4642 = vld [vmem:[%s4559 + $0x4] sm:$0x1]
        %v4645 = vunpack.c.l.s4 1966171168
        %v4646 = vunpack.c.0.s8 %v4645
        %v4647 = vlaneseq
        %v4648 = vshrl.u32 %v4647, 7
        %v4649 = vsub.s32 %v4646, %v4648
        %v4650 = vrot.slane %v4642, %v4649
        %v4652 = vunpack.c.l.s4 1966171168
        %v4653 = vunpack.c.0.s8 %v4652
        %v4654 = vlaneseq
        %v4655 = vshrl.u32 %v4654, 7
        %v4656 = vsub.s32 %v4653, %v4655
        %v4657 = vrot.slane %v4650, %v4656
        %4658 = vrot.lane.b32.xlu0 %v4657, 48
        %v4659 = vpop.permute.xlu0 %4658
        %4661 = vst.msk [vmem:[#allocation5 + $0x9] sm:$0x1] %vm4017, %v4659
        %v4662 = vld [vmem:[%s4559 + $0x5] sm:$0x1]
        %v4665 = vunpack.c.l.s4 1966171168
        %v4666 = vunpack.c.0.s8 %v4665
        %v4667 = vlaneseq
        %v4668 = vshrl.u32 %v4667, 7
        %v4669 = vsub.s32 %v4666, %v4668
        %v4670 = vrot.slane %v4662, %v4669
        %v4672 = vunpack.c.l.s4 1966171168
        %v4673 = vunpack.c.0.s8 %v4672
        %v4674 = vlaneseq
        %v4675 = vshrl.u32 %v4674, 7
        %v4676 = vsub.s32 %v4673, %v4675
        %v4677 = vrot.slane %v4670, %v4676
        %4678 = vrot.lane.b32.xlu0 %v4677, 68
        %v4679 = vpop.permute.xlu0 %4678
        %4681 = vst.msk [vmem:[#allocation5 + $0x9] sm:$0x1] %vm4040, %v4679
        %v4682 = vld [vmem:[%s4559 + $0x6] sm:$0x1]
        %v4685 = vunpack.c.l.s4 1966171168
        %v4686 = vunpack.c.0.s8 %v4685
        %v4687 = vlaneseq
        %v4688 = vshrl.u32 %v4687, 7
        %v4689 = vsub.s32 %v4686, %v4688
        %v4690 = vrot.slane %v4682, %v4689
        %v4692 = vunpack.c.l.s4 1966171168
        %v4693 = vunpack.c.0.s8 %v4692
        %v4694 = vlaneseq
        %v4695 = vshrl.u32 %v4694, 7
        %v4696 = vsub.s32 %v4693, %v4695
        %v4697 = vrot.slane %v4690, %v4696
        %4698 = vrot.lane.b32.xlu0 %v4697, 88
        %v4699 = vpop.permute.xlu0 %4698
        %4701 = vst.msk [vmem:[#allocation5 + $0x9] sm:$0x1] %vm4063, %v4699
        %v4702 = vld [vmem:[%s4559 + $0x7] sm:$0x1]
        %v4705 = vunpack.c.l.s4 1966171168
        %v4706 = vunpack.c.0.s8 %v4705
        %v4707 = vlaneseq
        %v4708 = vshrl.u32 %v4707, 7
        %v4709 = vsub.s32 %v4706, %v4708
        %v4710 = vrot.slane %v4702, %v4709
        %v4712 = vunpack.c.l.s4 1966171168
        %v4713 = vunpack.c.0.s8 %v4712
        %v4714 = vlaneseq
        %v4715 = vshrl.u32 %v4714, 7
        %v4716 = vsub.s32 %v4713, %v4715
        %v4717 = vrot.slane %v4710, %v4716
        %4718 = vrot.lane.b32.xlu0 %v4717, 108
        %v4719 = vpop.permute.xlu0 %4718
        %4721 = vst.msk [vmem:[#allocation5 + $0x9] sm:$0x1] %vm4086, %v4719
        %v4722 = vld [vmem:[#allocation5] sm:$0xff]
        %v4723 = vld [vmem:[%s180] sm:$0xff]
        %v4724 = vld [vmem:[%s180 + $0x8] sm:$0xff]
        %v4725 = vld [vmem:[%s180 + $0x10] sm:$0xff]
        %v4726 = vld [vmem:[%s180 + $0x18] sm:$0xff]
        %v4727 = vld [vmem:[%s180 + $0x20] sm:$0xff]
        %v4728 = vld [vmem:[%s180 + $0x28] sm:$0xff]
        %v4729 = vld [vmem:[%s180 + $0x30] sm:$0xff]
        %v4730 = vld [vmem:[%s180 + $0x38] sm:$0xff]
        %v4732 = vlaneseq
        %v4733 = vshrl.u32 %v4732, 7
        %v4734 = vsub.s32 0, %v4733
        %v4735 = vrot.slane %v4722, %v4734
        %v4736 = vlaneseq
        %v4737 = vshrl.u32 %v4736, 7
        %v4738 = vsub.s32 1, %v4737
        %v4739 = vrot.slane %v4722, %v4738
        %v4740 = vlaneseq
        %v4741 = vshrl.u32 %v4740, 7
        %v4742 = vsub.s32 2, %v4741
        %v4743 = vrot.slane %v4722, %v4742
        %v4744 = vlaneseq
        %v4745 = vshrl.u32 %v4744, 7
        %v4746 = vsub.s32 3, %v4745
        %v4747 = vrot.slane %v4722, %v4746
        %v4748 = vlaneseq
        %v4749 = vshrl.u32 %v4748, 7
        %v4750 = vsub.s32 4, %v4749
        %v4751 = vrot.slane %v4722, %v4750
        %v4752 = vlaneseq
        %v4753 = vshrl.u32 %v4752, 7
        %v4754 = vsub.s32 5, %v4753
        %v4755 = vrot.slane %v4722, %v4754
        %v4756 = vlaneseq
        %v4757 = vshrl.u32 %v4756, 7
        %v4758 = vsub.s32 6, %v4757
        %v4759 = vrot.slane %v4722, %v4758
        %v4760 = vlaneseq
        %v4761 = vshrl.u32 %v4760, 7
        %v4762 = vsub.s32 7, %v4761
        %v4763 = vrot.slane %v4722, %v4762
        %v4772 = vmul.f32 %v4723, %v4735
        %v4773 = vmul.f32 %v4724, %v4739
        %v4774 = vmul.f32 %v4725, %v4743
        %v4775 = vmul.f32 %v4726, %v4747
        %v4776 = vmul.f32 %v4727, %v4751
        %v4777 = vmul.f32 %v4728, %v4755
        %v4778 = vmul.f32 %v4729, %v4759
        %v4779 = vmul.f32 %v4730, %v4763
        %4780 = vst [vmem:[%s185] sm:$0xff] %v4772
        %4781 = vst [vmem:[%s185 + $0x8] sm:$0xff] %v4773
        %4782 = vst [vmem:[%s185 + $0x10] sm:$0xff] %v4774
        %4783 = vst [vmem:[%s185 + $0x18] sm:$0xff] %v4775
        %4784 = vst [vmem:[%s185 + $0x20] sm:$0xff] %v4776
        %4785 = vst [vmem:[%s185 + $0x28] sm:$0xff] %v4777
        %4786 = vst [vmem:[%s185 + $0x30] sm:$0xff] %v4778
        %4787 = vst [vmem:[%s185 + $0x38] sm:$0xff] %v4779
        %v4788 = vld [vmem:[%s180 + $0x50] sm:$0xf]
        %v4789 = vld [vmem:[%s180 + $0x58] sm:$0xf]
        %v4790 = vld [vmem:[%s180 + $0x60] sm:$0xf]
        %v4791 = vld [vmem:[%s180 + $0x68] sm:$0xf]
        %v4792 = vld [vmem:[%s180 + $0x70] sm:$0xf]
        %v4793 = vld [vmem:[%s180 + $0x78] sm:$0xf]
        %v4794 = vld [vmem:[%s180 + $0x80] sm:$0xf]
        %v4795 = vld [vmem:[%s180 + $0x88] sm:$0xf]
        %v4796 = vmul.f32 %v4788, %v4735
        %v4797 = vmul.f32 %v4789, %v4739
        %v4798 = vmul.f32 %v4790, %v4743
        %v4799 = vmul.f32 %v4791, %v4747
        %v4800 = vmul.f32 %v4792, %v4751
        %v4801 = vmul.f32 %v4793, %v4755
        %v4802 = vmul.f32 %v4794, %v4759
        %v4803 = vmul.f32 %v4795, %v4763
        %4804 = vst [vmem:[%s185 + $0x50] sm:$0xf] %v4796
        %4805 = vst [vmem:[%s185 + $0x58] sm:$0xf] %v4797
        %4806 = vst [vmem:[%s185 + $0x60] sm:$0xf] %v4798
        %4807 = vst [vmem:[%s185 + $0x68] sm:$0xf] %v4799
        %4808 = vst [vmem:[%s185 + $0x70] sm:$0xf] %v4800
        %4809 = vst [vmem:[%s185 + $0x78] sm:$0xf] %v4801
        %4810 = vst [vmem:[%s185 + $0x80] sm:$0xf] %v4802
        %4811 = vst [vmem:[%s185 + $0x88] sm:$0xf] %v4803
        %v4812 = vld [vmem:[#allocation5 + $0x8] sm:$0x3]
        %v4813 = vld [vmem:[%s180 + $0x40] sm:$0xff]
        %v4814 = vld [vmem:[%s180 + $0x48] sm:$0xff]
        %v4816 = vlaneseq
        %v4817 = vshrl.u32 %v4816, 7
        %v4818 = vsub.s32 0, %v4817
        %v4819 = vrot.slane %v4812, %v4818
        %v4820 = vlaneseq
        %v4821 = vshrl.u32 %v4820, 7
        %v4822 = vsub.s32 1, %v4821
        %v4823 = vrot.slane %v4812, %v4822
        %v4826 = vmul.f32 %v4813, %v4819
        %v4827 = vmul.f32 %v4814, %v4823
        %4828 = vst [vmem:[%s185 + $0x40] sm:$0xff] %v4826
        %4829 = vst [vmem:[%s185 + $0x48] sm:$0xff] %v4827
        %v4830 = vld [vmem:[%s180 + $0x90] sm:$0xf]
        %v4831 = vld [vmem:[%s180 + $0x98] sm:$0xf]
        %v4832 = vmul.f32 %v4830, %v4819
        %v4833 = vmul.f32 %v4831, %v4823
        %4834 = vst [vmem:[%s185 + $0x90] sm:$0xf] %v4832
        %4835 = vst [vmem:[%s185 + $0x98] sm:$0xf] %v4833
        %p4836 = scmp.lt.s32.totalorder %s16, 1
        %s4837 = scalar_select %p4836, %s16, 1
        %s4838 = smul.addr %s4837, 20
        %s4839 = smul.addr %s4838, 8
        %s4840 = scalar_lea.vmem %s3, %s4839
        // Predicated region
        $region58: #{tpu_custom_call.1} parent=31 // pred_check
          %p4841 = pneg %p102
        $region59: #{tpu_custom_call.1} parent=31 // pred_check_branch
          %4843 = sbr.rel (%p4841) target = $region61
        $region60: #{tpu_custom_call.1} parent=31 // pred_region
          _
        $region61: #{tpu_custom_call.1} parent=31 // pred_fallthru
          _
      $region32: #{tpu_custom_call.1} parent=5 // pred_fallthru
        _
      %p4844 = scmp.le.s32.totalorder 2, %s11
      // Predicated region
      $region62: #{tpu_custom_call.1} parent=5 // pred_check
        %p4845 = pneg %p4844
      $region63: #{tpu_custom_call.1} parent=5 // pred_check_branch
        %4847 = sbr.rel (%p4845) target = $region65
      $region64: #{tpu_custom_call.1} parent=5 // pred_region
        %s4848 = ssub.s32 %s11, 2
        // Predicated region
        $region66: #{tpu_custom_call.1} parent=64 // pred_check
          %p4849 = pneg %p108
        $region67: #{tpu_custom_call.1} parent=64 // pred_check_branch
          %4851 = sbr.rel (%p4849) target = $region69
        $region68: #{tpu_custom_call.1} parent=64 // pred_region
          %p4852 = scmp.lt.s32.totalorder %s17, 1
          %s4853 = scalar_select %p4852, %s17, 1
          %s4854 = smul.addr %s4853, 20
          %s4855 = smul.addr %s4854, 8
          %s4856 = scalar_lea.vmem %s3, %s4855
        $region69: #{tpu_custom_call.1} parent=64 // pred_fallthru
          _
      $region65: #{tpu_custom_call.1} parent=5 // pred_fallthru
        _
    $region6: #{tpu_custom_call.1} parent=1 // loop_footer
      %s15 = sadd.s32 1, %s11
    $region7: #{tpu_custom_call.1} parent=1 // loop_footer_branch
      %10 = sbr.rel target = $region3
    $region8: #{tpu_custom_call.1} parent=1 // loop_exit
      _
    %4857 = vsyncpa [#allocation8], 1
    %s4858 = scalar_lea.sflag [#allocation8], 1
    %4859 = vsyncpa %s4858, 1

</llo_original>
